<compile_context>
chip_gen: v6e
topology: v6e:2x2x1
jax: 0.10.0
libtpu: 0.0.40
codegen_flags: <defaults>
</compile_context>

<pallas_src>
import jax
import jax.numpy as jnp
from jax.experimental import pallas as pl
from jax.experimental.pallas import tpu as pltpu

LANE = 128     # lane-dense channel / K padding
SUB = 16       # bf16 sublane tile -> row blocks are multiples of 16
MAX_TM = 512   # max row tile for the matmul kernels
EPS = 1e-5


def _round_up(x, m):
    return ((x + m - 1) // m) * m


def _vmem_budget_bytes():
    """Generation-aware scoped-VMEM budget (~32 MiB on v7x, 48 MiB on v5e/v6e)."""
    cap = 128 * 1024 * 1024
    try:
        cap = int(getattr(pltpu.get_tpu_info(), "vmem_capacity_bytes", cap))
    except Exception:
        pass
    return max(8 * 1024 * 1024, min(48 * 1024 * 1024, cap // 2))


# ----------------------------- Pallas kernels ------------------------------ #

def _matmul_stats_kernel(p_ref, w_ref, b_ref, y_ref, s_ref, ss_ref):
    """bf16 Y = [TM,Kp] @ [Kp,Cp] + bias; BN partials accumulated in s/ss.

    Grid = (phase, row_block).  The (1, Cp) stats outputs keep the same block
    index along the last ("arbitrary") axis, so they stay resident in VMEM and
    act as f32 accumulators; they are written back once per phase.
    """
    i = pl.program_id(1)

    @pl.when(i == 0)
    def _():
        s_ref[...] = jnp.zeros_like(s_ref)
        ss_ref[...] = jnp.zeros_like(ss_ref)

    y = jnp.dot(p_ref[...], w_ref[...], preferred_element_type=jnp.float32)
    y = y + b_ref[...]
    s_ref[...] += jnp.sum(y, axis=0, keepdims=True)        # (1, Cp) f32
    ss_ref[...] += jnp.sum(y * y, axis=0, keepdims=True)   # (1, Cp) f32
    y_ref[...] = y.astype(y_ref.dtype)                     # bf16 inter-pass slab


def _matmul_tanh_kernel(p_ref, w_ref, o_ref):
    """Final layer: tanh([TM,Kp] @ [Kp,Cp]) fused, written exactly once."""
    y = jnp.dot(p_ref[...], w_ref[...], preferred_element_type=jnp.float32)
    o_ref[...] = jnp.tanh(y).astype(o_ref.dtype)


def _affine_relu_kernel(y_ref, s_ref, b_ref, o_ref):
    """Fused BatchNorm affine (y*scale + shift) + ReLU on a lane-dense slab."""
    v = y_ref[...].astype(jnp.float32)
    v = v * s_ref[...] + b_ref[...]
    o_ref[...] = jnp.maximum(v, 0.0).astype(o_ref.dtype)


# ------------------------------ Pallas wrappers ----------------------------- #

def matmul_bias_stats(patches, weights, bias, tm, vmem):
    """patches [4,Mp,Kp] bf16, weights [4,Kp,Cp] bf16, bias [1,Cp] f32.

    Returns (Y [4,Mp,Cp] bf16, sum [4,1,Cp] f32, sumsq [4,1,Cp] f32).
    """
    nph, Mp, Kp = patches.shape
    Cp = weights.shape[-1]
    nblk = Mp // tm
    return pl.pallas_call(
        _matmul_stats_kernel,
        out_shape=(
            jax.ShapeDtypeStruct((nph, Mp, Cp), jnp.bfloat16),
            jax.ShapeDtypeStruct((nph, 1, Cp), jnp.float32),
            jax.ShapeDtypeStruct((nph, 1, Cp), jnp.float32),
        ),
        grid=(nph, nblk),
        in_specs=[
            pl.BlockSpec((None, tm, Kp), lambda f, i: (f, i, 0)),
            pl.BlockSpec((None, Kp, Cp), lambda f, i: (f, 0, 0)),
            pl.BlockSpec((1, Cp), lambda f, i: (0, 0)),
        ],
        out_specs=(
            pl.BlockSpec((None, tm, Cp), lambda f, i: (f, i, 0)),
            pl.BlockSpec((None, 1, Cp), lambda f, i: (f, 0, 0)),
            pl.BlockSpec((None, 1, Cp), lambda f, i: (f, 0, 0)),
        ),
        compiler_params=pltpu.CompilerParams(
            dimension_semantics=("parallel", "arbitrary"),
            vmem_limit_bytes=vmem),
    )(patches, weights, bias)


def matmul_tanh(patches, weights, tm, vmem):
    """Fused final layer: f32 tanh(patches @ weights); no bias / stats / epilogue."""
    nph, Mp, Kp = patches.shape
    Cp = weights.shape[-1]
    nblk = Mp // tm
    return pl.pallas_call(
        _matmul_tanh_kernel,
        out_shape=jax.ShapeDtypeStruct((nph, Mp, Cp), jnp.float32),
        grid=(nph, nblk),
        in_specs=[
            pl.BlockSpec((None, tm, Kp), lambda f, i: (f, i, 0)),
            pl.BlockSpec((None, Kp, Cp), lambda f, i: (f, 0, 0)),
        ],
        out_specs=pl.BlockSpec((None, tm, Cp), lambda f, i: (f, i, 0)),
        compiler_params=pltpu.CompilerParams(
            dimension_semantics=("parallel", "parallel"),
            vmem_limit_bytes=vmem),
    )(patches, weights)


def affine_relu(y_flat, scale, shift, ta, vmem):
    """Fused per-channel BN affine + ReLU on a lane-dense bf16 [Mtot, Cp] slab."""
    Mtot, Cp = y_flat.shape
    return pl.pallas_call(
        _affine_relu_kernel,
        out_shape=jax.ShapeDtypeStruct((Mtot, Cp), jnp.bfloat16),
        grid=(Mtot // ta,),
        in_specs=[
            pl.BlockSpec((ta, Cp), lambda i: (i, 0)),
            pl.BlockSpec((1, Cp), lambda i: (0, 0)),
            pl.BlockSpec((1, Cp), lambda i: (0, 0)),
        ],
        out_specs=pl.BlockSpec((ta, Cp), lambda i: (i, 0)),
        compiler_params=pltpu.CompilerParams(
            dimension_semantics=("parallel",), vmem_limit_bytes=vmem),
    )(y_flat, scale, shift)


# ------------------------------- JAX glue ----------------------------------- #

def convtranspose_block(x_nhwc, w, b, gamma, beta, stride, padding, act):
    """One ConvTranspose2d(k=4, s=2) [+ BatchNorm2d(train) + ReLU] or [+ Tanh].

    x_nhwc: (N, H, W, Cin) activation.  w: (Cin, Cout, 4, 4) PyTorch layout.
    Returns the activated output as (N, OH, OW, Cout) NHWC.
    """
    assert stride == 2 and w.shape[2] == 4 and w.shape[3] == 4 and padding in (0, 1)
    N, H, W, Cin = x_nhwc.shape
    Cout = w.shape[1]
    Rh, Rw = H + 1 - padding, W + 1 - padding        # per-phase output grid
    Mph = N * Rh * Rw                                # rows per phase
    Kd = 4 * Cin                                     # 2x2 effective taps
    Kp = _round_up(Kd, LANE)                         # lane-dense K
    Cp = _round_up(max(Cout, LANE), LANE)            # lane-dense channels

    budget = _vmem_budget_bytes()
    tm = min(MAX_TM, _round_up(Mph, SUB))

    def _need(t):  # double-buffered per-step working set of the matmul kernel
        return 2 * (t * Kp * 2 + Kp * Cp * 2 + t * Cp * 2 + 3 * Cp * 4)

    while tm > SUB and _need(tm) > budget:
        tm = _round_up(tm // 2, SUB)
    Mp = _round_up(Mph, tm)

    # ---- sub-pixel (phase) patch matrices: [4, Mp, Kp] bf16, no zeros in Kd ----
    xp = jnp.pad(x_nhwc.astype(jnp.bfloat16), ((0, 0), (1, 1), (1, 1), (0, 0)))
    phase_patches = []
    for ph in (0, 1):
        for pw in (0, 1):
            qh, qw = (ph + padding) // 2, (pw + padding) // 2
            taps = [xp[:, qh + dh:qh + dh + Rh, qw + dw:qw + dw + Rw, :]
                    for dh in (0, 1) for dw in (0, 1)]
            pm = jnp.concatenate(taps, axis=-1).reshape(Mph, Kd)
            phase_patches.append(jnp.pad(pm, ((0, Mp - Mph), (0, Kp - Kd))))
    patches = jnp.stack(phase_patches)                           # (4, Mp, Kp)

    # ---- per-phase weight matrices, padded to (Kp, Cp), bf16 ----
    phase_w = []
    for ph in (0, 1):
        for pw in (0, 1):
            k0h, k0w = (ph + padding) % 2, (pw + padding) % 2
            taps = [w[:, :, k0h + 2 * (1 - dh), k0w + 2 * (1 - dw)]
                    for dh in (0, 1) for dw in (0, 1)]
            phase_w.append(jnp.concatenate(taps, axis=0))        # (Kd, Cout)
    wmat = jnp.stack(phase_w).astype(jnp.bfloat16)               # (4, Kd, Cout)
    wmat = jnp.pad(wmat, ((0, 0), (0, Kp - Kd), (0, Cp - Cout)))

    if act == "tanh":
        # Final layer (bias=False, no BN): fully fused matmul + tanh, one write.
        assert gamma is None and b is None
        y = matmul_tanh(patches, wmat, tm, budget)               # (4, Mp, Cp) f32
        yact = y[:, :Mph, :Cout]
    else:
        if b is None:
            b = jnp.zeros((Cout,), jnp.float32)
        bias_p = jnp.pad(b.astype(jnp.float32), (0, Cp - Cout)).reshape(1, Cp)

        # fused matmul + bias + BN partial statistics (bf16 Y slab, f32 stats)
        y, s_out, ss_out = matmul_bias_stats(patches, wmat, bias_p, tm, budget)

        # BatchNorm2d (training-mode batch stats) -> per-channel affine
        n_pad = 4 * (Mp - Mph)          # zero patch rows each produced `bias`
        count = 4 * Mph                 # = N * OH * OW
        s_tot = jnp.sum(s_out[:, 0, :], axis=0) - n_pad * bias_p[0]
        ss_tot = jnp.sum(ss_out[:, 0, :], axis=0) - n_pad * bias_p[0] * bias_p[0]
        mean = s_tot / count
        var = jnp.maximum(ss_tot / count - mean * mean, 0.0)     # biased variance
        scale = (jnp.pad(gamma.astype(jnp.float32), (0, Cp - Cout))
                 * jax.lax.rsqrt(var + EPS))
        shift = jnp.pad(beta.astype(jnp.float32), (0, Cp - Cout)) - mean * scale

        # mem-bound epilogue: row tile sized from the VMEM budget (bf16 in/out)
        ta = tm
        for k in (4, 2):
            if 8 * k * tm * Cp <= budget:
                ta = k * tm
                break

        yact = affine_relu(y.reshape(4 * Mp, Cp), scale.reshape(1, Cp),
                           shift.reshape(1, Cp), ta, budget)
        yact = yact.reshape(4, Mp, Cp)[:, :Mph, :Cout]

    # ---- pixel-shuffle the 4 phases back into (N, OH, OW, Cout) NHWC ----
    # TODO(synk): phase-major inter-layer layout would remove this transpose.
    yact = yact.reshape(2, 2, N, Rh, Rw, Cout).transpose(2, 3, 0, 4, 1, 5)
    return yact.reshape(N, 2 * Rh, 2 * Rw, Cout)


def init_params(key, z_channels, img_channels, fc):
    chans = [z_channels, fc * 16, fc * 8, fc * 4, fc * 2]
    params = {"blocks": []}
    for i in range(4):
        key, k1, k2, k3 = jax.random.split(key, 4)
        cin, cout = chans[i], chans[i + 1]
        w = 0.02 * jax.random.normal(k1, (cin, cout, 4, 4), jnp.float32)
        b = 0.02 * jax.random.normal(k2, (cout,), jnp.float32)
        gamma = 1.0 + 0.02 * jax.random.normal(k3, (cout,), jnp.float32)
        beta = jnp.zeros((cout,), jnp.float32)
        params["blocks"].append((w, b, gamma, beta))
    key, k = jax.random.split(key)
    params["final_w"] = 0.02 * jax.random.normal(
        k, (fc * 2, img_channels, 4, 4), jnp.float32)    # bias=False in final layer
    return params


@jax.jit
def generator_forward(x, params):
    # Public interface is NCHW (PyTorch); internally NHWC end-to-end.
    x = x.transpose(0, 2, 3, 1)
    strides_pads = [(2, 0), (2, 1), (2, 1), (2, 1)]
    for (w, b, g, be), (s, p) in zip(params["blocks"], strides_pads):
        x = convtranspose_block(x, w, b, g, be, s, p, act="relu")
    x = convtranspose_block(x, params["final_w"], None, None, None, 2, 1, act="tanh")
    return x.transpose(0, 3, 1, 2)


# --------------------------- plain-JAX reference ---------------------------- #

def _ref_forward(x, params, eps=EPS):
    def ct(x, w, b, stride, padding):
        K = w.shape[2]
        kern = jnp.flip(w, (2, 3)).transpose(1, 0, 2, 3)        # (Cout, Cin, K, K)
        y = jax.lax.conv_general_dilated(
            x, kern, window_strides=(1, 1),
            padding=[(K - 1 - padding, K - 1 - padding)] * 2,
            lhs_dilation=(stride, stride),
            dimension_numbers=("NCHW", "OIHW", "NCHW"))
        if b is not None:
            y = y + b[None, :, None, None]
        return y

    sp = [(2, 0), (2, 1), (2, 1), (2, 1)]
    for (w, b, g, be), (s, p) in zip(params["blocks"], sp):
        y = ct(x, w, b, s, p)
        m = jnp.mean(y, axis=(0, 2, 3), keepdims=True)
        v = jnp.var(y, axis=(0, 2, 3), keepdims=True)
        x = jnp.maximum((y - m) * jax.lax.rsqrt(v + eps) * g[None, :, None, None]
                        + be[None, :, None, None], 0.0)
    return jnp.tanh(ct(x, params["final_w"], None, 2, 1))


if __name__ == "__main__":
    key = jax.random.PRNGKey(0)
    kx, kp = jax.random.split(key)
    z_channels, img_channels, feature_channels = 4, 3, 4
    x = jax.random.normal(kx, (2, z_channels, 1, 1), jnp.float32)  # latent (N, Cz, 1, 1)
    params = init_params(kp, z_channels, img_channels, feature_channels)

    y = generator_forward(x, params)
    jax.block_until_ready(y)
    assert y.shape == (2, img_channels, 64, 64), y.shape
    assert bool(jnp.all(jnp.abs(y) <= 1.0 + 1e-6))     # tanh output range

    # numerical sanity check vs. a plain-JAX f32 reference (the Pallas path
    # uses bf16 MXU inputs and a bf16 inter-pass Y slab, hence the loose
    # tolerance on the [-1, 1] tanh output)
    y_ref = _ref_forward(x, params)
    max_err = float(jnp.max(jnp.abs(y - y_ref)))
    mean_err = float(jnp.mean(jnp.abs(y - y_ref)))
    assert max_err < 0.5 and mean_err < 0.05, (max_err, mean_err)

    print("KERNEL_OK")
</pallas_src>

<mosaic_0001>
module attributes {stable_mosaic.version = 11 : i64} {
  func.func @_matmul_stats_kernel(%arg0: i32, %arg1: i32, %arg2: memref<1x16x128xbf16, #tpu.memory_space<vmem>>, %arg3: memref<1x128x128xbf16, #tpu.memory_space<vmem>>, %arg4: memref<1x128xf32, #tpu.memory_space<vmem>>, %arg5: memref<1x16x128xbf16, #tpu.memory_space<vmem>>, %arg6: memref<1x1x128xf32, #tpu.memory_space<vmem>>, %arg7: memref<1x1x128xf32, #tpu.memory_space<vmem>>) attributes {dimension_semantics = [#tpu.dimension_semantics<parallel>, #tpu.dimension_semantics<arbitrary>], iteration_bounds = array<i64: 4, 1>, scalar_prefetch = 0 : i64, scratch_operands = 0 : i64, tpu.core_type = #tpu.core_type<tc>, window_params = [{transform_indices = @transform_0, window_bounds = array<i64: 1, 16, 128>}, {transform_indices = @transform_1, window_bounds = array<i64: 1, 128, 128>}, {pipeline_mode = #tpu.pipeline_mode<synchronous>, transform_indices = @transform_2, window_bounds = array<i64: 1, 128>}, {transform_indices = @transform_3, window_bounds = array<i64: 1, 16, 128>}, {transform_indices = @transform_4, window_bounds = array<i64: 1, 1, 128>}, {transform_indices = @transform_5, window_bounds = array<i64: 1, 1, 128>}]} {
    %c0_i32 = arith.constant 0 : i32
    %0 = arith.cmpi eq, %arg1, %c0_i32 : i32
    %1 = arith.extui %0 : i1 to i32
    %c0_i32_0 = arith.constant 0 : i32
    %2 = arith.cmpi ne, %1, %c0_i32_0 : i32
    scf.if %2 {
      %cst_25 = arith.constant 0.000000e+00 : f32
      %32 = vector.broadcast %cst_25 : f32 to vector<1x128xf32>
      %c0_26 = arith.constant 0 : index
      %c0_27 = arith.constant 0 : index
      %c0_28 = arith.constant 0 : index
      %33 = vector.load %arg6[%c0_26, %c0_27, %c0_28] : memref<1x1x128xf32, #tpu.memory_space<vmem>>, vector<1x1x128xf32>
      %34 = vector.shape_cast %33 : vector<1x1x128xf32> to vector<1x128xf32>
      %35 = vector.shape_cast %32 : vector<1x128xf32> to vector<1x1x128xf32>
      tpu.vector_store %arg6[%c0_26, %c0_27, %c0_28], %35 {strides = array<i32>} : memref<1x1x128xf32, #tpu.memory_space<vmem>>, vector<1x1x128xf32>,
      %cst_29 = arith.constant 0.000000e+00 : f32
      %36 = vector.broadcast %cst_29 : f32 to vector<1x128xf32>
      %c0_30 = arith.constant 0 : index
      %c0_31 = arith.constant 0 : index
      %c0_32 = arith.constant 0 : index
      %37 = vector.load %arg7[%c0_30, %c0_31, %c0_32] : memref<1x1x128xf32, #tpu.memory_space<vmem>>, vector<1x1x128xf32>
      %38 = vector.shape_cast %37 : vector<1x1x128xf32> to vector<1x128xf32>
      %39 = vector.shape_cast %36 : vector<1x128xf32> to vector<1x1x128xf32>
      tpu.vector_store %arg7[%c0_30, %c0_31, %c0_32], %39 {strides = array<i32>} : memref<1x1x128xf32, #tpu.memory_space<vmem>>, vector<1x1x128xf32>,
    } else {
    }
    %c0 = arith.constant 0 : index
    %c0_1 = arith.constant 0 : index
    %c0_2 = arith.constant 0 : index
    %3 = vector.load %arg2[%c0, %c0_1, %c0_2] : memref<1x16x128xbf16, #tpu.memory_space<vmem>>, vector<1x16x128xbf16>
    %4 = vector.shape_cast %3 : vector<1x16x128xbf16> to vector<16x128xbf16>
    %c0_3 = arith.constant 0 : index
    %c0_4 = arith.constant 0 : index
    %c0_5 = arith.constant 0 : index
    %5 = vector.load %arg3[%c0_3, %c0_4, %c0_5] : memref<1x128x128xbf16, #tpu.memory_space<vmem>>, vector<1x128x128xbf16>
    %6 = vector.shape_cast %5 : vector<1x128x128xbf16> to vector<128x128xbf16>
    %cst = arith.constant dense<0.000000e+00> : vector<16x128xf32>
    %7 = tpu.matmul %4, %6, %cst {dimension_numbers = #tpu.dot_dimension_numbers<[1], [0], [0], [1], [0, 0, 1, 1], [], []>} : vector<16x128xbf16>, vector<128x128xbf16>, vector<16x128xf32> -> vector<16x128xf32>
    %c0_6 = arith.constant 0 : index
    %c0_7 = arith.constant 0 : index
    %8 = vector.load %arg4[%c0_6, %c0_7] : memref<1x128xf32, #tpu.memory_space<vmem>>, vector<1x128xf32>
    %9 = vector.broadcast %8 : vector<1x128xf32> to vector<16x128xf32>
    %10 = arith.addf %7, %9 : vector<16x128xf32>
    %c0_8 = arith.constant 0 : index
    %c0_9 = arith.constant 0 : index
    %c0_10 = arith.constant 0 : index
    %11 = vector.load %arg6[%c0_8, %c0_9, %c0_10] : memref<1x1x128xf32, #tpu.memory_space<vmem>>, vector<1x1x128xf32>
    %12 = vector.shape_cast %11 : vector<1x1x128xf32> to vector<1x128xf32>
    %cst_11 = arith.constant dense<0.000000e+00> : vector<128xf32>
    %13 = vector.multi_reduction <add>, %10, %cst_11 [0] : vector<16x128xf32> to vector<128xf32>
    %14 = vector.shape_cast %13 : vector<128xf32> to vector<1x128xf32>
    %15 = arith.addf %12, %14 : vector<1x128xf32>
    %c0_12 = arith.constant 0 : index
    %c0_13 = arith.constant 0 : index
    %c0_14 = arith.constant 0 : index
    %16 = vector.load %arg6[%c0_12, %c0_13, %c0_14] : memref<1x1x128xf32, #tpu.memory_space<vmem>>, vector<1x1x128xf32>
    %17 = vector.shape_cast %16 : vector<1x1x128xf32> to vector<1x128xf32>
    %18 = vector.shape_cast %15 : vector<1x128xf32> to vector<1x1x128xf32>
    tpu.vector_store %arg6[%c0_12, %c0_13, %c0_14], %18 {strides = array<i32>} : memref<1x1x128xf32, #tpu.memory_space<vmem>>, vector<1x1x128xf32>,
    %c0_15 = arith.constant 0 : index
    %c0_16 = arith.constant 0 : index
    %c0_17 = arith.constant 0 : index
    %19 = vector.load %arg7[%c0_15, %c0_16, %c0_17] : memref<1x1x128xf32, #tpu.memory_space<vmem>>, vector<1x1x128xf32>
    %20 = vector.shape_cast %19 : vector<1x1x128xf32> to vector<1x128xf32>
    %21 = arith.mulf %10, %10 : vector<16x128xf32>
    %cst_18 = arith.constant dense<0.000000e+00> : vector<128xf32>
    %22 = vector.multi_reduction <add>, %21, %cst_18 [0] : vector<16x128xf32> to vector<128xf32>
    %23 = vector.shape_cast %22 : vector<128xf32> to vector<1x128xf32>
    %24 = arith.addf %20, %23 : vector<1x128xf32>
    %c0_19 = arith.constant 0 : index
    %c0_20 = arith.constant 0 : index
    %c0_21 = arith.constant 0 : index
    %25 = vector.load %arg7[%c0_19, %c0_20, %c0_21] : memref<1x1x128xf32, #tpu.memory_space<vmem>>, vector<1x1x128xf32>
    %26 = vector.shape_cast %25 : vector<1x1x128xf32> to vector<1x128xf32>
    %27 = vector.shape_cast %24 : vector<1x128xf32> to vector<1x1x128xf32>
    tpu.vector_store %arg7[%c0_19, %c0_20, %c0_21], %27 {strides = array<i32>} : memref<1x1x128xf32, #tpu.memory_space<vmem>>, vector<1x1x128xf32>,
    %28 = arith.truncf %10 : vector<16x128xf32> to vector<16x128xbf16>
    %c0_22 = arith.constant 0 : index
    %c0_23 = arith.constant 0 : index
    %c0_24 = arith.constant 0 : index
    %29 = vector.load %arg5[%c0_22, %c0_23, %c0_24] : memref<1x16x128xbf16, #tpu.memory_space<vmem>>, vector<1x16x128xbf16>
    %30 = vector.shape_cast %29 : vector<1x16x128xbf16> to vector<16x128xbf16>
    %31 = vector.shape_cast %28 : vector<16x128xbf16> to vector<1x16x128xbf16>
    tpu.vector_store %arg5[%c0_22, %c0_23, %c0_24], %31 {strides = array<i32>} : memref<1x16x128xbf16, #tpu.memory_space<vmem>>, vector<1x16x128xbf16>,
    return
  }
  func.func @transform_0(%arg0: i32, %arg1: i32) -> (i32, i32, i32) {
    %c0_i32 = arith.constant 0 : i32
    %c0_i32_0 = arith.constant 0 : i32
    return %arg0, %arg1, %c0_i32 : i32, i32, i32
  }
  func.func @transform_1(%arg0: i32, %arg1: i32) -> (i32, i32, i32) {
    %c0_i32 = arith.constant 0 : i32
    %c0_i32_0 = arith.constant 0 : i32
    %c0_i32_1 = arith.constant 0 : i32
    return %arg0, %c0_i32, %c0_i32_0 : i32, i32, i32
  }
  func.func @transform_2(%arg0: i32, %arg1: i32) -> (i32, i32) {
    %c0_i32 = arith.constant 0 : i32
    %c0_i32_0 = arith.constant 0 : i32
    %c0_i32_1 = arith.constant 0 : i32
    return %c0_i32, %c0_i32_0 : i32, i32
  }
  func.func @transform_3(%arg0: i32, %arg1: i32) -> (i32, i32, i32) {
    %c0_i32 = arith.constant 0 : i32
    %c0_i32_0 = arith.constant 0 : i32
    return %arg0, %arg1, %c0_i32 : i32, i32, i32
  }
  func.func @transform_4(%arg0: i32, %arg1: i32) -> (i32, i32, i32) {
    %c0_i32 = arith.constant 0 : i32
    %c0_i32_0 = arith.constant 0 : i32
    %c0_i32_1 = arith.constant 0 : i32
    return %arg0, %c0_i32, %c0_i32_0 : i32, i32, i32
  }
  func.func @transform_5(%arg0: i32, %arg1: i32) -> (i32, i32, i32) {
    %c0_i32 = arith.constant 0 : i32
    %c0_i32_0 = arith.constant 0 : i32
    %c0_i32_1 = arith.constant 0 : i32
    return %arg0, %c0_i32, %c0_i32_0 : i32, i32, i32
  }
}

module attributes {stable_mosaic.version = 11 : i64} {
  func.func @_affine_relu_kernel(%arg0: i32, %arg1: memref<64x128xbf16, #tpu.memory_space<vmem>>, %arg2: memref<1x128xf32, #tpu.memory_space<vmem>>, %arg3: memref<1x128xf32, #tpu.memory_space<vmem>>, %arg4: memref<64x128xbf16, #tpu.memory_space<vmem>>) attributes {dimension_semantics = [#tpu.dimension_semantics<parallel>], iteration_bounds = array<i64: 1>, scalar_prefetch = 0 : i64, scratch_operands = 0 : i64, tpu.core_type = #tpu.core_type<tc>, window_params = [{transform_indices = @transform_0, window_bounds = array<i64: 64, 128>}, {pipeline_mode = #tpu.pipeline_mode<synchronous>, transform_indices = @transform_1, window_bounds = array<i64: 1, 128>}, {pipeline_mode = #tpu.pipeline_mode<synchronous>, transform_indices = @transform_2, window_bounds = array<i64: 1, 128>}, {transform_indices = @transform_3, window_bounds = array<i64: 64, 128>}]} {
    %c0 = arith.constant 0 : index
    %c0_0 = arith.constant 0 : index
    %0 = vector.load %arg1[%c0, %c0_0] : memref<64x128xbf16, #tpu.memory_space<vmem>>, vector<64x128xbf16>
    %1 = arith.extf %0 : vector<64x128xbf16> to vector<64x128xf32>
    %c0_1 = arith.constant 0 : index
    %c0_2 = arith.constant 0 : index
    %2 = vector.load %arg2[%c0_1, %c0_2] : memref<1x128xf32, #tpu.memory_space<vmem>>, vector<1x128xf32>
    %3 = vector.broadcast %2 : vector<1x128xf32> to vector<64x128xf32>
    %4 = arith.mulf %1, %3 : vector<64x128xf32>
    %c0_3 = arith.constant 0 : index
    %c0_4 = arith.constant 0 : index
    %5 = vector.load %arg3[%c0_3, %c0_4] : memref<1x128xf32, #tpu.memory_space<vmem>>, vector<1x128xf32>
    %6 = vector.broadcast %5 : vector<1x128xf32> to vector<64x128xf32>
    %7 = arith.addf %4, %6 : vector<64x128xf32>
    %cst = arith.constant 0.000000e+00 : f32
    %8 = vector.broadcast %cst : f32 to vector<64x128xf32>
    %9 = arith.maximumf %7, %8 : vector<64x128xf32>
    %10 = arith.truncf %9 : vector<64x128xf32> to vector<64x128xbf16>
    %c0_5 = arith.constant 0 : index
    %c0_6 = arith.constant 0 : index
    %11 = vector.load %arg4[%c0_5, %c0_6] : memref<64x128xbf16, #tpu.memory_space<vmem>>, vector<64x128xbf16>
    tpu.vector_store %arg4[%c0_5, %c0_6], %10 {strides = array<i32>} : memref<64x128xbf16, #tpu.memory_space<vmem>>, vector<64x128xbf16>,
    return
  }
  func.func @transform_0(%arg0: i32) -> (i32, i32) {
    %c0_i32 = arith.constant 0 : i32
    %c0_i32_0 = arith.constant 0 : i32
    return %arg0, %c0_i32 : i32, i32
  }
  func.func @transform_1(%arg0: i32) -> (i32, i32) {
    %c0_i32 = arith.constant 0 : i32
    %c0_i32_0 = arith.constant 0 : i32
    %c0_i32_1 = arith.constant 0 : i32
    return %c0_i32, %c0_i32_0 : i32, i32
  }
  func.func @transform_2(%arg0: i32) -> (i32, i32) {
    %c0_i32 = arith.constant 0 : i32
    %c0_i32_0 = arith.constant 0 : i32
    %c0_i32_1 = arith.constant 0 : i32
    return %c0_i32, %c0_i32_0 : i32, i32
  }
  func.func @transform_3(%arg0: i32) -> (i32, i32) {
    %c0_i32 = arith.constant 0 : i32
    %c0_i32_0 = arith.constant 0 : i32
    return %arg0, %c0_i32 : i32, i32
  }
}

module attributes {stable_mosaic.version = 11 : i64} {
  func.func @_matmul_stats_kernel(%arg0: i32, %arg1: i32, %arg2: memref<1x32x256xbf16, #tpu.memory_space<vmem>>, %arg3: memref<1x256x128xbf16, #tpu.memory_space<vmem>>, %arg4: memref<1x128xf32, #tpu.memory_space<vmem>>, %arg5: memref<1x32x128xbf16, #tpu.memory_space<vmem>>, %arg6: memref<1x1x128xf32, #tpu.memory_space<vmem>>, %arg7: memref<1x1x128xf32, #tpu.memory_space<vmem>>) attributes {dimension_semantics = [#tpu.dimension_semantics<parallel>, #tpu.dimension_semantics<arbitrary>], iteration_bounds = array<i64: 4, 1>, scalar_prefetch = 0 : i64, scratch_operands = 0 : i64, tpu.core_type = #tpu.core_type<tc>, window_params = [{transform_indices = @transform_0, window_bounds = array<i64: 1, 32, 256>}, {transform_indices = @transform_1, window_bounds = array<i64: 1, 256, 128>}, {pipeline_mode = #tpu.pipeline_mode<synchronous>, transform_indices = @transform_2, window_bounds = array<i64: 1, 128>}, {transform_indices = @transform_3, window_bounds = array<i64: 1, 32, 128>}, {transform_indices = @transform_4, window_bounds = array<i64: 1, 1, 128>}, {transform_indices = @transform_5, window_bounds = array<i64: 1, 1, 128>}]} {
    %c0_i32 = arith.constant 0 : i32
    %0 = arith.cmpi eq, %arg1, %c0_i32 : i32
    %1 = arith.extui %0 : i1 to i32
    %c0_i32_0 = arith.constant 0 : i32
    %2 = arith.cmpi ne, %1, %c0_i32_0 : i32
    scf.if %2 {
      %cst_25 = arith.constant 0.000000e+00 : f32
      %32 = vector.broadcast %cst_25 : f32 to vector<1x128xf32>
      %c0_26 = arith.constant 0 : index
      %c0_27 = arith.constant 0 : index
      %c0_28 = arith.constant 0 : index
      %33 = vector.load %arg6[%c0_26, %c0_27, %c0_28] : memref<1x1x128xf32, #tpu.memory_space<vmem>>, vector<1x1x128xf32>
      %34 = vector.shape_cast %33 : vector<1x1x128xf32> to vector<1x128xf32>
      %35 = vector.shape_cast %32 : vector<1x128xf32> to vector<1x1x128xf32>
      tpu.vector_store %arg6[%c0_26, %c0_27, %c0_28], %35 {strides = array<i32>} : memref<1x1x128xf32, #tpu.memory_space<vmem>>, vector<1x1x128xf32>,
      %cst_29 = arith.constant 0.000000e+00 : f32
      %36 = vector.broadcast %cst_29 : f32 to vector<1x128xf32>
      %c0_30 = arith.constant 0 : index
      %c0_31 = arith.constant 0 : index
      %c0_32 = arith.constant 0 : index
      %37 = vector.load %arg7[%c0_30, %c0_31, %c0_32] : memref<1x1x128xf32, #tpu.memory_space<vmem>>, vector<1x1x128xf32>
      %38 = vector.shape_cast %37 : vector<1x1x128xf32> to vector<1x128xf32>
      %39 = vector.shape_cast %36 : vector<1x128xf32> to vector<1x1x128xf32>
      tpu.vector_store %arg7[%c0_30, %c0_31, %c0_32], %39 {strides = array<i32>} : memref<1x1x128xf32, #tpu.memory_space<vmem>>, vector<1x1x128xf32>,
    } else {
    }
    %c0 = arith.constant 0 : index
    %c0_1 = arith.constant 0 : index
    %c0_2 = arith.constant 0 : index
    %3 = vector.load %arg2[%c0, %c0_1, %c0_2] : memref<1x32x256xbf16, #tpu.memory_space<vmem>>, vector<1x32x256xbf16>
    %4 = vector.shape_cast %3 : vector<1x32x256xbf16> to vector<32x256xbf16>
    %c0_3 = arith.constant 0 : index
    %c0_4 = arith.constant 0 : index
    %c0_5 = arith.constant 0 : index
    %5 = vector.load %arg3[%c0_3, %c0_4, %c0_5] : memref<1x256x128xbf16, #tpu.memory_space<vmem>>, vector<1x256x128xbf16>
    %6 = vector.shape_cast %5 : vector<1x256x128xbf16> to vector<256x128xbf16>
    %cst = arith.constant dense<0.000000e+00> : vector<32x128xf32>
    %7 = tpu.matmul %4, %6, %cst {dimension_numbers = #tpu.dot_dimension_numbers<[1], [0], [0], [1], [0, 0, 1, 1], [], []>} : vector<32x256xbf16>, vector<256x128xbf16>, vector<32x128xf32> -> vector<32x128xf32>
    %c0_6 = arith.constant 0 : index
    %c0_7 = arith.constant 0 : index
    %8 = vector.load %arg4[%c0_6, %c0_7] : memref<1x128xf32, #tpu.memory_space<vmem>>, vector<1x128xf32>
    %9 = vector.broadcast %8 : vector<1x128xf32> to vector<32x128xf32>
    %10 = arith.addf %7, %9 : vector<32x128xf32>
    %c0_8 = arith.constant 0 : index
    %c0_9 = arith.constant 0 : index
    %c0_10 = arith.constant 0 : index
    %11 = vector.load %arg6[%c0_8, %c0_9, %c0_10] : memref<1x1x128xf32, #tpu.memory_space<vmem>>, vector<1x1x128xf32>
    %12 = vector.shape_cast %11 : vector<1x1x128xf32> to vector<1x128xf32>
    %cst_11 = arith.constant dense<0.000000e+00> : vector<128xf32>
    %13 = vector.multi_reduction <add>, %10, %cst_11 [0] : vector<32x128xf32> to vector<128xf32>
    %14 = vector.shape_cast %13 : vector<128xf32> to vector<1x128xf32>
    %15 = arith.addf %12, %14 : vector<1x128xf32>
    %c0_12 = arith.constant 0 : index
    %c0_13 = arith.constant 0 : index
    %c0_14 = arith.constant 0 : index
    %16 = vector.load %arg6[%c0_12, %c0_13, %c0_14] : memref<1x1x128xf32, #tpu.memory_space<vmem>>, vector<1x1x128xf32>
    %17 = vector.shape_cast %16 : vector<1x1x128xf32> to vector<1x128xf32>
    %18 = vector.shape_cast %15 : vector<1x128xf32> to vector<1x1x128xf32>
    tpu.vector_store %arg6[%c0_12, %c0_13, %c0_14], %18 {strides = array<i32>} : memref<1x1x128xf32, #tpu.memory_space<vmem>>, vector<1x1x128xf32>,
    %c0_15 = arith.constant 0 : index
    %c0_16 = arith.constant 0 : index
    %c0_17 = arith.constant 0 : index
    %19 = vector.load %arg7[%c0_15, %c0_16, %c0_17] : memref<1x1x128xf32, #tpu.memory_space<vmem>>, vector<1x1x128xf32>
    %20 = vector.shape_cast %19 : vector<1x1x128xf32> to vector<1x128xf32>
    %21 = arith.mulf %10, %10 : vector<32x128xf32>
    %cst_18 = arith.constant dense<0.000000e+00> : vector<128xf32>
    %22 = vector.multi_reduction <add>, %21, %cst_18 [0] : vector<32x128xf32> to vector<128xf32>
    %23 = vector.shape_cast %22 : vector<128xf32> to vector<1x128xf32>
    %24 = arith.addf %20, %23 : vector<1x128xf32>
    %c0_19 = arith.constant 0 : index
    %c0_20 = arith.constant 0 : index
    %c0_21 = arith.constant 0 : index
    %25 = vector.load %arg7[%c0_19, %c0_20, %c0_21] : memref<1x1x128xf32, #tpu.memory_space<vmem>>, vector<1x1x128xf32>
    %26 = vector.shape_cast %25 : vector<1x1x128xf32> to vector<1x128xf32>
    %27 = vector.shape_cast %24 : vector<1x128xf32> to vector<1x1x128xf32>
    tpu.vector_store %arg7[%c0_19, %c0_20, %c0_21], %27 {strides = array<i32>} : memref<1x1x128xf32, #tpu.memory_space<vmem>>, vector<1x1x128xf32>,
    %28 = arith.truncf %10 : vector<32x128xf32> to vector<32x128xbf16>
    %c0_22 = arith.constant 0 : index
    %c0_23 = arith.constant 0 : index
    %c0_24 = arith.constant 0 : index
    %29 = vector.load %arg5[%c0_22, %c0_23, %c0_24] : memref<1x32x128xbf16, #tpu.memory_space<vmem>>, vector<1x32x128xbf16>
    %30 = vector.shape_cast %29 : vector<1x32x128xbf16> to vector<32x128xbf16>
    %31 = vector.shape_cast %28 : vector<32x128xbf16> to vector<1x32x128xbf16>
    tpu.vector_store %arg5[%c0_22, %c0_23, %c0_24], %31 {strides = array<i32>} : memref<1x32x128xbf16, #tpu.memory_space<vmem>>, vector<1x32x128xbf16>,
    return
  }
  func.func @transform_0(%arg0: i32, %arg1: i32) -> (i32, i32, i32) {
    %c0_i32 = arith.constant 0 : i32
    %c0_i32_0 = arith.constant 0 : i32
    return %arg0, %arg1, %c0_i32 : i32, i32, i32
  }
  func.func @transform_1(%arg0: i32, %arg1: i32) -> (i32, i32, i32) {
    %c0_i32 = arith.constant 0 : i32
    %c0_i32_0 = arith.constant 0 : i32
    %c0_i32_1 = arith.constant 0 : i32
    return %arg0, %c0_i32, %c0_i32_0 : i32, i32, i32
  }
  func.func @transform_2(%arg0: i32, %arg1: i32) -> (i32, i32) {
    %c0_i32 = arith.constant 0 : i32
    %c0_i32_0 = arith.constant 0 : i32
    %c0_i32_1 = arith.constant 0 : i32
    return %c0_i32, %c0_i32_0 : i32, i32
  }
  func.func @transform_3(%arg0: i32, %arg1: i32) -> (i32, i32, i32) {
    %c0_i32 = arith.constant 0 : i32
    %c0_i32_0 = arith.constant 0 : i32
    return %arg0, %arg1, %c0_i32 : i32, i32, i32
  }
  func.func @transform_4(%arg0: i32, %arg1: i32) -> (i32, i32, i32) {
    %c0_i32 = arith.constant 0 : i32
    %c0_i32_0 = arith.constant 0 : i32
    %c0_i32_1 = arith.constant 0 : i32
    return %arg0, %c0_i32, %c0_i32_0 : i32, i32, i32
  }
  func.func @transform_5(%arg0: i32, %arg1: i32) -> (i32, i32, i32) {
    %c0_i32 = arith.constant 0 : i32
    %c0_i32_0 = arith.constant 0 : i32
    %c0_i32_1 = arith.constant 0 : i32
    return %arg0, %c0_i32, %c0_i32_0 : i32, i32, i32
  }
}

module attributes {stable_mosaic.version = 11 : i64} {
  func.func @_affine_relu_kernel(%arg0: i32, %arg1: memref<128x128xbf16, #tpu.memory_space<vmem>>, %arg2: memref<1x128xf32, #tpu.memory_space<vmem>>, %arg3: memref<1x128xf32, #tpu.memory_space<vmem>>, %arg4: memref<128x128xbf16, #tpu.memory_space<vmem>>) attributes {dimension_semantics = [#tpu.dimension_semantics<parallel>], iteration_bounds = array<i64: 1>, scalar_prefetch = 0 : i64, scratch_operands = 0 : i64, tpu.core_type = #tpu.core_type<tc>, window_params = [{transform_indices = @transform_0, window_bounds = array<i64: 128, 128>}, {pipeline_mode = #tpu.pipeline_mode<synchronous>, transform_indices = @transform_1, window_bounds = array<i64: 1, 128>}, {pipeline_mode = #tpu.pipeline_mode<synchronous>, transform_indices = @transform_2, window_bounds = array<i64: 1, 128>}, {transform_indices = @transform_3, window_bounds = array<i64: 128, 128>}]} {
    %c0 = arith.constant 0 : index
    %c0_0 = arith.constant 0 : index
    %0 = vector.load %arg1[%c0, %c0_0] : memref<128x128xbf16, #tpu.memory_space<vmem>>, vector<128x128xbf16>
    %1 = arith.extf %0 : vector<128x128xbf16> to vector<128x128xf32>
    %c0_1 = arith.constant 0 : index
    %c0_2 = arith.constant 0 : index
    %2 = vector.load %arg2[%c0_1, %c0_2] : memref<1x128xf32, #tpu.memory_space<vmem>>, vector<1x128xf32>
    %3 = vector.broadcast %2 : vector<1x128xf32> to vector<128x128xf32>
    %4 = arith.mulf %1, %3 : vector<128x128xf32>
    %c0_3 = arith.constant 0 : index
    %c0_4 = arith.constant 0 : index
    %5 = vector.load %arg3[%c0_3, %c0_4] : memref<1x128xf32, #tpu.memory_space<vmem>>, vector<1x128xf32>
    %6 = vector.broadcast %5 : vector<1x128xf32> to vector<128x128xf32>
    %7 = arith.addf %4, %6 : vector<128x128xf32>
    %cst = arith.constant 0.000000e+00 : f32
    %8 = vector.broadcast %cst : f32 to vector<128x128xf32>
    %9 = arith.maximumf %7, %8 : vector<128x128xf32>
    %10 = arith.truncf %9 : vector<128x128xf32> to vector<128x128xbf16>
    %c0_5 = arith.constant 0 : index
    %c0_6 = arith.constant 0 : index
    %11 = vector.load %arg4[%c0_5, %c0_6] : memref<128x128xbf16, #tpu.memory_space<vmem>>, vector<128x128xbf16>
    tpu.vector_store %arg4[%c0_5, %c0_6], %10 {strides = array<i32>} : memref<128x128xbf16, #tpu.memory_space<vmem>>, vector<128x128xbf16>,
    return
  }
  func.func @transform_0(%arg0: i32) -> (i32, i32) {
    %c0_i32 = arith.constant 0 : i32
    %c0_i32_0 = arith.constant 0 : i32
    return %arg0, %c0_i32 : i32, i32
  }
  func.func @transform_1(%arg0: i32) -> (i32, i32) {
    %c0_i32 = arith.constant 0 : i32
    %c0_i32_0 = arith.constant 0 : i32
    %c0_i32_1 = arith.constant 0 : i32
    return %c0_i32, %c0_i32_0 : i32, i32
  }
  func.func @transform_2(%arg0: i32) -> (i32, i32) {
    %c0_i32 = arith.constant 0 : i32
    %c0_i32_0 = arith.constant 0 : i32
    %c0_i32_1 = arith.constant 0 : i32
    return %c0_i32, %c0_i32_0 : i32, i32
  }
  func.func @transform_3(%arg0: i32) -> (i32, i32) {
    %c0_i32 = arith.constant 0 : i32
    %c0_i32_0 = arith.constant 0 : i32
    return %arg0, %c0_i32 : i32, i32
  }
}

module attributes {stable_mosaic.version = 11 : i64} {
  func.func @_matmul_stats_kernel(%arg0: i32, %arg1: i32, %arg2: memref<1x128x128xbf16, #tpu.memory_space<vmem>>, %arg3: memref<1x128x128xbf16, #tpu.memory_space<vmem>>, %arg4: memref<1x128xf32, #tpu.memory_space<vmem>>, %arg5: memref<1x128x128xbf16, #tpu.memory_space<vmem>>, %arg6: memref<1x1x128xf32, #tpu.memory_space<vmem>>, %arg7: memref<1x1x128xf32, #tpu.memory_space<vmem>>) attributes {dimension_semantics = [#tpu.dimension_semantics<parallel>, #tpu.dimension_semantics<arbitrary>], iteration_bounds = array<i64: 4, 1>, scalar_prefetch = 0 : i64, scratch_operands = 0 : i64, tpu.core_type = #tpu.core_type<tc>, window_params = [{transform_indices = @transform_0, window_bounds = array<i64: 1, 128, 128>}, {transform_indices = @transform_1, window_bounds = array<i64: 1, 128, 128>}, {pipeline_mode = #tpu.pipeline_mode<synchronous>, transform_indices = @transform_2, window_bounds = array<i64: 1, 128>}, {transform_indices = @transform_3, window_bounds = array<i64: 1, 128, 128>}, {transform_indices = @transform_4, window_bounds = array<i64: 1, 1, 128>}, {transform_indices = @transform_5, window_bounds = array<i64: 1, 1, 128>}]} {
    %c0_i32 = arith.constant 0 : i32
    %0 = arith.cmpi eq, %arg1, %c0_i32 : i32
    %1 = arith.extui %0 : i1 to i32
    %c0_i32_0 = arith.constant 0 : i32
    %2 = arith.cmpi ne, %1, %c0_i32_0 : i32
    scf.if %2 {
      %cst_25 = arith.constant 0.000000e+00 : f32
      %32 = vector.broadcast %cst_25 : f32 to vector<1x128xf32>
      %c0_26 = arith.constant 0 : index
      %c0_27 = arith.constant 0 : index
      %c0_28 = arith.constant 0 : index
      %33 = vector.load %arg6[%c0_26, %c0_27, %c0_28] : memref<1x1x128xf32, #tpu.memory_space<vmem>>, vector<1x1x128xf32>
      %34 = vector.shape_cast %33 : vector<1x1x128xf32> to vector<1x128xf32>
      %35 = vector.shape_cast %32 : vector<1x128xf32> to vector<1x1x128xf32>
      tpu.vector_store %arg6[%c0_26, %c0_27, %c0_28], %35 {strides = array<i32>} : memref<1x1x128xf32, #tpu.memory_space<vmem>>, vector<1x1x128xf32>,
      %cst_29 = arith.constant 0.000000e+00 : f32
      %36 = vector.broadcast %cst_29 : f32 to vector<1x128xf32>
      %c0_30 = arith.constant 0 : index
      %c0_31 = arith.constant 0 : index
      %c0_32 = arith.constant 0 : index
      %37 = vector.load %arg7[%c0_30, %c0_31, %c0_32] : memref<1x1x128xf32, #tpu.memory_space<vmem>>, vector<1x1x128xf32>
      %38 = vector.shape_cast %37 : vector<1x1x128xf32> to vector<1x128xf32>
      %39 = vector.shape_cast %36 : vector<1x128xf32> to vector<1x1x128xf32>
      tpu.vector_store %arg7[%c0_30, %c0_31, %c0_32], %39 {strides = array<i32>} : memref<1x1x128xf32, #tpu.memory_space<vmem>>, vector<1x1x128xf32>,
    } else {
    }
    %c0 = arith.constant 0 : index
    %c0_1 = arith.constant 0 : index
    %c0_2 = arith.constant 0 : index
    %3 = vector.load %arg2[%c0, %c0_1, %c0_2] : memref<1x128x128xbf16, #tpu.memory_space<vmem>>, vector<1x128x128xbf16>
    %4 = vector.shape_cast %3 : vector<1x128x128xbf16> to vector<128x128xbf16>
    %c0_3 = arith.constant 0 : index
    %c0_4 = arith.constant 0 : index
    %c0_5 = arith.constant 0 : index
    %5 = vector.load %arg3[%c0_3, %c0_4, %c0_5] : memref<1x128x128xbf16, #tpu.memory_space<vmem>>, vector<1x128x128xbf16>
    %6 = vector.shape_cast %5 : vector<1x128x128xbf16> to vector<128x128xbf16>
    %cst = arith.constant dense<0.000000e+00> : vector<128x128xf32>
    %7 = tpu.matmul %4, %6, %cst {dimension_numbers = #tpu.dot_dimension_numbers<[1], [0], [0], [1], [0, 0, 1, 1], [], []>} : vector<128x128xbf16>, vector<128x128xbf16>, vector<128x128xf32> -> vector<128x128xf32>
    %c0_6 = arith.constant 0 : index
    %c0_7 = arith.constant 0 : index
    %8 = vector.load %arg4[%c0_6, %c0_7] : memref<1x128xf32, #tpu.memory_space<vmem>>, vector<1x128xf32>
    %9 = vector.broadcast %8 : vector<1x128xf32> to vector<128x128xf32>
    %10 = arith.addf %7, %9 : vector<128x128xf32>
    %c0_8 = arith.constant 0 : index
    %c0_9 = arith.constant 0 : index
    %c0_10 = arith.constant 0 : index
    %11 = vector.load %arg6[%c0_8, %c0_9, %c0_10] : memref<1x1x128xf32, #tpu.memory_space<vmem>>, vector<1x1x128xf32>
    %12 = vector.shape_cast %11 : vector<1x1x128xf32> to vector<1x128xf32>
    %cst_11 = arith.constant dense<0.000000e+00> : vector<128xf32>
    %13 = vector.multi_reduction <add>, %10, %cst_11 [0] : vector<128x128xf32> to vector<128xf32>
    %14 = vector.shape_cast %13 : vector<128xf32> to vector<1x128xf32>
    %15 = arith.addf %12, %14 : vector<1x128xf32>
    %c0_12 = arith.constant 0 : index
    %c0_13 = arith.constant 0 : index
    %c0_14 = arith.constant 0 : index
    %16 = vector.load %arg6[%c0_12, %c0_13, %c0_14] : memref<1x1x128xf32, #tpu.memory_space<vmem>>, vector<1x1x128xf32>
    %17 = vector.shape_cast %16 : vector<1x1x128xf32> to vector<1x128xf32>
    %18 = vector.shape_cast %15 : vector<1x128xf32> to vector<1x1x128xf32>
    tpu.vector_store %arg6[%c0_12, %c0_13, %c0_14], %18 {strides = array<i32>} : memref<1x1x128xf32, #tpu.memory_space<vmem>>, vector<1x1x128xf32>,
    %c0_15 = arith.constant 0 : index
    %c0_16 = arith.constant 0 : index
    %c0_17 = arith.constant 0 : index
    %19 = vector.load %arg7[%c0_15, %c0_16, %c0_17] : memref<1x1x128xf32, #tpu.memory_space<vmem>>, vector<1x1x128xf32>
    %20 = vector.shape_cast %19 : vector<1x1x128xf32> to vector<1x128xf32>
    %21 = arith.mulf %10, %10 : vector<128x128xf32>
    %cst_18 = arith.constant dense<0.000000e+00> : vector<128xf32>
    %22 = vector.multi_reduction <add>, %21, %cst_18 [0] : vector<128x128xf32> to vector<128xf32>
    %23 = vector.shape_cast %22 : vector<128xf32> to vector<1x128xf32>
    %24 = arith.addf %20, %23 : vector<1x128xf32>
    %c0_19 = arith.constant 0 : index
    %c0_20 = arith.constant 0 : index
    %c0_21 = arith.constant 0 : index
    %25 = vector.load %arg7[%c0_19, %c0_20, %c0_21] : memref<1x1x128xf32, #tpu.memory_space<vmem>>, vector<1x1x128xf32>
    %26 = vector.shape_cast %25 : vector<1x1x128xf32> to vector<1x128xf32>
    %27 = vector.shape_cast %24 : vector<1x128xf32> to vector<1x1x128xf32>
    tpu.vector_store %arg7[%c0_19, %c0_20, %c0_21], %27 {strides = array<i32>} : memref<1x1x128xf32, #tpu.memory_space<vmem>>, vector<1x1x128xf32>,
    %28 = arith.truncf %10 : vector<128x128xf32> to vector<128x128xbf16>
    %c0_22 = arith.constant 0 : index
    %c0_23 = arith.constant 0 : index
    %c0_24 = arith.constant 0 : index
    %29 = vector.load %arg5[%c0_22, %c0_23, %c0_24] : memref<1x128x128xbf16, #tpu.memory_space<vmem>>, vector<1x128x128xbf16>
    %30 = vector.shape_cast %29 : vector<1x128x128xbf16> to vector<128x128xbf16>
    %31 = vector.shape_cast %28 : vector<128x128xbf16> to vector<1x128x128xbf16>
    tpu.vector_store %arg5[%c0_22, %c0_23, %c0_24], %31 {strides = array<i32>} : memref<1x128x128xbf16, #tpu.memory_space<vmem>>, vector<1x128x128xbf16>,
    return
  }
  func.func @transform_0(%arg0: i32, %arg1: i32) -> (i32, i32, i32) {
    %c0_i32 = arith.constant 0 : i32
    %c0_i32_0 = arith.constant 0 : i32
    return %arg0, %arg1, %c0_i32 : i32, i32, i32
  }
  func.func @transform_1(%arg0: i32, %arg1: i32) -> (i32, i32, i32) {
    %c0_i32 = arith.constant 0 : i32
    %c0_i32_0 = arith.constant 0 : i32
    %c0_i32_1 = arith.constant 0 : i32
    return %arg0, %c0_i32, %c0_i32_0 : i32, i32, i32
  }
  func.func @transform_2(%arg0: i32, %arg1: i32) -> (i32, i32) {
    %c0_i32 = arith.constant 0 : i32
    %c0_i32_0 = arith.constant 0 : i32
    %c0_i32_1 = arith.constant 0 : i32
    return %c0_i32, %c0_i32_0 : i32, i32
  }
  func.func @transform_3(%arg0: i32, %arg1: i32) -> (i32, i32, i32) {
    %c0_i32 = arith.constant 0 : i32
    %c0_i32_0 = arith.constant 0 : i32
    return %arg0, %arg1, %c0_i32 : i32, i32, i32
  }
  func.func @transform_4(%arg0: i32, %arg1: i32) -> (i32, i32, i32) {
    %c0_i32 = arith.constant 0 : i32
    %c0_i32_0 = arith.constant 0 : i32
    %c0_i32_1 = arith.constant 0 : i32
    return %arg0, %c0_i32, %c0_i32_0 : i32, i32, i32
  }
  func.func @transform_5(%arg0: i32, %arg1: i32) -> (i32, i32, i32) {
    %c0_i32 = arith.constant 0 : i32
    %c0_i32_0 = arith.constant 0 : i32
    %c0_i32_1 = arith.constant 0 : i32
    return %arg0, %c0_i32, %c0_i32_0 : i32, i32, i32
  }
}

module attributes {stable_mosaic.version = 11 : i64} {
  func.func @_affine_relu_kernel(%arg0: i32, %arg1: memref<512x128xbf16, #tpu.memory_space<vmem>>, %arg2: memref<1x128xf32, #tpu.memory_space<vmem>>, %arg3: memref<1x128xf32, #tpu.memory_space<vmem>>, %arg4: memref<512x128xbf16, #tpu.memory_space<vmem>>) attributes {dimension_semantics = [#tpu.dimension_semantics<parallel>], iteration_bounds = array<i64: 1>, scalar_prefetch = 0 : i64, scratch_operands = 0 : i64, tpu.core_type = #tpu.core_type<tc>, window_params = [{transform_indices = @transform_0, window_bounds = array<i64: 512, 128>}, {pipeline_mode = #tpu.pipeline_mode<synchronous>, transform_indices = @transform_1, window_bounds = array<i64: 1, 128>}, {pipeline_mode = #tpu.pipeline_mode<synchronous>, transform_indices = @transform_2, window_bounds = array<i64: 1, 128>}, {transform_indices = @transform_3, window_bounds = array<i64: 512, 128>}]} {
    %c0 = arith.constant 0 : index
    %c0_0 = arith.constant 0 : index
    %0 = vector.load %arg1[%c0, %c0_0] : memref<512x128xbf16, #tpu.memory_space<vmem>>, vector<512x128xbf16>
    %1 = arith.extf %0 : vector<512x128xbf16> to vector<512x128xf32>
    %c0_1 = arith.constant 0 : index
    %c0_2 = arith.constant 0 : index
    %2 = vector.load %arg2[%c0_1, %c0_2] : memref<1x128xf32, #tpu.memory_space<vmem>>, vector<1x128xf32>
    %3 = vector.broadcast %2 : vector<1x128xf32> to vector<512x128xf32>
    %4 = arith.mulf %1, %3 : vector<512x128xf32>
    %c0_3 = arith.constant 0 : index
    %c0_4 = arith.constant 0 : index
    %5 = vector.load %arg3[%c0_3, %c0_4] : memref<1x128xf32, #tpu.memory_space<vmem>>, vector<1x128xf32>
    %6 = vector.broadcast %5 : vector<1x128xf32> to vector<512x128xf32>
    %7 = arith.addf %4, %6 : vector<512x128xf32>
    %cst = arith.constant 0.000000e+00 : f32
    %8 = vector.broadcast %cst : f32 to vector<512x128xf32>
    %9 = arith.maximumf %7, %8 : vector<512x128xf32>
    %10 = arith.truncf %9 : vector<512x128xf32> to vector<512x128xbf16>
    %c0_5 = arith.constant 0 : index
    %c0_6 = arith.constant 0 : index
    %11 = vector.load %arg4[%c0_5, %c0_6] : memref<512x128xbf16, #tpu.memory_space<vmem>>, vector<512x128xbf16>
    tpu.vector_store %arg4[%c0_5, %c0_6], %10 {strides = array<i32>} : memref<512x128xbf16, #tpu.memory_space<vmem>>, vector<512x128xbf16>,
    return
  }
  func.func @transform_0(%arg0: i32) -> (i32, i32) {
    %c0_i32 = arith.constant 0 : i32
    %c0_i32_0 = arith.constant 0 : i32
    return %arg0, %c0_i32 : i32, i32
  }
  func.func @transform_1(%arg0: i32) -> (i32, i32) {
    %c0_i32 = arith.constant 0 : i32
    %c0_i32_0 = arith.constant 0 : i32
    %c0_i32_1 = arith.constant 0 : i32
    return %c0_i32, %c0_i32_0 : i32, i32
  }
  func.func @transform_2(%arg0: i32) -> (i32, i32) {
    %c0_i32 = arith.constant 0 : i32
    %c0_i32_0 = arith.constant 0 : i32
    %c0_i32_1 = arith.constant 0 : i32
    return %c0_i32, %c0_i32_0 : i32, i32
  }
  func.func @transform_3(%arg0: i32) -> (i32, i32) {
    %c0_i32 = arith.constant 0 : i32
    %c0_i32_0 = arith.constant 0 : i32
    return %arg0, %c0_i32 : i32, i32
  }
}

module attributes {stable_mosaic.version = 11 : i64} {
  func.func @_matmul_stats_kernel(%arg0: i32, %arg1: i32, %arg2: memref<1x512x128xbf16, #tpu.memory_space<vmem>>, %arg3: memref<1x128x128xbf16, #tpu.memory_space<vmem>>, %arg4: memref<1x128xf32, #tpu.memory_space<vmem>>, %arg5: memref<1x512x128xbf16, #tpu.memory_space<vmem>>, %arg6: memref<1x1x128xf32, #tpu.memory_space<vmem>>, %arg7: memref<1x1x128xf32, #tpu.memory_space<vmem>>) attributes {dimension_semantics = [#tpu.dimension_semantics<parallel>, #tpu.dimension_semantics<arbitrary>], iteration_bounds = array<i64: 4, 1>, scalar_prefetch = 0 : i64, scratch_operands = 0 : i64, tpu.core_type = #tpu.core_type<tc>, window_params = [{transform_indices = @transform_0, window_bounds = array<i64: 1, 512, 128>}, {transform_indices = @transform_1, window_bounds = array<i64: 1, 128, 128>}, {pipeline_mode = #tpu.pipeline_mode<synchronous>, transform_indices = @transform_2, window_bounds = array<i64: 1, 128>}, {transform_indices = @transform_3, window_bounds = array<i64: 1, 512, 128>}, {transform_indices = @transform_4, window_bounds = array<i64: 1, 1, 128>}, {transform_indices = @transform_5, window_bounds = array<i64: 1, 1, 128>}]} {
    %c0_i32 = arith.constant 0 : i32
    %0 = arith.cmpi eq, %arg1, %c0_i32 : i32
    %1 = arith.extui %0 : i1 to i32
    %c0_i32_0 = arith.constant 0 : i32
    %2 = arith.cmpi ne, %1, %c0_i32_0 : i32
    scf.if %2 {
      %cst_25 = arith.constant 0.000000e+00 : f32
      %32 = vector.broadcast %cst_25 : f32 to vector<1x128xf32>
      %c0_26 = arith.constant 0 : index
      %c0_27 = arith.constant 0 : index
      %c0_28 = arith.constant 0 : index
      %33 = vector.load %arg6[%c0_26, %c0_27, %c0_28] : memref<1x1x128xf32, #tpu.memory_space<vmem>>, vector<1x1x128xf32>
      %34 = vector.shape_cast %33 : vector<1x1x128xf32> to vector<1x128xf32>
      %35 = vector.shape_cast %32 : vector<1x128xf32> to vector<1x1x128xf32>
      tpu.vector_store %arg6[%c0_26, %c0_27, %c0_28], %35 {strides = array<i32>} : memref<1x1x128xf32, #tpu.memory_space<vmem>>, vector<1x1x128xf32>,
      %cst_29 = arith.constant 0.000000e+00 : f32
      %36 = vector.broadcast %cst_29 : f32 to vector<1x128xf32>
      %c0_30 = arith.constant 0 : index
      %c0_31 = arith.constant 0 : index
      %c0_32 = arith.constant 0 : index
      %37 = vector.load %arg7[%c0_30, %c0_31, %c0_32] : memref<1x1x128xf32, #tpu.memory_space<vmem>>, vector<1x1x128xf32>
      %38 = vector.shape_cast %37 : vector<1x1x128xf32> to vector<1x128xf32>
      %39 = vector.shape_cast %36 : vector<1x128xf32> to vector<1x1x128xf32>
      tpu.vector_store %arg7[%c0_30, %c0_31, %c0_32], %39 {strides = array<i32>} : memref<1x1x128xf32, #tpu.memory_space<vmem>>, vector<1x1x128xf32>,
    } else {
    }
    %c0 = arith.constant 0 : index
    %c0_1 = arith.constant 0 : index
    %c0_2 = arith.constant 0 : index
    %3 = vector.load %arg2[%c0, %c0_1, %c0_2] : memref<1x512x128xbf16, #tpu.memory_space<vmem>>, vector<1x512x128xbf16>
    %4 = vector.shape_cast %3 : vector<1x512x128xbf16> to vector<512x128xbf16>
    %c0_3 = arith.constant 0 : index
    %c0_4 = arith.constant 0 : index
    %c0_5 = arith.constant 0 : index
    %5 = vector.load %arg3[%c0_3, %c0_4, %c0_5] : memref<1x128x128xbf16, #tpu.memory_space<vmem>>, vector<1x128x128xbf16>
    %6 = vector.shape_cast %5 : vector<1x128x128xbf16> to vector<128x128xbf16>
    %cst = arith.constant dense<0.000000e+00> : vector<512x128xf32>
    %7 = tpu.matmul %4, %6, %cst {dimension_numbers = #tpu.dot_dimension_numbers<[1], [0], [0], [1], [0, 0, 1, 1], [], []>} : vector<512x128xbf16>, vector<128x128xbf16>, vector<512x128xf32> -> vector<512x128xf32>
    %c0_6 = arith.constant 0 : index
    %c0_7 = arith.constant 0 : index
    %8 = vector.load %arg4[%c0_6, %c0_7] : memref<1x128xf32, #tpu.memory_space<vmem>>, vector<1x128xf32>
    %9 = vector.broadcast %8 : vector<1x128xf32> to vector<512x128xf32>
    %10 = arith.addf %7, %9 : vector<512x128xf32>
    %c0_8 = arith.constant 0 : index
    %c0_9 = arith.constant 0 : index
    %c0_10 = arith.constant 0 : index
    %11 = vector.load %arg6[%c0_8, %c0_9, %c0_10] : memref<1x1x128xf32, #tpu.memory_space<vmem>>, vector<1x1x128xf32>
    %12 = vector.shape_cast %11 : vector<1x1x128xf32> to vector<1x128xf32>
    %cst_11 = arith.constant dense<0.000000e+00> : vector<128xf32>
    %13 = vector.multi_reduction <add>, %10, %cst_11 [0] : vector<512x128xf32> to vector<128xf32>
    %14 = vector.shape_cast %13 : vector<128xf32> to vector<1x128xf32>
    %15 = arith.addf %12, %14 : vector<1x128xf32>
    %c0_12 = arith.constant 0 : index
    %c0_13 = arith.constant 0 : index
    %c0_14 = arith.constant 0 : index
    %16 = vector.load %arg6[%c0_12, %c0_13, %c0_14] : memref<1x1x128xf32, #tpu.memory_space<vmem>>, vector<1x1x128xf32>
    %17 = vector.shape_cast %16 : vector<1x1x128xf32> to vector<1x128xf32>
    %18 = vector.shape_cast %15 : vector<1x128xf32> to vector<1x1x128xf32>
    tpu.vector_store %arg6[%c0_12, %c0_13, %c0_14], %18 {strides = array<i32>} : memref<1x1x128xf32, #tpu.memory_space<vmem>>, vector<1x1x128xf32>,
    %c0_15 = arith.constant 0 : index
    %c0_16 = arith.constant 0 : index
    %c0_17 = arith.constant 0 : index
    %19 = vector.load %arg7[%c0_15, %c0_16, %c0_17] : memref<1x1x128xf32, #tpu.memory_space<vmem>>, vector<1x1x128xf32>
    %20 = vector.shape_cast %19 : vector<1x1x128xf32> to vector<1x128xf32>
    %21 = arith.mulf %10, %10 : vector<512x128xf32>
    %cst_18 = arith.constant dense<0.000000e+00> : vector<128xf32>
    %22 = vector.multi_reduction <add>, %21, %cst_18 [0] : vector<512x128xf32> to vector<128xf32>
    %23 = vector.shape_cast %22 : vector<128xf32> to vector<1x128xf32>
    %24 = arith.addf %20, %23 : vector<1x128xf32>
    %c0_19 = arith.constant 0 : index
    %c0_20 = arith.constant 0 : index
    %c0_21 = arith.constant 0 : index
    %25 = vector.load %arg7[%c0_19, %c0_20, %c0_21] : memref<1x1x128xf32, #tpu.memory_space<vmem>>, vector<1x1x128xf32>
    %26 = vector.shape_cast %25 : vector<1x1x128xf32> to vector<1x128xf32>
    %27 = vector.shape_cast %24 : vector<1x128xf32> to vector<1x1x128xf32>
    tpu.vector_store %arg7[%c0_19, %c0_20, %c0_21], %27 {strides = array<i32>} : memref<1x1x128xf32, #tpu.memory_space<vmem>>, vector<1x1x128xf32>,
    %28 = arith.truncf %10 : vector<512x128xf32> to vector<512x128xbf16>
    %c0_22 = arith.constant 0 : index
    %c0_23 = arith.constant 0 : index
    %c0_24 = arith.constant 0 : index
    %29 = vector.load %arg5[%c0_22, %c0_23, %c0_24] : memref<1x512x128xbf16, #tpu.memory_space<vmem>>, vector<1x512x128xbf16>
    %30 = vector.shape_cast %29 : vector<1x512x128xbf16> to vector<512x128xbf16>
    %31 = vector.shape_cast %28 : vector<512x128xbf16> to vector<1x512x128xbf16>
    tpu.vector_store %arg5[%c0_22, %c0_23, %c0_24], %31 {strides = array<i32>} : memref<1x512x128xbf16, #tpu.memory_space<vmem>>, vector<1x512x128xbf16>,
    return
  }
  func.func @transform_0(%arg0: i32, %arg1: i32) -> (i32, i32, i32) {
    %c0_i32 = arith.constant 0 : i32
    %c0_i32_0 = arith.constant 0 : i32
    return %arg0, %arg1, %c0_i32 : i32, i32, i32
  }
  func.func @transform_1(%arg0: i32, %arg1: i32) -> (i32, i32, i32) {
    %c0_i32 = arith.constant 0 : i32
    %c0_i32_0 = arith.constant 0 : i32
    %c0_i32_1 = arith.constant 0 : i32
    return %arg0, %c0_i32, %c0_i32_0 : i32, i32, i32
  }
  func.func @transform_2(%arg0: i32, %arg1: i32) -> (i32, i32) {
    %c0_i32 = arith.constant 0 : i32
    %c0_i32_0 = arith.constant 0 : i32
    %c0_i32_1 = arith.constant 0 : i32
    return %c0_i32, %c0_i32_0 : i32, i32
  }
  func.func @transform_3(%arg0: i32, %arg1: i32) -> (i32, i32, i32) {
    %c0_i32 = arith.constant 0 : i32
    %c0_i32_0 = arith.constant 0 : i32
    return %arg0, %arg1, %c0_i32 : i32, i32, i32
  }
  func.func @transform_4(%arg0: i32, %arg1: i32) -> (i32, i32, i32) {
    %c0_i32 = arith.constant 0 : i32
    %c0_i32_0 = arith.constant 0 : i32
    %c0_i32_1 = arith.constant 0 : i32
    return %arg0, %c0_i32, %c0_i32_0 : i32, i32, i32
  }
  func.func @transform_5(%arg0: i32, %arg1: i32) -> (i32, i32, i32) {
    %c0_i32 = arith.constant 0 : i32
    %c0_i32_0 = arith.constant 0 : i32
    %c0_i32_1 = arith.constant 0 : i32
    return %arg0, %c0_i32, %c0_i32_0 : i32, i32, i32
  }
}

module attributes {stable_mosaic.version = 11 : i64} {
  func.func @_affine_relu_kernel(%arg0: i32, %arg1: memref<2048x128xbf16, #tpu.memory_space<vmem>>, %arg2: memref<1x128xf32, #tpu.memory_space<vmem>>, %arg3: memref<1x128xf32, #tpu.memory_space<vmem>>, %arg4: memref<2048x128xbf16, #tpu.memory_space<vmem>>) attributes {dimension_semantics = [#tpu.dimension_semantics<parallel>], iteration_bounds = array<i64: 1>, scalar_prefetch = 0 : i64, scratch_operands = 0 : i64, tpu.core_type = #tpu.core_type<tc>, window_params = [{transform_indices = @transform_0, window_bounds = array<i64: 2048, 128>}, {pipeline_mode = #tpu.pipeline_mode<synchronous>, transform_indices = @transform_1, window_bounds = array<i64: 1, 128>}, {pipeline_mode = #tpu.pipeline_mode<synchronous>, transform_indices = @transform_2, window_bounds = array<i64: 1, 128>}, {transform_indices = @transform_3, window_bounds = array<i64: 2048, 128>}]} {
    %c0 = arith.constant 0 : index
    %c0_0 = arith.constant 0 : index
    %0 = vector.load %arg1[%c0, %c0_0] : memref<2048x128xbf16, #tpu.memory_space<vmem>>, vector<2048x128xbf16>
    %1 = arith.extf %0 : vector<2048x128xbf16> to vector<2048x128xf32>
    %c0_1 = arith.constant 0 : index
    %c0_2 = arith.constant 0 : index
    %2 = vector.load %arg2[%c0_1, %c0_2] : memref<1x128xf32, #tpu.memory_space<vmem>>, vector<1x128xf32>
    %3 = vector.broadcast %2 : vector<1x128xf32> to vector<2048x128xf32>
    %4 = arith.mulf %1, %3 : vector<2048x128xf32>
    %c0_3 = arith.constant 0 : index
    %c0_4 = arith.constant 0 : index
    %5 = vector.load %arg3[%c0_3, %c0_4] : memref<1x128xf32, #tpu.memory_space<vmem>>, vector<1x128xf32>
    %6 = vector.broadcast %5 : vector<1x128xf32> to vector<2048x128xf32>
    %7 = arith.addf %4, %6 : vector<2048x128xf32>
    %cst = arith.constant 0.000000e+00 : f32
    %8 = vector.broadcast %cst : f32 to vector<2048x128xf32>
    %9 = arith.maximumf %7, %8 : vector<2048x128xf32>
    %10 = arith.truncf %9 : vector<2048x128xf32> to vector<2048x128xbf16>
    %c0_5 = arith.constant 0 : index
    %c0_6 = arith.constant 0 : index
    %11 = vector.load %arg4[%c0_5, %c0_6] : memref<2048x128xbf16, #tpu.memory_space<vmem>>, vector<2048x128xbf16>
    tpu.vector_store %arg4[%c0_5, %c0_6], %10 {strides = array<i32>} : memref<2048x128xbf16, #tpu.memory_space<vmem>>, vector<2048x128xbf16>,
    return
  }
  func.func @transform_0(%arg0: i32) -> (i32, i32) {
    %c0_i32 = arith.constant 0 : i32
    %c0_i32_0 = arith.constant 0 : i32
    return %arg0, %c0_i32 : i32, i32
  }
  func.func @transform_1(%arg0: i32) -> (i32, i32) {
    %c0_i32 = arith.constant 0 : i32
    %c0_i32_0 = arith.constant 0 : i32
    %c0_i32_1 = arith.constant 0 : i32
    return %c0_i32, %c0_i32_0 : i32, i32
  }
  func.func @transform_2(%arg0: i32) -> (i32, i32) {
    %c0_i32 = arith.constant 0 : i32
    %c0_i32_0 = arith.constant 0 : i32
    %c0_i32_1 = arith.constant 0 : i32
    return %c0_i32, %c0_i32_0 : i32, i32
  }
  func.func @transform_3(%arg0: i32) -> (i32, i32) {
    %c0_i32 = arith.constant 0 : i32
    %c0_i32_0 = arith.constant 0 : i32
    return %arg0, %c0_i32 : i32, i32
  }
}

module attributes {stable_mosaic.version = 11 : i64} {
  func.func @_matmul_tanh_kernel(%arg0: i32, %arg1: i32, %arg2: memref<1x512x128xbf16, #tpu.memory_space<vmem>>, %arg3: memref<1x128x128xbf16, #tpu.memory_space<vmem>>, %arg4: memref<1x512x128xf32, #tpu.memory_space<vmem>>) attributes {dimension_semantics = [#tpu.dimension_semantics<parallel>, #tpu.dimension_semantics<parallel>], iteration_bounds = array<i64: 4, 4>, scalar_prefetch = 0 : i64, scratch_operands = 0 : i64, tpu.core_type = #tpu.core_type<tc>, window_params = [{transform_indices = @transform_0, window_bounds = array<i64: 1, 512, 128>}, {transform_indices = @transform_1, window_bounds = array<i64: 1, 128, 128>}, {transform_indices = @transform_2, window_bounds = array<i64: 1, 512, 128>}]} {
    %c0 = arith.constant 0 : index
    %c0_0 = arith.constant 0 : index
    %c0_1 = arith.constant 0 : index
    %0 = vector.load %arg2[%c0, %c0_0, %c0_1] : memref<1x512x128xbf16, #tpu.memory_space<vmem>>, vector<1x512x128xbf16>
    %1 = vector.shape_cast %0 : vector<1x512x128xbf16> to vector<512x128xbf16>
    %c0_2 = arith.constant 0 : index
    %c0_3 = arith.constant 0 : index
    %c0_4 = arith.constant 0 : index
    %2 = vector.load %arg3[%c0_2, %c0_3, %c0_4] : memref<1x128x128xbf16, #tpu.memory_space<vmem>>, vector<1x128x128xbf16>
    %3 = vector.shape_cast %2 : vector<1x128x128xbf16> to vector<128x128xbf16>
    %cst = arith.constant dense<0.000000e+00> : vector<512x128xf32>
    %4 = tpu.matmul %1, %3, %cst {dimension_numbers = #tpu.dot_dimension_numbers<[1], [0], [0], [1], [0, 0, 1, 1], [], []>} : vector<512x128xbf16>, vector<128x128xbf16>, vector<512x128xf32> -> vector<512x128xf32>
    %5 = math.tanh %4 : vector<512x128xf32>
    %c0_5 = arith.constant 0 : index
    %c0_6 = arith.constant 0 : index
    %c0_7 = arith.constant 0 : index
    %6 = vector.load %arg4[%c0_5, %c0_6, %c0_7] : memref<1x512x128xf32, #tpu.memory_space<vmem>>, vector<1x512x128xf32>
    %7 = vector.shape_cast %6 : vector<1x512x128xf32> to vector<512x128xf32>
    %8 = vector.shape_cast %5 : vector<512x128xf32> to vector<1x512x128xf32>
    tpu.vector_store %arg4[%c0_5, %c0_6, %c0_7], %8 {strides = array<i32>} : memref<1x512x128xf32, #tpu.memory_space<vmem>>, vector<1x512x128xf32>,
    return
  }
  func.func @transform_0(%arg0: i32, %arg1: i32) -> (i32, i32, i32) {
    %c0_i32 = arith.constant 0 : i32
    %c0_i32_0 = arith.constant 0 : i32
    return %arg0, %arg1, %c0_i32 : i32, i32, i32
  }
  func.func @transform_1(%arg0: i32, %arg1: i32) -> (i32, i32, i32) {
    %c0_i32 = arith.constant 0 : i32
    %c0_i32_0 = arith.constant 0 : i32
    %c0_i32_1 = arith.constant 0 : i32
    return %arg0, %c0_i32, %c0_i32_0 : i32, i32, i32
  }
  func.func @transform_2(%arg0: i32, %arg1: i32) -> (i32, i32, i32) {
    %c0_i32 = arith.constant 0 : i32
    %c0_i32_0 = arith.constant 0 : i32
    return %arg0, %arg1, %c0_i32 : i32, i32, i32
  }
}

</mosaic_0001>

<llo_original>
// kernel: generator_forward.10
$region0: #{generator_forward.10}
  #allocation0 [shape = 'u32[]', space=smem, size = 0x4, offset = 0x4, fixed_abs, tag = 'smem constant byte address 0x4 - core index']
  #allocation1 [shape = 'u32[144,128]{1,0:T(1,128)}', space=vmem, size = 0x12000, scoped, tag = 'internal scratch']
  %s0 = inlined_call_operand.vmem [shape: bf16[64,128], index: 0, kind: input, shape index: {}]
  %s1 = inlined_call_operand.vmem [shape: f32[1,128], index: 1, kind: input, shape index: {}]
  %s2 = inlined_call_operand.vmem [shape: f32[1,128], index: 2, kind: input, shape index: {}]
  %s3 = inlined_call_operand.vmem [shape: bf16[64,128], index: 3, kind: output, shape index: {}]
  %s4 = sld [smem:[#allocation0]]
  $region22: #{generator_forward.10} parent=0
    _
  %s6 = ssub.s32 1, %s4
  %s7 = scalar_select 0, %s6, %s4
  // Predicated region
  $region2: #{generator_forward.10} parent=0 // pred_check
    _
  $region3: #{generator_forward.10} parent=0 // pred_check_branch
    %9 = sbr.rel (0) target = $region5
  $region4: #{generator_forward.10} parent=0 // pred_region
    _
  $region5: #{generator_forward.10} parent=0 // pred_fallthru
    _
  // Predicated region
  $region6: #{generator_forward.10} parent=0 // pred_check
    _
  $region7: #{generator_forward.10} parent=0 // pred_check_branch
    %11 = sbr.rel (0) target = $region9
  $region8: #{generator_forward.10} parent=0 // pred_region
    _
  $region9: #{generator_forward.10} parent=0 // pred_fallthru
    _
  // Predicated region
  $region10: #{generator_forward.10} parent=0 // pred_check
    _
  $region11: #{generator_forward.10} parent=0 // pred_check_branch
    %13 = sbr.rel (0) target = $region13
  $region12: #{generator_forward.10} parent=0 // pred_region
    _
  $region13: #{generator_forward.10} parent=0 // pred_fallthru
    _
  %v14 = vld [vmem:[%s0] sm:$0xf]
  %v15 = vld [vmem:[%s0 + $0x4] sm:$0xf]
  %v16 = vld [vmem:[%s0 + $0x8] sm:$0xf]
  %v17 = vld [vmem:[%s0 + $0xc] sm:$0xf]
  %v18 = vld [vmem:[%s0 + $0x10] sm:$0xf]
  %v19 = vld [vmem:[%s0 + $0x14] sm:$0xf]
  %v20 = vld [vmem:[%s0 + $0x18] sm:$0xf]
  %v21 = vld [vmem:[%s0 + $0x1c] sm:$0xf]
  %v22 = vunpack.c.l.bf16 %v14
  %v23 = vunpack.c.l.bf16 %v15
  %v24 = vunpack.c.l.bf16 %v16
  %v25 = vunpack.c.l.bf16 %v17
  %v26 = vunpack.c.l.bf16 %v18
  %v27 = vunpack.c.l.bf16 %v19
  %v28 = vunpack.c.l.bf16 %v20
  %v29 = vunpack.c.l.bf16 %v21
  %v30 = vld [vmem:[%s1] sm:$0x1]
  %v32 = vlaneseq
  %v33 = vshrl.u32 %v32, 7
  %v34 = vsub.s32 0, %v33
  %v35 = vrot.slane %v30, %v34
  %v37 = vmul.f32 %v22, %v35
  %v38 = vmul.f32 %v23, %v35
  %v39 = vmul.f32 %v24, %v35
  %v40 = vmul.f32 %v25, %v35
  %v41 = vmul.f32 %v26, %v35
  %v42 = vmul.f32 %v27, %v35
  %v43 = vmul.f32 %v28, %v35
  %v44 = vmul.f32 %v29, %v35
  %v45 = vld [vmem:[%s2] sm:$0x1]
  %v47 = vlaneseq
  %v48 = vshrl.u32 %v47, 7
  %v49 = vsub.s32 0, %v48
  %v50 = vrot.slane %v45, %v49
  %v52 = vadd.f32 %v37, %v50
  %v53 = vadd.f32 %v38, %v50
  %v54 = vadd.f32 %v39, %v50
  %v55 = vadd.f32 %v40, %v50
  %v56 = vadd.f32 %v41, %v50
  %v57 = vadd.f32 %v42, %v50
  %v58 = vadd.f32 %v43, %v50
  %v59 = vadd.f32 %v44, %v50
  %v60 = vmax.f32 %v52, 0.0
  %v61 = vmax.f32 %v53, 0.0
  %v62 = vmax.f32 %v54, 0.0
  %v63 = vmax.f32 %v55, 0.0
  %v64 = vmax.f32 %v56, 0.0
  %v65 = vmax.f32 %v57, 0.0
  %v66 = vmax.f32 %v58, 0.0
  %v67 = vmax.f32 %v59, 0.0
  %v68 = vpack.c.bf16 %v61, %v60
  %v69 = vpack.c.bf16 %v63, %v62
  %v70 = vpack.c.bf16 %v65, %v64
  %v71 = vpack.c.bf16 %v67, %v66
  %v76 = vunpack.c.l.b16 %v68
  %v77 = vunpack.c.h.b16 %v68
  %v78 = vunpack.c.l.b16 %v69
  %v79 = vunpack.c.h.b16 %v69
  %v80 = vunpack.c.l.b16 %v70
  %v81 = vunpack.c.h.b16 %v70
  %v82 = vunpack.c.l.b16 %v71
  %v83 = vunpack.c.h.b16 %v71
  %v84 = vpack.c.b16 %v76, %v76
  %v85 = vpack.c.b16 %v77, %v77
  %v86 = vpack.c.b16 %v78, %v78
  %v87 = vpack.c.b16 %v79, %v79
  %v88 = vpack.c.b16 %v80, %v80
  %v89 = vpack.c.b16 %v81, %v81
  %v90 = vpack.c.b16 %v82, %v82
  %v91 = vpack.c.b16 %v83, %v83
  %100 = vst [vmem:[%s3] sm:$0xf] %v84
  %101 = vst [vmem:[%s3 + $0x4] sm:$0xf] %v85
  %102 = vst [vmem:[%s3 + $0x8] sm:$0xf] %v86
  %103 = vst [vmem:[%s3 + $0xc] sm:$0xf] %v87
  %104 = vst [vmem:[%s3 + $0x10] sm:$0xf] %v88
  %105 = vst [vmem:[%s3 + $0x14] sm:$0xf] %v89
  %106 = vst [vmem:[%s3 + $0x18] sm:$0xf] %v90
  %107 = vst [vmem:[%s3 + $0x1c] sm:$0xf] %v91
  // Predicated region
  $region14: #{generator_forward.10} parent=0 // pred_check
    _
  $region15: #{generator_forward.10} parent=0 // pred_check_branch
    %109 = sbr.rel (0) target = $region17
  $region16: #{generator_forward.10} parent=0 // pred_region
    _
  $region17: #{generator_forward.10} parent=0 // pred_fallthru
    _
  // Predicated region
  $region18: #{generator_forward.10} parent=0 // pred_check
    _
  $region19: #{generator_forward.10} parent=0 // pred_check_branch
    %111 = sbr.rel (0) target = $region21
  $region20: #{generator_forward.10} parent=0 // pred_region
    _
  $region21: #{generator_forward.10} parent=0 // pred_fallthru
    _

// kernel: generator_forward.9
$region0: #{generator_forward.9}
  #allocation0 [shape = 'u32[]', space=smem, size = 0x4, offset = 0x4, fixed_abs, tag = 'smem constant byte address 0x4 - core index']
  #allocation1 [shape = 'u32[144,128]{1,0:T(1,128)}', space=vmem, size = 0x12000, scoped, tag = 'internal scratch']
  %s0 = inlined_call_operand.vmem [shape: bf16[4,16,128], index: 0, kind: input, shape index: {}]
  %s1 = inlined_call_operand.vmem [shape: bf16[4,128,128], index: 1, kind: input, shape index: {}]
  %s2 = inlined_call_operand.vmem [shape: f32[1,128], index: 2, kind: input, shape index: {}]
  %s3 = inlined_call_operand.vmem [shape: bf16[4,16,128], index: 3, kind: output, shape index: {0}]
  %s4 = inlined_call_operand.vmem [shape: f32[4,1,128], index: 4, kind: output, shape index: {1}]
  %s5 = inlined_call_operand.vmem [shape: f32[4,1,128], index: 5, kind: output, shape index: {2}]
  %6 = xla_tuple %s3, %s4, %s5
  %s7 = sld [smem:[#allocation0]]
  $region65: #{generator_forward.9} parent=0
    _
  %s9 = ssub.s32 1, %s7
  %s10 = scalar_select 0, %s9, %s7
  loop: start=0, step=1, limit=6
  $region2: #{generator_forward.9} parent=0 // loop_pre_header
    _
  $region3: #{generator_forward.9} parent=0 // loop_header
    %s12 = sphi 0, %s16
    %p13 = scmp.ge.s32.totalorder %s12, 6
    %s19 = sphi 0, %s31
    %s20 = sphi 0, %s27
    %s21 = sphi 0, %s19
    %s22 = sphi 0, %s20
    %s23 = sphi 0, %s21
    %s24 = sphi 0, %s22
    %s36 = sphi 0, %s38
    %s39 = sphi 0, %s36
    %s40 = sphi 0, %s39
    %s56 = sphi 0, %s40
    %s62 = sphi 0, %s64
    %s65 = sphi 0, %s62
    %s66 = sphi 0, %s65
    %s82 = sphi 0, %s66
    %s86 = sphi 0, %s86
    %s88 = sphi 0, %s86
    %s89 = sphi 0, %s88
    %s103 = sphi 0, %s89
    %s111 = sphi 0, %s113
    %s114 = sphi 0, %s111
    %s115 = sphi 0, %s114
    %s131 = sphi 0, %s115
    %s137 = sphi 0, %s139
    %s140 = sphi 0, %s137
    %s141 = sphi 0, %s140
    %s157 = sphi 0, %s141
    %s163 = sphi 0, %s165
    %s166 = sphi 0, %s163
    %s167 = sphi 0, %s166
    %s183 = sphi 0, %s167
  $region4: #{generator_forward.9} parent=0 // loop_header_branch
    %15 = sbr.rel (%p13) target = $region8
  $region5: #{generator_forward.9} parent=0 // loop_body
    %s17 = ssub.s32 %s12, 1
    %s18 = ssub.s32 %s12, 2
    %s25 = sadd.s32 1, %s20
    %p26 = scmp.ge.s32.totalorder %s25, 1
    %s27 = scalar_select %p26, 0, %s25
    %s28 = sadd.s32 1, %s19
    %s29 = scalar_select %p26, %s28, %s19
    %p30 = scmp.ge.s32.totalorder %s29, 4
    %s31 = scalar_select %p30, 0, %s29
    %s32 = ssub.s32 %s19, %s31
    %s33 = ssub.s32 %s20, %s27
    %s34 = sor.u32 %s32, %s33
    %p35 = scmp.eq.s32.totalorder %s34, 0
    %s37 = sadd.s32 %s36, 1
    %s38 = scalar_select %p35, %s36, %s37
    %p41 = pneg %p35
    %p42 = scmp.eq.s32.totalorder %s12, 3
    %p43 = por %p41, %p42
    %p44 = scmp.ne.s32.totalorder %s36, %s39
    %p45 = scmp.eq.s32.totalorder %s12, 0
    %p46 = por %p44, %p45
    %p47 = scmp.ne.s32.totalorder %s36, %s39
    %p48 = scmp.eq.s32.totalorder %s17, 3
    %p49 = por %p47, %p48
    %p50 = scmp.ne.s32.totalorder %s39, %s40
    %p51 = scmp.eq.s32.totalorder %s17, 0
    %p52 = por %p50, %p51
    %p53 = scmp.ne.s32.totalorder %s39, %s40
    %p54 = scmp.eq.s32.totalorder %s18, 3
    %p55 = por %p53, %p54
    %p57 = scmp.ne.s32.totalorder %s40, %s56
    %p58 = scmp.eq.s32.totalorder %s18, 0
    %p59 = por %p57, %p58
    %s60 = ssub.s32 %s19, %s31
    %p61 = scmp.eq.s32.totalorder %s60, 0
    %s63 = sadd.s32 %s62, 1
    %s64 = scalar_select %p61, %s62, %s63
    %p67 = pneg %p61
    %p68 = scmp.eq.s32.totalorder %s12, 3
    %p69 = por %p67, %p68
    %p70 = scmp.ne.s32.totalorder %s62, %s65
    %p71 = scmp.eq.s32.totalorder %s12, 0
    %p72 = por %p70, %p71
    %p73 = scmp.ne.s32.totalorder %s62, %s65
    %p74 = scmp.eq.s32.totalorder %s17, 3
    %p75 = por %p73, %p74
    %p76 = scmp.ne.s32.totalorder %s65, %s66
    %p77 = scmp.eq.s32.totalorder %s17, 0
    %p78 = por %p76, %p77
    %p79 = scmp.ne.s32.totalorder %s65, %s66
    %p80 = scmp.eq.s32.totalorder %s18, 3
    %p81 = por %p79, %p80
    %p83 = scmp.ne.s32.totalorder %s66, %s82
    %p84 = scmp.eq.s32.totalorder %s18, 0
    %p85 = por %p83, %p84
    %s87 = sadd.s32 %s86, 1
    %p90 = scmp.eq.s32.totalorder %s12, 3
    %p91 = scmp.ne.s32.totalorder %s86, %s88
    %p92 = scmp.eq.s32.totalorder %s12, 0
    %p93 = por %p91, %p92
    %p94 = scmp.ne.s32.totalorder %s86, %s88
    %p95 = scmp.eq.s32.totalorder %s17, 3
    %p96 = por %p94, %p95
    %p97 = scmp.ne.s32.totalorder %s88, %s89
    %p98 = scmp.eq.s32.totalorder %s17, 0
    %p99 = por %p97, %p98
    %p100 = scmp.ne.s32.totalorder %s88, %s89
    %p101 = scmp.eq.s32.totalorder %s18, 3
    %p102 = por %p100, %p101
    %p104 = scmp.ne.s32.totalorder %s89, %s103
    %p105 = scmp.eq.s32.totalorder %s18, 0
    %p106 = por %p104, %p105
    %s107 = ssub.s32 %s19, %s31
    %s108 = ssub.s32 %s20, %s27
    %s109 = sor.u32 %s107, %s108
    %p110 = scmp.eq.s32.totalorder %s109, 0
    %s112 = sadd.s32 %s111, 1
    %s113 = scalar_select %p110, %s111, %s112
    %p116 = pneg %p110
    %p117 = scmp.eq.s32.totalorder %s12, 3
    %p118 = por %p116, %p117
    %p119 = scmp.ne.s32.totalorder %s111, %s114
    %p120 = scmp.eq.s32.totalorder %s12, 0
    %p121 = por %p119, %p120
    %p122 = scmp.ne.s32.totalorder %s111, %s114
    %p123 = scmp.eq.s32.totalorder %s17, 3
    %p124 = por %p122, %p123
    %p125 = scmp.ne.s32.totalorder %s114, %s115
    %p126 = scmp.eq.s32.totalorder %s17, 0
    %p127 = por %p125, %p126
    %p128 = scmp.ne.s32.totalorder %s114, %s115
    %p129 = scmp.eq.s32.totalorder %s18, 3
    %p130 = por %p128, %p129
    %p132 = scmp.ne.s32.totalorder %s115, %s131
    %p133 = scmp.eq.s32.totalorder %s18, 0
    %p134 = por %p132, %p133
    %s135 = ssub.s32 %s19, %s31
    %p136 = scmp.eq.s32.totalorder %s135, 0
    %s138 = sadd.s32 %s137, 1
    %s139 = scalar_select %p136, %s137, %s138
    %p142 = pneg %p136
    %p143 = scmp.eq.s32.totalorder %s12, 3
    %p144 = por %p142, %p143
    %p145 = scmp.ne.s32.totalorder %s137, %s140
    %p146 = scmp.eq.s32.totalorder %s12, 0
    %p147 = por %p145, %p146
    %p148 = scmp.ne.s32.totalorder %s137, %s140
    %p149 = scmp.eq.s32.totalorder %s17, 3
    %p150 = por %p148, %p149
    %p151 = scmp.ne.s32.totalorder %s140, %s141
    %p152 = scmp.eq.s32.totalorder %s17, 0
    %p153 = por %p151, %p152
    %p154 = scmp.ne.s32.totalorder %s140, %s141
    %p155 = scmp.eq.s32.totalorder %s18, 3
    %p156 = por %p154, %p155
    %p158 = scmp.ne.s32.totalorder %s141, %s157
    %p159 = scmp.eq.s32.totalorder %s18, 0
    %p160 = por %p158, %p159
    %s161 = ssub.s32 %s19, %s31
    %p162 = scmp.eq.s32.totalorder %s161, 0
    %s164 = sadd.s32 %s163, 1
    %s165 = scalar_select %p162, %s163, %s164
    %p168 = pneg %p162
    %p169 = scmp.eq.s32.totalorder %s12, 3
    %p170 = por %p168, %p169
    %p171 = scmp.ne.s32.totalorder %s163, %s166
    %p172 = scmp.eq.s32.totalorder %s12, 0
    %p173 = por %p171, %p172
    %p174 = scmp.ne.s32.totalorder %s163, %s166
    %p175 = scmp.eq.s32.totalorder %s17, 3
    %p176 = por %p174, %p175
    %p177 = scmp.ne.s32.totalorder %s166, %s167
    %p178 = scmp.eq.s32.totalorder %s17, 0
    %p179 = por %p177, %p178
    %p180 = scmp.ne.s32.totalorder %s166, %s167
    %p181 = scmp.eq.s32.totalorder %s18, 3
    %p182 = por %p180, %p181
    %p184 = scmp.ne.s32.totalorder %s167, %s183
    %p185 = scmp.eq.s32.totalorder %s18, 0
    %p186 = por %p184, %p185
    %p187 = scmp.le.s32.totalorder 1, %s12
    %p188 = scmp.lt.s32.totalorder %s12, 5
    %p189 = pnand %p187, %p188
    %p190 = pneg %p189
    // Predicated region
    $region9: #{generator_forward.9} parent=5 // pred_check
      _
    $region10: #{generator_forward.9} parent=5 // pred_check_branch
      %192 = sbr.rel (%p189) target = $region12
    $region11: #{generator_forward.9} parent=5 // pred_region
      %s193 = ssub.s32 %s12, 1
      // Predicated region
      $region13: #{generator_forward.9} parent=11 // pred_check
        %p194 = pneg %p99
      $region14: #{generator_forward.9} parent=11 // pred_check_branch
        %196 = sbr.rel (%p194) target = $region16
      $region15: #{generator_forward.9} parent=11 // pred_region
        _
      $region16: #{generator_forward.9} parent=11 // pred_fallthru
        _
    $region12: #{generator_forward.9} parent=5 // pred_fallthru
      _
    %p197 = scmp.lt.s32.totalorder %s12, 4
    // Predicated region
    $region17: #{generator_forward.9} parent=5 // pred_check
      %p198 = pneg %p197
    $region18: #{generator_forward.9} parent=5 // pred_check_branch
      %200 = sbr.rel (%p198) target = $region20
    $region19: #{generator_forward.9} parent=5 // pred_region
      // Predicated region
      $region21: #{generator_forward.9} parent=19 // pred_check
        %p201 = pneg %p46
      $region22: #{generator_forward.9} parent=19 // pred_check_branch
        %203 = sbr.rel (%p201) target = $region24
      $region23: #{generator_forward.9} parent=19 // pred_region
        %s204 = smul.u32 2, %s20
        %p205 = scmp.lt.s32.totalorder %s19, 3
        %s206 = scalar_select %p205, %s19, 3
        %p207 = scmp.lt.s32.totalorder %s204, 1
        %s208 = scalar_select %p207, %s204, 1
        %s209 = smul.addr %s206, 2
        %s210 = sadd.s32 %s208, %s209
        %s211 = smul.addr %s210, 4
        %s212 = scalar_lea.vmem %s0, %s211
        %s213 = smul.u32 2, %s20
      $region24: #{generator_forward.9} parent=19 // pred_fallthru
        _
      // Predicated region
      $region25: #{generator_forward.9} parent=19 // pred_check
        %p214 = pneg %p72
      $region26: #{generator_forward.9} parent=19 // pred_check_branch
        %216 = sbr.rel (%p214) target = $region28
      $region27: #{generator_forward.9} parent=19 // pred_region
        %p217 = scmp.lt.s32.totalorder %s19, 3
        %s218 = scalar_select %p217, %s19, 3
        %s219 = smul.addr %s218, 16
        %s220 = smul.addr %s219, 4
        %s221 = scalar_lea.vmem %s1, %s220
      $region28: #{generator_forward.9} parent=19 // pred_fallthru
        _
    $region20: #{generator_forward.9} parent=5 // pred_fallthru
      _
    %p222 = scmp.le.s32.totalorder 1, %s12
    %p223 = scmp.lt.s32.totalorder %s12, 5
    %p224 = pnand %p222, %p223
    %p225 = pneg %p224
    // Predicated region
    $region29: #{generator_forward.9} parent=5 // pred_check
      _
    $region30: #{generator_forward.9} parent=5 // pred_check_branch
      %227 = sbr.rel (%p224) target = $region32
    $region31: #{generator_forward.9} parent=5 // pred_region
      %s228 = ssub.s32 %s12, 1
      %s229 = smul.u32 2, %s22
      %p230 = scmp.lt.s32.totalorder %s21, 3
      %s231 = scalar_select %p230, %s21, 3
      %p232 = scmp.lt.s32.totalorder %s229, 1
      %s233 = scalar_select %p232, %s229, 1
      %s234 = smul.addr %s231, 2
      %s235 = sadd.s32 %s233, %s234
      %s236 = smul.addr %s235, 4
      %s237 = scalar_lea.vmem %s0, %s236
      %p238 = pneg %p52
      %p239 = pneg %p49
      %p240 = scmp.lt.s32.totalorder %s21, 3
      %s241 = scalar_select %p240, %s21, 3
      %s242 = smul.addr %s241, 16
      %s243 = smul.addr %s242, 4
      %s244 = scalar_lea.vmem %s1, %s243
      %p245 = pneg %p78
      %p246 = pneg %p75
      %p247 = pneg %p99
      %p248 = pneg %p96
      %p249 = pneg %p127
      %p250 = pneg %p124
      %s251 = smul.u32 2, %s22
      %p252 = scmp.lt.s32.totalorder %s21, 3
      %s253 = scalar_select %p252, %s21, 3
      %p254 = scmp.lt.s32.totalorder %s251, 1
      %s255 = scalar_select %p254, %s251, 1
      %s256 = smul.addr %s253, 2
      %s257 = sadd.s32 %s255, %s256
      %s258 = smul.addr %s257, 4
      %s259 = scalar_lea.vmem %s3, %s258
      %p260 = pneg %p153
      %p261 = pneg %p150
      %p262 = scmp.lt.s32.totalorder %s21, 3
      %s263 = scalar_select %p262, %s21, 3
      %s264 = scalar_lea.vmem %s4, %s263
      %p265 = pneg %p179
      %p266 = pneg %p176
      %p267 = scmp.lt.s32.totalorder %s21, 3
      %s268 = scalar_select %p267, %s21, 3
      %s269 = scalar_lea.vmem %s5, %s268
      %s270 = smul.u32 2, %s22
      %p271 = scmp.lt.s32.totalorder %s21, 3
      %s272 = scalar_select %p271, %s21, 3
      %p273 = scmp.lt.s32.totalorder %s270, 1
      %s274 = scalar_select %p273, %s270, 1
      %s275 = smul.addr %s272, 2
      %s276 = sadd.s32 %s274, %s275
      %s277 = smul.addr %s276, 4
      %s278 = scalar_lea.vmem %s0, %s277
      %s279 = smul.u32 2, %s22
      %p280 = scmp.lt.s32.totalorder %s21, 3
      %s281 = scalar_select %p280, %s21, 3
      %s282 = smul.addr %s281, 16
      %s283 = smul.addr %s282, 4
      %s284 = scalar_lea.vmem %s1, %s283
      %s285 = smul.u32 2, %s22
      %p286 = scmp.lt.s32.totalorder %s21, 3
      %s287 = scalar_select %p286, %s21, 3
      %p288 = scmp.lt.s32.totalorder %s285, 1
      %s289 = scalar_select %p288, %s285, 1
      %s290 = smul.addr %s287, 2
      %s291 = sadd.s32 %s289, %s290
      %s292 = smul.addr %s291, 4
      %s293 = scalar_lea.vmem %s3, %s292
      %s294 = smul.u32 2, %s22
      %p295 = scmp.lt.s32.totalorder %s21, 3
      %s296 = scalar_select %p295, %s21, 3
      %s297 = scalar_lea.vmem %s4, %s296
      %p298 = scmp.lt.s32.totalorder %s21, 3
      %s299 = scalar_select %p298, %s21, 3
      %s300 = scalar_lea.vmem %s5, %s299
      %p302 = scmp.eq.s32.totalorder %s22, 0
      // Predicated region
      $region33: #{generator_forward.9} parent=31 // pred_check
        %p303 = pneg %p302
      $region34: #{generator_forward.9} parent=31 // pred_check_branch
        %305 = sbr.rel (%p303) target = $region36
      $region35: #{generator_forward.9} parent=31 // pred_region
        %306 = vst [vmem:[%s297] sm:$0x1] 0.0
        %307 = vst [vmem:[%s300] sm:$0x1] 0.0
      $region36: #{generator_forward.9} parent=31 // pred_fallthru
        _
      %v308 = vld [vmem:[%s278] sm:$0xf]
      %v309 = vld [vmem:[%s278 + $0x4] sm:$0xf]
      %v310 = vld [vmem:[%s284] sm:$0xf]
      %v311 = vld [vmem:[%s284 + $0x4] sm:$0xf]
      %v312 = vld [vmem:[%s284 + $0x8] sm:$0xf]
      %v313 = vld [vmem:[%s284 + $0xc] sm:$0xf]
      %v314 = vld [vmem:[%s284 + $0x10] sm:$0xf]
      %v315 = vld [vmem:[%s284 + $0x14] sm:$0xf]
      %v316 = vld [vmem:[%s284 + $0x18] sm:$0xf]
      %v317 = vld [vmem:[%s284 + $0x1c] sm:$0xf]
      %v318 = vld [vmem:[%s284 + $0x20] sm:$0xf]
      %v319 = vld [vmem:[%s284 + $0x24] sm:$0xf]
      %v320 = vld [vmem:[%s284 + $0x28] sm:$0xf]
      %v321 = vld [vmem:[%s284 + $0x2c] sm:$0xf]
      %v322 = vld [vmem:[%s284 + $0x30] sm:$0xf]
      %v323 = vld [vmem:[%s284 + $0x34] sm:$0xf]
      %v324 = vld [vmem:[%s284 + $0x38] sm:$0xf]
      %v325 = vld [vmem:[%s284 + $0x3c] sm:$0xf]
      %v326 = vld [vmem:[%s2] sm:$0x1]
      %v328 = vlaneseq
      %v329 = vshrl.u32 %v328, 7
      %v330 = vsub.s32 0, %v329
      %v331 = vrot.slane %v326, %v330
      %v335 = vunpack.c.l.b16 %v308
      %v336 = vunpack.c.l.b16 %v309
      %v337 = vpack.c.b16 %v336, %v335
      %v355 = vunpack.c.l.b16 %v310
      %v356 = vunpack.c.l.b16 %v311
      %v357 = vunpack.c.l.b16 %v312
      %v358 = vunpack.c.l.b16 %v313
      %v359 = vunpack.c.l.b16 %v314
      %v360 = vunpack.c.l.b16 %v315
      %v361 = vunpack.c.l.b16 %v316
      %v362 = vunpack.c.l.b16 %v317
      %v363 = vunpack.c.l.b16 %v318
      %v364 = vunpack.c.l.b16 %v319
      %v365 = vunpack.c.l.b16 %v320
      %v366 = vunpack.c.l.b16 %v321
      %v367 = vunpack.c.l.b16 %v322
      %v368 = vunpack.c.l.b16 %v323
      %v369 = vunpack.c.l.b16 %v324
      %v370 = vunpack.c.l.b16 %v325
      %v371 = vpack.c.b16 %v356, %v355
      %v372 = vpack.c.b16 %v358, %v357
      %v373 = vpack.c.b16 %v360, %v359
      %v374 = vpack.c.b16 %v362, %v361
      %v375 = vpack.c.b16 %v364, %v363
      %v376 = vpack.c.b16 %v366, %v365
      %v377 = vpack.c.b16 %v368, %v367
      %v378 = vpack.c.b16 %v370, %v369
      %387 = vmatprep.subr.bf16.mxu0 0
      %388 = vmatpush1.bf16.msra.mxu0 %v378
      %389 = vmatprep.subr.bf16.mxu0 0
      %390 = vmatpush1.bf16.msra.mxu0 %v377
      %391 = vmatprep.subr.bf16.mxu0 0
      %392 = vmatpush1.bf16.msra.mxu0 %v376
      %393 = vmatprep.subr.bf16.mxu0 0
      %394 = vmatpush1.bf16.msra.mxu0 %v375
      %395 = vmatprep.subr.bf16.mxu0 0
      %396 = vmatpush1.bf16.msra.mxu0 %v374
      %397 = vmatprep.subr.bf16.mxu0 0
      %398 = vmatpush1.bf16.msra.mxu0 %v373
      %399 = vmatprep.subr.bf16.mxu0 0
      %400 = vmatpush1.bf16.msra.mxu0 %v372
      %401 = vmatprep.subr.bf16.mxu0 0
      %402 = vmatpush1.bf16.msra.mxu0 %v371
      %403 = vmatprep.subr.bf16.mxu0 0
      %404 = vmatpush2.bf16.msra.mxu0 0
      %405 = vmatprep.subr.bf16.mxu0 0
      %406 = vmatpush2.bf16.msra.mxu0 0
      %407 = vmatprep.subr.bf16.mxu0 0
      %408 = vmatpush2.bf16.msra.mxu0 0
      %409 = vmatprep.subr.bf16.mxu0 0
      %410 = vmatpush2.bf16.msra.mxu0 0
      %411 = vmatprep.subr.bf16.mxu0 0
      %412 = vmatpush2.bf16.msra.mxu0 0
      %413 = vmatprep.subr.bf16.mxu0 0
      %414 = vmatpush2.bf16.msra.mxu0 0
      %415 = vmatprep.subr.bf16.mxu0 0
      %416 = vmatpush2.bf16.msra.mxu0 0
      %417 = vmatprep.subr.bf16.mxu0 0
      %418 = vmatpush2.bf16.msra.mxu0 0
      %419 = vmatprep.mubr.bf16.mxu0 0
      %420 = vmatmul.mubr.bf16.gmra.mxu0 %v337
      %v421 = vpop.f32.mrf.mxu0
      %v422 = vadd.f32 %v331, %v421
      %v423 = vpop.f32.mrf.mxu0
      %v424 = vpop.f32.mrf.mxu0
      %v425 = vadd.f32 %v331, %v424
      %v426 = vpop.f32.mrf.mxu0
      %427 = vdwg.mxu0
      %v428 = vld [vmem:[%s297] sm:$0x1]
      %v429 = vadd.f32 %v422, %v425
      %v430 = vrot.slane %v429, 4
      %v431 = vadd.f32 %v429, %v430
      %v432 = vrot.slane %v431, 2
      %v433 = vadd.f32 %v431, %v432
      %v434 = vrot.slane %v433, 1
      %v435 = vadd.f32 %v433, %v434
      %v436 = vadd.f32 %v428, %v435
      %437 = vst [vmem:[%s297] sm:$0x1] %v436
      %v438 = vld [vmem:[%s300] sm:$0x1]
      %v439 = vmul.f32 %v422, %v422
      %v440 = vmul.f32 %v425, %v425
      %v441 = vadd.f32 %v439, %v440
      %v442 = vrot.slane %v441, 4
      %v443 = vadd.f32 %v441, %v442
      %v444 = vrot.slane %v443, 2
      %v445 = vadd.f32 %v443, %v444
      %v446 = vrot.slane %v445, 1
      %v447 = vadd.f32 %v445, %v446
      %v448 = vadd.f32 %v438, %v447
      %449 = vst [vmem:[%s300] sm:$0x1] %v448
      %v450 = vpack.c.bf16 %v425, %v422
      %v452 = vunpack.c.l.b16 %v450
      %v453 = vunpack.c.h.b16 %v450
      %v454 = vpack.c.b16 %v452, %v452
      %v455 = vpack.c.b16 %v453, %v453
      %458 = vst [vmem:[%s293] sm:$0xf] %v454
      %459 = vst [vmem:[%s293 + $0x4] sm:$0xf] %v455
      %s460 = smul.u32 2, %s22
      %p461 = scmp.lt.s32.totalorder %s21, 3
      %s462 = scalar_select %p461, %s21, 3
      %p463 = scmp.lt.s32.totalorder %s460, 1
      %s464 = scalar_select %p463, %s460, 1
      %s465 = smul.addr %s462, 2
      %s466 = sadd.s32 %s464, %s465
      %s467 = smul.addr %s466, 4
      %s468 = scalar_lea.vmem %s3, %s467
      %p469 = scmp.lt.s32.totalorder %s21, 3
      %s470 = scalar_select %p469, %s21, 3
      %s471 = scalar_lea.vmem %s4, %s470
      %p472 = scmp.lt.s32.totalorder %s21, 3
      %s473 = scalar_select %p472, %s21, 3
      %s474 = scalar_lea.vmem %s5, %s473
      // Predicated region
      $region37: #{generator_forward.9} parent=31 // pred_check
        %p475 = pneg %p124
      $region38: #{generator_forward.9} parent=31 // pred_check_branch
        %477 = sbr.rel (%p475) target = $region40
      $region39: #{generator_forward.9} parent=31 // pred_region
        %s478 = smul.u32 2, %s22
      $region40: #{generator_forward.9} parent=31 // pred_fallthru
        _
      // Predicated region
      $region41: #{generator_forward.9} parent=31 // pred_check
        %p479 = pneg %p150
      $region42: #{generator_forward.9} parent=31 // pred_check_branch
        %481 = sbr.rel (%p479) target = $region44
      $region43: #{generator_forward.9} parent=31 // pred_region
        _
      $region44: #{generator_forward.9} parent=31 // pred_fallthru
        _
      // Predicated region
      $region45: #{generator_forward.9} parent=31 // pred_check
        %p482 = pneg %p176
      $region46: #{generator_forward.9} parent=31 // pred_check_branch
        %484 = sbr.rel (%p482) target = $region48
      $region47: #{generator_forward.9} parent=31 // pred_region
        _
      $region48: #{generator_forward.9} parent=31 // pred_fallthru
        _
    $region32: #{generator_forward.9} parent=5 // pred_fallthru
      _
    %p485 = scmp.le.s32.totalorder 2, %s12
    // Predicated region
    $region49: #{generator_forward.9} parent=5 // pred_check
      %p486 = pneg %p485
    $region50: #{generator_forward.9} parent=5 // pred_check_branch
      %488 = sbr.rel (%p486) target = $region52
    $region51: #{generator_forward.9} parent=5 // pred_region
      %s489 = ssub.s32 %s12, 2
      // Predicated region
      $region53: #{generator_forward.9} parent=51 // pred_check
        %p490 = pneg %p130
      $region54: #{generator_forward.9} parent=51 // pred_check_branch
        %492 = sbr.rel (%p490) target = $region56
      $region55: #{generator_forward.9} parent=51 // pred_region
        %s493 = smul.u32 2, %s24
        %p494 = scmp.lt.s32.totalorder %s23, 3
        %s495 = scalar_select %p494, %s23, 3
        %p496 = scmp.lt.s32.totalorder %s493, 1
        %s497 = scalar_select %p496, %s493, 1
        %s498 = smul.addr %s495, 2
        %s499 = sadd.s32 %s497, %s498
        %s500 = smul.addr %s499, 4
        %s501 = scalar_lea.vmem %s3, %s500
      $region56: #{generator_forward.9} parent=51 // pred_fallthru
        _
      // Predicated region
      $region57: #{generator_forward.9} parent=51 // pred_check
        %p502 = pneg %p156
      $region58: #{generator_forward.9} parent=51 // pred_check_branch
        %504 = sbr.rel (%p502) target = $region60
      $region59: #{generator_forward.9} parent=51 // pred_region
        %p505 = scmp.lt.s32.totalorder %s23, 3
        %s506 = scalar_select %p505, %s23, 3
        %s507 = scalar_lea.vmem %s4, %s506
      $region60: #{generator_forward.9} parent=51 // pred_fallthru
        _
      // Predicated region
      $region61: #{generator_forward.9} parent=51 // pred_check
        %p508 = pneg %p182
      $region62: #{generator_forward.9} parent=51 // pred_check_branch
        %510 = sbr.rel (%p508) target = $region64
      $region63: #{generator_forward.9} parent=51 // pred_region
        %p511 = scmp.lt.s32.totalorder %s23, 3
        %s512 = scalar_select %p511, %s23, 3
        %s513 = scalar_lea.vmem %s5, %s512
      $region64: #{generator_forward.9} parent=51 // pred_fallthru
        _
    $region52: #{generator_forward.9} parent=5 // pred_fallthru
      _
  $region6: #{generator_forward.9} parent=0 // loop_footer
    %s16 = sadd.s32 1, %s12
  $region7: #{generator_forward.9} parent=0 // loop_footer_branch
    %11 = sbr.rel target = $region3
  $region8: #{generator_forward.9} parent=0 // loop_exit
    _

// kernel: generator_forward.12
$region0: #{generator_forward.12}
  #allocation0 [shape = 'u32[]', space=smem, size = 0x4, offset = 0x4, fixed_abs, tag = 'smem constant byte address 0x4 - core index']
  #allocation1 [shape = 'u32[144,128]{1,0:T(1,128)}', space=vmem, size = 0x12000, scoped, tag = 'internal scratch']
  %s0 = inlined_call_operand.vmem [shape: bf16[128,128], index: 0, kind: input, shape index: {}]
  %s1 = inlined_call_operand.vmem [shape: f32[1,128], index: 1, kind: input, shape index: {}]
  %s2 = inlined_call_operand.vmem [shape: f32[1,128], index: 2, kind: input, shape index: {}]
  %s3 = inlined_call_operand.vmem [shape: bf16[128,128], index: 3, kind: output, shape index: {}]
  %s4 = sld [smem:[#allocation0]]
  $region22: #{generator_forward.12} parent=0
    _
  %s6 = ssub.s32 1, %s4
  %s7 = scalar_select 0, %s6, %s4
  // Predicated region
  $region2: #{generator_forward.12} parent=0 // pred_check
    _
  $region3: #{generator_forward.12} parent=0 // pred_check_branch
    %9 = sbr.rel (0) target = $region5
  $region4: #{generator_forward.12} parent=0 // pred_region
    _
  $region5: #{generator_forward.12} parent=0 // pred_fallthru
    _
  // Predicated region
  $region6: #{generator_forward.12} parent=0 // pred_check
    _
  $region7: #{generator_forward.12} parent=0 // pred_check_branch
    %11 = sbr.rel (0) target = $region9
  $region8: #{generator_forward.12} parent=0 // pred_region
    _
  $region9: #{generator_forward.12} parent=0 // pred_fallthru
    _
  // Predicated region
  $region10: #{generator_forward.12} parent=0 // pred_check
    _
  $region11: #{generator_forward.12} parent=0 // pred_check_branch
    %13 = sbr.rel (0) target = $region13
  $region12: #{generator_forward.12} parent=0 // pred_region
    _
  $region13: #{generator_forward.12} parent=0 // pred_fallthru
    _
  %v14 = vld [vmem:[%s0] sm:$0xf]
  %v15 = vld [vmem:[%s0 + $0x4] sm:$0xf]
  %v16 = vld [vmem:[%s0 + $0x8] sm:$0xf]
  %v17 = vld [vmem:[%s0 + $0xc] sm:$0xf]
  %v18 = vld [vmem:[%s0 + $0x10] sm:$0xf]
  %v19 = vld [vmem:[%s0 + $0x14] sm:$0xf]
  %v20 = vld [vmem:[%s0 + $0x18] sm:$0xf]
  %v21 = vld [vmem:[%s0 + $0x1c] sm:$0xf]
  %v22 = vld [vmem:[%s0 + $0x20] sm:$0xf]
  %v23 = vld [vmem:[%s0 + $0x24] sm:$0xf]
  %v24 = vld [vmem:[%s0 + $0x28] sm:$0xf]
  %v25 = vld [vmem:[%s0 + $0x2c] sm:$0xf]
  %v26 = vld [vmem:[%s0 + $0x30] sm:$0xf]
  %v27 = vld [vmem:[%s0 + $0x34] sm:$0xf]
  %v28 = vld [vmem:[%s0 + $0x38] sm:$0xf]
  %v29 = vld [vmem:[%s0 + $0x3c] sm:$0xf]
  %v30 = vunpack.c.l.bf16 %v14
  %v31 = vunpack.c.l.bf16 %v15
  %v32 = vunpack.c.l.bf16 %v16
  %v33 = vunpack.c.l.bf16 %v17
  %v34 = vunpack.c.l.bf16 %v18
  %v35 = vunpack.c.l.bf16 %v19
  %v36 = vunpack.c.l.bf16 %v20
  %v37 = vunpack.c.l.bf16 %v21
  %v38 = vunpack.c.l.bf16 %v22
  %v39 = vunpack.c.l.bf16 %v23
  %v40 = vunpack.c.l.bf16 %v24
  %v41 = vunpack.c.l.bf16 %v25
  %v42 = vunpack.c.l.bf16 %v26
  %v43 = vunpack.c.l.bf16 %v27
  %v44 = vunpack.c.l.bf16 %v28
  %v45 = vunpack.c.l.bf16 %v29
  %v46 = vld [vmem:[%s1] sm:$0x1]
  %v48 = vlaneseq
  %v49 = vshrl.u32 %v48, 7
  %v50 = vsub.s32 0, %v49
  %v51 = vrot.slane %v46, %v50
  %v53 = vmul.f32 %v30, %v51
  %v54 = vmul.f32 %v31, %v51
  %v55 = vmul.f32 %v32, %v51
  %v56 = vmul.f32 %v33, %v51
  %v57 = vmul.f32 %v34, %v51
  %v58 = vmul.f32 %v35, %v51
  %v59 = vmul.f32 %v36, %v51
  %v60 = vmul.f32 %v37, %v51
  %v61 = vmul.f32 %v38, %v51
  %v62 = vmul.f32 %v39, %v51
  %v63 = vmul.f32 %v40, %v51
  %v64 = vmul.f32 %v41, %v51
  %v65 = vmul.f32 %v42, %v51
  %v66 = vmul.f32 %v43, %v51
  %v67 = vmul.f32 %v44, %v51
  %v68 = vmul.f32 %v45, %v51
  %v69 = vld [vmem:[%s2] sm:$0x1]
  %v71 = vlaneseq
  %v72 = vshrl.u32 %v71, 7
  %v73 = vsub.s32 0, %v72
  %v74 = vrot.slane %v69, %v73
  %v76 = vadd.f32 %v53, %v74
  %v77 = vadd.f32 %v54, %v74
  %v78 = vadd.f32 %v55, %v74
  %v79 = vadd.f32 %v56, %v74
  %v80 = vadd.f32 %v57, %v74
  %v81 = vadd.f32 %v58, %v74
  %v82 = vadd.f32 %v59, %v74
  %v83 = vadd.f32 %v60, %v74
  %v84 = vadd.f32 %v61, %v74
  %v85 = vadd.f32 %v62, %v74
  %v86 = vadd.f32 %v63, %v74
  %v87 = vadd.f32 %v64, %v74
  %v88 = vadd.f32 %v65, %v74
  %v89 = vadd.f32 %v66, %v74
  %v90 = vadd.f32 %v67, %v74
  %v91 = vadd.f32 %v68, %v74
  %v92 = vmax.f32 %v76, 0.0
  %v93 = vmax.f32 %v77, 0.0
  %v94 = vmax.f32 %v78, 0.0
  %v95 = vmax.f32 %v79, 0.0
  %v96 = vmax.f32 %v80, 0.0
  %v97 = vmax.f32 %v81, 0.0
  %v98 = vmax.f32 %v82, 0.0
  %v99 = vmax.f32 %v83, 0.0
  %v100 = vmax.f32 %v84, 0.0
  %v101 = vmax.f32 %v85, 0.0
  %v102 = vmax.f32 %v86, 0.0
  %v103 = vmax.f32 %v87, 0.0
  %v104 = vmax.f32 %v88, 0.0
  %v105 = vmax.f32 %v89, 0.0
  %v106 = vmax.f32 %v90, 0.0
  %v107 = vmax.f32 %v91, 0.0
  %v108 = vpack.c.bf16 %v93, %v92
  %v109 = vpack.c.bf16 %v95, %v94
  %v110 = vpack.c.bf16 %v97, %v96
  %v111 = vpack.c.bf16 %v99, %v98
  %v112 = vpack.c.bf16 %v101, %v100
  %v113 = vpack.c.bf16 %v103, %v102
  %v114 = vpack.c.bf16 %v105, %v104
  %v115 = vpack.c.bf16 %v107, %v106
  %v124 = vunpack.c.l.b16 %v108
  %v125 = vunpack.c.h.b16 %v108
  %v126 = vunpack.c.l.b16 %v109
  %v127 = vunpack.c.h.b16 %v109
  %v128 = vunpack.c.l.b16 %v110
  %v129 = vunpack.c.h.b16 %v110
  %v130 = vunpack.c.l.b16 %v111
  %v131 = vunpack.c.h.b16 %v111
  %v132 = vunpack.c.l.b16 %v112
  %v133 = vunpack.c.h.b16 %v112
  %v134 = vunpack.c.l.b16 %v113
  %v135 = vunpack.c.h.b16 %v113
  %v136 = vunpack.c.l.b16 %v114
  %v137 = vunpack.c.h.b16 %v114
  %v138 = vunpack.c.l.b16 %v115
  %v139 = vunpack.c.h.b16 %v115
  %v140 = vpack.c.b16 %v124, %v124
  %v141 = vpack.c.b16 %v125, %v125
  %v142 = vpack.c.b16 %v126, %v126
  %v143 = vpack.c.b16 %v127, %v127
  %v144 = vpack.c.b16 %v128, %v128
  %v145 = vpack.c.b16 %v129, %v129
  %v146 = vpack.c.b16 %v130, %v130
  %v147 = vpack.c.b16 %v131, %v131
  %v148 = vpack.c.b16 %v132, %v132
  %v149 = vpack.c.b16 %v133, %v133
  %v150 = vpack.c.b16 %v134, %v134
  %v151 = vpack.c.b16 %v135, %v135
  %v152 = vpack.c.b16 %v136, %v136
  %v153 = vpack.c.b16 %v137, %v137
  %v154 = vpack.c.b16 %v138, %v138
  %v155 = vpack.c.b16 %v139, %v139
  %172 = vst [vmem:[%s3] sm:$0xf] %v140
  %173 = vst [vmem:[%s3 + $0x4] sm:$0xf] %v141
  %174 = vst [vmem:[%s3 + $0x8] sm:$0xf] %v142
  %175 = vst [vmem:[%s3 + $0xc] sm:$0xf] %v143
  %176 = vst [vmem:[%s3 + $0x10] sm:$0xf] %v144
  %177 = vst [vmem:[%s3 + $0x14] sm:$0xf] %v145
  %178 = vst [vmem:[%s3 + $0x18] sm:$0xf] %v146
  %179 = vst [vmem:[%s3 + $0x1c] sm:$0xf] %v147
  %180 = vst [vmem:[%s3 + $0x20] sm:$0xf] %v148
  %181 = vst [vmem:[%s3 + $0x24] sm:$0xf] %v149
  %182 = vst [vmem:[%s3 + $0x28] sm:$0xf] %v150
  %183 = vst [vmem:[%s3 + $0x2c] sm:$0xf] %v151
  %184 = vst [vmem:[%s3 + $0x30] sm:$0xf] %v152
  %185 = vst [vmem:[%s3 + $0x34] sm:$0xf] %v153
  %186 = vst [vmem:[%s3 + $0x38] sm:$0xf] %v154
  %187 = vst [vmem:[%s3 + $0x3c] sm:$0xf] %v155
  // Predicated region
  $region14: #{generator_forward.12} parent=0 // pred_check
    _
  $region15: #{generator_forward.12} parent=0 // pred_check_branch
    %189 = sbr.rel (0) target = $region17
  $region16: #{generator_forward.12} parent=0 // pred_region
    _
  $region17: #{generator_forward.12} parent=0 // pred_fallthru
    _
  // Predicated region
  $region18: #{generator_forward.12} parent=0 // pred_check
    _
  $region19: #{generator_forward.12} parent=0 // pred_check_branch
    %191 = sbr.rel (0) target = $region21
  $region20: #{generator_forward.12} parent=0 // pred_region
    _
  $region21: #{generator_forward.12} parent=0 // pred_fallthru
    _

// kernel: generator_forward.11
$region0: #{generator_forward.11}
  #allocation0 [shape = 'u32[]', space=smem, size = 0x4, offset = 0x4, fixed_abs, tag = 'smem constant byte address 0x4 - core index']
  #allocation1 [shape = 'u32[144,128]{1,0:T(1,128)}', space=vmem, size = 0x12000, scoped, tag = 'internal scratch']
  %s0 = inlined_call_operand.vmem [shape: bf16[4,32,256], index: 0, kind: input, shape index: {}]
  %s1 = inlined_call_operand.vmem [shape: bf16[4,256,128], index: 1, kind: input, shape index: {}]
  %s2 = inlined_call_operand.vmem [shape: f32[1,128], index: 2, kind: input, shape index: {}]
  %s3 = inlined_call_operand.vmem [shape: bf16[4,32,128], index: 3, kind: output, shape index: {0}]
  %s4 = inlined_call_operand.vmem [shape: f32[4,1,128], index: 4, kind: output, shape index: {1}]
  %s5 = inlined_call_operand.vmem [shape: f32[4,1,128], index: 5, kind: output, shape index: {2}]
  %6 = xla_tuple %s3, %s4, %s5
  %s7 = sld [smem:[#allocation0]]
  $region65: #{generator_forward.11} parent=0
    _
  %s9 = ssub.s32 1, %s7
  %s10 = scalar_select 0, %s9, %s7
  loop: start=0, step=1, limit=6
  $region2: #{generator_forward.11} parent=0 // loop_pre_header
    _
  $region3: #{generator_forward.11} parent=0 // loop_header
    %s12 = sphi 0, %s16
    %p13 = scmp.ge.s32.totalorder %s12, 6
    %s19 = sphi 0, %s31
    %s20 = sphi 0, %s27
    %s21 = sphi 0, %s19
    %s22 = sphi 0, %s20
    %s23 = sphi 0, %s21
    %s24 = sphi 0, %s22
    %s36 = sphi 0, %s38
    %s39 = sphi 0, %s36
    %s40 = sphi 0, %s39
    %s56 = sphi 0, %s40
    %s62 = sphi 0, %s64
    %s65 = sphi 0, %s62
    %s66 = sphi 0, %s65
    %s82 = sphi 0, %s66
    %s86 = sphi 0, %s86
    %s88 = sphi 0, %s86
    %s89 = sphi 0, %s88
    %s103 = sphi 0, %s89
    %s111 = sphi 0, %s113
    %s114 = sphi 0, %s111
    %s115 = sphi 0, %s114
    %s131 = sphi 0, %s115
    %s137 = sphi 0, %s139
    %s140 = sphi 0, %s137
    %s141 = sphi 0, %s140
    %s157 = sphi 0, %s141
    %s163 = sphi 0, %s165
    %s166 = sphi 0, %s163
    %s167 = sphi 0, %s166
    %s183 = sphi 0, %s167
  $region4: #{generator_forward.11} parent=0 // loop_header_branch
    %15 = sbr.rel (%p13) target = $region8
  $region5: #{generator_forward.11} parent=0 // loop_body
    %s17 = ssub.s32 %s12, 1
    %s18 = ssub.s32 %s12, 2
    %s25 = sadd.s32 1, %s20
    %p26 = scmp.ge.s32.totalorder %s25, 1
    %s27 = scalar_select %p26, 0, %s25
    %s28 = sadd.s32 1, %s19
    %s29 = scalar_select %p26, %s28, %s19
    %p30 = scmp.ge.s32.totalorder %s29, 4
    %s31 = scalar_select %p30, 0, %s29
    %s32 = ssub.s32 %s19, %s31
    %s33 = ssub.s32 %s20, %s27
    %s34 = sor.u32 %s32, %s33
    %p35 = scmp.eq.s32.totalorder %s34, 0
    %s37 = sadd.s32 %s36, 1
    %s38 = scalar_select %p35, %s36, %s37
    %p41 = pneg %p35
    %p42 = scmp.eq.s32.totalorder %s12, 3
    %p43 = por %p41, %p42
    %p44 = scmp.ne.s32.totalorder %s36, %s39
    %p45 = scmp.eq.s32.totalorder %s12, 0
    %p46 = por %p44, %p45
    %p47 = scmp.ne.s32.totalorder %s36, %s39
    %p48 = scmp.eq.s32.totalorder %s17, 3
    %p49 = por %p47, %p48
    %p50 = scmp.ne.s32.totalorder %s39, %s40
    %p51 = scmp.eq.s32.totalorder %s17, 0
    %p52 = por %p50, %p51
    %p53 = scmp.ne.s32.totalorder %s39, %s40
    %p54 = scmp.eq.s32.totalorder %s18, 3
    %p55 = por %p53, %p54
    %p57 = scmp.ne.s32.totalorder %s40, %s56
    %p58 = scmp.eq.s32.totalorder %s18, 0
    %p59 = por %p57, %p58
    %s60 = ssub.s32 %s19, %s31
    %p61 = scmp.eq.s32.totalorder %s60, 0
    %s63 = sadd.s32 %s62, 1
    %s64 = scalar_select %p61, %s62, %s63
    %p67 = pneg %p61
    %p68 = scmp.eq.s32.totalorder %s12, 3
    %p69 = por %p67, %p68
    %p70 = scmp.ne.s32.totalorder %s62, %s65
    %p71 = scmp.eq.s32.totalorder %s12, 0
    %p72 = por %p70, %p71
    %p73 = scmp.ne.s32.totalorder %s62, %s65
    %p74 = scmp.eq.s32.totalorder %s17, 3
    %p75 = por %p73, %p74
    %p76 = scmp.ne.s32.totalorder %s65, %s66
    %p77 = scmp.eq.s32.totalorder %s17, 0
    %p78 = por %p76, %p77
    %p79 = scmp.ne.s32.totalorder %s65, %s66
    %p80 = scmp.eq.s32.totalorder %s18, 3
    %p81 = por %p79, %p80
    %p83 = scmp.ne.s32.totalorder %s66, %s82
    %p84 = scmp.eq.s32.totalorder %s18, 0
    %p85 = por %p83, %p84
    %s87 = sadd.s32 %s86, 1
    %p90 = scmp.eq.s32.totalorder %s12, 3
    %p91 = scmp.ne.s32.totalorder %s86, %s88
    %p92 = scmp.eq.s32.totalorder %s12, 0
    %p93 = por %p91, %p92
    %p94 = scmp.ne.s32.totalorder %s86, %s88
    %p95 = scmp.eq.s32.totalorder %s17, 3
    %p96 = por %p94, %p95
    %p97 = scmp.ne.s32.totalorder %s88, %s89
    %p98 = scmp.eq.s32.totalorder %s17, 0
    %p99 = por %p97, %p98
    %p100 = scmp.ne.s32.totalorder %s88, %s89
    %p101 = scmp.eq.s32.totalorder %s18, 3
    %p102 = por %p100, %p101
    %p104 = scmp.ne.s32.totalorder %s89, %s103
    %p105 = scmp.eq.s32.totalorder %s18, 0
    %p106 = por %p104, %p105
    %s107 = ssub.s32 %s19, %s31
    %s108 = ssub.s32 %s20, %s27
    %s109 = sor.u32 %s107, %s108
    %p110 = scmp.eq.s32.totalorder %s109, 0
    %s112 = sadd.s32 %s111, 1
    %s113 = scalar_select %p110, %s111, %s112
    %p116 = pneg %p110
    %p117 = scmp.eq.s32.totalorder %s12, 3
    %p118 = por %p116, %p117
    %p119 = scmp.ne.s32.totalorder %s111, %s114
    %p120 = scmp.eq.s32.totalorder %s12, 0
    %p121 = por %p119, %p120
    %p122 = scmp.ne.s32.totalorder %s111, %s114
    %p123 = scmp.eq.s32.totalorder %s17, 3
    %p124 = por %p122, %p123
    %p125 = scmp.ne.s32.totalorder %s114, %s115
    %p126 = scmp.eq.s32.totalorder %s17, 0
    %p127 = por %p125, %p126
    %p128 = scmp.ne.s32.totalorder %s114, %s115
    %p129 = scmp.eq.s32.totalorder %s18, 3
    %p130 = por %p128, %p129
    %p132 = scmp.ne.s32.totalorder %s115, %s131
    %p133 = scmp.eq.s32.totalorder %s18, 0
    %p134 = por %p132, %p133
    %s135 = ssub.s32 %s19, %s31
    %p136 = scmp.eq.s32.totalorder %s135, 0
    %s138 = sadd.s32 %s137, 1
    %s139 = scalar_select %p136, %s137, %s138
    %p142 = pneg %p136
    %p143 = scmp.eq.s32.totalorder %s12, 3
    %p144 = por %p142, %p143
    %p145 = scmp.ne.s32.totalorder %s137, %s140
    %p146 = scmp.eq.s32.totalorder %s12, 0
    %p147 = por %p145, %p146
    %p148 = scmp.ne.s32.totalorder %s137, %s140
    %p149 = scmp.eq.s32.totalorder %s17, 3
    %p150 = por %p148, %p149
    %p151 = scmp.ne.s32.totalorder %s140, %s141
    %p152 = scmp.eq.s32.totalorder %s17, 0
    %p153 = por %p151, %p152
    %p154 = scmp.ne.s32.totalorder %s140, %s141
    %p155 = scmp.eq.s32.totalorder %s18, 3
    %p156 = por %p154, %p155
    %p158 = scmp.ne.s32.totalorder %s141, %s157
    %p159 = scmp.eq.s32.totalorder %s18, 0
    %p160 = por %p158, %p159
    %s161 = ssub.s32 %s19, %s31
    %p162 = scmp.eq.s32.totalorder %s161, 0
    %s164 = sadd.s32 %s163, 1
    %s165 = scalar_select %p162, %s163, %s164
    %p168 = pneg %p162
    %p169 = scmp.eq.s32.totalorder %s12, 3
    %p170 = por %p168, %p169
    %p171 = scmp.ne.s32.totalorder %s163, %s166
    %p172 = scmp.eq.s32.totalorder %s12, 0
    %p173 = por %p171, %p172
    %p174 = scmp.ne.s32.totalorder %s163, %s166
    %p175 = scmp.eq.s32.totalorder %s17, 3
    %p176 = por %p174, %p175
    %p177 = scmp.ne.s32.totalorder %s166, %s167
    %p178 = scmp.eq.s32.totalorder %s17, 0
    %p179 = por %p177, %p178
    %p180 = scmp.ne.s32.totalorder %s166, %s167
    %p181 = scmp.eq.s32.totalorder %s18, 3
    %p182 = por %p180, %p181
    %p184 = scmp.ne.s32.totalorder %s167, %s183
    %p185 = scmp.eq.s32.totalorder %s18, 0
    %p186 = por %p184, %p185
    %p187 = scmp.le.s32.totalorder 1, %s12
    %p188 = scmp.lt.s32.totalorder %s12, 5
    %p189 = pnand %p187, %p188
    %p190 = pneg %p189
    // Predicated region
    $region9: #{generator_forward.11} parent=5 // pred_check
      _
    $region10: #{generator_forward.11} parent=5 // pred_check_branch
      %192 = sbr.rel (%p189) target = $region12
    $region11: #{generator_forward.11} parent=5 // pred_region
      %s193 = ssub.s32 %s12, 1
      // Predicated region
      $region13: #{generator_forward.11} parent=11 // pred_check
        %p194 = pneg %p99
      $region14: #{generator_forward.11} parent=11 // pred_check_branch
        %196 = sbr.rel (%p194) target = $region16
      $region15: #{generator_forward.11} parent=11 // pred_region
        _
      $region16: #{generator_forward.11} parent=11 // pred_fallthru
        _
    $region12: #{generator_forward.11} parent=5 // pred_fallthru
      _
    %p197 = scmp.lt.s32.totalorder %s12, 4
    // Predicated region
    $region17: #{generator_forward.11} parent=5 // pred_check
      %p198 = pneg %p197
    $region18: #{generator_forward.11} parent=5 // pred_check_branch
      %200 = sbr.rel (%p198) target = $region20
    $region19: #{generator_forward.11} parent=5 // pred_region
      // Predicated region
      $region21: #{generator_forward.11} parent=19 // pred_check
        %p201 = pneg %p46
      $region22: #{generator_forward.11} parent=19 // pred_check_branch
        %203 = sbr.rel (%p201) target = $region24
      $region23: #{generator_forward.11} parent=19 // pred_region
        %s204 = smul.u32 4, %s20
        %p205 = scmp.lt.s32.totalorder %s19, 3
        %s206 = scalar_select %p205, %s19, 3
        %p207 = scmp.lt.s32.totalorder %s204, 3
        %s208 = scalar_select %p207, %s204, 3
        %s209 = smul.addr %s208, 2
        %s210 = smul.addr %s206, 8
        %s211 = sadd.s32 %s209, %s210
        %s212 = smul.addr %s211, 4
        %s213 = scalar_lea.vmem %s0, %s212
        %s214 = smul.u32 4, %s20
      $region24: #{generator_forward.11} parent=19 // pred_fallthru
        _
      // Predicated region
      $region25: #{generator_forward.11} parent=19 // pred_check
        %p215 = pneg %p72
      $region26: #{generator_forward.11} parent=19 // pred_check_branch
        %217 = sbr.rel (%p215) target = $region28
      $region27: #{generator_forward.11} parent=19 // pred_region
        %p218 = scmp.lt.s32.totalorder %s19, 3
        %s219 = scalar_select %p218, %s19, 3
        %s220 = smul.addr %s219, 32
        %s221 = smul.addr %s220, 4
        %s222 = scalar_lea.vmem %s1, %s221
      $region28: #{generator_forward.11} parent=19 // pred_fallthru
        _
    $region20: #{generator_forward.11} parent=5 // pred_fallthru
      _
    %p223 = scmp.le.s32.totalorder 1, %s12
    %p224 = scmp.lt.s32.totalorder %s12, 5
    %p225 = pnand %p223, %p224
    %p226 = pneg %p225
    // Predicated region
    $region29: #{generator_forward.11} parent=5 // pred_check
      _
    $region30: #{generator_forward.11} parent=5 // pred_check_branch
      %228 = sbr.rel (%p225) target = $region32
    $region31: #{generator_forward.11} parent=5 // pred_region
      %s229 = ssub.s32 %s12, 1
      %s230 = smul.u32 4, %s22
      %p231 = scmp.lt.s32.totalorder %s21, 3
      %s232 = scalar_select %p231, %s21, 3
      %p233 = scmp.lt.s32.totalorder %s230, 3
      %s234 = scalar_select %p233, %s230, 3
      %s235 = smul.addr %s234, 2
      %s236 = smul.addr %s232, 8
      %s237 = sadd.s32 %s235, %s236
      %s238 = smul.addr %s237, 4
      %s239 = scalar_lea.vmem %s0, %s238
      %p240 = pneg %p52
      %p241 = pneg %p49
      %p242 = scmp.lt.s32.totalorder %s21, 3
      %s243 = scalar_select %p242, %s21, 3
      %s244 = smul.addr %s243, 32
      %s245 = smul.addr %s244, 4
      %s246 = scalar_lea.vmem %s1, %s245
      %p247 = pneg %p78
      %p248 = pneg %p75
      %p249 = pneg %p99
      %p250 = pneg %p96
      %p251 = pneg %p127
      %p252 = pneg %p124
      %s253 = smul.u32 4, %s22
      %p254 = scmp.lt.s32.totalorder %s21, 3
      %s255 = scalar_select %p254, %s21, 3
      %p256 = scmp.lt.s32.totalorder %s253, 3
      %s257 = scalar_select %p256, %s253, 3
      %s258 = smul.addr %s255, 4
      %s259 = sadd.s32 %s257, %s258
      %s260 = smul.addr %s259, 4
      %s261 = scalar_lea.vmem %s3, %s260
      %p262 = pneg %p153
      %p263 = pneg %p150
      %p264 = scmp.lt.s32.totalorder %s21, 3
      %s265 = scalar_select %p264, %s21, 3
      %s266 = scalar_lea.vmem %s4, %s265
      %p267 = pneg %p179
      %p268 = pneg %p176
      %p269 = scmp.lt.s32.totalorder %s21, 3
      %s270 = scalar_select %p269, %s21, 3
      %s271 = scalar_lea.vmem %s5, %s270
      %s272 = smul.u32 4, %s22
      %p273 = scmp.lt.s32.totalorder %s21, 3
      %s274 = scalar_select %p273, %s21, 3
      %p275 = scmp.lt.s32.totalorder %s272, 3
      %s276 = scalar_select %p275, %s272, 3
      %s277 = smul.addr %s276, 2
      %s278 = smul.addr %s274, 8
      %s279 = sadd.s32 %s277, %s278
      %s280 = smul.addr %s279, 4
      %s281 = scalar_lea.vmem %s0, %s280
      %s282 = smul.u32 4, %s22
      %p283 = scmp.lt.s32.totalorder %s21, 3
      %s284 = scalar_select %p283, %s21, 3
      %s285 = smul.addr %s284, 32
      %s286 = smul.addr %s285, 4
      %s287 = scalar_lea.vmem %s1, %s286
      %s288 = smul.u32 4, %s22
      %p289 = scmp.lt.s32.totalorder %s21, 3
      %s290 = scalar_select %p289, %s21, 3
      %p291 = scmp.lt.s32.totalorder %s288, 3
      %s292 = scalar_select %p291, %s288, 3
      %s293 = smul.addr %s290, 4
      %s294 = sadd.s32 %s292, %s293
      %s295 = smul.addr %s294, 4
      %s296 = scalar_lea.vmem %s3, %s295
      %s297 = smul.u32 4, %s22
      %p298 = scmp.lt.s32.totalorder %s21, 3
      %s299 = scalar_select %p298, %s21, 3
      %s300 = scalar_lea.vmem %s4, %s299
      %p301 = scmp.lt.s32.totalorder %s21, 3
      %s302 = scalar_select %p301, %s21, 3
      %s303 = scalar_lea.vmem %s5, %s302
      %p305 = scmp.eq.s32.totalorder %s22, 0
      // Predicated region
      $region33: #{generator_forward.11} parent=31 // pred_check
        %p306 = pneg %p305
      $region34: #{generator_forward.11} parent=31 // pred_check_branch
        %308 = sbr.rel (%p306) target = $region36
      $region35: #{generator_forward.11} parent=31 // pred_region
        %309 = vst [vmem:[%s300] sm:$0x1] 0.0
        %310 = vst [vmem:[%s303] sm:$0x1] 0.0
      $region36: #{generator_forward.11} parent=31 // pred_fallthru
        _
      %v311 = vld [vmem:[%s281] sm:$0xff]
      %v312 = vld [vmem:[%s281 + $0x8] sm:$0xff]
      %v313 = vld [vmem:[%s281 + $0x10] sm:$0xff]
      %v314 = vld [vmem:[%s281 + $0x18] sm:$0xff]
      %v315 = vld [vmem:[%s287] sm:$0xf]
      %v316 = vld [vmem:[%s287 + $0x4] sm:$0xf]
      %v317 = vld [vmem:[%s287 + $0x8] sm:$0xf]
      %v318 = vld [vmem:[%s287 + $0xc] sm:$0xf]
      %v319 = vld [vmem:[%s287 + $0x10] sm:$0xf]
      %v320 = vld [vmem:[%s287 + $0x14] sm:$0xf]
      %v321 = vld [vmem:[%s287 + $0x18] sm:$0xf]
      %v322 = vld [vmem:[%s287 + $0x1c] sm:$0xf]
      %v323 = vld [vmem:[%s287 + $0x20] sm:$0xf]
      %v324 = vld [vmem:[%s287 + $0x24] sm:$0xf]
      %v325 = vld [vmem:[%s287 + $0x28] sm:$0xf]
      %v326 = vld [vmem:[%s287 + $0x2c] sm:$0xf]
      %v327 = vld [vmem:[%s287 + $0x30] sm:$0xf]
      %v328 = vld [vmem:[%s287 + $0x34] sm:$0xf]
      %v329 = vld [vmem:[%s287 + $0x38] sm:$0xf]
      %v330 = vld [vmem:[%s287 + $0x3c] sm:$0xf]
      %v331 = vld [vmem:[%s287 + $0x40] sm:$0xf]
      %v332 = vld [vmem:[%s287 + $0x44] sm:$0xf]
      %v333 = vld [vmem:[%s287 + $0x48] sm:$0xf]
      %v334 = vld [vmem:[%s287 + $0x4c] sm:$0xf]
      %v335 = vld [vmem:[%s287 + $0x50] sm:$0xf]
      %v336 = vld [vmem:[%s287 + $0x54] sm:$0xf]
      %v337 = vld [vmem:[%s287 + $0x58] sm:$0xf]
      %v338 = vld [vmem:[%s287 + $0x5c] sm:$0xf]
      %v339 = vld [vmem:[%s287 + $0x60] sm:$0xf]
      %v340 = vld [vmem:[%s287 + $0x64] sm:$0xf]
      %v341 = vld [vmem:[%s287 + $0x68] sm:$0xf]
      %v342 = vld [vmem:[%s287 + $0x6c] sm:$0xf]
      %v343 = vld [vmem:[%s287 + $0x70] sm:$0xf]
      %v344 = vld [vmem:[%s287 + $0x74] sm:$0xf]
      %v345 = vld [vmem:[%s287 + $0x78] sm:$0xf]
      %v346 = vld [vmem:[%s287 + $0x7c] sm:$0xf]
      %v347 = vld [vmem:[%s2] sm:$0x1]
      %v349 = vlaneseq
      %v350 = vshrl.u32 %v349, 7
      %v351 = vsub.s32 0, %v350
      %v352 = vrot.slane %v347, %v351
      %v358 = vunpack.c.l.b16 %v311
      %v359 = vunpack.c.h.b16 %v311
      %v360 = vunpack.c.l.b16 %v312
      %v361 = vunpack.c.h.b16 %v312
      %v362 = vunpack.c.l.b16 %v313
      %v363 = vunpack.c.h.b16 %v313
      %v364 = vunpack.c.l.b16 %v314
      %v365 = vunpack.c.h.b16 %v314
      %v366 = vpack.c.b16 %v360, %v358
      %v367 = vpack.c.b16 %v361, %v359
      %v368 = vpack.c.b16 %v364, %v362
      %v369 = vpack.c.b16 %v365, %v363
      %v406 = vunpack.c.l.b16 %v315
      %v407 = vunpack.c.l.b16 %v316
      %v408 = vunpack.c.l.b16 %v317
      %v409 = vunpack.c.l.b16 %v318
      %v410 = vunpack.c.l.b16 %v319
      %v411 = vunpack.c.l.b16 %v320
      %v412 = vunpack.c.l.b16 %v321
      %v413 = vunpack.c.l.b16 %v322
      %v414 = vunpack.c.l.b16 %v323
      %v415 = vunpack.c.l.b16 %v324
      %v416 = vunpack.c.l.b16 %v325
      %v417 = vunpack.c.l.b16 %v326
      %v418 = vunpack.c.l.b16 %v327
      %v419 = vunpack.c.l.b16 %v328
      %v420 = vunpack.c.l.b16 %v329
      %v421 = vunpack.c.l.b16 %v330
      %v422 = vunpack.c.l.b16 %v331
      %v423 = vunpack.c.l.b16 %v332
      %v424 = vunpack.c.l.b16 %v333
      %v425 = vunpack.c.l.b16 %v334
      %v426 = vunpack.c.l.b16 %v335
      %v427 = vunpack.c.l.b16 %v336
      %v428 = vunpack.c.l.b16 %v337
      %v429 = vunpack.c.l.b16 %v338
      %v430 = vunpack.c.l.b16 %v339
      %v431 = vunpack.c.l.b16 %v340
      %v432 = vunpack.c.l.b16 %v341
      %v433 = vunpack.c.l.b16 %v342
      %v434 = vunpack.c.l.b16 %v343
      %v435 = vunpack.c.l.b16 %v344
      %v436 = vunpack.c.l.b16 %v345
      %v437 = vunpack.c.l.b16 %v346
      %v438 = vpack.c.b16 %v407, %v406
      %v439 = vpack.c.b16 %v409, %v408
      %v440 = vpack.c.b16 %v411, %v410
      %v441 = vpack.c.b16 %v413, %v412
      %v442 = vpack.c.b16 %v415, %v414
      %v443 = vpack.c.b16 %v417, %v416
      %v444 = vpack.c.b16 %v419, %v418
      %v445 = vpack.c.b16 %v421, %v420
      %v446 = vpack.c.b16 %v423, %v422
      %v447 = vpack.c.b16 %v425, %v424
      %v448 = vpack.c.b16 %v427, %v426
      %v449 = vpack.c.b16 %v429, %v428
      %v450 = vpack.c.b16 %v431, %v430
      %v451 = vpack.c.b16 %v433, %v432
      %v452 = vpack.c.b16 %v435, %v434
      %v453 = vpack.c.b16 %v437, %v436
      %470 = vmatprep.subr.bf16.mxu0 0
      %471 = vmatpush1.bf16.msra.mxu0 %v445
      %472 = vmatprep.subr.bf16.mxu0 0
      %473 = vmatpush1.bf16.msra.mxu0 %v444
      %474 = vmatprep.subr.bf16.mxu0 0
      %475 = vmatpush1.bf16.msra.mxu0 %v443
      %476 = vmatprep.subr.bf16.mxu0 0
      %477 = vmatpush1.bf16.msra.mxu0 %v442
      %478 = vmatprep.subr.bf16.mxu0 0
      %479 = vmatpush1.bf16.msra.mxu0 %v441
      %480 = vmatprep.subr.bf16.mxu0 0
      %481 = vmatpush1.bf16.msra.mxu0 %v440
      %482 = vmatprep.subr.bf16.mxu0 0
      %483 = vmatpush1.bf16.msra.mxu0 %v439
      %484 = vmatprep.subr.bf16.mxu0 0
      %485 = vmatpush1.bf16.msra.mxu0 %v438
      %486 = vmatprep.subr.bf16.mxu0 0
      %487 = vmatpush2.bf16.msra.mxu0 %v453
      %488 = vmatprep.subr.bf16.mxu0 0
      %489 = vmatpush2.bf16.msra.mxu0 %v452
      %490 = vmatprep.subr.bf16.mxu0 0
      %491 = vmatpush2.bf16.msra.mxu0 %v451
      %492 = vmatprep.subr.bf16.mxu0 0
      %493 = vmatpush2.bf16.msra.mxu0 %v450
      %494 = vmatprep.subr.bf16.mxu0 0
      %495 = vmatpush2.bf16.msra.mxu0 %v449
      %496 = vmatprep.subr.bf16.mxu0 0
      %497 = vmatpush2.bf16.msra.mxu0 %v448
      %498 = vmatprep.subr.bf16.mxu0 0
      %499 = vmatpush2.bf16.msra.mxu0 %v447
      %500 = vmatprep.subr.bf16.mxu0 0
      %501 = vmatpush2.bf16.msra.mxu0 %v446
      %502 = vmatprep.mubr.bf16.mxu0 %v367
      %503 = vmatmul.mubr.bf16.gmra.mxu0 %v366
      %v504 = vpop.f32.mrf.mxu0
      %v505 = vadd.f32 %v352, %v504
      %v506 = vpop.f32.mrf.mxu0
      %v507 = vpop.f32.mrf.mxu0
      %v508 = vadd.f32 %v352, %v507
      %v509 = vpop.f32.mrf.mxu0
      %510 = vmatprep.mubr.bf16.mxu0 %v369
      %511 = vmatmul.mubr.bf16.gmra.mxu0 %v368
      %v512 = vpop.f32.mrf.mxu0
      %v513 = vadd.f32 %v352, %v512
      %v514 = vpop.f32.mrf.mxu0
      %v515 = vpop.f32.mrf.mxu0
      %v516 = vadd.f32 %v352, %v515
      %v517 = vpop.f32.mrf.mxu0
      %518 = vdwg.mxu0
      %v519 = vld [vmem:[%s300] sm:$0x1]
      %v520 = vadd.f32 %v505, %v508
      %v521 = vadd.f32 %v520, %v513
      %v522 = vadd.f32 %v521, %v516
      %v523 = vrot.slane %v522, 4
      %v524 = vadd.f32 %v522, %v523
      %v525 = vrot.slane %v524, 2
      %v526 = vadd.f32 %v524, %v525
      %v527 = vrot.slane %v526, 1
      %v528 = vadd.f32 %v526, %v527
      %v529 = vadd.f32 %v519, %v528
      %530 = vst [vmem:[%s300] sm:$0x1] %v529
      %v531 = vld [vmem:[%s303] sm:$0x1]
      %v532 = vmul.f32 %v505, %v505
      %v533 = vmul.f32 %v508, %v508
      %v534 = vmul.f32 %v513, %v513
      %v535 = vmul.f32 %v516, %v516
      %v536 = vadd.f32 %v532, %v533
      %v537 = vadd.f32 %v536, %v534
      %v538 = vadd.f32 %v537, %v535
      %v539 = vrot.slane %v538, 4
      %v540 = vadd.f32 %v538, %v539
      %v541 = vrot.slane %v540, 2
      %v542 = vadd.f32 %v540, %v541
      %v543 = vrot.slane %v542, 1
      %v544 = vadd.f32 %v542, %v543
      %v545 = vadd.f32 %v531, %v544
      %546 = vst [vmem:[%s303] sm:$0x1] %v545
      %v547 = vpack.c.bf16 %v508, %v505
      %v548 = vpack.c.bf16 %v516, %v513
      %v551 = vunpack.c.l.b16 %v547
      %v552 = vunpack.c.h.b16 %v547
      %v553 = vunpack.c.l.b16 %v548
      %v554 = vunpack.c.h.b16 %v548
      %v555 = vpack.c.b16 %v551, %v551
      %v556 = vpack.c.b16 %v552, %v552
      %v557 = vpack.c.b16 %v553, %v553
      %v558 = vpack.c.b16 %v554, %v554
      %563 = vst [vmem:[%s296] sm:$0xf] %v555
      %564 = vst [vmem:[%s296 + $0x4] sm:$0xf] %v556
      %565 = vst [vmem:[%s296 + $0x8] sm:$0xf] %v557
      %566 = vst [vmem:[%s296 + $0xc] sm:$0xf] %v558
      %s567 = smul.u32 4, %s22
      %p568 = scmp.lt.s32.totalorder %s21, 3
      %s569 = scalar_select %p568, %s21, 3
      %p570 = scmp.lt.s32.totalorder %s567, 3
      %s571 = scalar_select %p570, %s567, 3
      %s572 = smul.addr %s569, 4
      %s573 = sadd.s32 %s571, %s572
      %s574 = smul.addr %s573, 4
      %s575 = scalar_lea.vmem %s3, %s574
      %p576 = scmp.lt.s32.totalorder %s21, 3
      %s577 = scalar_select %p576, %s21, 3
      %s578 = scalar_lea.vmem %s4, %s577
      %p579 = scmp.lt.s32.totalorder %s21, 3
      %s580 = scalar_select %p579, %s21, 3
      %s581 = scalar_lea.vmem %s5, %s580
      // Predicated region
      $region37: #{generator_forward.11} parent=31 // pred_check
        %p582 = pneg %p124
      $region38: #{generator_forward.11} parent=31 // pred_check_branch
        %584 = sbr.rel (%p582) target = $region40
      $region39: #{generator_forward.11} parent=31 // pred_region
        %s585 = smul.u32 4, %s22
      $region40: #{generator_forward.11} parent=31 // pred_fallthru
        _
      // Predicated region
      $region41: #{generator_forward.11} parent=31 // pred_check
        %p586 = pneg %p150
      $region42: #{generator_forward.11} parent=31 // pred_check_branch
        %588 = sbr.rel (%p586) target = $region44
      $region43: #{generator_forward.11} parent=31 // pred_region
        _
      $region44: #{generator_forward.11} parent=31 // pred_fallthru
        _
      // Predicated region
      $region45: #{generator_forward.11} parent=31 // pred_check
        %p589 = pneg %p176
      $region46: #{generator_forward.11} parent=31 // pred_check_branch
        %591 = sbr.rel (%p589) target = $region48
      $region47: #{generator_forward.11} parent=31 // pred_region
        _
      $region48: #{generator_forward.11} parent=31 // pred_fallthru
        _
    $region32: #{generator_forward.11} parent=5 // pred_fallthru
      _
    %p592 = scmp.le.s32.totalorder 2, %s12
    // Predicated region
    $region49: #{generator_forward.11} parent=5 // pred_check
      %p593 = pneg %p592
    $region50: #{generator_forward.11} parent=5 // pred_check_branch
      %595 = sbr.rel (%p593) target = $region52
    $region51: #{generator_forward.11} parent=5 // pred_region
      %s596 = ssub.s32 %s12, 2
      // Predicated region
      $region53: #{generator_forward.11} parent=51 // pred_check
        %p597 = pneg %p130
      $region54: #{generator_forward.11} parent=51 // pred_check_branch
        %599 = sbr.rel (%p597) target = $region56
      $region55: #{generator_forward.11} parent=51 // pred_region
        %s600 = smul.u32 4, %s24
        %p601 = scmp.lt.s32.totalorder %s23, 3
        %s602 = scalar_select %p601, %s23, 3
        %p603 = scmp.lt.s32.totalorder %s600, 3
        %s604 = scalar_select %p603, %s600, 3
        %s605 = smul.addr %s602, 4
        %s606 = sadd.s32 %s604, %s605
        %s607 = smul.addr %s606, 4
        %s608 = scalar_lea.vmem %s3, %s607
      $region56: #{generator_forward.11} parent=51 // pred_fallthru
        _
      // Predicated region
      $region57: #{generator_forward.11} parent=51 // pred_check
        %p609 = pneg %p156
      $region58: #{generator_forward.11} parent=51 // pred_check_branch
        %611 = sbr.rel (%p609) target = $region60
      $region59: #{generator_forward.11} parent=51 // pred_region
        %p612 = scmp.lt.s32.totalorder %s23, 3
        %s613 = scalar_select %p612, %s23, 3
        %s614 = scalar_lea.vmem %s4, %s613
      $region60: #{generator_forward.11} parent=51 // pred_fallthru
        _
      // Predicated region
      $region61: #{generator_forward.11} parent=51 // pred_check
        %p615 = pneg %p182
      $region62: #{generator_forward.11} parent=51 // pred_check_branch
        %617 = sbr.rel (%p615) target = $region64
      $region63: #{generator_forward.11} parent=51 // pred_region
        %p618 = scmp.lt.s32.totalorder %s23, 3
        %s619 = scalar_select %p618, %s23, 3
        %s620 = scalar_lea.vmem %s5, %s619
      $region64: #{generator_forward.11} parent=51 // pred_fallthru
        _
    $region52: #{generator_forward.11} parent=5 // pred_fallthru
      _
  $region6: #{generator_forward.11} parent=0 // loop_footer
    %s16 = sadd.s32 1, %s12
  $region7: #{generator_forward.11} parent=0 // loop_footer_branch
    %11 = sbr.rel target = $region3
  $region8: #{generator_forward.11} parent=0 // loop_exit
    _

// kernel: generator_forward.13
$region0: #{generator_forward.13}
  #allocation0 [shape = 'u32[]', space=smem, size = 0x4, offset = 0x4, fixed_abs, tag = 'smem constant byte address 0x4 - core index']
  #allocation1 [shape = 'u32[144,128]{1,0:T(1,128)}', space=vmem, size = 0x12000, scoped, tag = 'internal scratch']
  %s0 = inlined_call_operand.vmem [shape: bf16[4,128,128], index: 0, kind: input, shape index: {}]
  %s1 = inlined_call_operand.vmem [shape: bf16[4,128,128], index: 1, kind: input, shape index: {}]
  %s2 = inlined_call_operand.vmem [shape: f32[1,128], index: 2, kind: input, shape index: {}]
  %s3 = inlined_call_operand.vmem [shape: bf16[4,128,128], index: 3, kind: output, shape index: {0}]
  %s4 = inlined_call_operand.vmem [shape: f32[4,1,128], index: 4, kind: output, shape index: {1}]
  %s5 = inlined_call_operand.vmem [shape: f32[4,1,128], index: 5, kind: output, shape index: {2}]
  %6 = xla_tuple %s3, %s4, %s5
  %s7 = sld [smem:[#allocation0]]
  $region65: #{generator_forward.13} parent=0
    _
  %s9 = ssub.s32 1, %s7
  %s10 = scalar_select 0, %s9, %s7
  loop: start=0, step=1, limit=6
  $region2: #{generator_forward.13} parent=0 // loop_pre_header
    _
  $region3: #{generator_forward.13} parent=0 // loop_header
    %s12 = sphi 0, %s16
    %p13 = scmp.ge.s32.totalorder %s12, 6
    %s19 = sphi 0, %s31
    %s20 = sphi 0, %s27
    %s21 = sphi 0, %s19
    %s22 = sphi 0, %s20
    %s23 = sphi 0, %s21
    %s24 = sphi 0, %s22
    %s36 = sphi 0, %s38
    %s39 = sphi 0, %s36
    %s40 = sphi 0, %s39
    %s56 = sphi 0, %s40
    %s62 = sphi 0, %s64
    %s65 = sphi 0, %s62
    %s66 = sphi 0, %s65
    %s82 = sphi 0, %s66
    %s86 = sphi 0, %s86
    %s88 = sphi 0, %s86
    %s89 = sphi 0, %s88
    %s103 = sphi 0, %s89
    %s111 = sphi 0, %s113
    %s114 = sphi 0, %s111
    %s115 = sphi 0, %s114
    %s131 = sphi 0, %s115
    %s137 = sphi 0, %s139
    %s140 = sphi 0, %s137
    %s141 = sphi 0, %s140
    %s157 = sphi 0, %s141
    %s163 = sphi 0, %s165
    %s166 = sphi 0, %s163
    %s167 = sphi 0, %s166
    %s183 = sphi 0, %s167
  $region4: #{generator_forward.13} parent=0 // loop_header_branch
    %15 = sbr.rel (%p13) target = $region8
  $region5: #{generator_forward.13} parent=0 // loop_body
    %s17 = ssub.s32 %s12, 1
    %s18 = ssub.s32 %s12, 2
    %s25 = sadd.s32 1, %s20
    %p26 = scmp.ge.s32.totalorder %s25, 1
    %s27 = scalar_select %p26, 0, %s25
    %s28 = sadd.s32 1, %s19
    %s29 = scalar_select %p26, %s28, %s19
    %p30 = scmp.ge.s32.totalorder %s29, 4
    %s31 = scalar_select %p30, 0, %s29
    %s32 = ssub.s32 %s19, %s31
    %s33 = ssub.s32 %s20, %s27
    %s34 = sor.u32 %s32, %s33
    %p35 = scmp.eq.s32.totalorder %s34, 0
    %s37 = sadd.s32 %s36, 1
    %s38 = scalar_select %p35, %s36, %s37
    %p41 = pneg %p35
    %p42 = scmp.eq.s32.totalorder %s12, 3
    %p43 = por %p41, %p42
    %p44 = scmp.ne.s32.totalorder %s36, %s39
    %p45 = scmp.eq.s32.totalorder %s12, 0
    %p46 = por %p44, %p45
    %p47 = scmp.ne.s32.totalorder %s36, %s39
    %p48 = scmp.eq.s32.totalorder %s17, 3
    %p49 = por %p47, %p48
    %p50 = scmp.ne.s32.totalorder %s39, %s40
    %p51 = scmp.eq.s32.totalorder %s17, 0
    %p52 = por %p50, %p51
    %p53 = scmp.ne.s32.totalorder %s39, %s40
    %p54 = scmp.eq.s32.totalorder %s18, 3
    %p55 = por %p53, %p54
    %p57 = scmp.ne.s32.totalorder %s40, %s56
    %p58 = scmp.eq.s32.totalorder %s18, 0
    %p59 = por %p57, %p58
    %s60 = ssub.s32 %s19, %s31
    %p61 = scmp.eq.s32.totalorder %s60, 0
    %s63 = sadd.s32 %s62, 1
    %s64 = scalar_select %p61, %s62, %s63
    %p67 = pneg %p61
    %p68 = scmp.eq.s32.totalorder %s12, 3
    %p69 = por %p67, %p68
    %p70 = scmp.ne.s32.totalorder %s62, %s65
    %p71 = scmp.eq.s32.totalorder %s12, 0
    %p72 = por %p70, %p71
    %p73 = scmp.ne.s32.totalorder %s62, %s65
    %p74 = scmp.eq.s32.totalorder %s17, 3
    %p75 = por %p73, %p74
    %p76 = scmp.ne.s32.totalorder %s65, %s66
    %p77 = scmp.eq.s32.totalorder %s17, 0
    %p78 = por %p76, %p77
    %p79 = scmp.ne.s32.totalorder %s65, %s66
    %p80 = scmp.eq.s32.totalorder %s18, 3
    %p81 = por %p79, %p80
    %p83 = scmp.ne.s32.totalorder %s66, %s82
    %p84 = scmp.eq.s32.totalorder %s18, 0
    %p85 = por %p83, %p84
    %s87 = sadd.s32 %s86, 1
    %p90 = scmp.eq.s32.totalorder %s12, 3
    %p91 = scmp.ne.s32.totalorder %s86, %s88
    %p92 = scmp.eq.s32.totalorder %s12, 0
    %p93 = por %p91, %p92
    %p94 = scmp.ne.s32.totalorder %s86, %s88
    %p95 = scmp.eq.s32.totalorder %s17, 3
    %p96 = por %p94, %p95
    %p97 = scmp.ne.s32.totalorder %s88, %s89
    %p98 = scmp.eq.s32.totalorder %s17, 0
    %p99 = por %p97, %p98
    %p100 = scmp.ne.s32.totalorder %s88, %s89
    %p101 = scmp.eq.s32.totalorder %s18, 3
    %p102 = por %p100, %p101
    %p104 = scmp.ne.s32.totalorder %s89, %s103
    %p105 = scmp.eq.s32.totalorder %s18, 0
    %p106 = por %p104, %p105
    %s107 = ssub.s32 %s19, %s31
    %s108 = ssub.s32 %s20, %s27
    %s109 = sor.u32 %s107, %s108
    %p110 = scmp.eq.s32.totalorder %s109, 0
    %s112 = sadd.s32 %s111, 1
    %s113 = scalar_select %p110, %s111, %s112
    %p116 = pneg %p110
    %p117 = scmp.eq.s32.totalorder %s12, 3
    %p118 = por %p116, %p117
    %p119 = scmp.ne.s32.totalorder %s111, %s114
    %p120 = scmp.eq.s32.totalorder %s12, 0
    %p121 = por %p119, %p120
    %p122 = scmp.ne.s32.totalorder %s111, %s114
    %p123 = scmp.eq.s32.totalorder %s17, 3
    %p124 = por %p122, %p123
    %p125 = scmp.ne.s32.totalorder %s114, %s115
    %p126 = scmp.eq.s32.totalorder %s17, 0
    %p127 = por %p125, %p126
    %p128 = scmp.ne.s32.totalorder %s114, %s115
    %p129 = scmp.eq.s32.totalorder %s18, 3
    %p130 = por %p128, %p129
    %p132 = scmp.ne.s32.totalorder %s115, %s131
    %p133 = scmp.eq.s32.totalorder %s18, 0
    %p134 = por %p132, %p133
    %s135 = ssub.s32 %s19, %s31
    %p136 = scmp.eq.s32.totalorder %s135, 0
    %s138 = sadd.s32 %s137, 1
    %s139 = scalar_select %p136, %s137, %s138
    %p142 = pneg %p136
    %p143 = scmp.eq.s32.totalorder %s12, 3
    %p144 = por %p142, %p143
    %p145 = scmp.ne.s32.totalorder %s137, %s140
    %p146 = scmp.eq.s32.totalorder %s12, 0
    %p147 = por %p145, %p146
    %p148 = scmp.ne.s32.totalorder %s137, %s140
    %p149 = scmp.eq.s32.totalorder %s17, 3
    %p150 = por %p148, %p149
    %p151 = scmp.ne.s32.totalorder %s140, %s141
    %p152 = scmp.eq.s32.totalorder %s17, 0
    %p153 = por %p151, %p152
    %p154 = scmp.ne.s32.totalorder %s140, %s141
    %p155 = scmp.eq.s32.totalorder %s18, 3
    %p156 = por %p154, %p155
    %p158 = scmp.ne.s32.totalorder %s141, %s157
    %p159 = scmp.eq.s32.totalorder %s18, 0
    %p160 = por %p158, %p159
    %s161 = ssub.s32 %s19, %s31
    %p162 = scmp.eq.s32.totalorder %s161, 0
    %s164 = sadd.s32 %s163, 1
    %s165 = scalar_select %p162, %s163, %s164
    %p168 = pneg %p162
    %p169 = scmp.eq.s32.totalorder %s12, 3
    %p170 = por %p168, %p169
    %p171 = scmp.ne.s32.totalorder %s163, %s166
    %p172 = scmp.eq.s32.totalorder %s12, 0
    %p173 = por %p171, %p172
    %p174 = scmp.ne.s32.totalorder %s163, %s166
    %p175 = scmp.eq.s32.totalorder %s17, 3
    %p176 = por %p174, %p175
    %p177 = scmp.ne.s32.totalorder %s166, %s167
    %p178 = scmp.eq.s32.totalorder %s17, 0
    %p179 = por %p177, %p178
    %p180 = scmp.ne.s32.totalorder %s166, %s167
    %p181 = scmp.eq.s32.totalorder %s18, 3
    %p182 = por %p180, %p181
    %p184 = scmp.ne.s32.totalorder %s167, %s183
    %p185 = scmp.eq.s32.totalorder %s18, 0
    %p186 = por %p184, %p185
    %p187 = scmp.le.s32.totalorder 1, %s12
    %p188 = scmp.lt.s32.totalorder %s12, 5
    %p189 = pnand %p187, %p188
    %p190 = pneg %p189
    // Predicated region
    $region9: #{generator_forward.13} parent=5 // pred_check
      _
    $region10: #{generator_forward.13} parent=5 // pred_check_branch
      %192 = sbr.rel (%p189) target = $region12
    $region11: #{generator_forward.13} parent=5 // pred_region
      %s193 = ssub.s32 %s12, 1
      // Predicated region
      $region13: #{generator_forward.13} parent=11 // pred_check
        %p194 = pneg %p99
      $region14: #{generator_forward.13} parent=11 // pred_check_branch
        %196 = sbr.rel (%p194) target = $region16
      $region15: #{generator_forward.13} parent=11 // pred_region
        _
      $region16: #{generator_forward.13} parent=11 // pred_fallthru
        _
    $region12: #{generator_forward.13} parent=5 // pred_fallthru
      _
    %p197 = scmp.lt.s32.totalorder %s12, 4
    // Predicated region
    $region17: #{generator_forward.13} parent=5 // pred_check
      %p198 = pneg %p197
    $region18: #{generator_forward.13} parent=5 // pred_check_branch
      %200 = sbr.rel (%p198) target = $region20
    $region19: #{generator_forward.13} parent=5 // pred_region
      // Predicated region
      $region21: #{generator_forward.13} parent=19 // pred_check
        %p201 = pneg %p46
      $region22: #{generator_forward.13} parent=19 // pred_check_branch
        %203 = sbr.rel (%p201) target = $region24
      $region23: #{generator_forward.13} parent=19 // pred_region
        %s204 = smul.u32 16, %s20
        %p205 = scmp.lt.s32.totalorder %s19, 3
        %s206 = scalar_select %p205, %s19, 3
        %p207 = scmp.lt.s32.totalorder %s204, 15
        %s208 = scalar_select %p207, %s204, 15
        %s209 = smul.addr %s206, 16
        %s210 = sadd.s32 %s208, %s209
        %s211 = smul.addr %s210, 4
        %s212 = scalar_lea.vmem %s0, %s211
        %s213 = smul.u32 16, %s20
      $region24: #{generator_forward.13} parent=19 // pred_fallthru
        _
      // Predicated region
      $region25: #{generator_forward.13} parent=19 // pred_check
        %p214 = pneg %p72
      $region26: #{generator_forward.13} parent=19 // pred_check_branch
        %216 = sbr.rel (%p214) target = $region28
      $region27: #{generator_forward.13} parent=19 // pred_region
        %p217 = scmp.lt.s32.totalorder %s19, 3
        %s218 = scalar_select %p217, %s19, 3
        %s219 = smul.addr %s218, 16
        %s220 = smul.addr %s219, 4
        %s221 = scalar_lea.vmem %s1, %s220
      $region28: #{generator_forward.13} parent=19 // pred_fallthru
        _
    $region20: #{generator_forward.13} parent=5 // pred_fallthru
      _
    %p222 = scmp.le.s32.totalorder 1, %s12
    %p223 = scmp.lt.s32.totalorder %s12, 5
    %p224 = pnand %p222, %p223
    %p225 = pneg %p224
    // Predicated region
    $region29: #{generator_forward.13} parent=5 // pred_check
      _
    $region30: #{generator_forward.13} parent=5 // pred_check_branch
      %227 = sbr.rel (%p224) target = $region32
    $region31: #{generator_forward.13} parent=5 // pred_region
      %s228 = ssub.s32 %s12, 1
      %s229 = smul.u32 16, %s22
      %p230 = scmp.lt.s32.totalorder %s21, 3
      %s231 = scalar_select %p230, %s21, 3
      %p232 = scmp.lt.s32.totalorder %s229, 15
      %s233 = scalar_select %p232, %s229, 15
      %s234 = smul.addr %s231, 16
      %s235 = sadd.s32 %s233, %s234
      %s236 = smul.addr %s235, 4
      %s237 = scalar_lea.vmem %s0, %s236
      %p238 = pneg %p52
      %p239 = pneg %p49
      %p240 = scmp.lt.s32.totalorder %s21, 3
      %s241 = scalar_select %p240, %s21, 3
      %s242 = smul.addr %s241, 16
      %s243 = smul.addr %s242, 4
      %s244 = scalar_lea.vmem %s1, %s243
      %p245 = pneg %p78
      %p246 = pneg %p75
      %p247 = pneg %p99
      %p248 = pneg %p96
      %p249 = pneg %p127
      %p250 = pneg %p124
      %s251 = smul.u32 16, %s22
      %p252 = scmp.lt.s32.totalorder %s21, 3
      %s253 = scalar_select %p252, %s21, 3
      %p254 = scmp.lt.s32.totalorder %s251, 15
      %s255 = scalar_select %p254, %s251, 15
      %s256 = smul.addr %s253, 16
      %s257 = sadd.s32 %s255, %s256
      %s258 = smul.addr %s257, 4
      %s259 = scalar_lea.vmem %s3, %s258
      %p260 = pneg %p153
      %p261 = pneg %p150
      %p262 = scmp.lt.s32.totalorder %s21, 3
      %s263 = scalar_select %p262, %s21, 3
      %s264 = scalar_lea.vmem %s4, %s263
      %p265 = pneg %p179
      %p266 = pneg %p176
      %p267 = scmp.lt.s32.totalorder %s21, 3
      %s268 = scalar_select %p267, %s21, 3
      %s269 = scalar_lea.vmem %s5, %s268
      %s270 = smul.u32 16, %s22
      %p271 = scmp.lt.s32.totalorder %s21, 3
      %s272 = scalar_select %p271, %s21, 3
      %p273 = scmp.lt.s32.totalorder %s270, 15
      %s274 = scalar_select %p273, %s270, 15
      %s275 = smul.addr %s272, 16
      %s276 = sadd.s32 %s274, %s275
      %s277 = smul.addr %s276, 4
      %s278 = scalar_lea.vmem %s0, %s277
      %s279 = smul.u32 16, %s22
      %p280 = scmp.lt.s32.totalorder %s21, 3
      %s281 = scalar_select %p280, %s21, 3
      %s282 = smul.addr %s281, 16
      %s283 = smul.addr %s282, 4
      %s284 = scalar_lea.vmem %s1, %s283
      %s285 = smul.u32 16, %s22
      %p286 = scmp.lt.s32.totalorder %s21, 3
      %s287 = scalar_select %p286, %s21, 3
      %p288 = scmp.lt.s32.totalorder %s285, 15
      %s289 = scalar_select %p288, %s285, 15
      %s290 = smul.addr %s287, 16
      %s291 = sadd.s32 %s289, %s290
      %s292 = smul.addr %s291, 4
      %s293 = scalar_lea.vmem %s3, %s292
      %s294 = smul.u32 16, %s22
      %p295 = scmp.lt.s32.totalorder %s21, 3
      %s296 = scalar_select %p295, %s21, 3
      %s297 = scalar_lea.vmem %s4, %s296
      %p298 = scmp.lt.s32.totalorder %s21, 3
      %s299 = scalar_select %p298, %s21, 3
      %s300 = scalar_lea.vmem %s5, %s299
      %p302 = scmp.eq.s32.totalorder %s22, 0
      // Predicated region
      $region33: #{generator_forward.13} parent=31 // pred_check
        %p303 = pneg %p302
      $region34: #{generator_forward.13} parent=31 // pred_check_branch
        %305 = sbr.rel (%p303) target = $region36
      $region35: #{generator_forward.13} parent=31 // pred_region
        %306 = vst [vmem:[%s297] sm:$0x1] 0.0
        %307 = vst [vmem:[%s300] sm:$0x1] 0.0
      $region36: #{generator_forward.13} parent=31 // pred_fallthru
        _
      %v308 = vld [vmem:[%s278] sm:$0xf]
      %v309 = vld [vmem:[%s278 + $0x4] sm:$0xf]
      %v310 = vld [vmem:[%s278 + $0x8] sm:$0xf]
      %v311 = vld [vmem:[%s278 + $0xc] sm:$0xf]
      %v312 = vld [vmem:[%s278 + $0x10] sm:$0xf]
      %v313 = vld [vmem:[%s278 + $0x14] sm:$0xf]
      %v314 = vld [vmem:[%s278 + $0x18] sm:$0xf]
      %v315 = vld [vmem:[%s278 + $0x1c] sm:$0xf]
      %v316 = vld [vmem:[%s278 + $0x20] sm:$0xf]
      %v317 = vld [vmem:[%s278 + $0x24] sm:$0xf]
      %v318 = vld [vmem:[%s278 + $0x28] sm:$0xf]
      %v319 = vld [vmem:[%s278 + $0x2c] sm:$0xf]
      %v320 = vld [vmem:[%s278 + $0x30] sm:$0xf]
      %v321 = vld [vmem:[%s278 + $0x34] sm:$0xf]
      %v322 = vld [vmem:[%s278 + $0x38] sm:$0xf]
      %v323 = vld [vmem:[%s278 + $0x3c] sm:$0xf]
      %v324 = vld [vmem:[%s284] sm:$0xf]
      %v325 = vld [vmem:[%s284 + $0x4] sm:$0xf]
      %v326 = vld [vmem:[%s284 + $0x8] sm:$0xf]
      %v327 = vld [vmem:[%s284 + $0xc] sm:$0xf]
      %v328 = vld [vmem:[%s284 + $0x10] sm:$0xf]
      %v329 = vld [vmem:[%s284 + $0x14] sm:$0xf]
      %v330 = vld [vmem:[%s284 + $0x18] sm:$0xf]
      %v331 = vld [vmem:[%s284 + $0x1c] sm:$0xf]
      %v332 = vld [vmem:[%s284 + $0x20] sm:$0xf]
      %v333 = vld [vmem:[%s284 + $0x24] sm:$0xf]
      %v334 = vld [vmem:[%s284 + $0x28] sm:$0xf]
      %v335 = vld [vmem:[%s284 + $0x2c] sm:$0xf]
      %v336 = vld [vmem:[%s284 + $0x30] sm:$0xf]
      %v337 = vld [vmem:[%s284 + $0x34] sm:$0xf]
      %v338 = vld [vmem:[%s284 + $0x38] sm:$0xf]
      %v339 = vld [vmem:[%s284 + $0x3c] sm:$0xf]
      %v340 = vld [vmem:[%s2] sm:$0x1]
      %v342 = vlaneseq
      %v343 = vshrl.u32 %v342, 7
      %v344 = vsub.s32 0, %v343
      %v345 = vrot.slane %v340, %v344
      %v363 = vunpack.c.l.b16 %v308
      %v364 = vunpack.c.l.b16 %v309
      %v365 = vunpack.c.l.b16 %v310
      %v366 = vunpack.c.l.b16 %v311
      %v367 = vunpack.c.l.b16 %v312
      %v368 = vunpack.c.l.b16 %v313
      %v369 = vunpack.c.l.b16 %v314
      %v370 = vunpack.c.l.b16 %v315
      %v371 = vunpack.c.l.b16 %v316
      %v372 = vunpack.c.l.b16 %v317
      %v373 = vunpack.c.l.b16 %v318
      %v374 = vunpack.c.l.b16 %v319
      %v375 = vunpack.c.l.b16 %v320
      %v376 = vunpack.c.l.b16 %v321
      %v377 = vunpack.c.l.b16 %v322
      %v378 = vunpack.c.l.b16 %v323
      %v379 = vpack.c.b16 %v364, %v363
      %v380 = vpack.c.b16 %v366, %v365
      %v381 = vpack.c.b16 %v368, %v367
      %v382 = vpack.c.b16 %v370, %v369
      %v383 = vpack.c.b16 %v372, %v371
      %v384 = vpack.c.b16 %v374, %v373
      %v385 = vpack.c.b16 %v376, %v375
      %v386 = vpack.c.b16 %v378, %v377
      %v411 = vunpack.c.l.b16 %v324
      %v412 = vunpack.c.l.b16 %v325
      %v413 = vunpack.c.l.b16 %v326
      %v414 = vunpack.c.l.b16 %v327
      %v415 = vunpack.c.l.b16 %v328
      %v416 = vunpack.c.l.b16 %v329
      %v417 = vunpack.c.l.b16 %v330
      %v418 = vunpack.c.l.b16 %v331
      %v419 = vunpack.c.l.b16 %v332
      %v420 = vunpack.c.l.b16 %v333
      %v421 = vunpack.c.l.b16 %v334
      %v422 = vunpack.c.l.b16 %v335
      %v423 = vunpack.c.l.b16 %v336
      %v424 = vunpack.c.l.b16 %v337
      %v425 = vunpack.c.l.b16 %v338
      %v426 = vunpack.c.l.b16 %v339
      %v427 = vpack.c.b16 %v412, %v411
      %v428 = vpack.c.b16 %v414, %v413
      %v429 = vpack.c.b16 %v416, %v415
      %v430 = vpack.c.b16 %v418, %v417
      %v431 = vpack.c.b16 %v420, %v419
      %v432 = vpack.c.b16 %v422, %v421
      %v433 = vpack.c.b16 %v424, %v423
      %v434 = vpack.c.b16 %v426, %v425
      %443 = vmatprep.subr.bf16.mxu0 0
      %444 = vmatpush1.bf16.msra.mxu0 %v434
      %445 = vmatprep.subr.bf16.mxu0 0
      %446 = vmatpush1.bf16.msra.mxu0 %v433
      %447 = vmatprep.subr.bf16.mxu0 0
      %448 = vmatpush1.bf16.msra.mxu0 %v432
      %449 = vmatprep.subr.bf16.mxu0 0
      %450 = vmatpush1.bf16.msra.mxu0 %v431
      %451 = vmatprep.subr.bf16.mxu0 0
      %452 = vmatpush1.bf16.msra.mxu0 %v430
      %453 = vmatprep.subr.bf16.mxu0 0
      %454 = vmatpush1.bf16.msra.mxu0 %v429
      %455 = vmatprep.subr.bf16.mxu0 0
      %456 = vmatpush1.bf16.msra.mxu0 %v428
      %457 = vmatprep.subr.bf16.mxu0 0
      %458 = vmatpush1.bf16.msra.mxu0 %v427
      %459 = vmatprep.subr.bf16.mxu0 0
      %460 = vmatpush2.bf16.msra.mxu0 0
      %461 = vmatprep.subr.bf16.mxu0 0
      %462 = vmatpush2.bf16.msra.mxu0 0
      %463 = vmatprep.subr.bf16.mxu0 0
      %464 = vmatpush2.bf16.msra.mxu0 0
      %465 = vmatprep.subr.bf16.mxu0 0
      %466 = vmatpush2.bf16.msra.mxu0 0
      %467 = vmatprep.subr.bf16.mxu0 0
      %468 = vmatpush2.bf16.msra.mxu0 0
      %469 = vmatprep.subr.bf16.mxu0 0
      %470 = vmatpush2.bf16.msra.mxu0 0
      %471 = vmatprep.subr.bf16.mxu0 0
      %472 = vmatpush2.bf16.msra.mxu0 0
      %473 = vmatprep.subr.bf16.mxu0 0
      %474 = vmatpush2.bf16.msra.mxu0 0
      %475 = vmatprep.mubr.bf16.mxu0 0
      %476 = vmatmul.mubr.bf16.gmra.mxu0 %v379
      %v477 = vpop.f32.mrf.mxu0
      %v478 = vadd.f32 %v345, %v477
      %v479 = vpop.f32.mrf.mxu0
      %v480 = vpop.f32.mrf.mxu0
      %v481 = vadd.f32 %v345, %v480
      %v482 = vpop.f32.mrf.mxu0
      %483 = vmatprep.mubr.bf16.mxu0 0
      %484 = vmatmul.mubr.bf16.gmra.mxu0 %v380
      %v485 = vpop.f32.mrf.mxu0
      %v486 = vadd.f32 %v345, %v485
      %v487 = vpop.f32.mrf.mxu0
      %v488 = vpop.f32.mrf.mxu0
      %v489 = vadd.f32 %v345, %v488
      %v490 = vpop.f32.mrf.mxu0
      %491 = vmatprep.mubr.bf16.mxu0 0
      %492 = vmatmul.mubr.bf16.gmra.mxu0 %v381
      %v493 = vpop.f32.mrf.mxu0
      %v494 = vadd.f32 %v345, %v493
      %v495 = vpop.f32.mrf.mxu0
      %v496 = vpop.f32.mrf.mxu0
      %v497 = vadd.f32 %v345, %v496
      %v498 = vpop.f32.mrf.mxu0
      %499 = vmatprep.mubr.bf16.mxu0 0
      %500 = vmatmul.mubr.bf16.gmra.mxu0 %v382
      %v501 = vpop.f32.mrf.mxu0
      %v502 = vadd.f32 %v345, %v501
      %v503 = vpop.f32.mrf.mxu0
      %v504 = vpop.f32.mrf.mxu0
      %v505 = vadd.f32 %v345, %v504
      %v506 = vpop.f32.mrf.mxu0
      %507 = vmatprep.mubr.bf16.mxu0 0
      %508 = vmatmul.mubr.bf16.gmra.mxu0 %v383
      %v509 = vpop.f32.mrf.mxu0
      %v510 = vadd.f32 %v345, %v509
      %v511 = vpop.f32.mrf.mxu0
      %v512 = vpop.f32.mrf.mxu0
      %v513 = vadd.f32 %v345, %v512
      %v514 = vpop.f32.mrf.mxu0
      %515 = vmatprep.mubr.bf16.mxu0 0
      %516 = vmatmul.mubr.bf16.gmra.mxu0 %v384
      %v517 = vpop.f32.mrf.mxu0
      %v518 = vadd.f32 %v345, %v517
      %v519 = vpop.f32.mrf.mxu0
      %v520 = vpop.f32.mrf.mxu0
      %v521 = vadd.f32 %v345, %v520
      %v522 = vpop.f32.mrf.mxu0
      %523 = vmatprep.mubr.bf16.mxu0 0
      %524 = vmatmul.mubr.bf16.gmra.mxu0 %v385
      %v525 = vpop.f32.mrf.mxu0
      %v526 = vadd.f32 %v345, %v525
      %v527 = vpop.f32.mrf.mxu0
      %v528 = vpop.f32.mrf.mxu0
      %v529 = vadd.f32 %v345, %v528
      %v530 = vpop.f32.mrf.mxu0
      %531 = vmatprep.mubr.bf16.mxu0 0
      %532 = vmatmul.mubr.bf16.gmra.mxu0 %v386
      %v533 = vpop.f32.mrf.mxu0
      %v534 = vadd.f32 %v345, %v533
      %v535 = vpop.f32.mrf.mxu0
      %v536 = vpop.f32.mrf.mxu0
      %v537 = vadd.f32 %v345, %v536
      %v538 = vpop.f32.mrf.mxu0
      %539 = vdwg.mxu0
      %v540 = vld [vmem:[%s297] sm:$0x1]
      %v541 = vadd.f32 %v478, %v481
      %v542 = vadd.f32 %v541, %v486
      %v543 = vadd.f32 %v542, %v489
      %v544 = vadd.f32 %v543, %v494
      %v545 = vadd.f32 %v544, %v497
      %v546 = vadd.f32 %v545, %v502
      %v547 = vadd.f32 %v546, %v505
      %v548 = vadd.f32 %v547, %v510
      %v549 = vadd.f32 %v548, %v513
      %v550 = vadd.f32 %v549, %v518
      %v551 = vadd.f32 %v550, %v521
      %v552 = vadd.f32 %v551, %v526
      %v553 = vadd.f32 %v552, %v529
      %v554 = vadd.f32 %v553, %v534
      %v555 = vadd.f32 %v554, %v537
      %v556 = vrot.slane %v555, 4
      %v557 = vadd.f32 %v555, %v556
      %v558 = vrot.slane %v557, 2
      %v559 = vadd.f32 %v557, %v558
      %v560 = vrot.slane %v559, 1
      %v561 = vadd.f32 %v559, %v560
      %v562 = vadd.f32 %v540, %v561
      %563 = vst [vmem:[%s297] sm:$0x1] %v562
      %v564 = vld [vmem:[%s300] sm:$0x1]
      %v565 = vmul.f32 %v478, %v478
      %v566 = vmul.f32 %v481, %v481
      %v567 = vmul.f32 %v486, %v486
      %v568 = vmul.f32 %v489, %v489
      %v569 = vmul.f32 %v494, %v494
      %v570 = vmul.f32 %v497, %v497
      %v571 = vmul.f32 %v502, %v502
      %v572 = vmul.f32 %v505, %v505
      %v573 = vmul.f32 %v510, %v510
      %v574 = vmul.f32 %v513, %v513
      %v575 = vmul.f32 %v518, %v518
      %v576 = vmul.f32 %v521, %v521
      %v577 = vmul.f32 %v526, %v526
      %v578 = vmul.f32 %v529, %v529
      %v579 = vmul.f32 %v534, %v534
      %v580 = vmul.f32 %v537, %v537
      %v581 = vadd.f32 %v565, %v566
      %v582 = vadd.f32 %v581, %v567
      %v583 = vadd.f32 %v582, %v568
      %v584 = vadd.f32 %v583, %v569
      %v585 = vadd.f32 %v584, %v570
      %v586 = vadd.f32 %v585, %v571
      %v587 = vadd.f32 %v586, %v572
      %v588 = vadd.f32 %v587, %v573
      %v589 = vadd.f32 %v588, %v574
      %v590 = vadd.f32 %v589, %v575
      %v591 = vadd.f32 %v590, %v576
      %v592 = vadd.f32 %v591, %v577
      %v593 = vadd.f32 %v592, %v578
      %v594 = vadd.f32 %v593, %v579
      %v595 = vadd.f32 %v594, %v580
      %v596 = vrot.slane %v595, 4
      %v597 = vadd.f32 %v595, %v596
      %v598 = vrot.slane %v597, 2
      %v599 = vadd.f32 %v597, %v598
      %v600 = vrot.slane %v599, 1
      %v601 = vadd.f32 %v599, %v600
      %v602 = vadd.f32 %v564, %v601
      %603 = vst [vmem:[%s300] sm:$0x1] %v602
      %v604 = vpack.c.bf16 %v481, %v478
      %v605 = vpack.c.bf16 %v489, %v486
      %v606 = vpack.c.bf16 %v497, %v494
      %v607 = vpack.c.bf16 %v505, %v502
      %v608 = vpack.c.bf16 %v513, %v510
      %v609 = vpack.c.bf16 %v521, %v518
      %v610 = vpack.c.bf16 %v529, %v526
      %v611 = vpack.c.bf16 %v537, %v534
      %v620 = vunpack.c.l.b16 %v604
      %v621 = vunpack.c.h.b16 %v604
      %v622 = vunpack.c.l.b16 %v605
      %v623 = vunpack.c.h.b16 %v605
      %v624 = vunpack.c.l.b16 %v606
      %v625 = vunpack.c.h.b16 %v606
      %v626 = vunpack.c.l.b16 %v607
      %v627 = vunpack.c.h.b16 %v607
      %v628 = vunpack.c.l.b16 %v608
      %v629 = vunpack.c.h.b16 %v608
      %v630 = vunpack.c.l.b16 %v609
      %v631 = vunpack.c.h.b16 %v609
      %v632 = vunpack.c.l.b16 %v610
      %v633 = vunpack.c.h.b16 %v610
      %v634 = vunpack.c.l.b16 %v611
      %v635 = vunpack.c.h.b16 %v611
      %v636 = vpack.c.b16 %v620, %v620
      %v637 = vpack.c.b16 %v621, %v621
      %v638 = vpack.c.b16 %v622, %v622
      %v639 = vpack.c.b16 %v623, %v623
      %v640 = vpack.c.b16 %v624, %v624
      %v641 = vpack.c.b16 %v625, %v625
      %v642 = vpack.c.b16 %v626, %v626
      %v643 = vpack.c.b16 %v627, %v627
      %v644 = vpack.c.b16 %v628, %v628
      %v645 = vpack.c.b16 %v629, %v629
      %v646 = vpack.c.b16 %v630, %v630
      %v647 = vpack.c.b16 %v631, %v631
      %v648 = vpack.c.b16 %v632, %v632
      %v649 = vpack.c.b16 %v633, %v633
      %v650 = vpack.c.b16 %v634, %v634
      %v651 = vpack.c.b16 %v635, %v635
      %668 = vst [vmem:[%s293] sm:$0xf] %v636
      %669 = vst [vmem:[%s293 + $0x4] sm:$0xf] %v637
      %670 = vst [vmem:[%s293 + $0x8] sm:$0xf] %v638
      %671 = vst [vmem:[%s293 + $0xc] sm:$0xf] %v639
      %672 = vst [vmem:[%s293 + $0x10] sm:$0xf] %v640
      %673 = vst [vmem:[%s293 + $0x14] sm:$0xf] %v641
      %674 = vst [vmem:[%s293 + $0x18] sm:$0xf] %v642
      %675 = vst [vmem:[%s293 + $0x1c] sm:$0xf] %v643
      %676 = vst [vmem:[%s293 + $0x20] sm:$0xf] %v644
      %677 = vst [vmem:[%s293 + $0x24] sm:$0xf] %v645
      %678 = vst [vmem:[%s293 + $0x28] sm:$0xf] %v646
      %679 = vst [vmem:[%s293 + $0x2c] sm:$0xf] %v647
      %680 = vst [vmem:[%s293 + $0x30] sm:$0xf] %v648
      %681 = vst [vmem:[%s293 + $0x34] sm:$0xf] %v649
      %682 = vst [vmem:[%s293 + $0x38] sm:$0xf] %v650
      %683 = vst [vmem:[%s293 + $0x3c] sm:$0xf] %v651
      %s684 = smul.u32 16, %s22
      %p685 = scmp.lt.s32.totalorder %s21, 3
      %s686 = scalar_select %p685, %s21, 3
      %p687 = scmp.lt.s32.totalorder %s684, 15
      %s688 = scalar_select %p687, %s684, 15
      %s689 = smul.addr %s686, 16
      %s690 = sadd.s32 %s688, %s689
      %s691 = smul.addr %s690, 4
      %s692 = scalar_lea.vmem %s3, %s691
      %p693 = scmp.lt.s32.totalorder %s21, 3
      %s694 = scalar_select %p693, %s21, 3
      %s695 = scalar_lea.vmem %s4, %s694
      %p696 = scmp.lt.s32.totalorder %s21, 3
      %s697 = scalar_select %p696, %s21, 3
      %s698 = scalar_lea.vmem %s5, %s697
      // Predicated region
      $region37: #{generator_forward.13} parent=31 // pred_check
        %p699 = pneg %p124
      $region38: #{generator_forward.13} parent=31 // pred_check_branch
        %701 = sbr.rel (%p699) target = $region40
      $region39: #{generator_forward.13} parent=31 // pred_region
        %s702 = smul.u32 16, %s22
      $region40: #{generator_forward.13} parent=31 // pred_fallthru
        _
      // Predicated region
      $region41: #{generator_forward.13} parent=31 // pred_check
        %p703 = pneg %p150
      $region42: #{generator_forward.13} parent=31 // pred_check_branch
        %705 = sbr.rel (%p703) target = $region44
      $region43: #{generator_forward.13} parent=31 // pred_region
        _
      $region44: #{generator_forward.13} parent=31 // pred_fallthru
        _
      // Predicated region
      $region45: #{generator_forward.13} parent=31 // pred_check
        %p706 = pneg %p176
      $region46: #{generator_forward.13} parent=31 // pred_check_branch
        %708 = sbr.rel (%p706) target = $region48
      $region47: #{generator_forward.13} parent=31 // pred_region
        _
      $region48: #{generator_forward.13} parent=31 // pred_fallthru
        _
    $region32: #{generator_forward.13} parent=5 // pred_fallthru
      _
    %p709 = scmp.le.s32.totalorder 2, %s12
    // Predicated region
    $region49: #{generator_forward.13} parent=5 // pred_check
      %p710 = pneg %p709
    $region50: #{generator_forward.13} parent=5 // pred_check_branch
      %712 = sbr.rel (%p710) target = $region52
    $region51: #{generator_forward.13} parent=5 // pred_region
      %s713 = ssub.s32 %s12, 2
      // Predicated region
      $region53: #{generator_forward.13} parent=51 // pred_check
        %p714 = pneg %p130
      $region54: #{generator_forward.13} parent=51 // pred_check_branch
        %716 = sbr.rel (%p714) target = $region56
      $region55: #{generator_forward.13} parent=51 // pred_region
        %s717 = smul.u32 16, %s24
        %p718 = scmp.lt.s32.totalorder %s23, 3
        %s719 = scalar_select %p718, %s23, 3
        %p720 = scmp.lt.s32.totalorder %s717, 15
        %s721 = scalar_select %p720, %s717, 15
        %s722 = smul.addr %s719, 16
        %s723 = sadd.s32 %s721, %s722
        %s724 = smul.addr %s723, 4
        %s725 = scalar_lea.vmem %s3, %s724
      $region56: #{generator_forward.13} parent=51 // pred_fallthru
        _
      // Predicated region
      $region57: #{generator_forward.13} parent=51 // pred_check
        %p726 = pneg %p156
      $region58: #{generator_forward.13} parent=51 // pred_check_branch
        %728 = sbr.rel (%p726) target = $region60
      $region59: #{generator_forward.13} parent=51 // pred_region
        %p729 = scmp.lt.s32.totalorder %s23, 3
        %s730 = scalar_select %p729, %s23, 3
        %s731 = scalar_lea.vmem %s4, %s730
      $region60: #{generator_forward.13} parent=51 // pred_fallthru
        _
      // Predicated region
      $region61: #{generator_forward.13} parent=51 // pred_check
        %p732 = pneg %p182
      $region62: #{generator_forward.13} parent=51 // pred_check_branch
        %734 = sbr.rel (%p732) target = $region64
      $region63: #{generator_forward.13} parent=51 // pred_region
        %p735 = scmp.lt.s32.totalorder %s23, 3
        %s736 = scalar_select %p735, %s23, 3
        %s737 = scalar_lea.vmem %s5, %s736
      $region64: #{generator_forward.13} parent=51 // pred_fallthru
        _
    $region52: #{generator_forward.13} parent=5 // pred_fallthru
      _
  $region6: #{generator_forward.13} parent=0 // loop_footer
    %s16 = sadd.s32 1, %s12
  $region7: #{generator_forward.13} parent=0 // loop_footer_branch
    %11 = sbr.rel target = $region3
  $region8: #{generator_forward.13} parent=0 // loop_exit
    _

// kernel: generator_forward.14
$region0: #{generator_forward.14}
  #allocation0 [shape = 'u32[]', space=smem, size = 0x4, offset = 0x4, fixed_abs, tag = 'smem constant byte address 0x4 - core index']
  #allocation1 [shape = 'u32[144,128]{1,0:T(1,128)}', space=vmem, size = 0x12000, scoped, tag = 'internal scratch']
  %s0 = inlined_call_operand.vmem [shape: bf16[512,128], index: 0, kind: input, shape index: {}]
  %s1 = inlined_call_operand.vmem [shape: f32[1,128], index: 1, kind: input, shape index: {}]
  %s2 = inlined_call_operand.vmem [shape: f32[1,128], index: 2, kind: input, shape index: {}]
  %s3 = inlined_call_operand.vmem [shape: bf16[512,128], index: 3, kind: output, shape index: {}]
  %s4 = sld [smem:[#allocation0]]
  $region22: #{generator_forward.14} parent=0
    _
  %s6 = ssub.s32 1, %s4
  %s7 = scalar_select 0, %s6, %s4
  // Predicated region
  $region2: #{generator_forward.14} parent=0 // pred_check
    _
  $region3: #{generator_forward.14} parent=0 // pred_check_branch
    %9 = sbr.rel (0) target = $region5
  $region4: #{generator_forward.14} parent=0 // pred_region
    _
  $region5: #{generator_forward.14} parent=0 // pred_fallthru
    _
  // Predicated region
  $region6: #{generator_forward.14} parent=0 // pred_check
    _
  $region7: #{generator_forward.14} parent=0 // pred_check_branch
    %11 = sbr.rel (0) target = $region9
  $region8: #{generator_forward.14} parent=0 // pred_region
    _
  $region9: #{generator_forward.14} parent=0 // pred_fallthru
    _
  // Predicated region
  $region10: #{generator_forward.14} parent=0 // pred_check
    _
  $region11: #{generator_forward.14} parent=0 // pred_check_branch
    %13 = sbr.rel (0) target = $region13
  $region12: #{generator_forward.14} parent=0 // pred_region
    _
  $region13: #{generator_forward.14} parent=0 // pred_fallthru
    _
  %v14 = vld [vmem:[%s0] sm:$0xf]
  %v15 = vld [vmem:[%s0 + $0x4] sm:$0xf]
  %v16 = vld [vmem:[%s0 + $0x8] sm:$0xf]
  %v17 = vld [vmem:[%s0 + $0xc] sm:$0xf]
  %v18 = vld [vmem:[%s0 + $0x10] sm:$0xf]
  %v19 = vld [vmem:[%s0 + $0x14] sm:$0xf]
  %v20 = vld [vmem:[%s0 + $0x18] sm:$0xf]
  %v21 = vld [vmem:[%s0 + $0x1c] sm:$0xf]
  %v22 = vld [vmem:[%s0 + $0x20] sm:$0xf]
  %v23 = vld [vmem:[%s0 + $0x24] sm:$0xf]
  %v24 = vld [vmem:[%s0 + $0x28] sm:$0xf]
  %v25 = vld [vmem:[%s0 + $0x2c] sm:$0xf]
  %v26 = vld [vmem:[%s0 + $0x30] sm:$0xf]
  %v27 = vld [vmem:[%s0 + $0x34] sm:$0xf]
  %v28 = vld [vmem:[%s0 + $0x38] sm:$0xf]
  %v29 = vld [vmem:[%s0 + $0x3c] sm:$0xf]
  %v30 = vld [vmem:[%s0 + $0x40] sm:$0xf]
  %v31 = vld [vmem:[%s0 + $0x44] sm:$0xf]
  %v32 = vld [vmem:[%s0 + $0x48] sm:$0xf]
  %v33 = vld [vmem:[%s0 + $0x4c] sm:$0xf]
  %v34 = vld [vmem:[%s0 + $0x50] sm:$0xf]
  %v35 = vld [vmem:[%s0 + $0x54] sm:$0xf]
  %v36 = vld [vmem:[%s0 + $0x58] sm:$0xf]
  %v37 = vld [vmem:[%s0 + $0x5c] sm:$0xf]
  %v38 = vld [vmem:[%s0 + $0x60] sm:$0xf]
  %v39 = vld [vmem:[%s0 + $0x64] sm:$0xf]
  %v40 = vld [vmem:[%s0 + $0x68] sm:$0xf]
  %v41 = vld [vmem:[%s0 + $0x6c] sm:$0xf]
  %v42 = vld [vmem:[%s0 + $0x70] sm:$0xf]
  %v43 = vld [vmem:[%s0 + $0x74] sm:$0xf]
  %v44 = vld [vmem:[%s0 + $0x78] sm:$0xf]
  %v45 = vld [vmem:[%s0 + $0x7c] sm:$0xf]
  %v46 = vld [vmem:[%s0 + $0x80] sm:$0xf]
  %v47 = vld [vmem:[%s0 + $0x84] sm:$0xf]
  %v48 = vld [vmem:[%s0 + $0x88] sm:$0xf]
  %v49 = vld [vmem:[%s0 + $0x8c] sm:$0xf]
  %v50 = vld [vmem:[%s0 + $0x90] sm:$0xf]
  %v51 = vld [vmem:[%s0 + $0x94] sm:$0xf]
  %v52 = vld [vmem:[%s0 + $0x98] sm:$0xf]
  %v53 = vld [vmem:[%s0 + $0x9c] sm:$0xf]
  %v54 = vld [vmem:[%s0 + $0xa0] sm:$0xf]
  %v55 = vld [vmem:[%s0 + $0xa4] sm:$0xf]
  %v56 = vld [vmem:[%s0 + $0xa8] sm:$0xf]
  %v57 = vld [vmem:[%s0 + $0xac] sm:$0xf]
  %v58 = vld [vmem:[%s0 + $0xb0] sm:$0xf]
  %v59 = vld [vmem:[%s0 + $0xb4] sm:$0xf]
  %v60 = vld [vmem:[%s0 + $0xb8] sm:$0xf]
  %v61 = vld [vmem:[%s0 + $0xbc] sm:$0xf]
  %v62 = vld [vmem:[%s0 + $0xc0] sm:$0xf]
  %v63 = vld [vmem:[%s0 + $0xc4] sm:$0xf]
  %v64 = vld [vmem:[%s0 + $0xc8] sm:$0xf]
  %v65 = vld [vmem:[%s0 + $0xcc] sm:$0xf]
  %v66 = vld [vmem:[%s0 + $0xd0] sm:$0xf]
  %v67 = vld [vmem:[%s0 + $0xd4] sm:$0xf]
  %v68 = vld [vmem:[%s0 + $0xd8] sm:$0xf]
  %v69 = vld [vmem:[%s0 + $0xdc] sm:$0xf]
  %v70 = vld [vmem:[%s0 + $0xe0] sm:$0xf]
  %v71 = vld [vmem:[%s0 + $0xe4] sm:$0xf]
  %v72 = vld [vmem:[%s0 + $0xe8] sm:$0xf]
  %v73 = vld [vmem:[%s0 + $0xec] sm:$0xf]
  %v74 = vld [vmem:[%s0 + $0xf0] sm:$0xf]
  %v75 = vld [vmem:[%s0 + $0xf4] sm:$0xf]
  %v76 = vld [vmem:[%s0 + $0xf8] sm:$0xf]
  %v77 = vld [vmem:[%s0 + $0xfc] sm:$0xf]
  %v78 = vunpack.c.l.bf16 %v14
  %v79 = vunpack.c.l.bf16 %v15
  %v80 = vunpack.c.l.bf16 %v16
  %v81 = vunpack.c.l.bf16 %v17
  %v82 = vunpack.c.l.bf16 %v18
  %v83 = vunpack.c.l.bf16 %v19
  %v84 = vunpack.c.l.bf16 %v20
  %v85 = vunpack.c.l.bf16 %v21
  %v86 = vunpack.c.l.bf16 %v22
  %v87 = vunpack.c.l.bf16 %v23
  %v88 = vunpack.c.l.bf16 %v24
  %v89 = vunpack.c.l.bf16 %v25
  %v90 = vunpack.c.l.bf16 %v26
  %v91 = vunpack.c.l.bf16 %v27
  %v92 = vunpack.c.l.bf16 %v28
  %v93 = vunpack.c.l.bf16 %v29
  %v94 = vunpack.c.l.bf16 %v30
  %v95 = vunpack.c.l.bf16 %v31
  %v96 = vunpack.c.l.bf16 %v32
  %v97 = vunpack.c.l.bf16 %v33
  %v98 = vunpack.c.l.bf16 %v34
  %v99 = vunpack.c.l.bf16 %v35
  %v100 = vunpack.c.l.bf16 %v36
  %v101 = vunpack.c.l.bf16 %v37
  %v102 = vunpack.c.l.bf16 %v38
  %v103 = vunpack.c.l.bf16 %v39
  %v104 = vunpack.c.l.bf16 %v40
  %v105 = vunpack.c.l.bf16 %v41
  %v106 = vunpack.c.l.bf16 %v42
  %v107 = vunpack.c.l.bf16 %v43
  %v108 = vunpack.c.l.bf16 %v44
  %v109 = vunpack.c.l.bf16 %v45
  %v110 = vunpack.c.l.bf16 %v46
  %v111 = vunpack.c.l.bf16 %v47
  %v112 = vunpack.c.l.bf16 %v48
  %v113 = vunpack.c.l.bf16 %v49
  %v114 = vunpack.c.l.bf16 %v50
  %v115 = vunpack.c.l.bf16 %v51
  %v116 = vunpack.c.l.bf16 %v52
  %v117 = vunpack.c.l.bf16 %v53
  %v118 = vunpack.c.l.bf16 %v54
  %v119 = vunpack.c.l.bf16 %v55
  %v120 = vunpack.c.l.bf16 %v56
  %v121 = vunpack.c.l.bf16 %v57
  %v122 = vunpack.c.l.bf16 %v58
  %v123 = vunpack.c.l.bf16 %v59
  %v124 = vunpack.c.l.bf16 %v60
  %v125 = vunpack.c.l.bf16 %v61
  %v126 = vunpack.c.l.bf16 %v62
  %v127 = vunpack.c.l.bf16 %v63
  %v128 = vunpack.c.l.bf16 %v64
  %v129 = vunpack.c.l.bf16 %v65
  %v130 = vunpack.c.l.bf16 %v66
  %v131 = vunpack.c.l.bf16 %v67
  %v132 = vunpack.c.l.bf16 %v68
  %v133 = vunpack.c.l.bf16 %v69
  %v134 = vunpack.c.l.bf16 %v70
  %v135 = vunpack.c.l.bf16 %v71
  %v136 = vunpack.c.l.bf16 %v72
  %v137 = vunpack.c.l.bf16 %v73
  %v138 = vunpack.c.l.bf16 %v74
  %v139 = vunpack.c.l.bf16 %v75
  %v140 = vunpack.c.l.bf16 %v76
  %v141 = vunpack.c.l.bf16 %v77
  %v142 = vld [vmem:[%s1] sm:$0x1]
  %v144 = vlaneseq
  %v145 = vshrl.u32 %v144, 7
  %v146 = vsub.s32 0, %v145
  %v147 = vrot.slane %v142, %v146
  %v149 = vmul.f32 %v78, %v147
  %v150 = vmul.f32 %v79, %v147
  %v151 = vmul.f32 %v80, %v147
  %v152 = vmul.f32 %v81, %v147
  %v153 = vmul.f32 %v82, %v147
  %v154 = vmul.f32 %v83, %v147
  %v155 = vmul.f32 %v84, %v147
  %v156 = vmul.f32 %v85, %v147
  %v157 = vmul.f32 %v86, %v147
  %v158 = vmul.f32 %v87, %v147
  %v159 = vmul.f32 %v88, %v147
  %v160 = vmul.f32 %v89, %v147
  %v161 = vmul.f32 %v90, %v147
  %v162 = vmul.f32 %v91, %v147
  %v163 = vmul.f32 %v92, %v147
  %v164 = vmul.f32 %v93, %v147
  %v165 = vmul.f32 %v94, %v147
  %v166 = vmul.f32 %v95, %v147
  %v167 = vmul.f32 %v96, %v147
  %v168 = vmul.f32 %v97, %v147
  %v169 = vmul.f32 %v98, %v147
  %v170 = vmul.f32 %v99, %v147
  %v171 = vmul.f32 %v100, %v147
  %v172 = vmul.f32 %v101, %v147
  %v173 = vmul.f32 %v102, %v147
  %v174 = vmul.f32 %v103, %v147
  %v175 = vmul.f32 %v104, %v147
  %v176 = vmul.f32 %v105, %v147
  %v177 = vmul.f32 %v106, %v147
  %v178 = vmul.f32 %v107, %v147
  %v179 = vmul.f32 %v108, %v147
  %v180 = vmul.f32 %v109, %v147
  %v181 = vmul.f32 %v110, %v147
  %v182 = vmul.f32 %v111, %v147
  %v183 = vmul.f32 %v112, %v147
  %v184 = vmul.f32 %v113, %v147
  %v185 = vmul.f32 %v114, %v147
  %v186 = vmul.f32 %v115, %v147
  %v187 = vmul.f32 %v116, %v147
  %v188 = vmul.f32 %v117, %v147
  %v189 = vmul.f32 %v118, %v147
  %v190 = vmul.f32 %v119, %v147
  %v191 = vmul.f32 %v120, %v147
  %v192 = vmul.f32 %v121, %v147
  %v193 = vmul.f32 %v122, %v147
  %v194 = vmul.f32 %v123, %v147
  %v195 = vmul.f32 %v124, %v147
  %v196 = vmul.f32 %v125, %v147
  %v197 = vmul.f32 %v126, %v147
  %v198 = vmul.f32 %v127, %v147
  %v199 = vmul.f32 %v128, %v147
  %v200 = vmul.f32 %v129, %v147
  %v201 = vmul.f32 %v130, %v147
  %v202 = vmul.f32 %v131, %v147
  %v203 = vmul.f32 %v132, %v147
  %v204 = vmul.f32 %v133, %v147
  %v205 = vmul.f32 %v134, %v147
  %v206 = vmul.f32 %v135, %v147
  %v207 = vmul.f32 %v136, %v147
  %v208 = vmul.f32 %v137, %v147
  %v209 = vmul.f32 %v138, %v147
  %v210 = vmul.f32 %v139, %v147
  %v211 = vmul.f32 %v140, %v147
  %v212 = vmul.f32 %v141, %v147
  %v213 = vld [vmem:[%s2] sm:$0x1]
  %v215 = vlaneseq
  %v216 = vshrl.u32 %v215, 7
  %v217 = vsub.s32 0, %v216
  %v218 = vrot.slane %v213, %v217
  %v220 = vadd.f32 %v149, %v218
  %v221 = vadd.f32 %v150, %v218
  %v222 = vadd.f32 %v151, %v218
  %v223 = vadd.f32 %v152, %v218
  %v224 = vadd.f32 %v153, %v218
  %v225 = vadd.f32 %v154, %v218
  %v226 = vadd.f32 %v155, %v218
  %v227 = vadd.f32 %v156, %v218
  %v228 = vadd.f32 %v157, %v218
  %v229 = vadd.f32 %v158, %v218
  %v230 = vadd.f32 %v159, %v218
  %v231 = vadd.f32 %v160, %v218
  %v232 = vadd.f32 %v161, %v218
  %v233 = vadd.f32 %v162, %v218
  %v234 = vadd.f32 %v163, %v218
  %v235 = vadd.f32 %v164, %v218
  %v236 = vadd.f32 %v165, %v218
  %v237 = vadd.f32 %v166, %v218
  %v238 = vadd.f32 %v167, %v218
  %v239 = vadd.f32 %v168, %v218
  %v240 = vadd.f32 %v169, %v218
  %v241 = vadd.f32 %v170, %v218
  %v242 = vadd.f32 %v171, %v218
  %v243 = vadd.f32 %v172, %v218
  %v244 = vadd.f32 %v173, %v218
  %v245 = vadd.f32 %v174, %v218
  %v246 = vadd.f32 %v175, %v218
  %v247 = vadd.f32 %v176, %v218
  %v248 = vadd.f32 %v177, %v218
  %v249 = vadd.f32 %v178, %v218
  %v250 = vadd.f32 %v179, %v218
  %v251 = vadd.f32 %v180, %v218
  %v252 = vadd.f32 %v181, %v218
  %v253 = vadd.f32 %v182, %v218
  %v254 = vadd.f32 %v183, %v218
  %v255 = vadd.f32 %v184, %v218
  %v256 = vadd.f32 %v185, %v218
  %v257 = vadd.f32 %v186, %v218
  %v258 = vadd.f32 %v187, %v218
  %v259 = vadd.f32 %v188, %v218
  %v260 = vadd.f32 %v189, %v218
  %v261 = vadd.f32 %v190, %v218
  %v262 = vadd.f32 %v191, %v218
  %v263 = vadd.f32 %v192, %v218
  %v264 = vadd.f32 %v193, %v218
  %v265 = vadd.f32 %v194, %v218
  %v266 = vadd.f32 %v195, %v218
  %v267 = vadd.f32 %v196, %v218
  %v268 = vadd.f32 %v197, %v218
  %v269 = vadd.f32 %v198, %v218
  %v270 = vadd.f32 %v199, %v218
  %v271 = vadd.f32 %v200, %v218
  %v272 = vadd.f32 %v201, %v218
  %v273 = vadd.f32 %v202, %v218
  %v274 = vadd.f32 %v203, %v218
  %v275 = vadd.f32 %v204, %v218
  %v276 = vadd.f32 %v205, %v218
  %v277 = vadd.f32 %v206, %v218
  %v278 = vadd.f32 %v207, %v218
  %v279 = vadd.f32 %v208, %v218
  %v280 = vadd.f32 %v209, %v218
  %v281 = vadd.f32 %v210, %v218
  %v282 = vadd.f32 %v211, %v218
  %v283 = vadd.f32 %v212, %v218
  %v284 = vmax.f32 %v220, 0.0
  %v285 = vmax.f32 %v221, 0.0
  %v286 = vmax.f32 %v222, 0.0
  %v287 = vmax.f32 %v223, 0.0
  %v288 = vmax.f32 %v224, 0.0
  %v289 = vmax.f32 %v225, 0.0
  %v290 = vmax.f32 %v226, 0.0
  %v291 = vmax.f32 %v227, 0.0
  %v292 = vmax.f32 %v228, 0.0
  %v293 = vmax.f32 %v229, 0.0
  %v294 = vmax.f32 %v230, 0.0
  %v295 = vmax.f32 %v231, 0.0
  %v296 = vmax.f32 %v232, 0.0
  %v297 = vmax.f32 %v233, 0.0
  %v298 = vmax.f32 %v234, 0.0
  %v299 = vmax.f32 %v235, 0.0
  %v300 = vmax.f32 %v236, 0.0
  %v301 = vmax.f32 %v237, 0.0
  %v302 = vmax.f32 %v238, 0.0
  %v303 = vmax.f32 %v239, 0.0
  %v304 = vmax.f32 %v240, 0.0
  %v305 = vmax.f32 %v241, 0.0
  %v306 = vmax.f32 %v242, 0.0
  %v307 = vmax.f32 %v243, 0.0
  %v308 = vmax.f32 %v244, 0.0
  %v309 = vmax.f32 %v245, 0.0
  %v310 = vmax.f32 %v246, 0.0
  %v311 = vmax.f32 %v247, 0.0
  %v312 = vmax.f32 %v248, 0.0
  %v313 = vmax.f32 %v249, 0.0
  %v314 = vmax.f32 %v250, 0.0
  %v315 = vmax.f32 %v251, 0.0
  %v316 = vmax.f32 %v252, 0.0
  %v317 = vmax.f32 %v253, 0.0
  %v318 = vmax.f32 %v254, 0.0
  %v319 = vmax.f32 %v255, 0.0
  %v320 = vmax.f32 %v256, 0.0
  %v321 = vmax.f32 %v257, 0.0
  %v322 = vmax.f32 %v258, 0.0
  %v323 = vmax.f32 %v259, 0.0
  %v324 = vmax.f32 %v260, 0.0
  %v325 = vmax.f32 %v261, 0.0
  %v326 = vmax.f32 %v262, 0.0
  %v327 = vmax.f32 %v263, 0.0
  %v328 = vmax.f32 %v264, 0.0
  %v329 = vmax.f32 %v265, 0.0
  %v330 = vmax.f32 %v266, 0.0
  %v331 = vmax.f32 %v267, 0.0
  %v332 = vmax.f32 %v268, 0.0
  %v333 = vmax.f32 %v269, 0.0
  %v334 = vmax.f32 %v270, 0.0
  %v335 = vmax.f32 %v271, 0.0
  %v336 = vmax.f32 %v272, 0.0
  %v337 = vmax.f32 %v273, 0.0
  %v338 = vmax.f32 %v274, 0.0
  %v339 = vmax.f32 %v275, 0.0
  %v340 = vmax.f32 %v276, 0.0
  %v341 = vmax.f32 %v277, 0.0
  %v342 = vmax.f32 %v278, 0.0
  %v343 = vmax.f32 %v279, 0.0
  %v344 = vmax.f32 %v280, 0.0
  %v345 = vmax.f32 %v281, 0.0
  %v346 = vmax.f32 %v282, 0.0
  %v347 = vmax.f32 %v283, 0.0
  %v348 = vpack.c.bf16 %v285, %v284
  %v349 = vpack.c.bf16 %v287, %v286
  %v350 = vpack.c.bf16 %v289, %v288
  %v351 = vpack.c.bf16 %v291, %v290
  %v352 = vpack.c.bf16 %v293, %v292
  %v353 = vpack.c.bf16 %v295, %v294
  %v354 = vpack.c.bf16 %v297, %v296
  %v355 = vpack.c.bf16 %v299, %v298
  %v356 = vpack.c.bf16 %v301, %v300
  %v357 = vpack.c.bf16 %v303, %v302
  %v358 = vpack.c.bf16 %v305, %v304
  %v359 = vpack.c.bf16 %v307, %v306
  %v360 = vpack.c.bf16 %v309, %v308
  %v361 = vpack.c.bf16 %v311, %v310
  %v362 = vpack.c.bf16 %v313, %v312
  %v363 = vpack.c.bf16 %v315, %v314
  %v364 = vpack.c.bf16 %v317, %v316
  %v365 = vpack.c.bf16 %v319, %v318
  %v366 = vpack.c.bf16 %v321, %v320
  %v367 = vpack.c.bf16 %v323, %v322
  %v368 = vpack.c.bf16 %v325, %v324
  %v369 = vpack.c.bf16 %v327, %v326
  %v370 = vpack.c.bf16 %v329, %v328
  %v371 = vpack.c.bf16 %v331, %v330
  %v372 = vpack.c.bf16 %v333, %v332
  %v373 = vpack.c.bf16 %v335, %v334
  %v374 = vpack.c.bf16 %v337, %v336
  %v375 = vpack.c.bf16 %v339, %v338
  %v376 = vpack.c.bf16 %v341, %v340
  %v377 = vpack.c.bf16 %v343, %v342
  %v378 = vpack.c.bf16 %v345, %v344
  %v379 = vpack.c.bf16 %v347, %v346
  %v412 = vunpack.c.l.b16 %v348
  %v413 = vunpack.c.h.b16 %v348
  %v414 = vunpack.c.l.b16 %v349
  %v415 = vunpack.c.h.b16 %v349
  %v416 = vunpack.c.l.b16 %v350
  %v417 = vunpack.c.h.b16 %v350
  %v418 = vunpack.c.l.b16 %v351
  %v419 = vunpack.c.h.b16 %v351
  %v420 = vunpack.c.l.b16 %v352
  %v421 = vunpack.c.h.b16 %v352
  %v422 = vunpack.c.l.b16 %v353
  %v423 = vunpack.c.h.b16 %v353
  %v424 = vunpack.c.l.b16 %v354
  %v425 = vunpack.c.h.b16 %v354
  %v426 = vunpack.c.l.b16 %v355
  %v427 = vunpack.c.h.b16 %v355
  %v428 = vunpack.c.l.b16 %v356
  %v429 = vunpack.c.h.b16 %v356
  %v430 = vunpack.c.l.b16 %v357
  %v431 = vunpack.c.h.b16 %v357
  %v432 = vunpack.c.l.b16 %v358
  %v433 = vunpack.c.h.b16 %v358
  %v434 = vunpack.c.l.b16 %v359
  %v435 = vunpack.c.h.b16 %v359
  %v436 = vunpack.c.l.b16 %v360
  %v437 = vunpack.c.h.b16 %v360
  %v438 = vunpack.c.l.b16 %v361
  %v439 = vunpack.c.h.b16 %v361
  %v440 = vunpack.c.l.b16 %v362
  %v441 = vunpack.c.h.b16 %v362
  %v442 = vunpack.c.l.b16 %v363
  %v443 = vunpack.c.h.b16 %v363
  %v444 = vunpack.c.l.b16 %v364
  %v445 = vunpack.c.h.b16 %v364
  %v446 = vunpack.c.l.b16 %v365
  %v447 = vunpack.c.h.b16 %v365
  %v448 = vunpack.c.l.b16 %v366
  %v449 = vunpack.c.h.b16 %v366
  %v450 = vunpack.c.l.b16 %v367
  %v451 = vunpack.c.h.b16 %v367
  %v452 = vunpack.c.l.b16 %v368
  %v453 = vunpack.c.h.b16 %v368
  %v454 = vunpack.c.l.b16 %v369
  %v455 = vunpack.c.h.b16 %v369
  %v456 = vunpack.c.l.b16 %v370
  %v457 = vunpack.c.h.b16 %v370
  %v458 = vunpack.c.l.b16 %v371
  %v459 = vunpack.c.h.b16 %v371
  %v460 = vunpack.c.l.b16 %v372
  %v461 = vunpack.c.h.b16 %v372
  %v462 = vunpack.c.l.b16 %v373
  %v463 = vunpack.c.h.b16 %v373
  %v464 = vunpack.c.l.b16 %v374
  %v465 = vunpack.c.h.b16 %v374
  %v466 = vunpack.c.l.b16 %v375
  %v467 = vunpack.c.h.b16 %v375
  %v468 = vunpack.c.l.b16 %v376
  %v469 = vunpack.c.h.b16 %v376
  %v470 = vunpack.c.l.b16 %v377
  %v471 = vunpack.c.h.b16 %v377
  %v472 = vunpack.c.l.b16 %v378
  %v473 = vunpack.c.h.b16 %v378
  %v474 = vunpack.c.l.b16 %v379
  %v475 = vunpack.c.h.b16 %v379
  %v476 = vpack.c.b16 %v412, %v412
  %v477 = vpack.c.b16 %v413, %v413
  %v478 = vpack.c.b16 %v414, %v414
  %v479 = vpack.c.b16 %v415, %v415
  %v480 = vpack.c.b16 %v416, %v416
  %v481 = vpack.c.b16 %v417, %v417
  %v482 = vpack.c.b16 %v418, %v418
  %v483 = vpack.c.b16 %v419, %v419
  %v484 = vpack.c.b16 %v420, %v420
  %v485 = vpack.c.b16 %v421, %v421
  %v486 = vpack.c.b16 %v422, %v422
  %v487 = vpack.c.b16 %v423, %v423
  %v488 = vpack.c.b16 %v424, %v424
  %v489 = vpack.c.b16 %v425, %v425
  %v490 = vpack.c.b16 %v426, %v426
  %v491 = vpack.c.b16 %v427, %v427
  %v492 = vpack.c.b16 %v428, %v428
  %v493 = vpack.c.b16 %v429, %v429
  %v494 = vpack.c.b16 %v430, %v430
  %v495 = vpack.c.b16 %v431, %v431
  %v496 = vpack.c.b16 %v432, %v432
  %v497 = vpack.c.b16 %v433, %v433
  %v498 = vpack.c.b16 %v434, %v434
  %v499 = vpack.c.b16 %v435, %v435
  %v500 = vpack.c.b16 %v436, %v436
  %v501 = vpack.c.b16 %v437, %v437
  %v502 = vpack.c.b16 %v438, %v438
  %v503 = vpack.c.b16 %v439, %v439
  %v504 = vpack.c.b16 %v440, %v440
  %v505 = vpack.c.b16 %v441, %v441
  %v506 = vpack.c.b16 %v442, %v442
  %v507 = vpack.c.b16 %v443, %v443
  %v508 = vpack.c.b16 %v444, %v444
  %v509 = vpack.c.b16 %v445, %v445
  %v510 = vpack.c.b16 %v446, %v446
  %v511 = vpack.c.b16 %v447, %v447
  %v512 = vpack.c.b16 %v448, %v448
  %v513 = vpack.c.b16 %v449, %v449
  %v514 = vpack.c.b16 %v450, %v450
  %v515 = vpack.c.b16 %v451, %v451
  %v516 = vpack.c.b16 %v452, %v452
  %v517 = vpack.c.b16 %v453, %v453
  %v518 = vpack.c.b16 %v454, %v454
  %v519 = vpack.c.b16 %v455, %v455
  %v520 = vpack.c.b16 %v456, %v456
  %v521 = vpack.c.b16 %v457, %v457
  %v522 = vpack.c.b16 %v458, %v458
  %v523 = vpack.c.b16 %v459, %v459
  %v524 = vpack.c.b16 %v460, %v460
  %v525 = vpack.c.b16 %v461, %v461
  %v526 = vpack.c.b16 %v462, %v462
  %v527 = vpack.c.b16 %v463, %v463
  %v528 = vpack.c.b16 %v464, %v464
  %v529 = vpack.c.b16 %v465, %v465
  %v530 = vpack.c.b16 %v466, %v466
  %v531 = vpack.c.b16 %v467, %v467
  %v532 = vpack.c.b16 %v468, %v468
  %v533 = vpack.c.b16 %v469, %v469
  %v534 = vpack.c.b16 %v470, %v470
  %v535 = vpack.c.b16 %v471, %v471
  %v536 = vpack.c.b16 %v472, %v472
  %v537 = vpack.c.b16 %v473, %v473
  %v538 = vpack.c.b16 %v474, %v474
  %v539 = vpack.c.b16 %v475, %v475
  %604 = vst [vmem:[%s3] sm:$0xf] %v476
  %605 = vst [vmem:[%s3 + $0x4] sm:$0xf] %v477
  %606 = vst [vmem:[%s3 + $0x8] sm:$0xf] %v478
  %607 = vst [vmem:[%s3 + $0xc] sm:$0xf] %v479
  %608 = vst [vmem:[%s3 + $0x10] sm:$0xf] %v480
  %609 = vst [vmem:[%s3 + $0x14] sm:$0xf] %v481
  %610 = vst [vmem:[%s3 + $0x18] sm:$0xf] %v482
  %611 = vst [vmem:[%s3 + $0x1c] sm:$0xf] %v483
  %612 = vst [vmem:[%s3 + $0x20] sm:$0xf] %v484
  %613 = vst [vmem:[%s3 + $0x24] sm:$0xf] %v485
  %614 = vst [vmem:[%s3 + $0x28] sm:$0xf] %v486
  %615 = vst [vmem:[%s3 + $0x2c] sm:$0xf] %v487
  %616 = vst [vmem:[%s3 + $0x30] sm:$0xf] %v488
  %617 = vst [vmem:[%s3 + $0x34] sm:$0xf] %v489
  %618 = vst [vmem:[%s3 + $0x38] sm:$0xf] %v490
  %619 = vst [vmem:[%s3 + $0x3c] sm:$0xf] %v491
  %620 = vst [vmem:[%s3 + $0x40] sm:$0xf] %v492
  %621 = vst [vmem:[%s3 + $0x44] sm:$0xf] %v493
  %622 = vst [vmem:[%s3 + $0x48] sm:$0xf] %v494
  %623 = vst [vmem:[%s3 + $0x4c] sm:$0xf] %v495
  %624 = vst [vmem:[%s3 + $0x50] sm:$0xf] %v496
  %625 = vst [vmem:[%s3 + $0x54] sm:$0xf] %v497
  %626 = vst [vmem:[%s3 + $0x58] sm:$0xf] %v498
  %627 = vst [vmem:[%s3 + $0x5c] sm:$0xf] %v499
  %628 = vst [vmem:[%s3 + $0x60] sm:$0xf] %v500
  %629 = vst [vmem:[%s3 + $0x64] sm:$0xf] %v501
  %630 = vst [vmem:[%s3 + $0x68] sm:$0xf] %v502
  %631 = vst [vmem:[%s3 + $0x6c] sm:$0xf] %v503
  %632 = vst [vmem:[%s3 + $0x70] sm:$0xf] %v504
  %633 = vst [vmem:[%s3 + $0x74] sm:$0xf] %v505
  %634 = vst [vmem:[%s3 + $0x78] sm:$0xf] %v506
  %635 = vst [vmem:[%s3 + $0x7c] sm:$0xf] %v507
  %636 = vst [vmem:[%s3 + $0x80] sm:$0xf] %v508
  %637 = vst [vmem:[%s3 + $0x84] sm:$0xf] %v509
  %638 = vst [vmem:[%s3 + $0x88] sm:$0xf] %v510
  %639 = vst [vmem:[%s3 + $0x8c] sm:$0xf] %v511
  %640 = vst [vmem:[%s3 + $0x90] sm:$0xf] %v512
  %641 = vst [vmem:[%s3 + $0x94] sm:$0xf] %v513
  %642 = vst [vmem:[%s3 + $0x98] sm:$0xf] %v514
  %643 = vst [vmem:[%s3 + $0x9c] sm:$0xf] %v515
  %644 = vst [vmem:[%s3 + $0xa0] sm:$0xf] %v516
  %645 = vst [vmem:[%s3 + $0xa4] sm:$0xf] %v517
  %646 = vst [vmem:[%s3 + $0xa8] sm:$0xf] %v518
  %647 = vst [vmem:[%s3 + $0xac] sm:$0xf] %v519
  %648 = vst [vmem:[%s3 + $0xb0] sm:$0xf] %v520
  %649 = vst [vmem:[%s3 + $0xb4] sm:$0xf] %v521
  %650 = vst [vmem:[%s3 + $0xb8] sm:$0xf] %v522
  %651 = vst [vmem:[%s3 + $0xbc] sm:$0xf] %v523
  %652 = vst [vmem:[%s3 + $0xc0] sm:$0xf] %v524
  %653 = vst [vmem:[%s3 + $0xc4] sm:$0xf] %v525
  %654 = vst [vmem:[%s3 + $0xc8] sm:$0xf] %v526
  %655 = vst [vmem:[%s3 + $0xcc] sm:$0xf] %v527
  %656 = vst [vmem:[%s3 + $0xd0] sm:$0xf] %v528
  %657 = vst [vmem:[%s3 + $0xd4] sm:$0xf] %v529
  %658 = vst [vmem:[%s3 + $0xd8] sm:$0xf] %v530
  %659 = vst [vmem:[%s3 + $0xdc] sm:$0xf] %v531
  %660 = vst [vmem:[%s3 + $0xe0] sm:$0xf] %v532
  %661 = vst [vmem:[%s3 + $0xe4] sm:$0xf] %v533
  %662 = vst [vmem:[%s3 + $0xe8] sm:$0xf] %v534
  %663 = vst [vmem:[%s3 + $0xec] sm:$0xf] %v535
  %664 = vst [vmem:[%s3 + $0xf0] sm:$0xf] %v536
  %665 = vst [vmem:[%s3 + $0xf4] sm:$0xf] %v537
  %666 = vst [vmem:[%s3 + $0xf8] sm:$0xf] %v538
  %667 = vst [vmem:[%s3 + $0xfc] sm:$0xf] %v539
  // Predicated region
  $region14: #{generator_forward.14} parent=0 // pred_check
    _
  $region15: #{generator_forward.14} parent=0 // pred_check_branch
    %669 = sbr.rel (0) target = $region17
  $region16: #{generator_forward.14} parent=0 // pred_region
    _
  $region17: #{generator_forward.14} parent=0 // pred_fallthru
    _
  // Predicated region
  $region18: #{generator_forward.14} parent=0 // pred_check
    _
  $region19: #{generator_forward.14} parent=0 // pred_check_branch
    %671 = sbr.rel (0) target = $region21
  $region20: #{generator_forward.14} parent=0 // pred_region
    _
  $region21: #{generator_forward.14} parent=0 // pred_fallthru
    _

// kernel: generator_forward.15
$region0: #{generator_forward.15}
  #allocation0 [shape = 'u32[]', space=smem, size = 0x4, offset = 0x4, fixed_abs, tag = 'smem constant byte address 0x4 - core index']
  #allocation1 [shape = 'u32[144,128]{1,0:T(1,128)}', space=vmem, size = 0x12000, scoped, tag = 'internal scratch']
  %s0 = inlined_call_operand.vmem [shape: bf16[4,512,128], index: 0, kind: input, shape index: {}]
  %s1 = inlined_call_operand.vmem [shape: bf16[4,128,128], index: 1, kind: input, shape index: {}]
  %s2 = inlined_call_operand.vmem [shape: f32[1,128], index: 2, kind: input, shape index: {}]
  %s3 = inlined_call_operand.vmem [shape: bf16[4,512,128], index: 3, kind: output, shape index: {0}]
  %s4 = inlined_call_operand.vmem [shape: f32[4,1,128], index: 4, kind: output, shape index: {1}]
  %s5 = inlined_call_operand.vmem [shape: f32[4,1,128], index: 5, kind: output, shape index: {2}]
  %6 = xla_tuple %s3, %s4, %s5
  %s7 = sld [smem:[#allocation0]]
  $region65: #{generator_forward.15} parent=0
    _
  %s9 = ssub.s32 1, %s7
  %s10 = scalar_select 0, %s9, %s7
  loop: start=0, step=1, limit=6
  $region2: #{generator_forward.15} parent=0 // loop_pre_header
    _
  $region3: #{generator_forward.15} parent=0 // loop_header
    %s12 = sphi 0, %s16
    %p13 = scmp.ge.s32.totalorder %s12, 6
    %s19 = sphi 0, %s31
    %s20 = sphi 0, %s27
    %s21 = sphi 0, %s19
    %s22 = sphi 0, %s20
    %s23 = sphi 0, %s21
    %s24 = sphi 0, %s22
    %s36 = sphi 0, %s38
    %s39 = sphi 0, %s36
    %s40 = sphi 0, %s39
    %s56 = sphi 0, %s40
    %s62 = sphi 0, %s64
    %s65 = sphi 0, %s62
    %s66 = sphi 0, %s65
    %s82 = sphi 0, %s66
    %s86 = sphi 0, %s86
    %s88 = sphi 0, %s86
    %s89 = sphi 0, %s88
    %s103 = sphi 0, %s89
    %s111 = sphi 0, %s113
    %s114 = sphi 0, %s111
    %s115 = sphi 0, %s114
    %s131 = sphi 0, %s115
    %s137 = sphi 0, %s139
    %s140 = sphi 0, %s137
    %s141 = sphi 0, %s140
    %s157 = sphi 0, %s141
    %s163 = sphi 0, %s165
    %s166 = sphi 0, %s163
    %s167 = sphi 0, %s166
    %s183 = sphi 0, %s167
  $region4: #{generator_forward.15} parent=0 // loop_header_branch
    %15 = sbr.rel (%p13) target = $region8
  $region5: #{generator_forward.15} parent=0 // loop_body
    %s17 = ssub.s32 %s12, 1
    %s18 = ssub.s32 %s12, 2
    %s25 = sadd.s32 1, %s20
    %p26 = scmp.ge.s32.totalorder %s25, 1
    %s27 = scalar_select %p26, 0, %s25
    %s28 = sadd.s32 1, %s19
    %s29 = scalar_select %p26, %s28, %s19
    %p30 = scmp.ge.s32.totalorder %s29, 4
    %s31 = scalar_select %p30, 0, %s29
    %s32 = ssub.s32 %s19, %s31
    %s33 = ssub.s32 %s20, %s27
    %s34 = sor.u32 %s32, %s33
    %p35 = scmp.eq.s32.totalorder %s34, 0
    %s37 = sadd.s32 %s36, 1
    %s38 = scalar_select %p35, %s36, %s37
    %p41 = pneg %p35
    %p42 = scmp.eq.s32.totalorder %s12, 3
    %p43 = por %p41, %p42
    %p44 = scmp.ne.s32.totalorder %s36, %s39
    %p45 = scmp.eq.s32.totalorder %s12, 0
    %p46 = por %p44, %p45
    %p47 = scmp.ne.s32.totalorder %s36, %s39
    %p48 = scmp.eq.s32.totalorder %s17, 3
    %p49 = por %p47, %p48
    %p50 = scmp.ne.s32.totalorder %s39, %s40
    %p51 = scmp.eq.s32.totalorder %s17, 0
    %p52 = por %p50, %p51
    %p53 = scmp.ne.s32.totalorder %s39, %s40
    %p54 = scmp.eq.s32.totalorder %s18, 3
    %p55 = por %p53, %p54
    %p57 = scmp.ne.s32.totalorder %s40, %s56
    %p58 = scmp.eq.s32.totalorder %s18, 0
    %p59 = por %p57, %p58
    %s60 = ssub.s32 %s19, %s31
    %p61 = scmp.eq.s32.totalorder %s60, 0
    %s63 = sadd.s32 %s62, 1
    %s64 = scalar_select %p61, %s62, %s63
    %p67 = pneg %p61
    %p68 = scmp.eq.s32.totalorder %s12, 3
    %p69 = por %p67, %p68
    %p70 = scmp.ne.s32.totalorder %s62, %s65
    %p71 = scmp.eq.s32.totalorder %s12, 0
    %p72 = por %p70, %p71
    %p73 = scmp.ne.s32.totalorder %s62, %s65
    %p74 = scmp.eq.s32.totalorder %s17, 3
    %p75 = por %p73, %p74
    %p76 = scmp.ne.s32.totalorder %s65, %s66
    %p77 = scmp.eq.s32.totalorder %s17, 0
    %p78 = por %p76, %p77
    %p79 = scmp.ne.s32.totalorder %s65, %s66
    %p80 = scmp.eq.s32.totalorder %s18, 3
    %p81 = por %p79, %p80
    %p83 = scmp.ne.s32.totalorder %s66, %s82
    %p84 = scmp.eq.s32.totalorder %s18, 0
    %p85 = por %p83, %p84
    %s87 = sadd.s32 %s86, 1
    %p90 = scmp.eq.s32.totalorder %s12, 3
    %p91 = scmp.ne.s32.totalorder %s86, %s88
    %p92 = scmp.eq.s32.totalorder %s12, 0
    %p93 = por %p91, %p92
    %p94 = scmp.ne.s32.totalorder %s86, %s88
    %p95 = scmp.eq.s32.totalorder %s17, 3
    %p96 = por %p94, %p95
    %p97 = scmp.ne.s32.totalorder %s88, %s89
    %p98 = scmp.eq.s32.totalorder %s17, 0
    %p99 = por %p97, %p98
    %p100 = scmp.ne.s32.totalorder %s88, %s89
    %p101 = scmp.eq.s32.totalorder %s18, 3
    %p102 = por %p100, %p101
    %p104 = scmp.ne.s32.totalorder %s89, %s103
    %p105 = scmp.eq.s32.totalorder %s18, 0
    %p106 = por %p104, %p105
    %s107 = ssub.s32 %s19, %s31
    %s108 = ssub.s32 %s20, %s27
    %s109 = sor.u32 %s107, %s108
    %p110 = scmp.eq.s32.totalorder %s109, 0
    %s112 = sadd.s32 %s111, 1
    %s113 = scalar_select %p110, %s111, %s112
    %p116 = pneg %p110
    %p117 = scmp.eq.s32.totalorder %s12, 3
    %p118 = por %p116, %p117
    %p119 = scmp.ne.s32.totalorder %s111, %s114
    %p120 = scmp.eq.s32.totalorder %s12, 0
    %p121 = por %p119, %p120
    %p122 = scmp.ne.s32.totalorder %s111, %s114
    %p123 = scmp.eq.s32.totalorder %s17, 3
    %p124 = por %p122, %p123
    %p125 = scmp.ne.s32.totalorder %s114, %s115
    %p126 = scmp.eq.s32.totalorder %s17, 0
    %p127 = por %p125, %p126
    %p128 = scmp.ne.s32.totalorder %s114, %s115
    %p129 = scmp.eq.s32.totalorder %s18, 3
    %p130 = por %p128, %p129
    %p132 = scmp.ne.s32.totalorder %s115, %s131
    %p133 = scmp.eq.s32.totalorder %s18, 0
    %p134 = por %p132, %p133
    %s135 = ssub.s32 %s19, %s31
    %p136 = scmp.eq.s32.totalorder %s135, 0
    %s138 = sadd.s32 %s137, 1
    %s139 = scalar_select %p136, %s137, %s138
    %p142 = pneg %p136
    %p143 = scmp.eq.s32.totalorder %s12, 3
    %p144 = por %p142, %p143
    %p145 = scmp.ne.s32.totalorder %s137, %s140
    %p146 = scmp.eq.s32.totalorder %s12, 0
    %p147 = por %p145, %p146
    %p148 = scmp.ne.s32.totalorder %s137, %s140
    %p149 = scmp.eq.s32.totalorder %s17, 3
    %p150 = por %p148, %p149
    %p151 = scmp.ne.s32.totalorder %s140, %s141
    %p152 = scmp.eq.s32.totalorder %s17, 0
    %p153 = por %p151, %p152
    %p154 = scmp.ne.s32.totalorder %s140, %s141
    %p155 = scmp.eq.s32.totalorder %s18, 3
    %p156 = por %p154, %p155
    %p158 = scmp.ne.s32.totalorder %s141, %s157
    %p159 = scmp.eq.s32.totalorder %s18, 0
    %p160 = por %p158, %p159
    %s161 = ssub.s32 %s19, %s31
    %p162 = scmp.eq.s32.totalorder %s161, 0
    %s164 = sadd.s32 %s163, 1
    %s165 = scalar_select %p162, %s163, %s164
    %p168 = pneg %p162
    %p169 = scmp.eq.s32.totalorder %s12, 3
    %p170 = por %p168, %p169
    %p171 = scmp.ne.s32.totalorder %s163, %s166
    %p172 = scmp.eq.s32.totalorder %s12, 0
    %p173 = por %p171, %p172
    %p174 = scmp.ne.s32.totalorder %s163, %s166
    %p175 = scmp.eq.s32.totalorder %s17, 3
    %p176 = por %p174, %p175
    %p177 = scmp.ne.s32.totalorder %s166, %s167
    %p178 = scmp.eq.s32.totalorder %s17, 0
    %p179 = por %p177, %p178
    %p180 = scmp.ne.s32.totalorder %s166, %s167
    %p181 = scmp.eq.s32.totalorder %s18, 3
    %p182 = por %p180, %p181
    %p184 = scmp.ne.s32.totalorder %s167, %s183
    %p185 = scmp.eq.s32.totalorder %s18, 0
    %p186 = por %p184, %p185
    %p187 = scmp.le.s32.totalorder 1, %s12
    %p188 = scmp.lt.s32.totalorder %s12, 5
    %p189 = pnand %p187, %p188
    %p190 = pneg %p189
    // Predicated region
    $region9: #{generator_forward.15} parent=5 // pred_check
      _
    $region10: #{generator_forward.15} parent=5 // pred_check_branch
      %192 = sbr.rel (%p189) target = $region12
    $region11: #{generator_forward.15} parent=5 // pred_region
      %s193 = ssub.s32 %s12, 1
      // Predicated region
      $region13: #{generator_forward.15} parent=11 // pred_check
        %p194 = pneg %p99
      $region14: #{generator_forward.15} parent=11 // pred_check_branch
        %196 = sbr.rel (%p194) target = $region16
      $region15: #{generator_forward.15} parent=11 // pred_region
        _
      $region16: #{generator_forward.15} parent=11 // pred_fallthru
        _
    $region12: #{generator_forward.15} parent=5 // pred_fallthru
      _
    %p197 = scmp.lt.s32.totalorder %s12, 4
    // Predicated region
    $region17: #{generator_forward.15} parent=5 // pred_check
      %p198 = pneg %p197
    $region18: #{generator_forward.15} parent=5 // pred_check_branch
      %200 = sbr.rel (%p198) target = $region20
    $region19: #{generator_forward.15} parent=5 // pred_region
      // Predicated region
      $region21: #{generator_forward.15} parent=19 // pred_check
        %p201 = pneg %p46
      $region22: #{generator_forward.15} parent=19 // pred_check_branch
        %203 = sbr.rel (%p201) target = $region24
      $region23: #{generator_forward.15} parent=19 // pred_region
        %s204 = smul.u32 64, %s20
        %p205 = scmp.lt.s32.totalorder %s19, 3
        %s206 = scalar_select %p205, %s19, 3
        %p207 = scmp.lt.s32.totalorder %s204, 63
        %s208 = scalar_select %p207, %s204, 63
        %s209 = smul.addr %s206, 64
        %s210 = sadd.s32 %s208, %s209
        %s211 = smul.addr %s210, 4
        %s212 = scalar_lea.vmem %s0, %s211
        %s213 = smul.u32 64, %s20
      $region24: #{generator_forward.15} parent=19 // pred_fallthru
        _
      // Predicated region
      $region25: #{generator_forward.15} parent=19 // pred_check
        %p214 = pneg %p72
      $region26: #{generator_forward.15} parent=19 // pred_check_branch
        %216 = sbr.rel (%p214) target = $region28
      $region27: #{generator_forward.15} parent=19 // pred_region
        %p217 = scmp.lt.s32.totalorder %s19, 3
        %s218 = scalar_select %p217, %s19, 3
        %s219 = smul.addr %s218, 16
        %s220 = smul.addr %s219, 4
        %s221 = scalar_lea.vmem %s1, %s220
      $region28: #{generator_forward.15} parent=19 // pred_fallthru
        _
    $region20: #{generator_forward.15} parent=5 // pred_fallthru
      _
    %p222 = scmp.le.s32.totalorder 1, %s12
    %p223 = scmp.lt.s32.totalorder %s12, 5
    %p224 = pnand %p222, %p223
    %p225 = pneg %p224
    // Predicated region
    $region29: #{generator_forward.15} parent=5 // pred_check
      _
    $region30: #{generator_forward.15} parent=5 // pred_check_branch
      %227 = sbr.rel (%p224) target = $region32
    $region31: #{generator_forward.15} parent=5 // pred_region
      %s228 = ssub.s32 %s12, 1
      %s229 = smul.u32 64, %s22
      %p230 = scmp.lt.s32.totalorder %s21, 3
      %s231 = scalar_select %p230, %s21, 3
      %p232 = scmp.lt.s32.totalorder %s229, 63
      %s233 = scalar_select %p232, %s229, 63
      %s234 = smul.addr %s231, 64
      %s235 = sadd.s32 %s233, %s234
      %s236 = smul.addr %s235, 4
      %s237 = scalar_lea.vmem %s0, %s236
      %p238 = pneg %p52
      %p239 = pneg %p49
      %p240 = scmp.lt.s32.totalorder %s21, 3
      %s241 = scalar_select %p240, %s21, 3
      %s242 = smul.addr %s241, 16
      %s243 = smul.addr %s242, 4
      %s244 = scalar_lea.vmem %s1, %s243
      %p245 = pneg %p78
      %p246 = pneg %p75
      %p247 = pneg %p99
      %p248 = pneg %p96
      %p249 = pneg %p127
      %p250 = pneg %p124
      %s251 = smul.u32 64, %s22
      %p252 = scmp.lt.s32.totalorder %s21, 3
      %s253 = scalar_select %p252, %s21, 3
      %p254 = scmp.lt.s32.totalorder %s251, 63
      %s255 = scalar_select %p254, %s251, 63
      %s256 = smul.addr %s253, 64
      %s257 = sadd.s32 %s255, %s256
      %s258 = smul.addr %s257, 4
      %s259 = scalar_lea.vmem %s3, %s258
      %p260 = pneg %p153
      %p261 = pneg %p150
      %p262 = scmp.lt.s32.totalorder %s21, 3
      %s263 = scalar_select %p262, %s21, 3
      %s264 = scalar_lea.vmem %s4, %s263
      %p265 = pneg %p179
      %p266 = pneg %p176
      %p267 = scmp.lt.s32.totalorder %s21, 3
      %s268 = scalar_select %p267, %s21, 3
      %s269 = scalar_lea.vmem %s5, %s268
      %s270 = smul.u32 64, %s22
      %p271 = scmp.lt.s32.totalorder %s21, 3
      %s272 = scalar_select %p271, %s21, 3
      %p273 = scmp.lt.s32.totalorder %s270, 63
      %s274 = scalar_select %p273, %s270, 63
      %s275 = smul.addr %s272, 64
      %s276 = sadd.s32 %s274, %s275
      %s277 = smul.addr %s276, 4
      %s278 = scalar_lea.vmem %s0, %s277
      %s279 = smul.u32 64, %s22
      %p280 = scmp.lt.s32.totalorder %s21, 3
      %s281 = scalar_select %p280, %s21, 3
      %s282 = smul.addr %s281, 16
      %s283 = smul.addr %s282, 4
      %s284 = scalar_lea.vmem %s1, %s283
      %s285 = smul.u32 64, %s22
      %p286 = scmp.lt.s32.totalorder %s21, 3
      %s287 = scalar_select %p286, %s21, 3
      %p288 = scmp.lt.s32.totalorder %s285, 63
      %s289 = scalar_select %p288, %s285, 63
      %s290 = smul.addr %s287, 64
      %s291 = sadd.s32 %s289, %s290
      %s292 = smul.addr %s291, 4
      %s293 = scalar_lea.vmem %s3, %s292
      %s294 = smul.u32 64, %s22
      %p295 = scmp.lt.s32.totalorder %s21, 3
      %s296 = scalar_select %p295, %s21, 3
      %s297 = scalar_lea.vmem %s4, %s296
      %p298 = scmp.lt.s32.totalorder %s21, 3
      %s299 = scalar_select %p298, %s21, 3
      %s300 = scalar_lea.vmem %s5, %s299
      %p302 = scmp.eq.s32.totalorder %s22, 0
      // Predicated region
      $region33: #{generator_forward.15} parent=31 // pred_check
        %p303 = pneg %p302
      $region34: #{generator_forward.15} parent=31 // pred_check_branch
        %305 = sbr.rel (%p303) target = $region36
      $region35: #{generator_forward.15} parent=31 // pred_region
        %306 = vst [vmem:[%s297] sm:$0x1] 0.0
        %307 = vst [vmem:[%s300] sm:$0x1] 0.0
      $region36: #{generator_forward.15} parent=31 // pred_fallthru
        _
      %v308 = vld [vmem:[%s278] sm:$0xf]
      %v309 = vld [vmem:[%s278 + $0x4] sm:$0xf]
      %v310 = vld [vmem:[%s278 + $0x8] sm:$0xf]
      %v311 = vld [vmem:[%s278 + $0xc] sm:$0xf]
      %v312 = vld [vmem:[%s278 + $0x10] sm:$0xf]
      %v313 = vld [vmem:[%s278 + $0x14] sm:$0xf]
      %v314 = vld [vmem:[%s278 + $0x18] sm:$0xf]
      %v315 = vld [vmem:[%s278 + $0x1c] sm:$0xf]
      %v316 = vld [vmem:[%s278 + $0x20] sm:$0xf]
      %v317 = vld [vmem:[%s278 + $0x24] sm:$0xf]
      %v318 = vld [vmem:[%s278 + $0x28] sm:$0xf]
      %v319 = vld [vmem:[%s278 + $0x2c] sm:$0xf]
      %v320 = vld [vmem:[%s278 + $0x30] sm:$0xf]
      %v321 = vld [vmem:[%s278 + $0x34] sm:$0xf]
      %v322 = vld [vmem:[%s278 + $0x38] sm:$0xf]
      %v323 = vld [vmem:[%s278 + $0x3c] sm:$0xf]
      %v324 = vld [vmem:[%s278 + $0x40] sm:$0xf]
      %v325 = vld [vmem:[%s278 + $0x44] sm:$0xf]
      %v326 = vld [vmem:[%s278 + $0x48] sm:$0xf]
      %v327 = vld [vmem:[%s278 + $0x4c] sm:$0xf]
      %v328 = vld [vmem:[%s278 + $0x50] sm:$0xf]
      %v329 = vld [vmem:[%s278 + $0x54] sm:$0xf]
      %v330 = vld [vmem:[%s278 + $0x58] sm:$0xf]
      %v331 = vld [vmem:[%s278 + $0x5c] sm:$0xf]
      %v332 = vld [vmem:[%s278 + $0x60] sm:$0xf]
      %v333 = vld [vmem:[%s278 + $0x64] sm:$0xf]
      %v334 = vld [vmem:[%s278 + $0x68] sm:$0xf]
      %v335 = vld [vmem:[%s278 + $0x6c] sm:$0xf]
      %v336 = vld [vmem:[%s278 + $0x70] sm:$0xf]
      %v337 = vld [vmem:[%s278 + $0x74] sm:$0xf]
      %v338 = vld [vmem:[%s278 + $0x78] sm:$0xf]
      %v339 = vld [vmem:[%s278 + $0x7c] sm:$0xf]
      %v340 = vld [vmem:[%s278 + $0x80] sm:$0xf]
      %v341 = vld [vmem:[%s278 + $0x84] sm:$0xf]
      %v342 = vld [vmem:[%s278 + $0x88] sm:$0xf]
      %v343 = vld [vmem:[%s278 + $0x8c] sm:$0xf]
      %v344 = vld [vmem:[%s278 + $0x90] sm:$0xf]
      %v345 = vld [vmem:[%s278 + $0x94] sm:$0xf]
      %v346 = vld [vmem:[%s278 + $0x98] sm:$0xf]
      %v347 = vld [vmem:[%s278 + $0x9c] sm:$0xf]
      %v348 = vld [vmem:[%s278 + $0xa0] sm:$0xf]
      %v349 = vld [vmem:[%s278 + $0xa4] sm:$0xf]
      %v350 = vld [vmem:[%s278 + $0xa8] sm:$0xf]
      %v351 = vld [vmem:[%s278 + $0xac] sm:$0xf]
      %v352 = vld [vmem:[%s278 + $0xb0] sm:$0xf]
      %v353 = vld [vmem:[%s278 + $0xb4] sm:$0xf]
      %v354 = vld [vmem:[%s278 + $0xb8] sm:$0xf]
      %v355 = vld [vmem:[%s278 + $0xbc] sm:$0xf]
      %v356 = vld [vmem:[%s278 + $0xc0] sm:$0xf]
      %v357 = vld [vmem:[%s278 + $0xc4] sm:$0xf]
      %v358 = vld [vmem:[%s278 + $0xc8] sm:$0xf]
      %v359 = vld [vmem:[%s278 + $0xcc] sm:$0xf]
      %v360 = vld [vmem:[%s278 + $0xd0] sm:$0xf]
      %v361 = vld [vmem:[%s278 + $0xd4] sm:$0xf]
      %v362 = vld [vmem:[%s278 + $0xd8] sm:$0xf]
      %v363 = vld [vmem:[%s278 + $0xdc] sm:$0xf]
      %v364 = vld [vmem:[%s278 + $0xe0] sm:$0xf]
      %v365 = vld [vmem:[%s278 + $0xe4] sm:$0xf]
      %v366 = vld [vmem:[%s278 + $0xe8] sm:$0xf]
      %v367 = vld [vmem:[%s278 + $0xec] sm:$0xf]
      %v368 = vld [vmem:[%s278 + $0xf0] sm:$0xf]
      %v369 = vld [vmem:[%s278 + $0xf4] sm:$0xf]
      %v370 = vld [vmem:[%s278 + $0xf8] sm:$0xf]
      %v371 = vld [vmem:[%s278 + $0xfc] sm:$0xf]
      %v372 = vld [vmem:[%s284] sm:$0xf]
      %v373 = vld [vmem:[%s284 + $0x4] sm:$0xf]
      %v374 = vld [vmem:[%s284 + $0x8] sm:$0xf]
      %v375 = vld [vmem:[%s284 + $0xc] sm:$0xf]
      %v376 = vld [vmem:[%s284 + $0x10] sm:$0xf]
      %v377 = vld [vmem:[%s284 + $0x14] sm:$0xf]
      %v378 = vld [vmem:[%s284 + $0x18] sm:$0xf]
      %v379 = vld [vmem:[%s284 + $0x1c] sm:$0xf]
      %v380 = vld [vmem:[%s284 + $0x20] sm:$0xf]
      %v381 = vld [vmem:[%s284 + $0x24] sm:$0xf]
      %v382 = vld [vmem:[%s284 + $0x28] sm:$0xf]
      %v383 = vld [vmem:[%s284 + $0x2c] sm:$0xf]
      %v384 = vld [vmem:[%s284 + $0x30] sm:$0xf]
      %v385 = vld [vmem:[%s284 + $0x34] sm:$0xf]
      %v386 = vld [vmem:[%s284 + $0x38] sm:$0xf]
      %v387 = vld [vmem:[%s284 + $0x3c] sm:$0xf]
      %v388 = vld [vmem:[%s2] sm:$0x1]
      %v390 = vlaneseq
      %v391 = vshrl.u32 %v390, 7
      %v392 = vsub.s32 0, %v391
      %v393 = vrot.slane %v388, %v392
      %v459 = vunpack.c.l.b16 %v308
      %v460 = vunpack.c.l.b16 %v309
      %v461 = vunpack.c.l.b16 %v310
      %v462 = vunpack.c.l.b16 %v311
      %v463 = vunpack.c.l.b16 %v312
      %v464 = vunpack.c.l.b16 %v313
      %v465 = vunpack.c.l.b16 %v314
      %v466 = vunpack.c.l.b16 %v315
      %v467 = vunpack.c.l.b16 %v316
      %v468 = vunpack.c.l.b16 %v317
      %v469 = vunpack.c.l.b16 %v318
      %v470 = vunpack.c.l.b16 %v319
      %v471 = vunpack.c.l.b16 %v320
      %v472 = vunpack.c.l.b16 %v321
      %v473 = vunpack.c.l.b16 %v322
      %v474 = vunpack.c.l.b16 %v323
      %v475 = vunpack.c.l.b16 %v324
      %v476 = vunpack.c.l.b16 %v325
      %v477 = vunpack.c.l.b16 %v326
      %v478 = vunpack.c.l.b16 %v327
      %v479 = vunpack.c.l.b16 %v328
      %v480 = vunpack.c.l.b16 %v329
      %v481 = vunpack.c.l.b16 %v330
      %v482 = vunpack.c.l.b16 %v331
      %v483 = vunpack.c.l.b16 %v332
      %v484 = vunpack.c.l.b16 %v333
      %v485 = vunpack.c.l.b16 %v334
      %v486 = vunpack.c.l.b16 %v335
      %v487 = vunpack.c.l.b16 %v336
      %v488 = vunpack.c.l.b16 %v337
      %v489 = vunpack.c.l.b16 %v338
      %v490 = vunpack.c.l.b16 %v339
      %v491 = vunpack.c.l.b16 %v340
      %v492 = vunpack.c.l.b16 %v341
      %v493 = vunpack.c.l.b16 %v342
      %v494 = vunpack.c.l.b16 %v343
      %v495 = vunpack.c.l.b16 %v344
      %v496 = vunpack.c.l.b16 %v345
      %v497 = vunpack.c.l.b16 %v346
      %v498 = vunpack.c.l.b16 %v347
      %v499 = vunpack.c.l.b16 %v348
      %v500 = vunpack.c.l.b16 %v349
      %v501 = vunpack.c.l.b16 %v350
      %v502 = vunpack.c.l.b16 %v351
      %v503 = vunpack.c.l.b16 %v352
      %v504 = vunpack.c.l.b16 %v353
      %v505 = vunpack.c.l.b16 %v354
      %v506 = vunpack.c.l.b16 %v355
      %v507 = vunpack.c.l.b16 %v356
      %v508 = vunpack.c.l.b16 %v357
      %v509 = vunpack.c.l.b16 %v358
      %v510 = vunpack.c.l.b16 %v359
      %v511 = vunpack.c.l.b16 %v360
      %v512 = vunpack.c.l.b16 %v361
      %v513 = vunpack.c.l.b16 %v362
      %v514 = vunpack.c.l.b16 %v363
      %v515 = vunpack.c.l.b16 %v364
      %v516 = vunpack.c.l.b16 %v365
      %v517 = vunpack.c.l.b16 %v366
      %v518 = vunpack.c.l.b16 %v367
      %v519 = vunpack.c.l.b16 %v368
      %v520 = vunpack.c.l.b16 %v369
      %v521 = vunpack.c.l.b16 %v370
      %v522 = vunpack.c.l.b16 %v371
      %v523 = vpack.c.b16 %v460, %v459
      %v524 = vpack.c.b16 %v462, %v461
      %v525 = vpack.c.b16 %v464, %v463
      %v526 = vpack.c.b16 %v466, %v465
      %v527 = vpack.c.b16 %v468, %v467
      %v528 = vpack.c.b16 %v470, %v469
      %v529 = vpack.c.b16 %v472, %v471
      %v530 = vpack.c.b16 %v474, %v473
      %v531 = vpack.c.b16 %v476, %v475
      %v532 = vpack.c.b16 %v478, %v477
      %v533 = vpack.c.b16 %v480, %v479
      %v534 = vpack.c.b16 %v482, %v481
      %v535 = vpack.c.b16 %v484, %v483
      %v536 = vpack.c.b16 %v486, %v485
      %v537 = vpack.c.b16 %v488, %v487
      %v538 = vpack.c.b16 %v490, %v489
      %v539 = vpack.c.b16 %v492, %v491
      %v540 = vpack.c.b16 %v494, %v493
      %v541 = vpack.c.b16 %v496, %v495
      %v542 = vpack.c.b16 %v498, %v497
      %v543 = vpack.c.b16 %v500, %v499
      %v544 = vpack.c.b16 %v502, %v501
      %v545 = vpack.c.b16 %v504, %v503
      %v546 = vpack.c.b16 %v506, %v505
      %v547 = vpack.c.b16 %v508, %v507
      %v548 = vpack.c.b16 %v510, %v509
      %v549 = vpack.c.b16 %v512, %v511
      %v550 = vpack.c.b16 %v514, %v513
      %v551 = vpack.c.b16 %v516, %v515
      %v552 = vpack.c.b16 %v518, %v517
      %v553 = vpack.c.b16 %v520, %v519
      %v554 = vpack.c.b16 %v522, %v521
      %v603 = vunpack.c.l.b16 %v372
      %v604 = vunpack.c.l.b16 %v373
      %v605 = vunpack.c.l.b16 %v374
      %v606 = vunpack.c.l.b16 %v375
      %v607 = vunpack.c.l.b16 %v376
      %v608 = vunpack.c.l.b16 %v377
      %v609 = vunpack.c.l.b16 %v378
      %v610 = vunpack.c.l.b16 %v379
      %v611 = vunpack.c.l.b16 %v380
      %v612 = vunpack.c.l.b16 %v381
      %v613 = vunpack.c.l.b16 %v382
      %v614 = vunpack.c.l.b16 %v383
      %v615 = vunpack.c.l.b16 %v384
      %v616 = vunpack.c.l.b16 %v385
      %v617 = vunpack.c.l.b16 %v386
      %v618 = vunpack.c.l.b16 %v387
      %v619 = vpack.c.b16 %v604, %v603
      %v620 = vpack.c.b16 %v606, %v605
      %v621 = vpack.c.b16 %v608, %v607
      %v622 = vpack.c.b16 %v610, %v609
      %v623 = vpack.c.b16 %v612, %v611
      %v624 = vpack.c.b16 %v614, %v613
      %v625 = vpack.c.b16 %v616, %v615
      %v626 = vpack.c.b16 %v618, %v617
      %635 = vmatprep.subr.bf16.mxu0 0
      %636 = vmatpush1.bf16.msra.mxu0 %v626
      %637 = vmatprep.subr.bf16.mxu0 0
      %638 = vmatpush1.bf16.msra.mxu0 %v625
      %639 = vmatprep.subr.bf16.mxu0 0
      %640 = vmatpush1.bf16.msra.mxu0 %v624
      %641 = vmatprep.subr.bf16.mxu0 0
      %642 = vmatpush1.bf16.msra.mxu0 %v623
      %643 = vmatprep.subr.bf16.mxu0 0
      %644 = vmatpush1.bf16.msra.mxu0 %v622
      %645 = vmatprep.subr.bf16.mxu0 0
      %646 = vmatpush1.bf16.msra.mxu0 %v621
      %647 = vmatprep.subr.bf16.mxu0 0
      %648 = vmatpush1.bf16.msra.mxu0 %v620
      %649 = vmatprep.subr.bf16.mxu0 0
      %650 = vmatpush1.bf16.msra.mxu0 %v619
      %651 = vmatprep.subr.bf16.mxu0 0
      %652 = vmatpush2.bf16.msra.mxu0 0
      %653 = vmatprep.subr.bf16.mxu0 0
      %654 = vmatpush2.bf16.msra.mxu0 0
      %655 = vmatprep.subr.bf16.mxu0 0
      %656 = vmatpush2.bf16.msra.mxu0 0
      %657 = vmatprep.subr.bf16.mxu0 0
      %658 = vmatpush2.bf16.msra.mxu0 0
      %659 = vmatprep.subr.bf16.mxu0 0
      %660 = vmatpush2.bf16.msra.mxu0 0
      %661 = vmatprep.subr.bf16.mxu0 0
      %662 = vmatpush2.bf16.msra.mxu0 0
      %663 = vmatprep.subr.bf16.mxu0 0
      %664 = vmatpush2.bf16.msra.mxu0 0
      %665 = vmatprep.subr.bf16.mxu0 0
      %666 = vmatpush2.bf16.msra.mxu0 0
      %667 = vmatprep.mubr.bf16.mxu0 0
      %668 = vmatmul.mubr.bf16.gmra.mxu0 %v523
      %v669 = vpop.f32.mrf.mxu0
      %v670 = vadd.f32 %v393, %v669
      %v671 = vpop.f32.mrf.mxu0
      %v672 = vpop.f32.mrf.mxu0
      %v673 = vadd.f32 %v393, %v672
      %v674 = vpop.f32.mrf.mxu0
      %675 = vmatprep.mubr.bf16.mxu0 0
      %676 = vmatmul.mubr.bf16.gmra.mxu0 %v524
      %v677 = vpop.f32.mrf.mxu0
      %v678 = vadd.f32 %v393, %v677
      %v679 = vpop.f32.mrf.mxu0
      %v680 = vpop.f32.mrf.mxu0
      %v681 = vadd.f32 %v393, %v680
      %v682 = vpop.f32.mrf.mxu0
      %683 = vmatprep.mubr.bf16.mxu0 0
      %684 = vmatmul.mubr.bf16.gmra.mxu0 %v525
      %v685 = vpop.f32.mrf.mxu0
      %v686 = vadd.f32 %v393, %v685
      %v687 = vpop.f32.mrf.mxu0
      %v688 = vpop.f32.mrf.mxu0
      %v689 = vadd.f32 %v393, %v688
      %v690 = vpop.f32.mrf.mxu0
      %691 = vmatprep.mubr.bf16.mxu0 0
      %692 = vmatmul.mubr.bf16.gmra.mxu0 %v526
      %v693 = vpop.f32.mrf.mxu0
      %v694 = vadd.f32 %v393, %v693
      %v695 = vpop.f32.mrf.mxu0
      %v696 = vpop.f32.mrf.mxu0
      %v697 = vadd.f32 %v393, %v696
      %v698 = vpop.f32.mrf.mxu0
      %699 = vmatprep.mubr.bf16.mxu0 0
      %700 = vmatmul.mubr.bf16.gmra.mxu0 %v527
      %v701 = vpop.f32.mrf.mxu0
      %v702 = vadd.f32 %v393, %v701
      %v703 = vpop.f32.mrf.mxu0
      %v704 = vpop.f32.mrf.mxu0
      %v705 = vadd.f32 %v393, %v704
      %v706 = vpop.f32.mrf.mxu0
      %707 = vmatprep.mubr.bf16.mxu0 0
      %708 = vmatmul.mubr.bf16.gmra.mxu0 %v528
      %v709 = vpop.f32.mrf.mxu0
      %v710 = vadd.f32 %v393, %v709
      %v711 = vpop.f32.mrf.mxu0
      %v712 = vpop.f32.mrf.mxu0
      %v713 = vadd.f32 %v393, %v712
      %v714 = vpop.f32.mrf.mxu0
      %715 = vmatprep.mubr.bf16.mxu0 0
      %716 = vmatmul.mubr.bf16.gmra.mxu0 %v529
      %v717 = vpop.f32.mrf.mxu0
      %v718 = vadd.f32 %v393, %v717
      %v719 = vpop.f32.mrf.mxu0
      %v720 = vpop.f32.mrf.mxu0
      %v721 = vadd.f32 %v393, %v720
      %v722 = vpop.f32.mrf.mxu0
      %723 = vmatprep.mubr.bf16.mxu0 0
      %724 = vmatmul.mubr.bf16.gmra.mxu0 %v530
      %v725 = vpop.f32.mrf.mxu0
      %v726 = vadd.f32 %v393, %v725
      %v727 = vpop.f32.mrf.mxu0
      %v728 = vpop.f32.mrf.mxu0
      %v729 = vadd.f32 %v393, %v728
      %v730 = vpop.f32.mrf.mxu0
      %731 = vmatprep.mubr.bf16.mxu0 0
      %732 = vmatmul.mubr.bf16.gmra.mxu0 %v531
      %v733 = vpop.f32.mrf.mxu0
      %v734 = vadd.f32 %v393, %v733
      %v735 = vpop.f32.mrf.mxu0
      %v736 = vpop.f32.mrf.mxu0
      %v737 = vadd.f32 %v393, %v736
      %v738 = vpop.f32.mrf.mxu0
      %739 = vmatprep.mubr.bf16.mxu0 0
      %740 = vmatmul.mubr.bf16.gmra.mxu0 %v532
      %v741 = vpop.f32.mrf.mxu0
      %v742 = vadd.f32 %v393, %v741
      %v743 = vpop.f32.mrf.mxu0
      %v744 = vpop.f32.mrf.mxu0
      %v745 = vadd.f32 %v393, %v744
      %v746 = vpop.f32.mrf.mxu0
      %747 = vmatprep.mubr.bf16.mxu0 0
      %748 = vmatmul.mubr.bf16.gmra.mxu0 %v533
      %v749 = vpop.f32.mrf.mxu0
      %v750 = vadd.f32 %v393, %v749
      %v751 = vpop.f32.mrf.mxu0
      %v752 = vpop.f32.mrf.mxu0
      %v753 = vadd.f32 %v393, %v752
      %v754 = vpop.f32.mrf.mxu0
      %755 = vmatprep.mubr.bf16.mxu0 0
      %756 = vmatmul.mubr.bf16.gmra.mxu0 %v534
      %v757 = vpop.f32.mrf.mxu0
      %v758 = vadd.f32 %v393, %v757
      %v759 = vpop.f32.mrf.mxu0
      %v760 = vpop.f32.mrf.mxu0
      %v761 = vadd.f32 %v393, %v760
      %v762 = vpop.f32.mrf.mxu0
      %763 = vmatprep.mubr.bf16.mxu0 0
      %764 = vmatmul.mubr.bf16.gmra.mxu0 %v535
      %v765 = vpop.f32.mrf.mxu0
      %v766 = vadd.f32 %v393, %v765
      %v767 = vpop.f32.mrf.mxu0
      %v768 = vpop.f32.mrf.mxu0
      %v769 = vadd.f32 %v393, %v768
      %v770 = vpop.f32.mrf.mxu0
      %771 = vmatprep.mubr.bf16.mxu0 0
      %772 = vmatmul.mubr.bf16.gmra.mxu0 %v536
      %v773 = vpop.f32.mrf.mxu0
      %v774 = vadd.f32 %v393, %v773
      %v775 = vpop.f32.mrf.mxu0
      %v776 = vpop.f32.mrf.mxu0
      %v777 = vadd.f32 %v393, %v776
      %v778 = vpop.f32.mrf.mxu0
      %779 = vmatprep.mubr.bf16.mxu0 0
      %780 = vmatmul.mubr.bf16.gmra.mxu0 %v537
      %v781 = vpop.f32.mrf.mxu0
      %v782 = vadd.f32 %v393, %v781
      %v783 = vpop.f32.mrf.mxu0
      %v784 = vpop.f32.mrf.mxu0
      %v785 = vadd.f32 %v393, %v784
      %v786 = vpop.f32.mrf.mxu0
      %787 = vmatprep.mubr.bf16.mxu0 0
      %788 = vmatmul.mubr.bf16.gmra.mxu0 %v538
      %v789 = vpop.f32.mrf.mxu0
      %v790 = vadd.f32 %v393, %v789
      %v791 = vpop.f32.mrf.mxu0
      %v792 = vpop.f32.mrf.mxu0
      %v793 = vadd.f32 %v393, %v792
      %v794 = vpop.f32.mrf.mxu0
      %795 = vmatprep.mubr.bf16.mxu0 0
      %796 = vmatmul.mubr.bf16.gmra.mxu0 %v539
      %v797 = vpop.f32.mrf.mxu0
      %v798 = vadd.f32 %v393, %v797
      %v799 = vpop.f32.mrf.mxu0
      %v800 = vpop.f32.mrf.mxu0
      %v801 = vadd.f32 %v393, %v800
      %v802 = vpop.f32.mrf.mxu0
      %803 = vmatprep.mubr.bf16.mxu0 0
      %804 = vmatmul.mubr.bf16.gmra.mxu0 %v540
      %v805 = vpop.f32.mrf.mxu0
      %v806 = vadd.f32 %v393, %v805
      %v807 = vpop.f32.mrf.mxu0
      %v808 = vpop.f32.mrf.mxu0
      %v809 = vadd.f32 %v393, %v808
      %v810 = vpop.f32.mrf.mxu0
      %811 = vmatprep.mubr.bf16.mxu0 0
      %812 = vmatmul.mubr.bf16.gmra.mxu0 %v541
      %v813 = vpop.f32.mrf.mxu0
      %v814 = vadd.f32 %v393, %v813
      %v815 = vpop.f32.mrf.mxu0
      %v816 = vpop.f32.mrf.mxu0
      %v817 = vadd.f32 %v393, %v816
      %v818 = vpop.f32.mrf.mxu0
      %819 = vmatprep.mubr.bf16.mxu0 0
      %820 = vmatmul.mubr.bf16.gmra.mxu0 %v542
      %v821 = vpop.f32.mrf.mxu0
      %v822 = vadd.f32 %v393, %v821
      %v823 = vpop.f32.mrf.mxu0
      %v824 = vpop.f32.mrf.mxu0
      %v825 = vadd.f32 %v393, %v824
      %v826 = vpop.f32.mrf.mxu0
      %827 = vmatprep.mubr.bf16.mxu0 0
      %828 = vmatmul.mubr.bf16.gmra.mxu0 %v543
      %v829 = vpop.f32.mrf.mxu0
      %v830 = vadd.f32 %v393, %v829
      %v831 = vpop.f32.mrf.mxu0
      %v832 = vpop.f32.mrf.mxu0
      %v833 = vadd.f32 %v393, %v832
      %v834 = vpop.f32.mrf.mxu0
      %835 = vmatprep.mubr.bf16.mxu0 0
      %836 = vmatmul.mubr.bf16.gmra.mxu0 %v544
      %v837 = vpop.f32.mrf.mxu0
      %v838 = vadd.f32 %v393, %v837
      %v839 = vpop.f32.mrf.mxu0
      %v840 = vpop.f32.mrf.mxu0
      %v841 = vadd.f32 %v393, %v840
      %v842 = vpop.f32.mrf.mxu0
      %843 = vmatprep.mubr.bf16.mxu0 0
      %844 = vmatmul.mubr.bf16.gmra.mxu0 %v545
      %v845 = vpop.f32.mrf.mxu0
      %v846 = vadd.f32 %v393, %v845
      %v847 = vpop.f32.mrf.mxu0
      %v848 = vpop.f32.mrf.mxu0
      %v849 = vadd.f32 %v393, %v848
      %v850 = vpop.f32.mrf.mxu0
      %851 = vmatprep.mubr.bf16.mxu0 0
      %852 = vmatmul.mubr.bf16.gmra.mxu0 %v546
      %v853 = vpop.f32.mrf.mxu0
      %v854 = vadd.f32 %v393, %v853
      %v855 = vpop.f32.mrf.mxu0
      %v856 = vpop.f32.mrf.mxu0
      %v857 = vadd.f32 %v393, %v856
      %v858 = vpop.f32.mrf.mxu0
      %859 = vmatprep.mubr.bf16.mxu0 0
      %860 = vmatmul.mubr.bf16.gmra.mxu0 %v547
      %v861 = vpop.f32.mrf.mxu0
      %v862 = vadd.f32 %v393, %v861
      %v863 = vpop.f32.mrf.mxu0
      %v864 = vpop.f32.mrf.mxu0
      %v865 = vadd.f32 %v393, %v864
      %v866 = vpop.f32.mrf.mxu0
      %867 = vmatprep.mubr.bf16.mxu0 0
      %868 = vmatmul.mubr.bf16.gmra.mxu0 %v548
      %v869 = vpop.f32.mrf.mxu0
      %v870 = vadd.f32 %v393, %v869
      %v871 = vpop.f32.mrf.mxu0
      %v872 = vpop.f32.mrf.mxu0
      %v873 = vadd.f32 %v393, %v872
      %v874 = vpop.f32.mrf.mxu0
      %875 = vmatprep.mubr.bf16.mxu0 0
      %876 = vmatmul.mubr.bf16.gmra.mxu0 %v549
      %v877 = vpop.f32.mrf.mxu0
      %v878 = vadd.f32 %v393, %v877
      %v879 = vpop.f32.mrf.mxu0
      %v880 = vpop.f32.mrf.mxu0
      %v881 = vadd.f32 %v393, %v880
      %v882 = vpop.f32.mrf.mxu0
      %883 = vmatprep.mubr.bf16.mxu0 0
      %884 = vmatmul.mubr.bf16.gmra.mxu0 %v550
      %v885 = vpop.f32.mrf.mxu0
      %v886 = vadd.f32 %v393, %v885
      %v887 = vpop.f32.mrf.mxu0
      %v888 = vpop.f32.mrf.mxu0
      %v889 = vadd.f32 %v393, %v888
      %v890 = vpop.f32.mrf.mxu0
      %891 = vmatprep.mubr.bf16.mxu0 0
      %892 = vmatmul.mubr.bf16.gmra.mxu0 %v551
      %v893 = vpop.f32.mrf.mxu0
      %v894 = vadd.f32 %v393, %v893
      %v895 = vpop.f32.mrf.mxu0
      %v896 = vpop.f32.mrf.mxu0
      %v897 = vadd.f32 %v393, %v896
      %v898 = vpop.f32.mrf.mxu0
      %899 = vmatprep.mubr.bf16.mxu0 0
      %900 = vmatmul.mubr.bf16.gmra.mxu0 %v552
      %v901 = vpop.f32.mrf.mxu0
      %v902 = vadd.f32 %v393, %v901
      %v903 = vpop.f32.mrf.mxu0
      %v904 = vpop.f32.mrf.mxu0
      %v905 = vadd.f32 %v393, %v904
      %v906 = vpop.f32.mrf.mxu0
      %907 = vmatprep.mubr.bf16.mxu0 0
      %908 = vmatmul.mubr.bf16.gmra.mxu0 %v553
      %v909 = vpop.f32.mrf.mxu0
      %v910 = vadd.f32 %v393, %v909
      %v911 = vpop.f32.mrf.mxu0
      %v912 = vpop.f32.mrf.mxu0
      %v913 = vadd.f32 %v393, %v912
      %v914 = vpop.f32.mrf.mxu0
      %915 = vmatprep.mubr.bf16.mxu0 0
      %916 = vmatmul.mubr.bf16.gmra.mxu0 %v554
      %v917 = vpop.f32.mrf.mxu0
      %v918 = vadd.f32 %v393, %v917
      %v919 = vpop.f32.mrf.mxu0
      %v920 = vpop.f32.mrf.mxu0
      %v921 = vadd.f32 %v393, %v920
      %v922 = vpop.f32.mrf.mxu0
      %923 = vdwg.mxu0
      %v924 = vld [vmem:[%s297] sm:$0x1]
      %v925 = vadd.f32 %v670, %v673
      %v926 = vadd.f32 %v925, %v678
      %v927 = vadd.f32 %v926, %v681
      %v928 = vadd.f32 %v927, %v686
      %v929 = vadd.f32 %v928, %v689
      %v930 = vadd.f32 %v929, %v694
      %v931 = vadd.f32 %v930, %v697
      %v932 = vadd.f32 %v931, %v702
      %v933 = vadd.f32 %v932, %v705
      %v934 = vadd.f32 %v933, %v710
      %v935 = vadd.f32 %v934, %v713
      %v936 = vadd.f32 %v935, %v718
      %v937 = vadd.f32 %v936, %v721
      %v938 = vadd.f32 %v937, %v726
      %v939 = vadd.f32 %v938, %v729
      %v940 = vadd.f32 %v939, %v734
      %v941 = vadd.f32 %v940, %v737
      %v942 = vadd.f32 %v941, %v742
      %v943 = vadd.f32 %v942, %v745
      %v944 = vadd.f32 %v943, %v750
      %v945 = vadd.f32 %v944, %v753
      %v946 = vadd.f32 %v945, %v758
      %v947 = vadd.f32 %v946, %v761
      %v948 = vadd.f32 %v947, %v766
      %v949 = vadd.f32 %v948, %v769
      %v950 = vadd.f32 %v949, %v774
      %v951 = vadd.f32 %v950, %v777
      %v952 = vadd.f32 %v951, %v782
      %v953 = vadd.f32 %v952, %v785
      %v954 = vadd.f32 %v953, %v790
      %v955 = vadd.f32 %v954, %v793
      %v956 = vadd.f32 %v955, %v798
      %v957 = vadd.f32 %v956, %v801
      %v958 = vadd.f32 %v957, %v806
      %v959 = vadd.f32 %v958, %v809
      %v960 = vadd.f32 %v959, %v814
      %v961 = vadd.f32 %v960, %v817
      %v962 = vadd.f32 %v961, %v822
      %v963 = vadd.f32 %v962, %v825
      %v964 = vadd.f32 %v963, %v830
      %v965 = vadd.f32 %v964, %v833
      %v966 = vadd.f32 %v965, %v838
      %v967 = vadd.f32 %v966, %v841
      %v968 = vadd.f32 %v967, %v846
      %v969 = vadd.f32 %v968, %v849
      %v970 = vadd.f32 %v969, %v854
      %v971 = vadd.f32 %v970, %v857
      %v972 = vadd.f32 %v971, %v862
      %v973 = vadd.f32 %v972, %v865
      %v974 = vadd.f32 %v973, %v870
      %v975 = vadd.f32 %v974, %v873
      %v976 = vadd.f32 %v975, %v878
      %v977 = vadd.f32 %v976, %v881
      %v978 = vadd.f32 %v977, %v886
      %v979 = vadd.f32 %v978, %v889
      %v980 = vadd.f32 %v979, %v894
      %v981 = vadd.f32 %v980, %v897
      %v982 = vadd.f32 %v981, %v902
      %v983 = vadd.f32 %v982, %v905
      %v984 = vadd.f32 %v983, %v910
      %v985 = vadd.f32 %v984, %v913
      %v986 = vadd.f32 %v985, %v918
      %v987 = vadd.f32 %v986, %v921
      %v988 = vrot.slane %v987, 4
      %v989 = vadd.f32 %v987, %v988
      %v990 = vrot.slane %v989, 2
      %v991 = vadd.f32 %v989, %v990
      %v992 = vrot.slane %v991, 1
      %v993 = vadd.f32 %v991, %v992
      %v994 = vadd.f32 %v924, %v993
      %995 = vst [vmem:[%s297] sm:$0x1] %v994
      %v996 = vld [vmem:[%s300] sm:$0x1]
      %v997 = vmul.f32 %v670, %v670
      %v998 = vmul.f32 %v673, %v673
      %v999 = vmul.f32 %v678, %v678
      %v1000 = vmul.f32 %v681, %v681
      %v1001 = vmul.f32 %v686, %v686
      %v1002 = vmul.f32 %v689, %v689
      %v1003 = vmul.f32 %v694, %v694
      %v1004 = vmul.f32 %v697, %v697
      %v1005 = vmul.f32 %v702, %v702
      %v1006 = vmul.f32 %v705, %v705
      %v1007 = vmul.f32 %v710, %v710
      %v1008 = vmul.f32 %v713, %v713
      %v1009 = vmul.f32 %v718, %v718
      %v1010 = vmul.f32 %v721, %v721
      %v1011 = vmul.f32 %v726, %v726
      %v1012 = vmul.f32 %v729, %v729
      %v1013 = vmul.f32 %v734, %v734
      %v1014 = vmul.f32 %v737, %v737
      %v1015 = vmul.f32 %v742, %v742
      %v1016 = vmul.f32 %v745, %v745
      %v1017 = vmul.f32 %v750, %v750
      %v1018 = vmul.f32 %v753, %v753
      %v1019 = vmul.f32 %v758, %v758
      %v1020 = vmul.f32 %v761, %v761
      %v1021 = vmul.f32 %v766, %v766
      %v1022 = vmul.f32 %v769, %v769
      %v1023 = vmul.f32 %v774, %v774
      %v1024 = vmul.f32 %v777, %v777
      %v1025 = vmul.f32 %v782, %v782
      %v1026 = vmul.f32 %v785, %v785
      %v1027 = vmul.f32 %v790, %v790
      %v1028 = vmul.f32 %v793, %v793
      %v1029 = vmul.f32 %v798, %v798
      %v1030 = vmul.f32 %v801, %v801
      %v1031 = vmul.f32 %v806, %v806
      %v1032 = vmul.f32 %v809, %v809
      %v1033 = vmul.f32 %v814, %v814
      %v1034 = vmul.f32 %v817, %v817
      %v1035 = vmul.f32 %v822, %v822
      %v1036 = vmul.f32 %v825, %v825
      %v1037 = vmul.f32 %v830, %v830
      %v1038 = vmul.f32 %v833, %v833
      %v1039 = vmul.f32 %v838, %v838
      %v1040 = vmul.f32 %v841, %v841
      %v1041 = vmul.f32 %v846, %v846
      %v1042 = vmul.f32 %v849, %v849
      %v1043 = vmul.f32 %v854, %v854
      %v1044 = vmul.f32 %v857, %v857
      %v1045 = vmul.f32 %v862, %v862
      %v1046 = vmul.f32 %v865, %v865
      %v1047 = vmul.f32 %v870, %v870
      %v1048 = vmul.f32 %v873, %v873
      %v1049 = vmul.f32 %v878, %v878
      %v1050 = vmul.f32 %v881, %v881
      %v1051 = vmul.f32 %v886, %v886
      %v1052 = vmul.f32 %v889, %v889
      %v1053 = vmul.f32 %v894, %v894
      %v1054 = vmul.f32 %v897, %v897
      %v1055 = vmul.f32 %v902, %v902
      %v1056 = vmul.f32 %v905, %v905
      %v1057 = vmul.f32 %v910, %v910
      %v1058 = vmul.f32 %v913, %v913
      %v1059 = vmul.f32 %v918, %v918
      %v1060 = vmul.f32 %v921, %v921
      %v1061 = vadd.f32 %v997, %v998
      %v1062 = vadd.f32 %v1061, %v999
      %v1063 = vadd.f32 %v1062, %v1000
      %v1064 = vadd.f32 %v1063, %v1001
      %v1065 = vadd.f32 %v1064, %v1002
      %v1066 = vadd.f32 %v1065, %v1003
      %v1067 = vadd.f32 %v1066, %v1004
      %v1068 = vadd.f32 %v1067, %v1005
      %v1069 = vadd.f32 %v1068, %v1006
      %v1070 = vadd.f32 %v1069, %v1007
      %v1071 = vadd.f32 %v1070, %v1008
      %v1072 = vadd.f32 %v1071, %v1009
      %v1073 = vadd.f32 %v1072, %v1010
      %v1074 = vadd.f32 %v1073, %v1011
      %v1075 = vadd.f32 %v1074, %v1012
      %v1076 = vadd.f32 %v1075, %v1013
      %v1077 = vadd.f32 %v1076, %v1014
      %v1078 = vadd.f32 %v1077, %v1015
      %v1079 = vadd.f32 %v1078, %v1016
      %v1080 = vadd.f32 %v1079, %v1017
      %v1081 = vadd.f32 %v1080, %v1018
      %v1082 = vadd.f32 %v1081, %v1019
      %v1083 = vadd.f32 %v1082, %v1020
      %v1084 = vadd.f32 %v1083, %v1021
      %v1085 = vadd.f32 %v1084, %v1022
      %v1086 = vadd.f32 %v1085, %v1023
      %v1087 = vadd.f32 %v1086, %v1024
      %v1088 = vadd.f32 %v1087, %v1025
      %v1089 = vadd.f32 %v1088, %v1026
      %v1090 = vadd.f32 %v1089, %v1027
      %v1091 = vadd.f32 %v1090, %v1028
      %v1092 = vadd.f32 %v1091, %v1029
      %v1093 = vadd.f32 %v1092, %v1030
      %v1094 = vadd.f32 %v1093, %v1031
      %v1095 = vadd.f32 %v1094, %v1032
      %v1096 = vadd.f32 %v1095, %v1033
      %v1097 = vadd.f32 %v1096, %v1034
      %v1098 = vadd.f32 %v1097, %v1035
      %v1099 = vadd.f32 %v1098, %v1036
      %v1100 = vadd.f32 %v1099, %v1037
      %v1101 = vadd.f32 %v1100, %v1038
      %v1102 = vadd.f32 %v1101, %v1039
      %v1103 = vadd.f32 %v1102, %v1040
      %v1104 = vadd.f32 %v1103, %v1041
      %v1105 = vadd.f32 %v1104, %v1042
      %v1106 = vadd.f32 %v1105, %v1043
      %v1107 = vadd.f32 %v1106, %v1044
      %v1108 = vadd.f32 %v1107, %v1045
      %v1109 = vadd.f32 %v1108, %v1046
      %v1110 = vadd.f32 %v1109, %v1047
      %v1111 = vadd.f32 %v1110, %v1048
      %v1112 = vadd.f32 %v1111, %v1049
      %v1113 = vadd.f32 %v1112, %v1050
      %v1114 = vadd.f32 %v1113, %v1051
      %v1115 = vadd.f32 %v1114, %v1052
      %v1116 = vadd.f32 %v1115, %v1053
      %v1117 = vadd.f32 %v1116, %v1054
      %v1118 = vadd.f32 %v1117, %v1055
      %v1119 = vadd.f32 %v1118, %v1056
      %v1120 = vadd.f32 %v1119, %v1057
      %v1121 = vadd.f32 %v1120, %v1058
      %v1122 = vadd.f32 %v1121, %v1059
      %v1123 = vadd.f32 %v1122, %v1060
      %v1124 = vrot.slane %v1123, 4
      %v1125 = vadd.f32 %v1123, %v1124
      %v1126 = vrot.slane %v1125, 2
      %v1127 = vadd.f32 %v1125, %v1126
      %v1128 = vrot.slane %v1127, 1
      %v1129 = vadd.f32 %v1127, %v1128
      %v1130 = vadd.f32 %v996, %v1129
      %1131 = vst [vmem:[%s300] sm:$0x1] %v1130
      %v1132 = vpack.c.bf16 %v673, %v670
      %v1133 = vpack.c.bf16 %v681, %v678
      %v1134 = vpack.c.bf16 %v689, %v686
      %v1135 = vpack.c.bf16 %v697, %v694
      %v1136 = vpack.c.bf16 %v705, %v702
      %v1137 = vpack.c.bf16 %v713, %v710
      %v1138 = vpack.c.bf16 %v721, %v718
      %v1139 = vpack.c.bf16 %v729, %v726
      %v1140 = vpack.c.bf16 %v737, %v734
      %v1141 = vpack.c.bf16 %v745, %v742
      %v1142 = vpack.c.bf16 %v753, %v750
      %v1143 = vpack.c.bf16 %v761, %v758
      %v1144 = vpack.c.bf16 %v769, %v766
      %v1145 = vpack.c.bf16 %v777, %v774
      %v1146 = vpack.c.bf16 %v785, %v782
      %v1147 = vpack.c.bf16 %v793, %v790
      %v1148 = vpack.c.bf16 %v801, %v798
      %v1149 = vpack.c.bf16 %v809, %v806
      %v1150 = vpack.c.bf16 %v817, %v814
      %v1151 = vpack.c.bf16 %v825, %v822
      %v1152 = vpack.c.bf16 %v833, %v830
      %v1153 = vpack.c.bf16 %v841, %v838
      %v1154 = vpack.c.bf16 %v849, %v846
      %v1155 = vpack.c.bf16 %v857, %v854
      %v1156 = vpack.c.bf16 %v865, %v862
      %v1157 = vpack.c.bf16 %v873, %v870
      %v1158 = vpack.c.bf16 %v881, %v878
      %v1159 = vpack.c.bf16 %v889, %v886
      %v1160 = vpack.c.bf16 %v897, %v894
      %v1161 = vpack.c.bf16 %v905, %v902
      %v1162 = vpack.c.bf16 %v913, %v910
      %v1163 = vpack.c.bf16 %v921, %v918
      %v1196 = vunpack.c.l.b16 %v1132
      %v1197 = vunpack.c.h.b16 %v1132
      %v1198 = vunpack.c.l.b16 %v1133
      %v1199 = vunpack.c.h.b16 %v1133
      %v1200 = vunpack.c.l.b16 %v1134
      %v1201 = vunpack.c.h.b16 %v1134
      %v1202 = vunpack.c.l.b16 %v1135
      %v1203 = vunpack.c.h.b16 %v1135
      %v1204 = vunpack.c.l.b16 %v1136
      %v1205 = vunpack.c.h.b16 %v1136
      %v1206 = vunpack.c.l.b16 %v1137
      %v1207 = vunpack.c.h.b16 %v1137
      %v1208 = vunpack.c.l.b16 %v1138
      %v1209 = vunpack.c.h.b16 %v1138
      %v1210 = vunpack.c.l.b16 %v1139
      %v1211 = vunpack.c.h.b16 %v1139
      %v1212 = vunpack.c.l.b16 %v1140
      %v1213 = vunpack.c.h.b16 %v1140
      %v1214 = vunpack.c.l.b16 %v1141
      %v1215 = vunpack.c.h.b16 %v1141
      %v1216 = vunpack.c.l.b16 %v1142
      %v1217 = vunpack.c.h.b16 %v1142
      %v1218 = vunpack.c.l.b16 %v1143
      %v1219 = vunpack.c.h.b16 %v1143
      %v1220 = vunpack.c.l.b16 %v1144
      %v1221 = vunpack.c.h.b16 %v1144
      %v1222 = vunpack.c.l.b16 %v1145
      %v1223 = vunpack.c.h.b16 %v1145
      %v1224 = vunpack.c.l.b16 %v1146
      %v1225 = vunpack.c.h.b16 %v1146
      %v1226 = vunpack.c.l.b16 %v1147
      %v1227 = vunpack.c.h.b16 %v1147
      %v1228 = vunpack.c.l.b16 %v1148
      %v1229 = vunpack.c.h.b16 %v1148
      %v1230 = vunpack.c.l.b16 %v1149
      %v1231 = vunpack.c.h.b16 %v1149
      %v1232 = vunpack.c.l.b16 %v1150
      %v1233 = vunpack.c.h.b16 %v1150
      %v1234 = vunpack.c.l.b16 %v1151
      %v1235 = vunpack.c.h.b16 %v1151
      %v1236 = vunpack.c.l.b16 %v1152
      %v1237 = vunpack.c.h.b16 %v1152
      %v1238 = vunpack.c.l.b16 %v1153
      %v1239 = vunpack.c.h.b16 %v1153
      %v1240 = vunpack.c.l.b16 %v1154
      %v1241 = vunpack.c.h.b16 %v1154
      %v1242 = vunpack.c.l.b16 %v1155
      %v1243 = vunpack.c.h.b16 %v1155
      %v1244 = vunpack.c.l.b16 %v1156
      %v1245 = vunpack.c.h.b16 %v1156
      %v1246 = vunpack.c.l.b16 %v1157
      %v1247 = vunpack.c.h.b16 %v1157
      %v1248 = vunpack.c.l.b16 %v1158
      %v1249 = vunpack.c.h.b16 %v1158
      %v1250 = vunpack.c.l.b16 %v1159
      %v1251 = vunpack.c.h.b16 %v1159
      %v1252 = vunpack.c.l.b16 %v1160
      %v1253 = vunpack.c.h.b16 %v1160
      %v1254 = vunpack.c.l.b16 %v1161
      %v1255 = vunpack.c.h.b16 %v1161
      %v1256 = vunpack.c.l.b16 %v1162
      %v1257 = vunpack.c.h.b16 %v1162
      %v1258 = vunpack.c.l.b16 %v1163
      %v1259 = vunpack.c.h.b16 %v1163
      %v1260 = vpack.c.b16 %v1196, %v1196
      %v1261 = vpack.c.b16 %v1197, %v1197
      %v1262 = vpack.c.b16 %v1198, %v1198
      %v1263 = vpack.c.b16 %v1199, %v1199
      %v1264 = vpack.c.b16 %v1200, %v1200
      %v1265 = vpack.c.b16 %v1201, %v1201
      %v1266 = vpack.c.b16 %v1202, %v1202
      %v1267 = vpack.c.b16 %v1203, %v1203
      %v1268 = vpack.c.b16 %v1204, %v1204
      %v1269 = vpack.c.b16 %v1205, %v1205
      %v1270 = vpack.c.b16 %v1206, %v1206
      %v1271 = vpack.c.b16 %v1207, %v1207
      %v1272 = vpack.c.b16 %v1208, %v1208
      %v1273 = vpack.c.b16 %v1209, %v1209
      %v1274 = vpack.c.b16 %v1210, %v1210
      %v1275 = vpack.c.b16 %v1211, %v1211
      %v1276 = vpack.c.b16 %v1212, %v1212
      %v1277 = vpack.c.b16 %v1213, %v1213
      %v1278 = vpack.c.b16 %v1214, %v1214
      %v1279 = vpack.c.b16 %v1215, %v1215
      %v1280 = vpack.c.b16 %v1216, %v1216
      %v1281 = vpack.c.b16 %v1217, %v1217
      %v1282 = vpack.c.b16 %v1218, %v1218
      %v1283 = vpack.c.b16 %v1219, %v1219
      %v1284 = vpack.c.b16 %v1220, %v1220
      %v1285 = vpack.c.b16 %v1221, %v1221
      %v1286 = vpack.c.b16 %v1222, %v1222
      %v1287 = vpack.c.b16 %v1223, %v1223
      %v1288 = vpack.c.b16 %v1224, %v1224
      %v1289 = vpack.c.b16 %v1225, %v1225
      %v1290 = vpack.c.b16 %v1226, %v1226
      %v1291 = vpack.c.b16 %v1227, %v1227
      %v1292 = vpack.c.b16 %v1228, %v1228
      %v1293 = vpack.c.b16 %v1229, %v1229
      %v1294 = vpack.c.b16 %v1230, %v1230
      %v1295 = vpack.c.b16 %v1231, %v1231
      %v1296 = vpack.c.b16 %v1232, %v1232
      %v1297 = vpack.c.b16 %v1233, %v1233
      %v1298 = vpack.c.b16 %v1234, %v1234
      %v1299 = vpack.c.b16 %v1235, %v1235
      %v1300 = vpack.c.b16 %v1236, %v1236
      %v1301 = vpack.c.b16 %v1237, %v1237
      %v1302 = vpack.c.b16 %v1238, %v1238
      %v1303 = vpack.c.b16 %v1239, %v1239
      %v1304 = vpack.c.b16 %v1240, %v1240
      %v1305 = vpack.c.b16 %v1241, %v1241
      %v1306 = vpack.c.b16 %v1242, %v1242
      %v1307 = vpack.c.b16 %v1243, %v1243
      %v1308 = vpack.c.b16 %v1244, %v1244
      %v1309 = vpack.c.b16 %v1245, %v1245
      %v1310 = vpack.c.b16 %v1246, %v1246
      %v1311 = vpack.c.b16 %v1247, %v1247
      %v1312 = vpack.c.b16 %v1248, %v1248
      %v1313 = vpack.c.b16 %v1249, %v1249
      %v1314 = vpack.c.b16 %v1250, %v1250
      %v1315 = vpack.c.b16 %v1251, %v1251
      %v1316 = vpack.c.b16 %v1252, %v1252
      %v1317 = vpack.c.b16 %v1253, %v1253
      %v1318 = vpack.c.b16 %v1254, %v1254
      %v1319 = vpack.c.b16 %v1255, %v1255
      %v1320 = vpack.c.b16 %v1256, %v1256
      %v1321 = vpack.c.b16 %v1257, %v1257
      %v1322 = vpack.c.b16 %v1258, %v1258
      %v1323 = vpack.c.b16 %v1259, %v1259
      %1388 = vst [vmem:[%s293] sm:$0xf] %v1260
      %1389 = vst [vmem:[%s293 + $0x4] sm:$0xf] %v1261
      %1390 = vst [vmem:[%s293 + $0x8] sm:$0xf] %v1262
      %1391 = vst [vmem:[%s293 + $0xc] sm:$0xf] %v1263
      %1392 = vst [vmem:[%s293 + $0x10] sm:$0xf] %v1264
      %1393 = vst [vmem:[%s293 + $0x14] sm:$0xf] %v1265
      %1394 = vst [vmem:[%s293 + $0x18] sm:$0xf] %v1266
      %1395 = vst [vmem:[%s293 + $0x1c] sm:$0xf] %v1267
      %1396 = vst [vmem:[%s293 + $0x20] sm:$0xf] %v1268
      %1397 = vst [vmem:[%s293 + $0x24] sm:$0xf] %v1269
      %1398 = vst [vmem:[%s293 + $0x28] sm:$0xf] %v1270
      %1399 = vst [vmem:[%s293 + $0x2c] sm:$0xf] %v1271
      %1400 = vst [vmem:[%s293 + $0x30] sm:$0xf] %v1272
      %1401 = vst [vmem:[%s293 + $0x34] sm:$0xf] %v1273
      %1402 = vst [vmem:[%s293 + $0x38] sm:$0xf] %v1274
      %1403 = vst [vmem:[%s293 + $0x3c] sm:$0xf] %v1275
      %1404 = vst [vmem:[%s293 + $0x40] sm:$0xf] %v1276
      %1405 = vst [vmem:[%s293 + $0x44] sm:$0xf] %v1277
      %1406 = vst [vmem:[%s293 + $0x48] sm:$0xf] %v1278
      %1407 = vst [vmem:[%s293 + $0x4c] sm:$0xf] %v1279
      %1408 = vst [vmem:[%s293 + $0x50] sm:$0xf] %v1280
      %1409 = vst [vmem:[%s293 + $0x54] sm:$0xf] %v1281
      %1410 = vst [vmem:[%s293 + $0x58] sm:$0xf] %v1282
      %1411 = vst [vmem:[%s293 + $0x5c] sm:$0xf] %v1283
      %1412 = vst [vmem:[%s293 + $0x60] sm:$0xf] %v1284
      %1413 = vst [vmem:[%s293 + $0x64] sm:$0xf] %v1285
      %1414 = vst [vmem:[%s293 + $0x68] sm:$0xf] %v1286
      %1415 = vst [vmem:[%s293 + $0x6c] sm:$0xf] %v1287
      %1416 = vst [vmem:[%s293 + $0x70] sm:$0xf] %v1288
      %1417 = vst [vmem:[%s293 + $0x74] sm:$0xf] %v1289
      %1418 = vst [vmem:[%s293 + $0x78] sm:$0xf] %v1290
      %1419 = vst [vmem:[%s293 + $0x7c] sm:$0xf] %v1291
      %1420 = vst [vmem:[%s293 + $0x80] sm:$0xf] %v1292
      %1421 = vst [vmem:[%s293 + $0x84] sm:$0xf] %v1293
      %1422 = vst [vmem:[%s293 + $0x88] sm:$0xf] %v1294
      %1423 = vst [vmem:[%s293 + $0x8c] sm:$0xf] %v1295
      %1424 = vst [vmem:[%s293 + $0x90] sm:$0xf] %v1296
      %1425 = vst [vmem:[%s293 + $0x94] sm:$0xf] %v1297
      %1426 = vst [vmem:[%s293 + $0x98] sm:$0xf] %v1298
      %1427 = vst [vmem:[%s293 + $0x9c] sm:$0xf] %v1299
      %1428 = vst [vmem:[%s293 + $0xa0] sm:$0xf] %v1300
      %1429 = vst [vmem:[%s293 + $0xa4] sm:$0xf] %v1301
      %1430 = vst [vmem:[%s293 + $0xa8] sm:$0xf] %v1302
      %1431 = vst [vmem:[%s293 + $0xac] sm:$0xf] %v1303
      %1432 = vst [vmem:[%s293 + $0xb0] sm:$0xf] %v1304
      %1433 = vst [vmem:[%s293 + $0xb4] sm:$0xf] %v1305
      %1434 = vst [vmem:[%s293 + $0xb8] sm:$0xf] %v1306
      %1435 = vst [vmem:[%s293 + $0xbc] sm:$0xf] %v1307
      %1436 = vst [vmem:[%s293 + $0xc0] sm:$0xf] %v1308
      %1437 = vst [vmem:[%s293 + $0xc4] sm:$0xf] %v1309
      %1438 = vst [vmem:[%s293 + $0xc8] sm:$0xf] %v1310
      %1439 = vst [vmem:[%s293 + $0xcc] sm:$0xf] %v1311
      %1440 = vst [vmem:[%s293 + $0xd0] sm:$0xf] %v1312
      %1441 = vst [vmem:[%s293 + $0xd4] sm:$0xf] %v1313
      %1442 = vst [vmem:[%s293 + $0xd8] sm:$0xf] %v1314
      %1443 = vst [vmem:[%s293 + $0xdc] sm:$0xf] %v1315
      %1444 = vst [vmem:[%s293 + $0xe0] sm:$0xf] %v1316
      %1445 = vst [vmem:[%s293 + $0xe4] sm:$0xf] %v1317
      %1446 = vst [vmem:[%s293 + $0xe8] sm:$0xf] %v1318
      %1447 = vst [vmem:[%s293 + $0xec] sm:$0xf] %v1319
      %1448 = vst [vmem:[%s293 + $0xf0] sm:$0xf] %v1320
      %1449 = vst [vmem:[%s293 + $0xf4] sm:$0xf] %v1321
      %1450 = vst [vmem:[%s293 + $0xf8] sm:$0xf] %v1322
      %1451 = vst [vmem:[%s293 + $0xfc] sm:$0xf] %v1323
      %s1452 = smul.u32 64, %s22
      %p1453 = scmp.lt.s32.totalorder %s21, 3
      %s1454 = scalar_select %p1453, %s21, 3
      %p1455 = scmp.lt.s32.totalorder %s1452, 63
      %s1456 = scalar_select %p1455, %s1452, 63
      %s1457 = smul.addr %s1454, 64
      %s1458 = sadd.s32 %s1456, %s1457
      %s1459 = smul.addr %s1458, 4
      %s1460 = scalar_lea.vmem %s3, %s1459
      %p1461 = scmp.lt.s32.totalorder %s21, 3
      %s1462 = scalar_select %p1461, %s21, 3
      %s1463 = scalar_lea.vmem %s4, %s1462
      %p1464 = scmp.lt.s32.totalorder %s21, 3
      %s1465 = scalar_select %p1464, %s21, 3
      %s1466 = scalar_lea.vmem %s5, %s1465
      // Predicated region
      $region37: #{generator_forward.15} parent=31 // pred_check
        %p1467 = pneg %p124
      $region38: #{generator_forward.15} parent=31 // pred_check_branch
        %1469 = sbr.rel (%p1467) target = $region40
      $region39: #{generator_forward.15} parent=31 // pred_region
        %s1470 = smul.u32 64, %s22
      $region40: #{generator_forward.15} parent=31 // pred_fallthru
        _
      // Predicated region
      $region41: #{generator_forward.15} parent=31 // pred_check
        %p1471 = pneg %p150
      $region42: #{generator_forward.15} parent=31 // pred_check_branch
        %1473 = sbr.rel (%p1471) target = $region44
      $region43: #{generator_forward.15} parent=31 // pred_region
        _
      $region44: #{generator_forward.15} parent=31 // pred_fallthru
        _
      // Predicated region
      $region45: #{generator_forward.15} parent=31 // pred_check
        %p1474 = pneg %p176
      $region46: #{generator_forward.15} parent=31 // pred_check_branch
        %1476 = sbr.rel (%p1474) target = $region48
      $region47: #{generator_forward.15} parent=31 // pred_region
        _
      $region48: #{generator_forward.15} parent=31 // pred_fallthru
        _
    $region32: #{generator_forward.15} parent=5 // pred_fallthru
      _
    %p1477 = scmp.le.s32.totalorder 2, %s12
    // Predicated region
    $region49: #{generator_forward.15} parent=5 // pred_check
      %p1478 = pneg %p1477
    $region50: #{generator_forward.15} parent=5 // pred_check_branch
      %1480 = sbr.rel (%p1478) target = $region52
    $region51: #{generator_forward.15} parent=5 // pred_region
      %s1481 = ssub.s32 %s12, 2
      // Predicated region
      $region53: #{generator_forward.15} parent=51 // pred_check
        %p1482 = pneg %p130
      $region54: #{generator_forward.15} parent=51 // pred_check_branch
        %1484 = sbr.rel (%p1482) target = $region56
      $region55: #{generator_forward.15} parent=51 // pred_region
        %s1485 = smul.u32 64, %s24
        %p1486 = scmp.lt.s32.totalorder %s23, 3
        %s1487 = scalar_select %p1486, %s23, 3
        %p1488 = scmp.lt.s32.totalorder %s1485, 63
        %s1489 = scalar_select %p1488, %s1485, 63
        %s1490 = smul.addr %s1487, 64
        %s1491 = sadd.s32 %s1489, %s1490
        %s1492 = smul.addr %s1491, 4
        %s1493 = scalar_lea.vmem %s3, %s1492
      $region56: #{generator_forward.15} parent=51 // pred_fallthru
        _
      // Predicated region
      $region57: #{generator_forward.15} parent=51 // pred_check
        %p1494 = pneg %p156
      $region58: #{generator_forward.15} parent=51 // pred_check_branch
        %1496 = sbr.rel (%p1494) target = $region60
      $region59: #{generator_forward.15} parent=51 // pred_region
        %p1497 = scmp.lt.s32.totalorder %s23, 3
        %s1498 = scalar_select %p1497, %s23, 3
        %s1499 = scalar_lea.vmem %s4, %s1498
      $region60: #{generator_forward.15} parent=51 // pred_fallthru
        _
      // Predicated region
      $region61: #{generator_forward.15} parent=51 // pred_check
        %p1500 = pneg %p182
      $region62: #{generator_forward.15} parent=51 // pred_check_branch
        %1502 = sbr.rel (%p1500) target = $region64
      $region63: #{generator_forward.15} parent=51 // pred_region
        %p1503 = scmp.lt.s32.totalorder %s23, 3
        %s1504 = scalar_select %p1503, %s23, 3
        %s1505 = scalar_lea.vmem %s5, %s1504
      $region64: #{generator_forward.15} parent=51 // pred_fallthru
        _
    $region52: #{generator_forward.15} parent=5 // pred_fallthru
      _
  $region6: #{generator_forward.15} parent=0 // loop_footer
    %s16 = sadd.s32 1, %s12
  $region7: #{generator_forward.15} parent=0 // loop_footer_branch
    %11 = sbr.rel target = $region3
  $region8: #{generator_forward.15} parent=0 // loop_exit
    _

// kernel: generator_forward.16
$region0: #{generator_forward.16}
  #allocation0 [shape = 'u32[]', space=smem, size = 0x4, offset = 0x4, fixed_abs, tag = 'smem constant byte address 0x4 - core index']
  #allocation1 [shape = 'u32[144,128]{1,0:T(1,128)}', space=vmem, size = 0x12000, scoped, tag = 'internal scratch']
  %s0 = inlined_call_operand.vmem [shape: bf16[2048,128], index: 0, kind: input, shape index: {}]
  %s1 = inlined_call_operand.vmem [shape: f32[1,128], index: 1, kind: input, shape index: {}]
  %s2 = inlined_call_operand.vmem [shape: f32[1,128], index: 2, kind: input, shape index: {}]
  %s3 = inlined_call_operand.vmem [shape: bf16[2048,128], index: 3, kind: output, shape index: {}]
  %s4 = sld [smem:[#allocation0]]
  $region22: #{generator_forward.16} parent=0
    _
  %s6 = ssub.s32 1, %s4
  %s7 = scalar_select 0, %s6, %s4
  // Predicated region
  $region2: #{generator_forward.16} parent=0 // pred_check
    _
  $region3: #{generator_forward.16} parent=0 // pred_check_branch
    %9 = sbr.rel (0) target = $region5
  $region4: #{generator_forward.16} parent=0 // pred_region
    _
  $region5: #{generator_forward.16} parent=0 // pred_fallthru
    _
  // Predicated region
  $region6: #{generator_forward.16} parent=0 // pred_check
    _
  $region7: #{generator_forward.16} parent=0 // pred_check_branch
    %11 = sbr.rel (0) target = $region9
  $region8: #{generator_forward.16} parent=0 // pred_region
    _
  $region9: #{generator_forward.16} parent=0 // pred_fallthru
    _
  // Predicated region
  $region10: #{generator_forward.16} parent=0 // pred_check
    _
  $region11: #{generator_forward.16} parent=0 // pred_check_branch
    %13 = sbr.rel (0) target = $region13
  $region12: #{generator_forward.16} parent=0 // pred_region
    _
  $region13: #{generator_forward.16} parent=0 // pred_fallthru
    _
  %v14 = vld [vmem:[%s0] sm:$0xf]
  %v15 = vld [vmem:[%s0 + $0x4] sm:$0xf]
  %v16 = vld [vmem:[%s0 + $0x8] sm:$0xf]
  %v17 = vld [vmem:[%s0 + $0xc] sm:$0xf]
  %v18 = vld [vmem:[%s0 + $0x10] sm:$0xf]
  %v19 = vld [vmem:[%s0 + $0x14] sm:$0xf]
  %v20 = vld [vmem:[%s0 + $0x18] sm:$0xf]
  %v21 = vld [vmem:[%s0 + $0x1c] sm:$0xf]
  %v22 = vld [vmem:[%s0 + $0x20] sm:$0xf]
  %v23 = vld [vmem:[%s0 + $0x24] sm:$0xf]
  %v24 = vld [vmem:[%s0 + $0x28] sm:$0xf]
  %v25 = vld [vmem:[%s0 + $0x2c] sm:$0xf]
  %v26 = vld [vmem:[%s0 + $0x30] sm:$0xf]
  %v27 = vld [vmem:[%s0 + $0x34] sm:$0xf]
  %v28 = vld [vmem:[%s0 + $0x38] sm:$0xf]
  %v29 = vld [vmem:[%s0 + $0x3c] sm:$0xf]
  %v30 = vld [vmem:[%s0 + $0x40] sm:$0xf]
  %v31 = vld [vmem:[%s0 + $0x44] sm:$0xf]
  %v32 = vld [vmem:[%s0 + $0x48] sm:$0xf]
  %v33 = vld [vmem:[%s0 + $0x4c] sm:$0xf]
  %v34 = vld [vmem:[%s0 + $0x50] sm:$0xf]
  %v35 = vld [vmem:[%s0 + $0x54] sm:$0xf]
  %v36 = vld [vmem:[%s0 + $0x58] sm:$0xf]
  %v37 = vld [vmem:[%s0 + $0x5c] sm:$0xf]
  %v38 = vld [vmem:[%s0 + $0x60] sm:$0xf]
  %v39 = vld [vmem:[%s0 + $0x64] sm:$0xf]
  %v40 = vld [vmem:[%s0 + $0x68] sm:$0xf]
  %v41 = vld [vmem:[%s0 + $0x6c] sm:$0xf]
  %v42 = vld [vmem:[%s0 + $0x70] sm:$0xf]
  %v43 = vld [vmem:[%s0 + $0x74] sm:$0xf]
  %v44 = vld [vmem:[%s0 + $0x78] sm:$0xf]
  %v45 = vld [vmem:[%s0 + $0x7c] sm:$0xf]
  %v46 = vld [vmem:[%s0 + $0x80] sm:$0xf]
  %v47 = vld [vmem:[%s0 + $0x84] sm:$0xf]
  %v48 = vld [vmem:[%s0 + $0x88] sm:$0xf]
  %v49 = vld [vmem:[%s0 + $0x8c] sm:$0xf]
  %v50 = vld [vmem:[%s0 + $0x90] sm:$0xf]
  %v51 = vld [vmem:[%s0 + $0x94] sm:$0xf]
  %v52 = vld [vmem:[%s0 + $0x98] sm:$0xf]
  %v53 = vld [vmem:[%s0 + $0x9c] sm:$0xf]
  %v54 = vld [vmem:[%s0 + $0xa0] sm:$0xf]
  %v55 = vld [vmem:[%s0 + $0xa4] sm:$0xf]
  %v56 = vld [vmem:[%s0 + $0xa8] sm:$0xf]
  %v57 = vld [vmem:[%s0 + $0xac] sm:$0xf]
  %v58 = vld [vmem:[%s0 + $0xb0] sm:$0xf]
  %v59 = vld [vmem:[%s0 + $0xb4] sm:$0xf]
  %v60 = vld [vmem:[%s0 + $0xb8] sm:$0xf]
  %v61 = vld [vmem:[%s0 + $0xbc] sm:$0xf]
  %v62 = vld [vmem:[%s0 + $0xc0] sm:$0xf]
  %v63 = vld [vmem:[%s0 + $0xc4] sm:$0xf]
  %v64 = vld [vmem:[%s0 + $0xc8] sm:$0xf]
  %v65 = vld [vmem:[%s0 + $0xcc] sm:$0xf]
  %v66 = vld [vmem:[%s0 + $0xd0] sm:$0xf]
  %v67 = vld [vmem:[%s0 + $0xd4] sm:$0xf]
  %v68 = vld [vmem:[%s0 + $0xd8] sm:$0xf]
  %v69 = vld [vmem:[%s0 + $0xdc] sm:$0xf]
  %v70 = vld [vmem:[%s0 + $0xe0] sm:$0xf]
  %v71 = vld [vmem:[%s0 + $0xe4] sm:$0xf]
  %v72 = vld [vmem:[%s0 + $0xe8] sm:$0xf]
  %v73 = vld [vmem:[%s0 + $0xec] sm:$0xf]
  %v74 = vld [vmem:[%s0 + $0xf0] sm:$0xf]
  %v75 = vld [vmem:[%s0 + $0xf4] sm:$0xf]
  %v76 = vld [vmem:[%s0 + $0xf8] sm:$0xf]
  %v77 = vld [vmem:[%s0 + $0xfc] sm:$0xf]
  %v78 = vld [vmem:[%s0 + $0x100] sm:$0xf]
  %v79 = vld [vmem:[%s0 + $0x104] sm:$0xf]
  %v80 = vld [vmem:[%s0 + $0x108] sm:$0xf]
  %v81 = vld [vmem:[%s0 + $0x10c] sm:$0xf]
  %v82 = vld [vmem:[%s0 + $0x110] sm:$0xf]
  %v83 = vld [vmem:[%s0 + $0x114] sm:$0xf]
  %v84 = vld [vmem:[%s0 + $0x118] sm:$0xf]
  %v85 = vld [vmem:[%s0 + $0x11c] sm:$0xf]
  %v86 = vld [vmem:[%s0 + $0x120] sm:$0xf]
  %v87 = vld [vmem:[%s0 + $0x124] sm:$0xf]
  %v88 = vld [vmem:[%s0 + $0x128] sm:$0xf]
  %v89 = vld [vmem:[%s0 + $0x12c] sm:$0xf]
  %v90 = vld [vmem:[%s0 + $0x130] sm:$0xf]
  %v91 = vld [vmem:[%s0 + $0x134] sm:$0xf]
  %v92 = vld [vmem:[%s0 + $0x138] sm:$0xf]
  %v93 = vld [vmem:[%s0 + $0x13c] sm:$0xf]
  %v94 = vld [vmem:[%s0 + $0x140] sm:$0xf]
  %v95 = vld [vmem:[%s0 + $0x144] sm:$0xf]
  %v96 = vld [vmem:[%s0 + $0x148] sm:$0xf]
  %v97 = vld [vmem:[%s0 + $0x14c] sm:$0xf]
  %v98 = vld [vmem:[%s0 + $0x150] sm:$0xf]
  %v99 = vld [vmem:[%s0 + $0x154] sm:$0xf]
  %v100 = vld [vmem:[%s0 + $0x158] sm:$0xf]
  %v101 = vld [vmem:[%s0 + $0x15c] sm:$0xf]
  %v102 = vld [vmem:[%s0 + $0x160] sm:$0xf]
  %v103 = vld [vmem:[%s0 + $0x164] sm:$0xf]
  %v104 = vld [vmem:[%s0 + $0x168] sm:$0xf]
  %v105 = vld [vmem:[%s0 + $0x16c] sm:$0xf]
  %v106 = vld [vmem:[%s0 + $0x170] sm:$0xf]
  %v107 = vld [vmem:[%s0 + $0x174] sm:$0xf]
  %v108 = vld [vmem:[%s0 + $0x178] sm:$0xf]
  %v109 = vld [vmem:[%s0 + $0x17c] sm:$0xf]
  %v110 = vld [vmem:[%s0 + $0x180] sm:$0xf]
  %v111 = vld [vmem:[%s0 + $0x184] sm:$0xf]
  %v112 = vld [vmem:[%s0 + $0x188] sm:$0xf]
  %v113 = vld [vmem:[%s0 + $0x18c] sm:$0xf]
  %v114 = vld [vmem:[%s0 + $0x190] sm:$0xf]
  %v115 = vld [vmem:[%s0 + $0x194] sm:$0xf]
  %v116 = vld [vmem:[%s0 + $0x198] sm:$0xf]
  %v117 = vld [vmem:[%s0 + $0x19c] sm:$0xf]
  %v118 = vld [vmem:[%s0 + $0x1a0] sm:$0xf]
  %v119 = vld [vmem:[%s0 + $0x1a4] sm:$0xf]
  %v120 = vld [vmem:[%s0 + $0x1a8] sm:$0xf]
  %v121 = vld [vmem:[%s0 + $0x1ac] sm:$0xf]
  %v122 = vld [vmem:[%s0 + $0x1b0] sm:$0xf]
  %v123 = vld [vmem:[%s0 + $0x1b4] sm:$0xf]
  %v124 = vld [vmem:[%s0 + $0x1b8] sm:$0xf]
  %v125 = vld [vmem:[%s0 + $0x1bc] sm:$0xf]
  %v126 = vld [vmem:[%s0 + $0x1c0] sm:$0xf]
  %v127 = vld [vmem:[%s0 + $0x1c4] sm:$0xf]
  %v128 = vld [vmem:[%s0 + $0x1c8] sm:$0xf]
  %v129 = vld [vmem:[%s0 + $0x1cc] sm:$0xf]
  %v130 = vld [vmem:[%s0 + $0x1d0] sm:$0xf]
  %v131 = vld [vmem:[%s0 + $0x1d4] sm:$0xf]
  %v132 = vld [vmem:[%s0 + $0x1d8] sm:$0xf]
  %v133 = vld [vmem:[%s0 + $0x1dc] sm:$0xf]
  %v134 = vld [vmem:[%s0 + $0x1e0] sm:$0xf]
  %v135 = vld [vmem:[%s0 + $0x1e4] sm:$0xf]
  %v136 = vld [vmem:[%s0 + $0x1e8] sm:$0xf]
  %v137 = vld [vmem:[%s0 + $0x1ec] sm:$0xf]
  %v138 = vld [vmem:[%s0 + $0x1f0] sm:$0xf]
  %v139 = vld [vmem:[%s0 + $0x1f4] sm:$0xf]
  %v140 = vld [vmem:[%s0 + $0x1f8] sm:$0xf]
  %v141 = vld [vmem:[%s0 + $0x1fc] sm:$0xf]
  %v142 = vld [vmem:[%s0 + $0x200] sm:$0xf]
  %v143 = vld [vmem:[%s0 + $0x204] sm:$0xf]
  %v144 = vld [vmem:[%s0 + $0x208] sm:$0xf]
  %v145 = vld [vmem:[%s0 + $0x20c] sm:$0xf]
  %v146 = vld [vmem:[%s0 + $0x210] sm:$0xf]
  %v147 = vld [vmem:[%s0 + $0x214] sm:$0xf]
  %v148 = vld [vmem:[%s0 + $0x218] sm:$0xf]
  %v149 = vld [vmem:[%s0 + $0x21c] sm:$0xf]
  %v150 = vld [vmem:[%s0 + $0x220] sm:$0xf]
  %v151 = vld [vmem:[%s0 + $0x224] sm:$0xf]
  %v152 = vld [vmem:[%s0 + $0x228] sm:$0xf]
  %v153 = vld [vmem:[%s0 + $0x22c] sm:$0xf]
  %v154 = vld [vmem:[%s0 + $0x230] sm:$0xf]
  %v155 = vld [vmem:[%s0 + $0x234] sm:$0xf]
  %v156 = vld [vmem:[%s0 + $0x238] sm:$0xf]
  %v157 = vld [vmem:[%s0 + $0x23c] sm:$0xf]
  %v158 = vld [vmem:[%s0 + $0x240] sm:$0xf]
  %v159 = vld [vmem:[%s0 + $0x244] sm:$0xf]
  %v160 = vld [vmem:[%s0 + $0x248] sm:$0xf]
  %v161 = vld [vmem:[%s0 + $0x24c] sm:$0xf]
  %v162 = vld [vmem:[%s0 + $0x250] sm:$0xf]
  %v163 = vld [vmem:[%s0 + $0x254] sm:$0xf]
  %v164 = vld [vmem:[%s0 + $0x258] sm:$0xf]
  %v165 = vld [vmem:[%s0 + $0x25c] sm:$0xf]
  %v166 = vld [vmem:[%s0 + $0x260] sm:$0xf]
  %v167 = vld [vmem:[%s0 + $0x264] sm:$0xf]
  %v168 = vld [vmem:[%s0 + $0x268] sm:$0xf]
  %v169 = vld [vmem:[%s0 + $0x26c] sm:$0xf]
  %v170 = vld [vmem:[%s0 + $0x270] sm:$0xf]
  %v171 = vld [vmem:[%s0 + $0x274] sm:$0xf]
  %v172 = vld [vmem:[%s0 + $0x278] sm:$0xf]
  %v173 = vld [vmem:[%s0 + $0x27c] sm:$0xf]
  %v174 = vld [vmem:[%s0 + $0x280] sm:$0xf]
  %v175 = vld [vmem:[%s0 + $0x284] sm:$0xf]
  %v176 = vld [vmem:[%s0 + $0x288] sm:$0xf]
  %v177 = vld [vmem:[%s0 + $0x28c] sm:$0xf]
  %v178 = vld [vmem:[%s0 + $0x290] sm:$0xf]
  %v179 = vld [vmem:[%s0 + $0x294] sm:$0xf]
  %v180 = vld [vmem:[%s0 + $0x298] sm:$0xf]
  %v181 = vld [vmem:[%s0 + $0x29c] sm:$0xf]
  %v182 = vld [vmem:[%s0 + $0x2a0] sm:$0xf]
  %v183 = vld [vmem:[%s0 + $0x2a4] sm:$0xf]
  %v184 = vld [vmem:[%s0 + $0x2a8] sm:$0xf]
  %v185 = vld [vmem:[%s0 + $0x2ac] sm:$0xf]
  %v186 = vld [vmem:[%s0 + $0x2b0] sm:$0xf]
  %v187 = vld [vmem:[%s0 + $0x2b4] sm:$0xf]
  %v188 = vld [vmem:[%s0 + $0x2b8] sm:$0xf]
  %v189 = vld [vmem:[%s0 + $0x2bc] sm:$0xf]
  %v190 = vld [vmem:[%s0 + $0x2c0] sm:$0xf]
  %v191 = vld [vmem:[%s0 + $0x2c4] sm:$0xf]
  %v192 = vld [vmem:[%s0 + $0x2c8] sm:$0xf]
  %v193 = vld [vmem:[%s0 + $0x2cc] sm:$0xf]
  %v194 = vld [vmem:[%s0 + $0x2d0] sm:$0xf]
  %v195 = vld [vmem:[%s0 + $0x2d4] sm:$0xf]
  %v196 = vld [vmem:[%s0 + $0x2d8] sm:$0xf]
  %v197 = vld [vmem:[%s0 + $0x2dc] sm:$0xf]
  %v198 = vld [vmem:[%s0 + $0x2e0] sm:$0xf]
  %v199 = vld [vmem:[%s0 + $0x2e4] sm:$0xf]
  %v200 = vld [vmem:[%s0 + $0x2e8] sm:$0xf]
  %v201 = vld [vmem:[%s0 + $0x2ec] sm:$0xf]
  %v202 = vld [vmem:[%s0 + $0x2f0] sm:$0xf]
  %v203 = vld [vmem:[%s0 + $0x2f4] sm:$0xf]
  %v204 = vld [vmem:[%s0 + $0x2f8] sm:$0xf]
  %v205 = vld [vmem:[%s0 + $0x2fc] sm:$0xf]
  %v206 = vld [vmem:[%s0 + $0x300] sm:$0xf]
  %v207 = vld [vmem:[%s0 + $0x304] sm:$0xf]
  %v208 = vld [vmem:[%s0 + $0x308] sm:$0xf]
  %v209 = vld [vmem:[%s0 + $0x30c] sm:$0xf]
  %v210 = vld [vmem:[%s0 + $0x310] sm:$0xf]
  %v211 = vld [vmem:[%s0 + $0x314] sm:$0xf]
  %v212 = vld [vmem:[%s0 + $0x318] sm:$0xf]
  %v213 = vld [vmem:[%s0 + $0x31c] sm:$0xf]
  %v214 = vld [vmem:[%s0 + $0x320] sm:$0xf]
  %v215 = vld [vmem:[%s0 + $0x324] sm:$0xf]
  %v216 = vld [vmem:[%s0 + $0x328] sm:$0xf]
  %v217 = vld [vmem:[%s0 + $0x32c] sm:$0xf]
  %v218 = vld [vmem:[%s0 + $0x330] sm:$0xf]
  %v219 = vld [vmem:[%s0 + $0x334] sm:$0xf]
  %v220 = vld [vmem:[%s0 + $0x338] sm:$0xf]
  %v221 = vld [vmem:[%s0 + $0x33c] sm:$0xf]
  %v222 = vld [vmem:[%s0 + $0x340] sm:$0xf]
  %v223 = vld [vmem:[%s0 + $0x344] sm:$0xf]
  %v224 = vld [vmem:[%s0 + $0x348] sm:$0xf]
  %v225 = vld [vmem:[%s0 + $0x34c] sm:$0xf]
  %v226 = vld [vmem:[%s0 + $0x350] sm:$0xf]
  %v227 = vld [vmem:[%s0 + $0x354] sm:$0xf]
  %v228 = vld [vmem:[%s0 + $0x358] sm:$0xf]
  %v229 = vld [vmem:[%s0 + $0x35c] sm:$0xf]
  %v230 = vld [vmem:[%s0 + $0x360] sm:$0xf]
  %v231 = vld [vmem:[%s0 + $0x364] sm:$0xf]
  %v232 = vld [vmem:[%s0 + $0x368] sm:$0xf]
  %v233 = vld [vmem:[%s0 + $0x36c] sm:$0xf]
  %v234 = vld [vmem:[%s0 + $0x370] sm:$0xf]
  %v235 = vld [vmem:[%s0 + $0x374] sm:$0xf]
  %v236 = vld [vmem:[%s0 + $0x378] sm:$0xf]
  %v237 = vld [vmem:[%s0 + $0x37c] sm:$0xf]
  %v238 = vld [vmem:[%s0 + $0x380] sm:$0xf]
  %v239 = vld [vmem:[%s0 + $0x384] sm:$0xf]
  %v240 = vld [vmem:[%s0 + $0x388] sm:$0xf]
  %v241 = vld [vmem:[%s0 + $0x38c] sm:$0xf]
  %v242 = vld [vmem:[%s0 + $0x390] sm:$0xf]
  %v243 = vld [vmem:[%s0 + $0x394] sm:$0xf]
  %v244 = vld [vmem:[%s0 + $0x398] sm:$0xf]
  %v245 = vld [vmem:[%s0 + $0x39c] sm:$0xf]
  %v246 = vld [vmem:[%s0 + $0x3a0] sm:$0xf]
  %v247 = vld [vmem:[%s0 + $0x3a4] sm:$0xf]
  %v248 = vld [vmem:[%s0 + $0x3a8] sm:$0xf]
  %v249 = vld [vmem:[%s0 + $0x3ac] sm:$0xf]
  %v250 = vld [vmem:[%s0 + $0x3b0] sm:$0xf]
  %v251 = vld [vmem:[%s0 + $0x3b4] sm:$0xf]
  %v252 = vld [vmem:[%s0 + $0x3b8] sm:$0xf]
  %v253 = vld [vmem:[%s0 + $0x3bc] sm:$0xf]
  %v254 = vld [vmem:[%s0 + $0x3c0] sm:$0xf]
  %v255 = vld [vmem:[%s0 + $0x3c4] sm:$0xf]
  %v256 = vld [vmem:[%s0 + $0x3c8] sm:$0xf]
  %v257 = vld [vmem:[%s0 + $0x3cc] sm:$0xf]
  %v258 = vld [vmem:[%s0 + $0x3d0] sm:$0xf]
  %v259 = vld [vmem:[%s0 + $0x3d4] sm:$0xf]
  %v260 = vld [vmem:[%s0 + $0x3d8] sm:$0xf]
  %v261 = vld [vmem:[%s0 + $0x3dc] sm:$0xf]
  %v262 = vld [vmem:[%s0 + $0x3e0] sm:$0xf]
  %v263 = vld [vmem:[%s0 + $0x3e4] sm:$0xf]
  %v264 = vld [vmem:[%s0 + $0x3e8] sm:$0xf]
  %v265 = vld [vmem:[%s0 + $0x3ec] sm:$0xf]
  %v266 = vld [vmem:[%s0 + $0x3f0] sm:$0xf]
  %v267 = vld [vmem:[%s0 + $0x3f4] sm:$0xf]
  %v268 = vld [vmem:[%s0 + $0x3f8] sm:$0xf]
  %v269 = vld [vmem:[%s0 + $0x3fc] sm:$0xf]
  %v270 = vunpack.c.l.bf16 %v14
  %v271 = vunpack.c.l.bf16 %v15
  %v272 = vunpack.c.l.bf16 %v16
  %v273 = vunpack.c.l.bf16 %v17
  %v274 = vunpack.c.l.bf16 %v18
  %v275 = vunpack.c.l.bf16 %v19
  %v276 = vunpack.c.l.bf16 %v20
  %v277 = vunpack.c.l.bf16 %v21
  %v278 = vunpack.c.l.bf16 %v22
  %v279 = vunpack.c.l.bf16 %v23
  %v280 = vunpack.c.l.bf16 %v24
  %v281 = vunpack.c.l.bf16 %v25
  %v282 = vunpack.c.l.bf16 %v26
  %v283 = vunpack.c.l.bf16 %v27
  %v284 = vunpack.c.l.bf16 %v28
  %v285 = vunpack.c.l.bf16 %v29
  %v286 = vunpack.c.l.bf16 %v30
  %v287 = vunpack.c.l.bf16 %v31
  %v288 = vunpack.c.l.bf16 %v32
  %v289 = vunpack.c.l.bf16 %v33
  %v290 = vunpack.c.l.bf16 %v34
  %v291 = vunpack.c.l.bf16 %v35
  %v292 = vunpack.c.l.bf16 %v36
  %v293 = vunpack.c.l.bf16 %v37
  %v294 = vunpack.c.l.bf16 %v38
  %v295 = vunpack.c.l.bf16 %v39
  %v296 = vunpack.c.l.bf16 %v40
  %v297 = vunpack.c.l.bf16 %v41
  %v298 = vunpack.c.l.bf16 %v42
  %v299 = vunpack.c.l.bf16 %v43
  %v300 = vunpack.c.l.bf16 %v44
  %v301 = vunpack.c.l.bf16 %v45
  %v302 = vunpack.c.l.bf16 %v46
  %v303 = vunpack.c.l.bf16 %v47
  %v304 = vunpack.c.l.bf16 %v48
  %v305 = vunpack.c.l.bf16 %v49
  %v306 = vunpack.c.l.bf16 %v50
  %v307 = vunpack.c.l.bf16 %v51
  %v308 = vunpack.c.l.bf16 %v52
  %v309 = vunpack.c.l.bf16 %v53
  %v310 = vunpack.c.l.bf16 %v54
  %v311 = vunpack.c.l.bf16 %v55
  %v312 = vunpack.c.l.bf16 %v56
  %v313 = vunpack.c.l.bf16 %v57
  %v314 = vunpack.c.l.bf16 %v58
  %v315 = vunpack.c.l.bf16 %v59
  %v316 = vunpack.c.l.bf16 %v60
  %v317 = vunpack.c.l.bf16 %v61
  %v318 = vunpack.c.l.bf16 %v62
  %v319 = vunpack.c.l.bf16 %v63
  %v320 = vunpack.c.l.bf16 %v64
  %v321 = vunpack.c.l.bf16 %v65
  %v322 = vunpack.c.l.bf16 %v66
  %v323 = vunpack.c.l.bf16 %v67
  %v324 = vunpack.c.l.bf16 %v68
  %v325 = vunpack.c.l.bf16 %v69
  %v326 = vunpack.c.l.bf16 %v70
  %v327 = vunpack.c.l.bf16 %v71
  %v328 = vunpack.c.l.bf16 %v72
  %v329 = vunpack.c.l.bf16 %v73
  %v330 = vunpack.c.l.bf16 %v74
  %v331 = vunpack.c.l.bf16 %v75
  %v332 = vunpack.c.l.bf16 %v76
  %v333 = vunpack.c.l.bf16 %v77
  %v334 = vunpack.c.l.bf16 %v78
  %v335 = vunpack.c.l.bf16 %v79
  %v336 = vunpack.c.l.bf16 %v80
  %v337 = vunpack.c.l.bf16 %v81
  %v338 = vunpack.c.l.bf16 %v82
  %v339 = vunpack.c.l.bf16 %v83
  %v340 = vunpack.c.l.bf16 %v84
  %v341 = vunpack.c.l.bf16 %v85
  %v342 = vunpack.c.l.bf16 %v86
  %v343 = vunpack.c.l.bf16 %v87
  %v344 = vunpack.c.l.bf16 %v88
  %v345 = vunpack.c.l.bf16 %v89
  %v346 = vunpack.c.l.bf16 %v90
  %v347 = vunpack.c.l.bf16 %v91
  %v348 = vunpack.c.l.bf16 %v92
  %v349 = vunpack.c.l.bf16 %v93
  %v350 = vunpack.c.l.bf16 %v94
  %v351 = vunpack.c.l.bf16 %v95
  %v352 = vunpack.c.l.bf16 %v96
  %v353 = vunpack.c.l.bf16 %v97
  %v354 = vunpack.c.l.bf16 %v98
  %v355 = vunpack.c.l.bf16 %v99
  %v356 = vunpack.c.l.bf16 %v100
  %v357 = vunpack.c.l.bf16 %v101
  %v358 = vunpack.c.l.bf16 %v102
  %v359 = vunpack.c.l.bf16 %v103
  %v360 = vunpack.c.l.bf16 %v104
  %v361 = vunpack.c.l.bf16 %v105
  %v362 = vunpack.c.l.bf16 %v106
  %v363 = vunpack.c.l.bf16 %v107
  %v364 = vunpack.c.l.bf16 %v108
  %v365 = vunpack.c.l.bf16 %v109
  %v366 = vunpack.c.l.bf16 %v110
  %v367 = vunpack.c.l.bf16 %v111
  %v368 = vunpack.c.l.bf16 %v112
  %v369 = vunpack.c.l.bf16 %v113
  %v370 = vunpack.c.l.bf16 %v114
  %v371 = vunpack.c.l.bf16 %v115
  %v372 = vunpack.c.l.bf16 %v116
  %v373 = vunpack.c.l.bf16 %v117
  %v374 = vunpack.c.l.bf16 %v118
  %v375 = vunpack.c.l.bf16 %v119
  %v376 = vunpack.c.l.bf16 %v120
  %v377 = vunpack.c.l.bf16 %v121
  %v378 = vunpack.c.l.bf16 %v122
  %v379 = vunpack.c.l.bf16 %v123
  %v380 = vunpack.c.l.bf16 %v124
  %v381 = vunpack.c.l.bf16 %v125
  %v382 = vunpack.c.l.bf16 %v126
  %v383 = vunpack.c.l.bf16 %v127
  %v384 = vunpack.c.l.bf16 %v128
  %v385 = vunpack.c.l.bf16 %v129
  %v386 = vunpack.c.l.bf16 %v130
  %v387 = vunpack.c.l.bf16 %v131
  %v388 = vunpack.c.l.bf16 %v132
  %v389 = vunpack.c.l.bf16 %v133
  %v390 = vunpack.c.l.bf16 %v134
  %v391 = vunpack.c.l.bf16 %v135
  %v392 = vunpack.c.l.bf16 %v136
  %v393 = vunpack.c.l.bf16 %v137
  %v394 = vunpack.c.l.bf16 %v138
  %v395 = vunpack.c.l.bf16 %v139
  %v396 = vunpack.c.l.bf16 %v140
  %v397 = vunpack.c.l.bf16 %v141
  %v398 = vunpack.c.l.bf16 %v142
  %v399 = vunpack.c.l.bf16 %v143
  %v400 = vunpack.c.l.bf16 %v144
  %v401 = vunpack.c.l.bf16 %v145
  %v402 = vunpack.c.l.bf16 %v146
  %v403 = vunpack.c.l.bf16 %v147
  %v404 = vunpack.c.l.bf16 %v148
  %v405 = vunpack.c.l.bf16 %v149
  %v406 = vunpack.c.l.bf16 %v150
  %v407 = vunpack.c.l.bf16 %v151
  %v408 = vunpack.c.l.bf16 %v152
  %v409 = vunpack.c.l.bf16 %v153
  %v410 = vunpack.c.l.bf16 %v154
  %v411 = vunpack.c.l.bf16 %v155
  %v412 = vunpack.c.l.bf16 %v156
  %v413 = vunpack.c.l.bf16 %v157
  %v414 = vunpack.c.l.bf16 %v158
  %v415 = vunpack.c.l.bf16 %v159
  %v416 = vunpack.c.l.bf16 %v160
  %v417 = vunpack.c.l.bf16 %v161
  %v418 = vunpack.c.l.bf16 %v162
  %v419 = vunpack.c.l.bf16 %v163
  %v420 = vunpack.c.l.bf16 %v164
  %v421 = vunpack.c.l.bf16 %v165
  %v422 = vunpack.c.l.bf16 %v166
  %v423 = vunpack.c.l.bf16 %v167
  %v424 = vunpack.c.l.bf16 %v168
  %v425 = vunpack.c.l.bf16 %v169
  %v426 = vunpack.c.l.bf16 %v170
  %v427 = vunpack.c.l.bf16 %v171
  %v428 = vunpack.c.l.bf16 %v172
  %v429 = vunpack.c.l.bf16 %v173
  %v430 = vunpack.c.l.bf16 %v174
  %v431 = vunpack.c.l.bf16 %v175
  %v432 = vunpack.c.l.bf16 %v176
  %v433 = vunpack.c.l.bf16 %v177
  %v434 = vunpack.c.l.bf16 %v178
  %v435 = vunpack.c.l.bf16 %v179
  %v436 = vunpack.c.l.bf16 %v180
  %v437 = vunpack.c.l.bf16 %v181
  %v438 = vunpack.c.l.bf16 %v182
  %v439 = vunpack.c.l.bf16 %v183
  %v440 = vunpack.c.l.bf16 %v184
  %v441 = vunpack.c.l.bf16 %v185
  %v442 = vunpack.c.l.bf16 %v186
  %v443 = vunpack.c.l.bf16 %v187
  %v444 = vunpack.c.l.bf16 %v188
  %v445 = vunpack.c.l.bf16 %v189
  %v446 = vunpack.c.l.bf16 %v190
  %v447 = vunpack.c.l.bf16 %v191
  %v448 = vunpack.c.l.bf16 %v192
  %v449 = vunpack.c.l.bf16 %v193
  %v450 = vunpack.c.l.bf16 %v194
  %v451 = vunpack.c.l.bf16 %v195
  %v452 = vunpack.c.l.bf16 %v196
  %v453 = vunpack.c.l.bf16 %v197
  %v454 = vunpack.c.l.bf16 %v198
  %v455 = vunpack.c.l.bf16 %v199
  %v456 = vunpack.c.l.bf16 %v200
  %v457 = vunpack.c.l.bf16 %v201
  %v458 = vunpack.c.l.bf16 %v202
  %v459 = vunpack.c.l.bf16 %v203
  %v460 = vunpack.c.l.bf16 %v204
  %v461 = vunpack.c.l.bf16 %v205
  %v462 = vunpack.c.l.bf16 %v206
  %v463 = vunpack.c.l.bf16 %v207
  %v464 = vunpack.c.l.bf16 %v208
  %v465 = vunpack.c.l.bf16 %v209
  %v466 = vunpack.c.l.bf16 %v210
  %v467 = vunpack.c.l.bf16 %v211
  %v468 = vunpack.c.l.bf16 %v212
  %v469 = vunpack.c.l.bf16 %v213
  %v470 = vunpack.c.l.bf16 %v214
  %v471 = vunpack.c.l.bf16 %v215
  %v472 = vunpack.c.l.bf16 %v216
  %v473 = vunpack.c.l.bf16 %v217
  %v474 = vunpack.c.l.bf16 %v218
  %v475 = vunpack.c.l.bf16 %v219
  %v476 = vunpack.c.l.bf16 %v220
  %v477 = vunpack.c.l.bf16 %v221
  %v478 = vunpack.c.l.bf16 %v222
  %v479 = vunpack.c.l.bf16 %v223
  %v480 = vunpack.c.l.bf16 %v224
  %v481 = vunpack.c.l.bf16 %v225
  %v482 = vunpack.c.l.bf16 %v226
  %v483 = vunpack.c.l.bf16 %v227
  %v484 = vunpack.c.l.bf16 %v228
  %v485 = vunpack.c.l.bf16 %v229
  %v486 = vunpack.c.l.bf16 %v230
  %v487 = vunpack.c.l.bf16 %v231
  %v488 = vunpack.c.l.bf16 %v232
  %v489 = vunpack.c.l.bf16 %v233
  %v490 = vunpack.c.l.bf16 %v234
  %v491 = vunpack.c.l.bf16 %v235
  %v492 = vunpack.c.l.bf16 %v236
  %v493 = vunpack.c.l.bf16 %v237
  %v494 = vunpack.c.l.bf16 %v238
  %v495 = vunpack.c.l.bf16 %v239
  %v496 = vunpack.c.l.bf16 %v240
  %v497 = vunpack.c.l.bf16 %v241
  %v498 = vunpack.c.l.bf16 %v242
  %v499 = vunpack.c.l.bf16 %v243
  %v500 = vunpack.c.l.bf16 %v244
  %v501 = vunpack.c.l.bf16 %v245
  %v502 = vunpack.c.l.bf16 %v246
  %v503 = vunpack.c.l.bf16 %v247
  %v504 = vunpack.c.l.bf16 %v248
  %v505 = vunpack.c.l.bf16 %v249
  %v506 = vunpack.c.l.bf16 %v250
  %v507 = vunpack.c.l.bf16 %v251
  %v508 = vunpack.c.l.bf16 %v252
  %v509 = vunpack.c.l.bf16 %v253
  %v510 = vunpack.c.l.bf16 %v254
  %v511 = vunpack.c.l.bf16 %v255
  %v512 = vunpack.c.l.bf16 %v256
  %v513 = vunpack.c.l.bf16 %v257
  %v514 = vunpack.c.l.bf16 %v258
  %v515 = vunpack.c.l.bf16 %v259
  %v516 = vunpack.c.l.bf16 %v260
  %v517 = vunpack.c.l.bf16 %v261
  %v518 = vunpack.c.l.bf16 %v262
  %v519 = vunpack.c.l.bf16 %v263
  %v520 = vunpack.c.l.bf16 %v264
  %v521 = vunpack.c.l.bf16 %v265
  %v522 = vunpack.c.l.bf16 %v266
  %v523 = vunpack.c.l.bf16 %v267
  %v524 = vunpack.c.l.bf16 %v268
  %v525 = vunpack.c.l.bf16 %v269
  %v526 = vld [vmem:[%s1] sm:$0x1]
  %v528 = vlaneseq
  %v529 = vshrl.u32 %v528, 7
  %v530 = vsub.s32 0, %v529
  %v531 = vrot.slane %v526, %v530
  %v533 = vmul.f32 %v270, %v531
  %v534 = vmul.f32 %v271, %v531
  %v535 = vmul.f32 %v272, %v531
  %v536 = vmul.f32 %v273, %v531
  %v537 = vmul.f32 %v274, %v531
  %v538 = vmul.f32 %v275, %v531
  %v539 = vmul.f32 %v276, %v531
  %v540 = vmul.f32 %v277, %v531
  %v541 = vmul.f32 %v278, %v531
  %v542 = vmul.f32 %v279, %v531
  %v543 = vmul.f32 %v280, %v531
  %v544 = vmul.f32 %v281, %v531
  %v545 = vmul.f32 %v282, %v531
  %v546 = vmul.f32 %v283, %v531
  %v547 = vmul.f32 %v284, %v531
  %v548 = vmul.f32 %v285, %v531
  %v549 = vmul.f32 %v286, %v531
  %v550 = vmul.f32 %v287, %v531
  %v551 = vmul.f32 %v288, %v531
  %v552 = vmul.f32 %v289, %v531
  %v553 = vmul.f32 %v290, %v531
  %v554 = vmul.f32 %v291, %v531
  %v555 = vmul.f32 %v292, %v531
  %v556 = vmul.f32 %v293, %v531
  %v557 = vmul.f32 %v294, %v531
  %v558 = vmul.f32 %v295, %v531
  %v559 = vmul.f32 %v296, %v531
  %v560 = vmul.f32 %v297, %v531
  %v561 = vmul.f32 %v298, %v531
  %v562 = vmul.f32 %v299, %v531
  %v563 = vmul.f32 %v300, %v531
  %v564 = vmul.f32 %v301, %v531
  %v565 = vmul.f32 %v302, %v531
  %v566 = vmul.f32 %v303, %v531
  %v567 = vmul.f32 %v304, %v531
  %v568 = vmul.f32 %v305, %v531
  %v569 = vmul.f32 %v306, %v531
  %v570 = vmul.f32 %v307, %v531
  %v571 = vmul.f32 %v308, %v531
  %v572 = vmul.f32 %v309, %v531
  %v573 = vmul.f32 %v310, %v531
  %v574 = vmul.f32 %v311, %v531
  %v575 = vmul.f32 %v312, %v531
  %v576 = vmul.f32 %v313, %v531
  %v577 = vmul.f32 %v314, %v531
  %v578 = vmul.f32 %v315, %v531
  %v579 = vmul.f32 %v316, %v531
  %v580 = vmul.f32 %v317, %v531
  %v581 = vmul.f32 %v318, %v531
  %v582 = vmul.f32 %v319, %v531
  %v583 = vmul.f32 %v320, %v531
  %v584 = vmul.f32 %v321, %v531
  %v585 = vmul.f32 %v322, %v531
  %v586 = vmul.f32 %v323, %v531
  %v587 = vmul.f32 %v324, %v531
  %v588 = vmul.f32 %v325, %v531
  %v589 = vmul.f32 %v326, %v531
  %v590 = vmul.f32 %v327, %v531
  %v591 = vmul.f32 %v328, %v531
  %v592 = vmul.f32 %v329, %v531
  %v593 = vmul.f32 %v330, %v531
  %v594 = vmul.f32 %v331, %v531
  %v595 = vmul.f32 %v332, %v531
  %v596 = vmul.f32 %v333, %v531
  %v597 = vmul.f32 %v334, %v531
  %v598 = vmul.f32 %v335, %v531
  %v599 = vmul.f32 %v336, %v531
  %v600 = vmul.f32 %v337, %v531
  %v601 = vmul.f32 %v338, %v531
  %v602 = vmul.f32 %v339, %v531
  %v603 = vmul.f32 %v340, %v531
  %v604 = vmul.f32 %v341, %v531
  %v605 = vmul.f32 %v342, %v531
  %v606 = vmul.f32 %v343, %v531
  %v607 = vmul.f32 %v344, %v531
  %v608 = vmul.f32 %v345, %v531
  %v609 = vmul.f32 %v346, %v531
  %v610 = vmul.f32 %v347, %v531
  %v611 = vmul.f32 %v348, %v531
  %v612 = vmul.f32 %v349, %v531
  %v613 = vmul.f32 %v350, %v531
  %v614 = vmul.f32 %v351, %v531
  %v615 = vmul.f32 %v352, %v531
  %v616 = vmul.f32 %v353, %v531
  %v617 = vmul.f32 %v354, %v531
  %v618 = vmul.f32 %v355, %v531
  %v619 = vmul.f32 %v356, %v531
  %v620 = vmul.f32 %v357, %v531
  %v621 = vmul.f32 %v358, %v531
  %v622 = vmul.f32 %v359, %v531
  %v623 = vmul.f32 %v360, %v531
  %v624 = vmul.f32 %v361, %v531
  %v625 = vmul.f32 %v362, %v531
  %v626 = vmul.f32 %v363, %v531
  %v627 = vmul.f32 %v364, %v531
  %v628 = vmul.f32 %v365, %v531
  %v629 = vmul.f32 %v366, %v531
  %v630 = vmul.f32 %v367, %v531
  %v631 = vmul.f32 %v368, %v531
  %v632 = vmul.f32 %v369, %v531
  %v633 = vmul.f32 %v370, %v531
  %v634 = vmul.f32 %v371, %v531
  %v635 = vmul.f32 %v372, %v531
  %v636 = vmul.f32 %v373, %v531
  %v637 = vmul.f32 %v374, %v531
  %v638 = vmul.f32 %v375, %v531
  %v639 = vmul.f32 %v376, %v531
  %v640 = vmul.f32 %v377, %v531
  %v641 = vmul.f32 %v378, %v531
  %v642 = vmul.f32 %v379, %v531
  %v643 = vmul.f32 %v380, %v531
  %v644 = vmul.f32 %v381, %v531
  %v645 = vmul.f32 %v382, %v531
  %v646 = vmul.f32 %v383, %v531
  %v647 = vmul.f32 %v384, %v531
  %v648 = vmul.f32 %v385, %v531
  %v649 = vmul.f32 %v386, %v531
  %v650 = vmul.f32 %v387, %v531
  %v651 = vmul.f32 %v388, %v531
  %v652 = vmul.f32 %v389, %v531
  %v653 = vmul.f32 %v390, %v531
  %v654 = vmul.f32 %v391, %v531
  %v655 = vmul.f32 %v392, %v531
  %v656 = vmul.f32 %v393, %v531
  %v657 = vmul.f32 %v394, %v531
  %v658 = vmul.f32 %v395, %v531
  %v659 = vmul.f32 %v396, %v531
  %v660 = vmul.f32 %v397, %v531
  %v661 = vmul.f32 %v398, %v531
  %v662 = vmul.f32 %v399, %v531
  %v663 = vmul.f32 %v400, %v531
  %v664 = vmul.f32 %v401, %v531
  %v665 = vmul.f32 %v402, %v531
  %v666 = vmul.f32 %v403, %v531
  %v667 = vmul.f32 %v404, %v531
  %v668 = vmul.f32 %v405, %v531
  %v669 = vmul.f32 %v406, %v531
  %v670 = vmul.f32 %v407, %v531
  %v671 = vmul.f32 %v408, %v531
  %v672 = vmul.f32 %v409, %v531
  %v673 = vmul.f32 %v410, %v531
  %v674 = vmul.f32 %v411, %v531
  %v675 = vmul.f32 %v412, %v531
  %v676 = vmul.f32 %v413, %v531
  %v677 = vmul.f32 %v414, %v531
  %v678 = vmul.f32 %v415, %v531
  %v679 = vmul.f32 %v416, %v531
  %v680 = vmul.f32 %v417, %v531
  %v681 = vmul.f32 %v418, %v531
  %v682 = vmul.f32 %v419, %v531
  %v683 = vmul.f32 %v420, %v531
  %v684 = vmul.f32 %v421, %v531
  %v685 = vmul.f32 %v422, %v531
  %v686 = vmul.f32 %v423, %v531
  %v687 = vmul.f32 %v424, %v531
  %v688 = vmul.f32 %v425, %v531
  %v689 = vmul.f32 %v426, %v531
  %v690 = vmul.f32 %v427, %v531
  %v691 = vmul.f32 %v428, %v531
  %v692 = vmul.f32 %v429, %v531
  %v693 = vmul.f32 %v430, %v531
  %v694 = vmul.f32 %v431, %v531
  %v695 = vmul.f32 %v432, %v531
  %v696 = vmul.f32 %v433, %v531
  %v697 = vmul.f32 %v434, %v531
  %v698 = vmul.f32 %v435, %v531
  %v699 = vmul.f32 %v436, %v531
  %v700 = vmul.f32 %v437, %v531
  %v701 = vmul.f32 %v438, %v531
  %v702 = vmul.f32 %v439, %v531
  %v703 = vmul.f32 %v440, %v531
  %v704 = vmul.f32 %v441, %v531
  %v705 = vmul.f32 %v442, %v531
  %v706 = vmul.f32 %v443, %v531
  %v707 = vmul.f32 %v444, %v531
  %v708 = vmul.f32 %v445, %v531
  %v709 = vmul.f32 %v446, %v531
  %v710 = vmul.f32 %v447, %v531
  %v711 = vmul.f32 %v448, %v531
  %v712 = vmul.f32 %v449, %v531
  %v713 = vmul.f32 %v450, %v531
  %v714 = vmul.f32 %v451, %v531
  %v715 = vmul.f32 %v452, %v531
  %v716 = vmul.f32 %v453, %v531
  %v717 = vmul.f32 %v454, %v531
  %v718 = vmul.f32 %v455, %v531
  %v719 = vmul.f32 %v456, %v531
  %v720 = vmul.f32 %v457, %v531
  %v721 = vmul.f32 %v458, %v531
  %v722 = vmul.f32 %v459, %v531
  %v723 = vmul.f32 %v460, %v531
  %v724 = vmul.f32 %v461, %v531
  %v725 = vmul.f32 %v462, %v531
  %v726 = vmul.f32 %v463, %v531
  %v727 = vmul.f32 %v464, %v531
  %v728 = vmul.f32 %v465, %v531
  %v729 = vmul.f32 %v466, %v531
  %v730 = vmul.f32 %v467, %v531
  %v731 = vmul.f32 %v468, %v531
  %v732 = vmul.f32 %v469, %v531
  %v733 = vmul.f32 %v470, %v531
  %v734 = vmul.f32 %v471, %v531
  %v735 = vmul.f32 %v472, %v531
  %v736 = vmul.f32 %v473, %v531
  %v737 = vmul.f32 %v474, %v531
  %v738 = vmul.f32 %v475, %v531
  %v739 = vmul.f32 %v476, %v531
  %v740 = vmul.f32 %v477, %v531
  %v741 = vmul.f32 %v478, %v531
  %v742 = vmul.f32 %v479, %v531
  %v743 = vmul.f32 %v480, %v531
  %v744 = vmul.f32 %v481, %v531
  %v745 = vmul.f32 %v482, %v531
  %v746 = vmul.f32 %v483, %v531
  %v747 = vmul.f32 %v484, %v531
  %v748 = vmul.f32 %v485, %v531
  %v749 = vmul.f32 %v486, %v531
  %v750 = vmul.f32 %v487, %v531
  %v751 = vmul.f32 %v488, %v531
  %v752 = vmul.f32 %v489, %v531
  %v753 = vmul.f32 %v490, %v531
  %v754 = vmul.f32 %v491, %v531
  %v755 = vmul.f32 %v492, %v531
  %v756 = vmul.f32 %v493, %v531
  %v757 = vmul.f32 %v494, %v531
  %v758 = vmul.f32 %v495, %v531
  %v759 = vmul.f32 %v496, %v531
  %v760 = vmul.f32 %v497, %v531
  %v761 = vmul.f32 %v498, %v531
  %v762 = vmul.f32 %v499, %v531
  %v763 = vmul.f32 %v500, %v531
  %v764 = vmul.f32 %v501, %v531
  %v765 = vmul.f32 %v502, %v531
  %v766 = vmul.f32 %v503, %v531
  %v767 = vmul.f32 %v504, %v531
  %v768 = vmul.f32 %v505, %v531
  %v769 = vmul.f32 %v506, %v531
  %v770 = vmul.f32 %v507, %v531
  %v771 = vmul.f32 %v508, %v531
  %v772 = vmul.f32 %v509, %v531
  %v773 = vmul.f32 %v510, %v531
  %v774 = vmul.f32 %v511, %v531
  %v775 = vmul.f32 %v512, %v531
  %v776 = vmul.f32 %v513, %v531
  %v777 = vmul.f32 %v514, %v531
  %v778 = vmul.f32 %v515, %v531
  %v779 = vmul.f32 %v516, %v531
  %v780 = vmul.f32 %v517, %v531
  %v781 = vmul.f32 %v518, %v531
  %v782 = vmul.f32 %v519, %v531
  %v783 = vmul.f32 %v520, %v531
  %v784 = vmul.f32 %v521, %v531
  %v785 = vmul.f32 %v522, %v531
  %v786 = vmul.f32 %v523, %v531
  %v787 = vmul.f32 %v524, %v531
  %v788 = vmul.f32 %v525, %v531
  %v789 = vld [vmem:[%s2] sm:$0x1]
  %v791 = vlaneseq
  %v792 = vshrl.u32 %v791, 7
  %v793 = vsub.s32 0, %v792
  %v794 = vrot.slane %v789, %v793
  %v796 = vadd.f32 %v533, %v794
  %v797 = vadd.f32 %v534, %v794
  %v798 = vadd.f32 %v535, %v794
  %v799 = vadd.f32 %v536, %v794
  %v800 = vadd.f32 %v537, %v794
  %v801 = vadd.f32 %v538, %v794
  %v802 = vadd.f32 %v539, %v794
  %v803 = vadd.f32 %v540, %v794
  %v804 = vadd.f32 %v541, %v794
  %v805 = vadd.f32 %v542, %v794
  %v806 = vadd.f32 %v543, %v794
  %v807 = vadd.f32 %v544, %v794
  %v808 = vadd.f32 %v545, %v794
  %v809 = vadd.f32 %v546, %v794
  %v810 = vadd.f32 %v547, %v794
  %v811 = vadd.f32 %v548, %v794
  %v812 = vadd.f32 %v549, %v794
  %v813 = vadd.f32 %v550, %v794
  %v814 = vadd.f32 %v551, %v794
  %v815 = vadd.f32 %v552, %v794
  %v816 = vadd.f32 %v553, %v794
  %v817 = vadd.f32 %v554, %v794
  %v818 = vadd.f32 %v555, %v794
  %v819 = vadd.f32 %v556, %v794
  %v820 = vadd.f32 %v557, %v794
  %v821 = vadd.f32 %v558, %v794
  %v822 = vadd.f32 %v559, %v794
  %v823 = vadd.f32 %v560, %v794
  %v824 = vadd.f32 %v561, %v794
  %v825 = vadd.f32 %v562, %v794
  %v826 = vadd.f32 %v563, %v794
  %v827 = vadd.f32 %v564, %v794
  %v828 = vadd.f32 %v565, %v794
  %v829 = vadd.f32 %v566, %v794
  %v830 = vadd.f32 %v567, %v794
  %v831 = vadd.f32 %v568, %v794
  %v832 = vadd.f32 %v569, %v794
  %v833 = vadd.f32 %v570, %v794
  %v834 = vadd.f32 %v571, %v794
  %v835 = vadd.f32 %v572, %v794
  %v836 = vadd.f32 %v573, %v794
  %v837 = vadd.f32 %v574, %v794
  %v838 = vadd.f32 %v575, %v794
  %v839 = vadd.f32 %v576, %v794
  %v840 = vadd.f32 %v577, %v794
  %v841 = vadd.f32 %v578, %v794
  %v842 = vadd.f32 %v579, %v794
  %v843 = vadd.f32 %v580, %v794
  %v844 = vadd.f32 %v581, %v794
  %v845 = vadd.f32 %v582, %v794
  %v846 = vadd.f32 %v583, %v794
  %v847 = vadd.f32 %v584, %v794
  %v848 = vadd.f32 %v585, %v794
  %v849 = vadd.f32 %v586, %v794
  %v850 = vadd.f32 %v587, %v794
  %v851 = vadd.f32 %v588, %v794
  %v852 = vadd.f32 %v589, %v794
  %v853 = vadd.f32 %v590, %v794
  %v854 = vadd.f32 %v591, %v794
  %v855 = vadd.f32 %v592, %v794
  %v856 = vadd.f32 %v593, %v794
  %v857 = vadd.f32 %v594, %v794
  %v858 = vadd.f32 %v595, %v794
  %v859 = vadd.f32 %v596, %v794
  %v860 = vadd.f32 %v597, %v794
  %v861 = vadd.f32 %v598, %v794
  %v862 = vadd.f32 %v599, %v794
  %v863 = vadd.f32 %v600, %v794
  %v864 = vadd.f32 %v601, %v794
  %v865 = vadd.f32 %v602, %v794
  %v866 = vadd.f32 %v603, %v794
  %v867 = vadd.f32 %v604, %v794
  %v868 = vadd.f32 %v605, %v794
  %v869 = vadd.f32 %v606, %v794
  %v870 = vadd.f32 %v607, %v794
  %v871 = vadd.f32 %v608, %v794
  %v872 = vadd.f32 %v609, %v794
  %v873 = vadd.f32 %v610, %v794
  %v874 = vadd.f32 %v611, %v794
  %v875 = vadd.f32 %v612, %v794
  %v876 = vadd.f32 %v613, %v794
  %v877 = vadd.f32 %v614, %v794
  %v878 = vadd.f32 %v615, %v794
  %v879 = vadd.f32 %v616, %v794
  %v880 = vadd.f32 %v617, %v794
  %v881 = vadd.f32 %v618, %v794
  %v882 = vadd.f32 %v619, %v794
  %v883 = vadd.f32 %v620, %v794
  %v884 = vadd.f32 %v621, %v794
  %v885 = vadd.f32 %v622, %v794
  %v886 = vadd.f32 %v623, %v794
  %v887 = vadd.f32 %v624, %v794
  %v888 = vadd.f32 %v625, %v794
  %v889 = vadd.f32 %v626, %v794
  %v890 = vadd.f32 %v627, %v794
  %v891 = vadd.f32 %v628, %v794
  %v892 = vadd.f32 %v629, %v794
  %v893 = vadd.f32 %v630, %v794
  %v894 = vadd.f32 %v631, %v794
  %v895 = vadd.f32 %v632, %v794
  %v896 = vadd.f32 %v633, %v794
  %v897 = vadd.f32 %v634, %v794
  %v898 = vadd.f32 %v635, %v794
  %v899 = vadd.f32 %v636, %v794
  %v900 = vadd.f32 %v637, %v794
  %v901 = vadd.f32 %v638, %v794
  %v902 = vadd.f32 %v639, %v794
  %v903 = vadd.f32 %v640, %v794
  %v904 = vadd.f32 %v641, %v794
  %v905 = vadd.f32 %v642, %v794
  %v906 = vadd.f32 %v643, %v794
  %v907 = vadd.f32 %v644, %v794
  %v908 = vadd.f32 %v645, %v794
  %v909 = vadd.f32 %v646, %v794
  %v910 = vadd.f32 %v647, %v794
  %v911 = vadd.f32 %v648, %v794
  %v912 = vadd.f32 %v649, %v794
  %v913 = vadd.f32 %v650, %v794
  %v914 = vadd.f32 %v651, %v794
  %v915 = vadd.f32 %v652, %v794
  %v916 = vadd.f32 %v653, %v794
  %v917 = vadd.f32 %v654, %v794
  %v918 = vadd.f32 %v655, %v794
  %v919 = vadd.f32 %v656, %v794
  %v920 = vadd.f32 %v657, %v794
  %v921 = vadd.f32 %v658, %v794
  %v922 = vadd.f32 %v659, %v794
  %v923 = vadd.f32 %v660, %v794
  %v924 = vadd.f32 %v661, %v794
  %v925 = vadd.f32 %v662, %v794
  %v926 = vadd.f32 %v663, %v794
  %v927 = vadd.f32 %v664, %v794
  %v928 = vadd.f32 %v665, %v794
  %v929 = vadd.f32 %v666, %v794
  %v930 = vadd.f32 %v667, %v794
  %v931 = vadd.f32 %v668, %v794
  %v932 = vadd.f32 %v669, %v794
  %v933 = vadd.f32 %v670, %v794
  %v934 = vadd.f32 %v671, %v794
  %v935 = vadd.f32 %v672, %v794
  %v936 = vadd.f32 %v673, %v794
  %v937 = vadd.f32 %v674, %v794
  %v938 = vadd.f32 %v675, %v794
  %v939 = vadd.f32 %v676, %v794
  %v940 = vadd.f32 %v677, %v794
  %v941 = vadd.f32 %v678, %v794
  %v942 = vadd.f32 %v679, %v794
  %v943 = vadd.f32 %v680, %v794
  %v944 = vadd.f32 %v681, %v794
  %v945 = vadd.f32 %v682, %v794
  %v946 = vadd.f32 %v683, %v794
  %v947 = vadd.f32 %v684, %v794
  %v948 = vadd.f32 %v685, %v794
  %v949 = vadd.f32 %v686, %v794
  %v950 = vadd.f32 %v687, %v794
  %v951 = vadd.f32 %v688, %v794
  %v952 = vadd.f32 %v689, %v794
  %v953 = vadd.f32 %v690, %v794
  %v954 = vadd.f32 %v691, %v794
  %v955 = vadd.f32 %v692, %v794
  %v956 = vadd.f32 %v693, %v794
  %v957 = vadd.f32 %v694, %v794
  %v958 = vadd.f32 %v695, %v794
  %v959 = vadd.f32 %v696, %v794
  %v960 = vadd.f32 %v697, %v794
  %v961 = vadd.f32 %v698, %v794
  %v962 = vadd.f32 %v699, %v794
  %v963 = vadd.f32 %v700, %v794
  %v964 = vadd.f32 %v701, %v794
  %v965 = vadd.f32 %v702, %v794
  %v966 = vadd.f32 %v703, %v794
  %v967 = vadd.f32 %v704, %v794
  %v968 = vadd.f32 %v705, %v794
  %v969 = vadd.f32 %v706, %v794
  %v970 = vadd.f32 %v707, %v794
  %v971 = vadd.f32 %v708, %v794
  %v972 = vadd.f32 %v709, %v794
  %v973 = vadd.f32 %v710, %v794
  %v974 = vadd.f32 %v711, %v794
  %v975 = vadd.f32 %v712, %v794
  %v976 = vadd.f32 %v713, %v794
  %v977 = vadd.f32 %v714, %v794
  %v978 = vadd.f32 %v715, %v794
  %v979 = vadd.f32 %v716, %v794
  %v980 = vadd.f32 %v717, %v794
  %v981 = vadd.f32 %v718, %v794
  %v982 = vadd.f32 %v719, %v794
  %v983 = vadd.f32 %v720, %v794
  %v984 = vadd.f32 %v721, %v794
  %v985 = vadd.f32 %v722, %v794
  %v986 = vadd.f32 %v723, %v794
  %v987 = vadd.f32 %v724, %v794
  %v988 = vadd.f32 %v725, %v794
  %v989 = vadd.f32 %v726, %v794
  %v990 = vadd.f32 %v727, %v794
  %v991 = vadd.f32 %v728, %v794
  %v992 = vadd.f32 %v729, %v794
  %v993 = vadd.f32 %v730, %v794
  %v994 = vadd.f32 %v731, %v794
  %v995 = vadd.f32 %v732, %v794
  %v996 = vadd.f32 %v733, %v794
  %v997 = vadd.f32 %v734, %v794
  %v998 = vadd.f32 %v735, %v794
  %v999 = vadd.f32 %v736, %v794
  %v1000 = vadd.f32 %v737, %v794
  %v1001 = vadd.f32 %v738, %v794
  %v1002 = vadd.f32 %v739, %v794
  %v1003 = vadd.f32 %v740, %v794
  %v1004 = vadd.f32 %v741, %v794
  %v1005 = vadd.f32 %v742, %v794
  %v1006 = vadd.f32 %v743, %v794
  %v1007 = vadd.f32 %v744, %v794
  %v1008 = vadd.f32 %v745, %v794
  %v1009 = vadd.f32 %v746, %v794
  %v1010 = vadd.f32 %v747, %v794
  %v1011 = vadd.f32 %v748, %v794
  %v1012 = vadd.f32 %v749, %v794
  %v1013 = vadd.f32 %v750, %v794
  %v1014 = vadd.f32 %v751, %v794
  %v1015 = vadd.f32 %v752, %v794
  %v1016 = vadd.f32 %v753, %v794
  %v1017 = vadd.f32 %v754, %v794
  %v1018 = vadd.f32 %v755, %v794
  %v1019 = vadd.f32 %v756, %v794
  %v1020 = vadd.f32 %v757, %v794
  %v1021 = vadd.f32 %v758, %v794
  %v1022 = vadd.f32 %v759, %v794
  %v1023 = vadd.f32 %v760, %v794
  %v1024 = vadd.f32 %v761, %v794
  %v1025 = vadd.f32 %v762, %v794
  %v1026 = vadd.f32 %v763, %v794
  %v1027 = vadd.f32 %v764, %v794
  %v1028 = vadd.f32 %v765, %v794
  %v1029 = vadd.f32 %v766, %v794
  %v1030 = vadd.f32 %v767, %v794
  %v1031 = vadd.f32 %v768, %v794
  %v1032 = vadd.f32 %v769, %v794
  %v1033 = vadd.f32 %v770, %v794
  %v1034 = vadd.f32 %v771, %v794
  %v1035 = vadd.f32 %v772, %v794
  %v1036 = vadd.f32 %v773, %v794
  %v1037 = vadd.f32 %v774, %v794
  %v1038 = vadd.f32 %v775, %v794
  %v1039 = vadd.f32 %v776, %v794
  %v1040 = vadd.f32 %v777, %v794
  %v1041 = vadd.f32 %v778, %v794
  %v1042 = vadd.f32 %v779, %v794
  %v1043 = vadd.f32 %v780, %v794
  %v1044 = vadd.f32 %v781, %v794
  %v1045 = vadd.f32 %v782, %v794
  %v1046 = vadd.f32 %v783, %v794
  %v1047 = vadd.f32 %v784, %v794
  %v1048 = vadd.f32 %v785, %v794
  %v1049 = vadd.f32 %v786, %v794
  %v1050 = vadd.f32 %v787, %v794
  %v1051 = vadd.f32 %v788, %v794
  %v1052 = vmax.f32 %v796, 0.0
  %v1053 = vmax.f32 %v797, 0.0
  %v1054 = vmax.f32 %v798, 0.0
  %v1055 = vmax.f32 %v799, 0.0
  %v1056 = vmax.f32 %v800, 0.0
  %v1057 = vmax.f32 %v801, 0.0
  %v1058 = vmax.f32 %v802, 0.0
  %v1059 = vmax.f32 %v803, 0.0
  %v1060 = vmax.f32 %v804, 0.0
  %v1061 = vmax.f32 %v805, 0.0
  %v1062 = vmax.f32 %v806, 0.0
  %v1063 = vmax.f32 %v807, 0.0
  %v1064 = vmax.f32 %v808, 0.0
  %v1065 = vmax.f32 %v809, 0.0
  %v1066 = vmax.f32 %v810, 0.0
  %v1067 = vmax.f32 %v811, 0.0
  %v1068 = vmax.f32 %v812, 0.0
  %v1069 = vmax.f32 %v813, 0.0
  %v1070 = vmax.f32 %v814, 0.0
  %v1071 = vmax.f32 %v815, 0.0
  %v1072 = vmax.f32 %v816, 0.0
  %v1073 = vmax.f32 %v817, 0.0
  %v1074 = vmax.f32 %v818, 0.0
  %v1075 = vmax.f32 %v819, 0.0
  %v1076 = vmax.f32 %v820, 0.0
  %v1077 = vmax.f32 %v821, 0.0
  %v1078 = vmax.f32 %v822, 0.0
  %v1079 = vmax.f32 %v823, 0.0
  %v1080 = vmax.f32 %v824, 0.0
  %v1081 = vmax.f32 %v825, 0.0
  %v1082 = vmax.f32 %v826, 0.0
  %v1083 = vmax.f32 %v827, 0.0
  %v1084 = vmax.f32 %v828, 0.0
  %v1085 = vmax.f32 %v829, 0.0
  %v1086 = vmax.f32 %v830, 0.0
  %v1087 = vmax.f32 %v831, 0.0
  %v1088 = vmax.f32 %v832, 0.0
  %v1089 = vmax.f32 %v833, 0.0
  %v1090 = vmax.f32 %v834, 0.0
  %v1091 = vmax.f32 %v835, 0.0
  %v1092 = vmax.f32 %v836, 0.0
  %v1093 = vmax.f32 %v837, 0.0
  %v1094 = vmax.f32 %v838, 0.0
  %v1095 = vmax.f32 %v839, 0.0
  %v1096 = vmax.f32 %v840, 0.0
  %v1097 = vmax.f32 %v841, 0.0
  %v1098 = vmax.f32 %v842, 0.0
  %v1099 = vmax.f32 %v843, 0.0
  %v1100 = vmax.f32 %v844, 0.0
  %v1101 = vmax.f32 %v845, 0.0
  %v1102 = vmax.f32 %v846, 0.0
  %v1103 = vmax.f32 %v847, 0.0
  %v1104 = vmax.f32 %v848, 0.0
  %v1105 = vmax.f32 %v849, 0.0
  %v1106 = vmax.f32 %v850, 0.0
  %v1107 = vmax.f32 %v851, 0.0
  %v1108 = vmax.f32 %v852, 0.0
  %v1109 = vmax.f32 %v853, 0.0
  %v1110 = vmax.f32 %v854, 0.0
  %v1111 = vmax.f32 %v855, 0.0
  %v1112 = vmax.f32 %v856, 0.0
  %v1113 = vmax.f32 %v857, 0.0
  %v1114 = vmax.f32 %v858, 0.0
  %v1115 = vmax.f32 %v859, 0.0
  %v1116 = vmax.f32 %v860, 0.0
  %v1117 = vmax.f32 %v861, 0.0
  %v1118 = vmax.f32 %v862, 0.0
  %v1119 = vmax.f32 %v863, 0.0
  %v1120 = vmax.f32 %v864, 0.0
  %v1121 = vmax.f32 %v865, 0.0
  %v1122 = vmax.f32 %v866, 0.0
  %v1123 = vmax.f32 %v867, 0.0
  %v1124 = vmax.f32 %v868, 0.0
  %v1125 = vmax.f32 %v869, 0.0
  %v1126 = vmax.f32 %v870, 0.0
  %v1127 = vmax.f32 %v871, 0.0
  %v1128 = vmax.f32 %v872, 0.0
  %v1129 = vmax.f32 %v873, 0.0
  %v1130 = vmax.f32 %v874, 0.0
  %v1131 = vmax.f32 %v875, 0.0
  %v1132 = vmax.f32 %v876, 0.0
  %v1133 = vmax.f32 %v877, 0.0
  %v1134 = vmax.f32 %v878, 0.0
  %v1135 = vmax.f32 %v879, 0.0
  %v1136 = vmax.f32 %v880, 0.0
  %v1137 = vmax.f32 %v881, 0.0
  %v1138 = vmax.f32 %v882, 0.0
  %v1139 = vmax.f32 %v883, 0.0
  %v1140 = vmax.f32 %v884, 0.0
  %v1141 = vmax.f32 %v885, 0.0
  %v1142 = vmax.f32 %v886, 0.0
  %v1143 = vmax.f32 %v887, 0.0
  %v1144 = vmax.f32 %v888, 0.0
  %v1145 = vmax.f32 %v889, 0.0
  %v1146 = vmax.f32 %v890, 0.0
  %v1147 = vmax.f32 %v891, 0.0
  %v1148 = vmax.f32 %v892, 0.0
  %v1149 = vmax.f32 %v893, 0.0
  %v1150 = vmax.f32 %v894, 0.0
  %v1151 = vmax.f32 %v895, 0.0
  %v1152 = vmax.f32 %v896, 0.0
  %v1153 = vmax.f32 %v897, 0.0
  %v1154 = vmax.f32 %v898, 0.0
  %v1155 = vmax.f32 %v899, 0.0
  %v1156 = vmax.f32 %v900, 0.0
  %v1157 = vmax.f32 %v901, 0.0
  %v1158 = vmax.f32 %v902, 0.0
  %v1159 = vmax.f32 %v903, 0.0
  %v1160 = vmax.f32 %v904, 0.0
  %v1161 = vmax.f32 %v905, 0.0
  %v1162 = vmax.f32 %v906, 0.0
  %v1163 = vmax.f32 %v907, 0.0
  %v1164 = vmax.f32 %v908, 0.0
  %v1165 = vmax.f32 %v909, 0.0
  %v1166 = vmax.f32 %v910, 0.0
  %v1167 = vmax.f32 %v911, 0.0
  %v1168 = vmax.f32 %v912, 0.0
  %v1169 = vmax.f32 %v913, 0.0
  %v1170 = vmax.f32 %v914, 0.0
  %v1171 = vmax.f32 %v915, 0.0
  %v1172 = vmax.f32 %v916, 0.0
  %v1173 = vmax.f32 %v917, 0.0
  %v1174 = vmax.f32 %v918, 0.0
  %v1175 = vmax.f32 %v919, 0.0
  %v1176 = vmax.f32 %v920, 0.0
  %v1177 = vmax.f32 %v921, 0.0
  %v1178 = vmax.f32 %v922, 0.0
  %v1179 = vmax.f32 %v923, 0.0
  %v1180 = vmax.f32 %v924, 0.0
  %v1181 = vmax.f32 %v925, 0.0
  %v1182 = vmax.f32 %v926, 0.0
  %v1183 = vmax.f32 %v927, 0.0
  %v1184 = vmax.f32 %v928, 0.0
  %v1185 = vmax.f32 %v929, 0.0
  %v1186 = vmax.f32 %v930, 0.0
  %v1187 = vmax.f32 %v931, 0.0
  %v1188 = vmax.f32 %v932, 0.0
  %v1189 = vmax.f32 %v933, 0.0
  %v1190 = vmax.f32 %v934, 0.0
  %v1191 = vmax.f32 %v935, 0.0
  %v1192 = vmax.f32 %v936, 0.0
  %v1193 = vmax.f32 %v937, 0.0
  %v1194 = vmax.f32 %v938, 0.0
  %v1195 = vmax.f32 %v939, 0.0
  %v1196 = vmax.f32 %v940, 0.0
  %v1197 = vmax.f32 %v941, 0.0
  %v1198 = vmax.f32 %v942, 0.0
  %v1199 = vmax.f32 %v943, 0.0
  %v1200 = vmax.f32 %v944, 0.0
  %v1201 = vmax.f32 %v945, 0.0
  %v1202 = vmax.f32 %v946, 0.0
  %v1203 = vmax.f32 %v947, 0.0
  %v1204 = vmax.f32 %v948, 0.0
  %v1205 = vmax.f32 %v949, 0.0
  %v1206 = vmax.f32 %v950, 0.0
  %v1207 = vmax.f32 %v951, 0.0
  %v1208 = vmax.f32 %v952, 0.0
  %v1209 = vmax.f32 %v953, 0.0
  %v1210 = vmax.f32 %v954, 0.0
  %v1211 = vmax.f32 %v955, 0.0
  %v1212 = vmax.f32 %v956, 0.0
  %v1213 = vmax.f32 %v957, 0.0
  %v1214 = vmax.f32 %v958, 0.0
  %v1215 = vmax.f32 %v959, 0.0
  %v1216 = vmax.f32 %v960, 0.0
  %v1217 = vmax.f32 %v961, 0.0
  %v1218 = vmax.f32 %v962, 0.0
  %v1219 = vmax.f32 %v963, 0.0
  %v1220 = vmax.f32 %v964, 0.0
  %v1221 = vmax.f32 %v965, 0.0
  %v1222 = vmax.f32 %v966, 0.0
  %v1223 = vmax.f32 %v967, 0.0
  %v1224 = vmax.f32 %v968, 0.0
  %v1225 = vmax.f32 %v969, 0.0
  %v1226 = vmax.f32 %v970, 0.0
  %v1227 = vmax.f32 %v971, 0.0
  %v1228 = vmax.f32 %v972, 0.0
  %v1229 = vmax.f32 %v973, 0.0
  %v1230 = vmax.f32 %v974, 0.0
  %v1231 = vmax.f32 %v975, 0.0
  %v1232 = vmax.f32 %v976, 0.0
  %v1233 = vmax.f32 %v977, 0.0
  %v1234 = vmax.f32 %v978, 0.0
  %v1235 = vmax.f32 %v979, 0.0
  %v1236 = vmax.f32 %v980, 0.0
  %v1237 = vmax.f32 %v981, 0.0
  %v1238 = vmax.f32 %v982, 0.0
  %v1239 = vmax.f32 %v983, 0.0
  %v1240 = vmax.f32 %v984, 0.0
  %v1241 = vmax.f32 %v985, 0.0
  %v1242 = vmax.f32 %v986, 0.0
  %v1243 = vmax.f32 %v987, 0.0
  %v1244 = vmax.f32 %v988, 0.0
  %v1245 = vmax.f32 %v989, 0.0
  %v1246 = vmax.f32 %v990, 0.0
  %v1247 = vmax.f32 %v991, 0.0
  %v1248 = vmax.f32 %v992, 0.0
  %v1249 = vmax.f32 %v993, 0.0
  %v1250 = vmax.f32 %v994, 0.0
  %v1251 = vmax.f32 %v995, 0.0
  %v1252 = vmax.f32 %v996, 0.0
  %v1253 = vmax.f32 %v997, 0.0
  %v1254 = vmax.f32 %v998, 0.0
  %v1255 = vmax.f32 %v999, 0.0
  %v1256 = vmax.f32 %v1000, 0.0
  %v1257 = vmax.f32 %v1001, 0.0
  %v1258 = vmax.f32 %v1002, 0.0
  %v1259 = vmax.f32 %v1003, 0.0
  %v1260 = vmax.f32 %v1004, 0.0
  %v1261 = vmax.f32 %v1005, 0.0
  %v1262 = vmax.f32 %v1006, 0.0
  %v1263 = vmax.f32 %v1007, 0.0
  %v1264 = vmax.f32 %v1008, 0.0
  %v1265 = vmax.f32 %v1009, 0.0
  %v1266 = vmax.f32 %v1010, 0.0
  %v1267 = vmax.f32 %v1011, 0.0
  %v1268 = vmax.f32 %v1012, 0.0
  %v1269 = vmax.f32 %v1013, 0.0
  %v1270 = vmax.f32 %v1014, 0.0
  %v1271 = vmax.f32 %v1015, 0.0
  %v1272 = vmax.f32 %v1016, 0.0
  %v1273 = vmax.f32 %v1017, 0.0
  %v1274 = vmax.f32 %v1018, 0.0
  %v1275 = vmax.f32 %v1019, 0.0
  %v1276 = vmax.f32 %v1020, 0.0
  %v1277 = vmax.f32 %v1021, 0.0
  %v1278 = vmax.f32 %v1022, 0.0
  %v1279 = vmax.f32 %v1023, 0.0
  %v1280 = vmax.f32 %v1024, 0.0
  %v1281 = vmax.f32 %v1025, 0.0
  %v1282 = vmax.f32 %v1026, 0.0
  %v1283 = vmax.f32 %v1027, 0.0
  %v1284 = vmax.f32 %v1028, 0.0
  %v1285 = vmax.f32 %v1029, 0.0
  %v1286 = vmax.f32 %v1030, 0.0
  %v1287 = vmax.f32 %v1031, 0.0
  %v1288 = vmax.f32 %v1032, 0.0
  %v1289 = vmax.f32 %v1033, 0.0
  %v1290 = vmax.f32 %v1034, 0.0
  %v1291 = vmax.f32 %v1035, 0.0
  %v1292 = vmax.f32 %v1036, 0.0
  %v1293 = vmax.f32 %v1037, 0.0
  %v1294 = vmax.f32 %v1038, 0.0
  %v1295 = vmax.f32 %v1039, 0.0
  %v1296 = vmax.f32 %v1040, 0.0
  %v1297 = vmax.f32 %v1041, 0.0
  %v1298 = vmax.f32 %v1042, 0.0
  %v1299 = vmax.f32 %v1043, 0.0
  %v1300 = vmax.f32 %v1044, 0.0
  %v1301 = vmax.f32 %v1045, 0.0
  %v1302 = vmax.f32 %v1046, 0.0
  %v1303 = vmax.f32 %v1047, 0.0
  %v1304 = vmax.f32 %v1048, 0.0
  %v1305 = vmax.f32 %v1049, 0.0
  %v1306 = vmax.f32 %v1050, 0.0
  %v1307 = vmax.f32 %v1051, 0.0
  %v1308 = vpack.c.bf16 %v1053, %v1052
  %v1309 = vpack.c.bf16 %v1055, %v1054
  %v1310 = vpack.c.bf16 %v1057, %v1056
  %v1311 = vpack.c.bf16 %v1059, %v1058
  %v1312 = vpack.c.bf16 %v1061, %v1060
  %v1313 = vpack.c.bf16 %v1063, %v1062
  %v1314 = vpack.c.bf16 %v1065, %v1064
  %v1315 = vpack.c.bf16 %v1067, %v1066
  %v1316 = vpack.c.bf16 %v1069, %v1068
  %v1317 = vpack.c.bf16 %v1071, %v1070
  %v1318 = vpack.c.bf16 %v1073, %v1072
  %v1319 = vpack.c.bf16 %v1075, %v1074
  %v1320 = vpack.c.bf16 %v1077, %v1076
  %v1321 = vpack.c.bf16 %v1079, %v1078
  %v1322 = vpack.c.bf16 %v1081, %v1080
  %v1323 = vpack.c.bf16 %v1083, %v1082
  %v1324 = vpack.c.bf16 %v1085, %v1084
  %v1325 = vpack.c.bf16 %v1087, %v1086
  %v1326 = vpack.c.bf16 %v1089, %v1088
  %v1327 = vpack.c.bf16 %v1091, %v1090
  %v1328 = vpack.c.bf16 %v1093, %v1092
  %v1329 = vpack.c.bf16 %v1095, %v1094
  %v1330 = vpack.c.bf16 %v1097, %v1096
  %v1331 = vpack.c.bf16 %v1099, %v1098
  %v1332 = vpack.c.bf16 %v1101, %v1100
  %v1333 = vpack.c.bf16 %v1103, %v1102
  %v1334 = vpack.c.bf16 %v1105, %v1104
  %v1335 = vpack.c.bf16 %v1107, %v1106
  %v1336 = vpack.c.bf16 %v1109, %v1108
  %v1337 = vpack.c.bf16 %v1111, %v1110
  %v1338 = vpack.c.bf16 %v1113, %v1112
  %v1339 = vpack.c.bf16 %v1115, %v1114
  %v1340 = vpack.c.bf16 %v1117, %v1116
  %v1341 = vpack.c.bf16 %v1119, %v1118
  %v1342 = vpack.c.bf16 %v1121, %v1120
  %v1343 = vpack.c.bf16 %v1123, %v1122
  %v1344 = vpack.c.bf16 %v1125, %v1124
  %v1345 = vpack.c.bf16 %v1127, %v1126
  %v1346 = vpack.c.bf16 %v1129, %v1128
  %v1347 = vpack.c.bf16 %v1131, %v1130
  %v1348 = vpack.c.bf16 %v1133, %v1132
  %v1349 = vpack.c.bf16 %v1135, %v1134
  %v1350 = vpack.c.bf16 %v1137, %v1136
  %v1351 = vpack.c.bf16 %v1139, %v1138
  %v1352 = vpack.c.bf16 %v1141, %v1140
  %v1353 = vpack.c.bf16 %v1143, %v1142
  %v1354 = vpack.c.bf16 %v1145, %v1144
  %v1355 = vpack.c.bf16 %v1147, %v1146
  %v1356 = vpack.c.bf16 %v1149, %v1148
  %v1357 = vpack.c.bf16 %v1151, %v1150
  %v1358 = vpack.c.bf16 %v1153, %v1152
  %v1359 = vpack.c.bf16 %v1155, %v1154
  %v1360 = vpack.c.bf16 %v1157, %v1156
  %v1361 = vpack.c.bf16 %v1159, %v1158
  %v1362 = vpack.c.bf16 %v1161, %v1160
  %v1363 = vpack.c.bf16 %v1163, %v1162
  %v1364 = vpack.c.bf16 %v1165, %v1164
  %v1365 = vpack.c.bf16 %v1167, %v1166
  %v1366 = vpack.c.bf16 %v1169, %v1168
  %v1367 = vpack.c.bf16 %v1171, %v1170
  %v1368 = vpack.c.bf16 %v1173, %v1172
  %v1369 = vpack.c.bf16 %v1175, %v1174
  %v1370 = vpack.c.bf16 %v1177, %v1176
  %v1371 = vpack.c.bf16 %v1179, %v1178
  %v1372 = vpack.c.bf16 %v1181, %v1180
  %v1373 = vpack.c.bf16 %v1183, %v1182
  %v1374 = vpack.c.bf16 %v1185, %v1184
  %v1375 = vpack.c.bf16 %v1187, %v1186
  %v1376 = vpack.c.bf16 %v1189, %v1188
  %v1377 = vpack.c.bf16 %v1191, %v1190
  %v1378 = vpack.c.bf16 %v1193, %v1192
  %v1379 = vpack.c.bf16 %v1195, %v1194
  %v1380 = vpack.c.bf16 %v1197, %v1196
  %v1381 = vpack.c.bf16 %v1199, %v1198
  %v1382 = vpack.c.bf16 %v1201, %v1200
  %v1383 = vpack.c.bf16 %v1203, %v1202
  %v1384 = vpack.c.bf16 %v1205, %v1204
  %v1385 = vpack.c.bf16 %v1207, %v1206
  %v1386 = vpack.c.bf16 %v1209, %v1208
  %v1387 = vpack.c.bf16 %v1211, %v1210
  %v1388 = vpack.c.bf16 %v1213, %v1212
  %v1389 = vpack.c.bf16 %v1215, %v1214
  %v1390 = vpack.c.bf16 %v1217, %v1216
  %v1391 = vpack.c.bf16 %v1219, %v1218
  %v1392 = vpack.c.bf16 %v1221, %v1220
  %v1393 = vpack.c.bf16 %v1223, %v1222
  %v1394 = vpack.c.bf16 %v1225, %v1224
  %v1395 = vpack.c.bf16 %v1227, %v1226
  %v1396 = vpack.c.bf16 %v1229, %v1228
  %v1397 = vpack.c.bf16 %v1231, %v1230
  %v1398 = vpack.c.bf16 %v1233, %v1232
  %v1399 = vpack.c.bf16 %v1235, %v1234
  %v1400 = vpack.c.bf16 %v1237, %v1236
  %v1401 = vpack.c.bf16 %v1239, %v1238
  %v1402 = vpack.c.bf16 %v1241, %v1240
  %v1403 = vpack.c.bf16 %v1243, %v1242
  %v1404 = vpack.c.bf16 %v1245, %v1244
  %v1405 = vpack.c.bf16 %v1247, %v1246
  %v1406 = vpack.c.bf16 %v1249, %v1248
  %v1407 = vpack.c.bf16 %v1251, %v1250
  %v1408 = vpack.c.bf16 %v1253, %v1252
  %v1409 = vpack.c.bf16 %v1255, %v1254
  %v1410 = vpack.c.bf16 %v1257, %v1256
  %v1411 = vpack.c.bf16 %v1259, %v1258
  %v1412 = vpack.c.bf16 %v1261, %v1260
  %v1413 = vpack.c.bf16 %v1263, %v1262
  %v1414 = vpack.c.bf16 %v1265, %v1264
  %v1415 = vpack.c.bf16 %v1267, %v1266
  %v1416 = vpack.c.bf16 %v1269, %v1268
  %v1417 = vpack.c.bf16 %v1271, %v1270
  %v1418 = vpack.c.bf16 %v1273, %v1272
  %v1419 = vpack.c.bf16 %v1275, %v1274
  %v1420 = vpack.c.bf16 %v1277, %v1276
  %v1421 = vpack.c.bf16 %v1279, %v1278
  %v1422 = vpack.c.bf16 %v1281, %v1280
  %v1423 = vpack.c.bf16 %v1283, %v1282
  %v1424 = vpack.c.bf16 %v1285, %v1284
  %v1425 = vpack.c.bf16 %v1287, %v1286
  %v1426 = vpack.c.bf16 %v1289, %v1288
  %v1427 = vpack.c.bf16 %v1291, %v1290
  %v1428 = vpack.c.bf16 %v1293, %v1292
  %v1429 = vpack.c.bf16 %v1295, %v1294
  %v1430 = vpack.c.bf16 %v1297, %v1296
  %v1431 = vpack.c.bf16 %v1299, %v1298
  %v1432 = vpack.c.bf16 %v1301, %v1300
  %v1433 = vpack.c.bf16 %v1303, %v1302
  %v1434 = vpack.c.bf16 %v1305, %v1304
  %v1435 = vpack.c.bf16 %v1307, %v1306
  %v1564 = vunpack.c.l.b16 %v1308
  %v1565 = vunpack.c.h.b16 %v1308
  %v1566 = vunpack.c.l.b16 %v1309
  %v1567 = vunpack.c.h.b16 %v1309
  %v1568 = vunpack.c.l.b16 %v1310
  %v1569 = vunpack.c.h.b16 %v1310
  %v1570 = vunpack.c.l.b16 %v1311
  %v1571 = vunpack.c.h.b16 %v1311
  %v1572 = vunpack.c.l.b16 %v1312
  %v1573 = vunpack.c.h.b16 %v1312
  %v1574 = vunpack.c.l.b16 %v1313
  %v1575 = vunpack.c.h.b16 %v1313
  %v1576 = vunpack.c.l.b16 %v1314
  %v1577 = vunpack.c.h.b16 %v1314
  %v1578 = vunpack.c.l.b16 %v1315
  %v1579 = vunpack.c.h.b16 %v1315
  %v1580 = vunpack.c.l.b16 %v1316
  %v1581 = vunpack.c.h.b16 %v1316
  %v1582 = vunpack.c.l.b16 %v1317
  %v1583 = vunpack.c.h.b16 %v1317
  %v1584 = vunpack.c.l.b16 %v1318
  %v1585 = vunpack.c.h.b16 %v1318
  %v1586 = vunpack.c.l.b16 %v1319
  %v1587 = vunpack.c.h.b16 %v1319
  %v1588 = vunpack.c.l.b16 %v1320
  %v1589 = vunpack.c.h.b16 %v1320
  %v1590 = vunpack.c.l.b16 %v1321
  %v1591 = vunpack.c.h.b16 %v1321
  %v1592 = vunpack.c.l.b16 %v1322
  %v1593 = vunpack.c.h.b16 %v1322
  %v1594 = vunpack.c.l.b16 %v1323
  %v1595 = vunpack.c.h.b16 %v1323
  %v1596 = vunpack.c.l.b16 %v1324
  %v1597 = vunpack.c.h.b16 %v1324
  %v1598 = vunpack.c.l.b16 %v1325
  %v1599 = vunpack.c.h.b16 %v1325
  %v1600 = vunpack.c.l.b16 %v1326
  %v1601 = vunpack.c.h.b16 %v1326
  %v1602 = vunpack.c.l.b16 %v1327
  %v1603 = vunpack.c.h.b16 %v1327
  %v1604 = vunpack.c.l.b16 %v1328
  %v1605 = vunpack.c.h.b16 %v1328
  %v1606 = vunpack.c.l.b16 %v1329
  %v1607 = vunpack.c.h.b16 %v1329
  %v1608 = vunpack.c.l.b16 %v1330
  %v1609 = vunpack.c.h.b16 %v1330
  %v1610 = vunpack.c.l.b16 %v1331
  %v1611 = vunpack.c.h.b16 %v1331
  %v1612 = vunpack.c.l.b16 %v1332
  %v1613 = vunpack.c.h.b16 %v1332
  %v1614 = vunpack.c.l.b16 %v1333
  %v1615 = vunpack.c.h.b16 %v1333
  %v1616 = vunpack.c.l.b16 %v1334
  %v1617 = vunpack.c.h.b16 %v1334
  %v1618 = vunpack.c.l.b16 %v1335
  %v1619 = vunpack.c.h.b16 %v1335
  %v1620 = vunpack.c.l.b16 %v1336
  %v1621 = vunpack.c.h.b16 %v1336
  %v1622 = vunpack.c.l.b16 %v1337
  %v1623 = vunpack.c.h.b16 %v1337
  %v1624 = vunpack.c.l.b16 %v1338
  %v1625 = vunpack.c.h.b16 %v1338
  %v1626 = vunpack.c.l.b16 %v1339
  %v1627 = vunpack.c.h.b16 %v1339
  %v1628 = vunpack.c.l.b16 %v1340
  %v1629 = vunpack.c.h.b16 %v1340
  %v1630 = vunpack.c.l.b16 %v1341
  %v1631 = vunpack.c.h.b16 %v1341
  %v1632 = vunpack.c.l.b16 %v1342
  %v1633 = vunpack.c.h.b16 %v1342
  %v1634 = vunpack.c.l.b16 %v1343
  %v1635 = vunpack.c.h.b16 %v1343
  %v1636 = vunpack.c.l.b16 %v1344
  %v1637 = vunpack.c.h.b16 %v1344
  %v1638 = vunpack.c.l.b16 %v1345
  %v1639 = vunpack.c.h.b16 %v1345
  %v1640 = vunpack.c.l.b16 %v1346
  %v1641 = vunpack.c.h.b16 %v1346
  %v1642 = vunpack.c.l.b16 %v1347
  %v1643 = vunpack.c.h.b16 %v1347
  %v1644 = vunpack.c.l.b16 %v1348
  %v1645 = vunpack.c.h.b16 %v1348
  %v1646 = vunpack.c.l.b16 %v1349
  %v1647 = vunpack.c.h.b16 %v1349
  %v1648 = vunpack.c.l.b16 %v1350
  %v1649 = vunpack.c.h.b16 %v1350
  %v1650 = vunpack.c.l.b16 %v1351
  %v1651 = vunpack.c.h.b16 %v1351
  %v1652 = vunpack.c.l.b16 %v1352
  %v1653 = vunpack.c.h.b16 %v1352
  %v1654 = vunpack.c.l.b16 %v1353
  %v1655 = vunpack.c.h.b16 %v1353
  %v1656 = vunpack.c.l.b16 %v1354
  %v1657 = vunpack.c.h.b16 %v1354
  %v1658 = vunpack.c.l.b16 %v1355
  %v1659 = vunpack.c.h.b16 %v1355
  %v1660 = vunpack.c.l.b16 %v1356
  %v1661 = vunpack.c.h.b16 %v1356
  %v1662 = vunpack.c.l.b16 %v1357
  %v1663 = vunpack.c.h.b16 %v1357
  %v1664 = vunpack.c.l.b16 %v1358
  %v1665 = vunpack.c.h.b16 %v1358
  %v1666 = vunpack.c.l.b16 %v1359
  %v1667 = vunpack.c.h.b16 %v1359
  %v1668 = vunpack.c.l.b16 %v1360
  %v1669 = vunpack.c.h.b16 %v1360
  %v1670 = vunpack.c.l.b16 %v1361
  %v1671 = vunpack.c.h.b16 %v1361
  %v1672 = vunpack.c.l.b16 %v1362
  %v1673 = vunpack.c.h.b16 %v1362
  %v1674 = vunpack.c.l.b16 %v1363
  %v1675 = vunpack.c.h.b16 %v1363
  %v1676 = vunpack.c.l.b16 %v1364
  %v1677 = vunpack.c.h.b16 %v1364
  %v1678 = vunpack.c.l.b16 %v1365
  %v1679 = vunpack.c.h.b16 %v1365
  %v1680 = vunpack.c.l.b16 %v1366
  %v1681 = vunpack.c.h.b16 %v1366
  %v1682 = vunpack.c.l.b16 %v1367
  %v1683 = vunpack.c.h.b16 %v1367
  %v1684 = vunpack.c.l.b16 %v1368
  %v1685 = vunpack.c.h.b16 %v1368
  %v1686 = vunpack.c.l.b16 %v1369
  %v1687 = vunpack.c.h.b16 %v1369
  %v1688 = vunpack.c.l.b16 %v1370
  %v1689 = vunpack.c.h.b16 %v1370
  %v1690 = vunpack.c.l.b16 %v1371
  %v1691 = vunpack.c.h.b16 %v1371
  %v1692 = vunpack.c.l.b16 %v1372
  %v1693 = vunpack.c.h.b16 %v1372
  %v1694 = vunpack.c.l.b16 %v1373
  %v1695 = vunpack.c.h.b16 %v1373
  %v1696 = vunpack.c.l.b16 %v1374
  %v1697 = vunpack.c.h.b16 %v1374
  %v1698 = vunpack.c.l.b16 %v1375
  %v1699 = vunpack.c.h.b16 %v1375
  %v1700 = vunpack.c.l.b16 %v1376
  %v1701 = vunpack.c.h.b16 %v1376
  %v1702 = vunpack.c.l.b16 %v1377
  %v1703 = vunpack.c.h.b16 %v1377
  %v1704 = vunpack.c.l.b16 %v1378
  %v1705 = vunpack.c.h.b16 %v1378
  %v1706 = vunpack.c.l.b16 %v1379
  %v1707 = vunpack.c.h.b16 %v1379
  %v1708 = vunpack.c.l.b16 %v1380
  %v1709 = vunpack.c.h.b16 %v1380
  %v1710 = vunpack.c.l.b16 %v1381
  %v1711 = vunpack.c.h.b16 %v1381
  %v1712 = vunpack.c.l.b16 %v1382
  %v1713 = vunpack.c.h.b16 %v1382
  %v1714 = vunpack.c.l.b16 %v1383
  %v1715 = vunpack.c.h.b16 %v1383
  %v1716 = vunpack.c.l.b16 %v1384
  %v1717 = vunpack.c.h.b16 %v1384
  %v1718 = vunpack.c.l.b16 %v1385
  %v1719 = vunpack.c.h.b16 %v1385
  %v1720 = vunpack.c.l.b16 %v1386
  %v1721 = vunpack.c.h.b16 %v1386
  %v1722 = vunpack.c.l.b16 %v1387
  %v1723 = vunpack.c.h.b16 %v1387
  %v1724 = vunpack.c.l.b16 %v1388
  %v1725 = vunpack.c.h.b16 %v1388
  %v1726 = vunpack.c.l.b16 %v1389
  %v1727 = vunpack.c.h.b16 %v1389
  %v1728 = vunpack.c.l.b16 %v1390
  %v1729 = vunpack.c.h.b16 %v1390
  %v1730 = vunpack.c.l.b16 %v1391
  %v1731 = vunpack.c.h.b16 %v1391
  %v1732 = vunpack.c.l.b16 %v1392
  %v1733 = vunpack.c.h.b16 %v1392
  %v1734 = vunpack.c.l.b16 %v1393
  %v1735 = vunpack.c.h.b16 %v1393
  %v1736 = vunpack.c.l.b16 %v1394
  %v1737 = vunpack.c.h.b16 %v1394
  %v1738 = vunpack.c.l.b16 %v1395
  %v1739 = vunpack.c.h.b16 %v1395
  %v1740 = vunpack.c.l.b16 %v1396
  %v1741 = vunpack.c.h.b16 %v1396
  %v1742 = vunpack.c.l.b16 %v1397
  %v1743 = vunpack.c.h.b16 %v1397
  %v1744 = vunpack.c.l.b16 %v1398
  %v1745 = vunpack.c.h.b16 %v1398
  %v1746 = vunpack.c.l.b16 %v1399
  %v1747 = vunpack.c.h.b16 %v1399
  %v1748 = vunpack.c.l.b16 %v1400
  %v1749 = vunpack.c.h.b16 %v1400
  %v1750 = vunpack.c.l.b16 %v1401
  %v1751 = vunpack.c.h.b16 %v1401
  %v1752 = vunpack.c.l.b16 %v1402
  %v1753 = vunpack.c.h.b16 %v1402
  %v1754 = vunpack.c.l.b16 %v1403
  %v1755 = vunpack.c.h.b16 %v1403
  %v1756 = vunpack.c.l.b16 %v1404
  %v1757 = vunpack.c.h.b16 %v1404
  %v1758 = vunpack.c.l.b16 %v1405
  %v1759 = vunpack.c.h.b16 %v1405
  %v1760 = vunpack.c.l.b16 %v1406
  %v1761 = vunpack.c.h.b16 %v1406
  %v1762 = vunpack.c.l.b16 %v1407
  %v1763 = vunpack.c.h.b16 %v1407
  %v1764 = vunpack.c.l.b16 %v1408
  %v1765 = vunpack.c.h.b16 %v1408
  %v1766 = vunpack.c.l.b16 %v1409
  %v1767 = vunpack.c.h.b16 %v1409
  %v1768 = vunpack.c.l.b16 %v1410
  %v1769 = vunpack.c.h.b16 %v1410
  %v1770 = vunpack.c.l.b16 %v1411
  %v1771 = vunpack.c.h.b16 %v1411
  %v1772 = vunpack.c.l.b16 %v1412
  %v1773 = vunpack.c.h.b16 %v1412
  %v1774 = vunpack.c.l.b16 %v1413
  %v1775 = vunpack.c.h.b16 %v1413
  %v1776 = vunpack.c.l.b16 %v1414
  %v1777 = vunpack.c.h.b16 %v1414
  %v1778 = vunpack.c.l.b16 %v1415
  %v1779 = vunpack.c.h.b16 %v1415
  %v1780 = vunpack.c.l.b16 %v1416
  %v1781 = vunpack.c.h.b16 %v1416
  %v1782 = vunpack.c.l.b16 %v1417
  %v1783 = vunpack.c.h.b16 %v1417
  %v1784 = vunpack.c.l.b16 %v1418
  %v1785 = vunpack.c.h.b16 %v1418
  %v1786 = vunpack.c.l.b16 %v1419
  %v1787 = vunpack.c.h.b16 %v1419
  %v1788 = vunpack.c.l.b16 %v1420
  %v1789 = vunpack.c.h.b16 %v1420
  %v1790 = vunpack.c.l.b16 %v1421
  %v1791 = vunpack.c.h.b16 %v1421
  %v1792 = vunpack.c.l.b16 %v1422
  %v1793 = vunpack.c.h.b16 %v1422
  %v1794 = vunpack.c.l.b16 %v1423
  %v1795 = vunpack.c.h.b16 %v1423
  %v1796 = vunpack.c.l.b16 %v1424
  %v1797 = vunpack.c.h.b16 %v1424
  %v1798 = vunpack.c.l.b16 %v1425
  %v1799 = vunpack.c.h.b16 %v1425
  %v1800 = vunpack.c.l.b16 %v1426
  %v1801 = vunpack.c.h.b16 %v1426
  %v1802 = vunpack.c.l.b16 %v1427
  %v1803 = vunpack.c.h.b16 %v1427
  %v1804 = vunpack.c.l.b16 %v1428
  %v1805 = vunpack.c.h.b16 %v1428
  %v1806 = vunpack.c.l.b16 %v1429
  %v1807 = vunpack.c.h.b16 %v1429
  %v1808 = vunpack.c.l.b16 %v1430
  %v1809 = vunpack.c.h.b16 %v1430
  %v1810 = vunpack.c.l.b16 %v1431
  %v1811 = vunpack.c.h.b16 %v1431
  %v1812 = vunpack.c.l.b16 %v1432
  %v1813 = vunpack.c.h.b16 %v1432
  %v1814 = vunpack.c.l.b16 %v1433
  %v1815 = vunpack.c.h.b16 %v1433
  %v1816 = vunpack.c.l.b16 %v1434
  %v1817 = vunpack.c.h.b16 %v1434
  %v1818 = vunpack.c.l.b16 %v1435
  %v1819 = vunpack.c.h.b16 %v1435
  %v1820 = vpack.c.b16 %v1564, %v1564
  %v1821 = vpack.c.b16 %v1565, %v1565
  %v1822 = vpack.c.b16 %v1566, %v1566
  %v1823 = vpack.c.b16 %v1567, %v1567
  %v1824 = vpack.c.b16 %v1568, %v1568
  %v1825 = vpack.c.b16 %v1569, %v1569
  %v1826 = vpack.c.b16 %v1570, %v1570
  %v1827 = vpack.c.b16 %v1571, %v1571
  %v1828 = vpack.c.b16 %v1572, %v1572
  %v1829 = vpack.c.b16 %v1573, %v1573
  %v1830 = vpack.c.b16 %v1574, %v1574
  %v1831 = vpack.c.b16 %v1575, %v1575
  %v1832 = vpack.c.b16 %v1576, %v1576
  %v1833 = vpack.c.b16 %v1577, %v1577
  %v1834 = vpack.c.b16 %v1578, %v1578
  %v1835 = vpack.c.b16 %v1579, %v1579
  %v1836 = vpack.c.b16 %v1580, %v1580
  %v1837 = vpack.c.b16 %v1581, %v1581
  %v1838 = vpack.c.b16 %v1582, %v1582
  %v1839 = vpack.c.b16 %v1583, %v1583
  %v1840 = vpack.c.b16 %v1584, %v1584
  %v1841 = vpack.c.b16 %v1585, %v1585
  %v1842 = vpack.c.b16 %v1586, %v1586
  %v1843 = vpack.c.b16 %v1587, %v1587
  %v1844 = vpack.c.b16 %v1588, %v1588
  %v1845 = vpack.c.b16 %v1589, %v1589
  %v1846 = vpack.c.b16 %v1590, %v1590
  %v1847 = vpack.c.b16 %v1591, %v1591
  %v1848 = vpack.c.b16 %v1592, %v1592
  %v1849 = vpack.c.b16 %v1593, %v1593
  %v1850 = vpack.c.b16 %v1594, %v1594
  %v1851 = vpack.c.b16 %v1595, %v1595
  %v1852 = vpack.c.b16 %v1596, %v1596
  %v1853 = vpack.c.b16 %v1597, %v1597
  %v1854 = vpack.c.b16 %v1598, %v1598
  %v1855 = vpack.c.b16 %v1599, %v1599
  %v1856 = vpack.c.b16 %v1600, %v1600
  %v1857 = vpack.c.b16 %v1601, %v1601
  %v1858 = vpack.c.b16 %v1602, %v1602
  %v1859 = vpack.c.b16 %v1603, %v1603
  %v1860 = vpack.c.b16 %v1604, %v1604
  %v1861 = vpack.c.b16 %v1605, %v1605
  %v1862 = vpack.c.b16 %v1606, %v1606
  %v1863 = vpack.c.b16 %v1607, %v1607
  %v1864 = vpack.c.b16 %v1608, %v1608
  %v1865 = vpack.c.b16 %v1609, %v1609
  %v1866 = vpack.c.b16 %v1610, %v1610
  %v1867 = vpack.c.b16 %v1611, %v1611
  %v1868 = vpack.c.b16 %v1612, %v1612
  %v1869 = vpack.c.b16 %v1613, %v1613
  %v1870 = vpack.c.b16 %v1614, %v1614
  %v1871 = vpack.c.b16 %v1615, %v1615
  %v1872 = vpack.c.b16 %v1616, %v1616
  %v1873 = vpack.c.b16 %v1617, %v1617
  %v1874 = vpack.c.b16 %v1618, %v1618
  %v1875 = vpack.c.b16 %v1619, %v1619
  %v1876 = vpack.c.b16 %v1620, %v1620
  %v1877 = vpack.c.b16 %v1621, %v1621
  %v1878 = vpack.c.b16 %v1622, %v1622
  %v1879 = vpack.c.b16 %v1623, %v1623
  %v1880 = vpack.c.b16 %v1624, %v1624
  %v1881 = vpack.c.b16 %v1625, %v1625
  %v1882 = vpack.c.b16 %v1626, %v1626
  %v1883 = vpack.c.b16 %v1627, %v1627
  %v1884 = vpack.c.b16 %v1628, %v1628
  %v1885 = vpack.c.b16 %v1629, %v1629
  %v1886 = vpack.c.b16 %v1630, %v1630
  %v1887 = vpack.c.b16 %v1631, %v1631
  %v1888 = vpack.c.b16 %v1632, %v1632
  %v1889 = vpack.c.b16 %v1633, %v1633
  %v1890 = vpack.c.b16 %v1634, %v1634
  %v1891 = vpack.c.b16 %v1635, %v1635
  %v1892 = vpack.c.b16 %v1636, %v1636
  %v1893 = vpack.c.b16 %v1637, %v1637
  %v1894 = vpack.c.b16 %v1638, %v1638
  %v1895 = vpack.c.b16 %v1639, %v1639
  %v1896 = vpack.c.b16 %v1640, %v1640
  %v1897 = vpack.c.b16 %v1641, %v1641
  %v1898 = vpack.c.b16 %v1642, %v1642
  %v1899 = vpack.c.b16 %v1643, %v1643
  %v1900 = vpack.c.b16 %v1644, %v1644
  %v1901 = vpack.c.b16 %v1645, %v1645
  %v1902 = vpack.c.b16 %v1646, %v1646
  %v1903 = vpack.c.b16 %v1647, %v1647
  %v1904 = vpack.c.b16 %v1648, %v1648
  %v1905 = vpack.c.b16 %v1649, %v1649
  %v1906 = vpack.c.b16 %v1650, %v1650
  %v1907 = vpack.c.b16 %v1651, %v1651
  %v1908 = vpack.c.b16 %v1652, %v1652
  %v1909 = vpack.c.b16 %v1653, %v1653
  %v1910 = vpack.c.b16 %v1654, %v1654
  %v1911 = vpack.c.b16 %v1655, %v1655
  %v1912 = vpack.c.b16 %v1656, %v1656
  %v1913 = vpack.c.b16 %v1657, %v1657
  %v1914 = vpack.c.b16 %v1658, %v1658
  %v1915 = vpack.c.b16 %v1659, %v1659
  %v1916 = vpack.c.b16 %v1660, %v1660
  %v1917 = vpack.c.b16 %v1661, %v1661
  %v1918 = vpack.c.b16 %v1662, %v1662
  %v1919 = vpack.c.b16 %v1663, %v1663
  %v1920 = vpack.c.b16 %v1664, %v1664
  %v1921 = vpack.c.b16 %v1665, %v1665
  %v1922 = vpack.c.b16 %v1666, %v1666
  %v1923 = vpack.c.b16 %v1667, %v1667
  %v1924 = vpack.c.b16 %v1668, %v1668
  %v1925 = vpack.c.b16 %v1669, %v1669
  %v1926 = vpack.c.b16 %v1670, %v1670
  %v1927 = vpack.c.b16 %v1671, %v1671
  %v1928 = vpack.c.b16 %v1672, %v1672
  %v1929 = vpack.c.b16 %v1673, %v1673
  %v1930 = vpack.c.b16 %v1674, %v1674
  %v1931 = vpack.c.b16 %v1675, %v1675
  %v1932 = vpack.c.b16 %v1676, %v1676
  %v1933 = vpack.c.b16 %v1677, %v1677
  %v1934 = vpack.c.b16 %v1678, %v1678
  %v1935 = vpack.c.b16 %v1679, %v1679
  %v1936 = vpack.c.b16 %v1680, %v1680
  %v1937 = vpack.c.b16 %v1681, %v1681
  %v1938 = vpack.c.b16 %v1682, %v1682
  %v1939 = vpack.c.b16 %v1683, %v1683
  %v1940 = vpack.c.b16 %v1684, %v1684
  %v1941 = vpack.c.b16 %v1685, %v1685
  %v1942 = vpack.c.b16 %v1686, %v1686
  %v1943 = vpack.c.b16 %v1687, %v1687
  %v1944 = vpack.c.b16 %v1688, %v1688
  %v1945 = vpack.c.b16 %v1689, %v1689
  %v1946 = vpack.c.b16 %v1690, %v1690
  %v1947 = vpack.c.b16 %v1691, %v1691
  %v1948 = vpack.c.b16 %v1692, %v1692
  %v1949 = vpack.c.b16 %v1693, %v1693
  %v1950 = vpack.c.b16 %v1694, %v1694
  %v1951 = vpack.c.b16 %v1695, %v1695
  %v1952 = vpack.c.b16 %v1696, %v1696
  %v1953 = vpack.c.b16 %v1697, %v1697
  %v1954 = vpack.c.b16 %v1698, %v1698
  %v1955 = vpack.c.b16 %v1699, %v1699
  %v1956 = vpack.c.b16 %v1700, %v1700
  %v1957 = vpack.c.b16 %v1701, %v1701
  %v1958 = vpack.c.b16 %v1702, %v1702
  %v1959 = vpack.c.b16 %v1703, %v1703
  %v1960 = vpack.c.b16 %v1704, %v1704
  %v1961 = vpack.c.b16 %v1705, %v1705
  %v1962 = vpack.c.b16 %v1706, %v1706
  %v1963 = vpack.c.b16 %v1707, %v1707
  %v1964 = vpack.c.b16 %v1708, %v1708
  %v1965 = vpack.c.b16 %v1709, %v1709
  %v1966 = vpack.c.b16 %v1710, %v1710
  %v1967 = vpack.c.b16 %v1711, %v1711
  %v1968 = vpack.c.b16 %v1712, %v1712
  %v1969 = vpack.c.b16 %v1713, %v1713
  %v1970 = vpack.c.b16 %v1714, %v1714
  %v1971 = vpack.c.b16 %v1715, %v1715
  %v1972 = vpack.c.b16 %v1716, %v1716
  %v1973 = vpack.c.b16 %v1717, %v1717
  %v1974 = vpack.c.b16 %v1718, %v1718
  %v1975 = vpack.c.b16 %v1719, %v1719
  %v1976 = vpack.c.b16 %v1720, %v1720
  %v1977 = vpack.c.b16 %v1721, %v1721
  %v1978 = vpack.c.b16 %v1722, %v1722
  %v1979 = vpack.c.b16 %v1723, %v1723
  %v1980 = vpack.c.b16 %v1724, %v1724
  %v1981 = vpack.c.b16 %v1725, %v1725
  %v1982 = vpack.c.b16 %v1726, %v1726
  %v1983 = vpack.c.b16 %v1727, %v1727
  %v1984 = vpack.c.b16 %v1728, %v1728
  %v1985 = vpack.c.b16 %v1729, %v1729
  %v1986 = vpack.c.b16 %v1730, %v1730
  %v1987 = vpack.c.b16 %v1731, %v1731
  %v1988 = vpack.c.b16 %v1732, %v1732
  %v1989 = vpack.c.b16 %v1733, %v1733
  %v1990 = vpack.c.b16 %v1734, %v1734
  %v1991 = vpack.c.b16 %v1735, %v1735
  %v1992 = vpack.c.b16 %v1736, %v1736
  %v1993 = vpack.c.b16 %v1737, %v1737
  %v1994 = vpack.c.b16 %v1738, %v1738
  %v1995 = vpack.c.b16 %v1739, %v1739
  %v1996 = vpack.c.b16 %v1740, %v1740
  %v1997 = vpack.c.b16 %v1741, %v1741
  %v1998 = vpack.c.b16 %v1742, %v1742
  %v1999 = vpack.c.b16 %v1743, %v1743
  %v2000 = vpack.c.b16 %v1744, %v1744
  %v2001 = vpack.c.b16 %v1745, %v1745
  %v2002 = vpack.c.b16 %v1746, %v1746
  %v2003 = vpack.c.b16 %v1747, %v1747
  %v2004 = vpack.c.b16 %v1748, %v1748
  %v2005 = vpack.c.b16 %v1749, %v1749
  %v2006 = vpack.c.b16 %v1750, %v1750
  %v2007 = vpack.c.b16 %v1751, %v1751
  %v2008 = vpack.c.b16 %v1752, %v1752
  %v2009 = vpack.c.b16 %v1753, %v1753
  %v2010 = vpack.c.b16 %v1754, %v1754
  %v2011 = vpack.c.b16 %v1755, %v1755
  %v2012 = vpack.c.b16 %v1756, %v1756
  %v2013 = vpack.c.b16 %v1757, %v1757
  %v2014 = vpack.c.b16 %v1758, %v1758
  %v2015 = vpack.c.b16 %v1759, %v1759
  %v2016 = vpack.c.b16 %v1760, %v1760
  %v2017 = vpack.c.b16 %v1761, %v1761
  %v2018 = vpack.c.b16 %v1762, %v1762
  %v2019 = vpack.c.b16 %v1763, %v1763
  %v2020 = vpack.c.b16 %v1764, %v1764
  %v2021 = vpack.c.b16 %v1765, %v1765
  %v2022 = vpack.c.b16 %v1766, %v1766
  %v2023 = vpack.c.b16 %v1767, %v1767
  %v2024 = vpack.c.b16 %v1768, %v1768
  %v2025 = vpack.c.b16 %v1769, %v1769
  %v2026 = vpack.c.b16 %v1770, %v1770
  %v2027 = vpack.c.b16 %v1771, %v1771
  %v2028 = vpack.c.b16 %v1772, %v1772
  %v2029 = vpack.c.b16 %v1773, %v1773
  %v2030 = vpack.c.b16 %v1774, %v1774
  %v2031 = vpack.c.b16 %v1775, %v1775
  %v2032 = vpack.c.b16 %v1776, %v1776
  %v2033 = vpack.c.b16 %v1777, %v1777
  %v2034 = vpack.c.b16 %v1778, %v1778
  %v2035 = vpack.c.b16 %v1779, %v1779
  %v2036 = vpack.c.b16 %v1780, %v1780
  %v2037 = vpack.c.b16 %v1781, %v1781
  %v2038 = vpack.c.b16 %v1782, %v1782
  %v2039 = vpack.c.b16 %v1783, %v1783
  %v2040 = vpack.c.b16 %v1784, %v1784
  %v2041 = vpack.c.b16 %v1785, %v1785
  %v2042 = vpack.c.b16 %v1786, %v1786
  %v2043 = vpack.c.b16 %v1787, %v1787
  %v2044 = vpack.c.b16 %v1788, %v1788
  %v2045 = vpack.c.b16 %v1789, %v1789
  %v2046 = vpack.c.b16 %v1790, %v1790
  %v2047 = vpack.c.b16 %v1791, %v1791
  %v2048 = vpack.c.b16 %v1792, %v1792
  %v2049 = vpack.c.b16 %v1793, %v1793
  %v2050 = vpack.c.b16 %v1794, %v1794
  %v2051 = vpack.c.b16 %v1795, %v1795
  %v2052 = vpack.c.b16 %v1796, %v1796
  %v2053 = vpack.c.b16 %v1797, %v1797
  %v2054 = vpack.c.b16 %v1798, %v1798
  %v2055 = vpack.c.b16 %v1799, %v1799
  %v2056 = vpack.c.b16 %v1800, %v1800
  %v2057 = vpack.c.b16 %v1801, %v1801
  %v2058 = vpack.c.b16 %v1802, %v1802
  %v2059 = vpack.c.b16 %v1803, %v1803
  %v2060 = vpack.c.b16 %v1804, %v1804
  %v2061 = vpack.c.b16 %v1805, %v1805
  %v2062 = vpack.c.b16 %v1806, %v1806
  %v2063 = vpack.c.b16 %v1807, %v1807
  %v2064 = vpack.c.b16 %v1808, %v1808
  %v2065 = vpack.c.b16 %v1809, %v1809
  %v2066 = vpack.c.b16 %v1810, %v1810
  %v2067 = vpack.c.b16 %v1811, %v1811
  %v2068 = vpack.c.b16 %v1812, %v1812
  %v2069 = vpack.c.b16 %v1813, %v1813
  %v2070 = vpack.c.b16 %v1814, %v1814
  %v2071 = vpack.c.b16 %v1815, %v1815
  %v2072 = vpack.c.b16 %v1816, %v1816
  %v2073 = vpack.c.b16 %v1817, %v1817
  %v2074 = vpack.c.b16 %v1818, %v1818
  %v2075 = vpack.c.b16 %v1819, %v1819
  %2332 = vst [vmem:[%s3] sm:$0xf] %v1820
  %2333 = vst [vmem:[%s3 + $0x4] sm:$0xf] %v1821
  %2334 = vst [vmem:[%s3 + $0x8] sm:$0xf] %v1822
  %2335 = vst [vmem:[%s3 + $0xc] sm:$0xf] %v1823
  %2336 = vst [vmem:[%s3 + $0x10] sm:$0xf] %v1824
  %2337 = vst [vmem:[%s3 + $0x14] sm:$0xf] %v1825
  %2338 = vst [vmem:[%s3 + $0x18] sm:$0xf] %v1826
  %2339 = vst [vmem:[%s3 + $0x1c] sm:$0xf] %v1827
  %2340 = vst [vmem:[%s3 + $0x20] sm:$0xf] %v1828
  %2341 = vst [vmem:[%s3 + $0x24] sm:$0xf] %v1829
  %2342 = vst [vmem:[%s3 + $0x28] sm:$0xf] %v1830
  %2343 = vst [vmem:[%s3 + $0x2c] sm:$0xf] %v1831
  %2344 = vst [vmem:[%s3 + $0x30] sm:$0xf] %v1832
  %2345 = vst [vmem:[%s3 + $0x34] sm:$0xf] %v1833
  %2346 = vst [vmem:[%s3 + $0x38] sm:$0xf] %v1834
  %2347 = vst [vmem:[%s3 + $0x3c] sm:$0xf] %v1835
  %2348 = vst [vmem:[%s3 + $0x40] sm:$0xf] %v1836
  %2349 = vst [vmem:[%s3 + $0x44] sm:$0xf] %v1837
  %2350 = vst [vmem:[%s3 + $0x48] sm:$0xf] %v1838
  %2351 = vst [vmem:[%s3 + $0x4c] sm:$0xf] %v1839
  %2352 = vst [vmem:[%s3 + $0x50] sm:$0xf] %v1840
  %2353 = vst [vmem:[%s3 + $0x54] sm:$0xf] %v1841
  %2354 = vst [vmem:[%s3 + $0x58] sm:$0xf] %v1842
  %2355 = vst [vmem:[%s3 + $0x5c] sm:$0xf] %v1843
  %2356 = vst [vmem:[%s3 + $0x60] sm:$0xf] %v1844
  %2357 = vst [vmem:[%s3 + $0x64] sm:$0xf] %v1845
  %2358 = vst [vmem:[%s3 + $0x68] sm:$0xf] %v1846
  %2359 = vst [vmem:[%s3 + $0x6c] sm:$0xf] %v1847
  %2360 = vst [vmem:[%s3 + $0x70] sm:$0xf] %v1848
  %2361 = vst [vmem:[%s3 + $0x74] sm:$0xf] %v1849
  %2362 = vst [vmem:[%s3 + $0x78] sm:$0xf] %v1850
  %2363 = vst [vmem:[%s3 + $0x7c] sm:$0xf] %v1851
  %2364 = vst [vmem:[%s3 + $0x80] sm:$0xf] %v1852
  %2365 = vst [vmem:[%s3 + $0x84] sm:$0xf] %v1853
  %2366 = vst [vmem:[%s3 + $0x88] sm:$0xf] %v1854
  %2367 = vst [vmem:[%s3 + $0x8c] sm:$0xf] %v1855
  %2368 = vst [vmem:[%s3 + $0x90] sm:$0xf] %v1856
  %2369 = vst [vmem:[%s3 + $0x94] sm:$0xf] %v1857
  %2370 = vst [vmem:[%s3 + $0x98] sm:$0xf] %v1858
  %2371 = vst [vmem:[%s3 + $0x9c] sm:$0xf] %v1859
  %2372 = vst [vmem:[%s3 + $0xa0] sm:$0xf] %v1860
  %2373 = vst [vmem:[%s3 + $0xa4] sm:$0xf] %v1861
  %2374 = vst [vmem:[%s3 + $0xa8] sm:$0xf] %v1862
  %2375 = vst [vmem:[%s3 + $0xac] sm:$0xf] %v1863
  %2376 = vst [vmem:[%s3 + $0xb0] sm:$0xf] %v1864
  %2377 = vst [vmem:[%s3 + $0xb4] sm:$0xf] %v1865
  %2378 = vst [vmem:[%s3 + $0xb8] sm:$0xf] %v1866
  %2379 = vst [vmem:[%s3 + $0xbc] sm:$0xf] %v1867
  %2380 = vst [vmem:[%s3 + $0xc0] sm:$0xf] %v1868
  %2381 = vst [vmem:[%s3 + $0xc4] sm:$0xf] %v1869
  %2382 = vst [vmem:[%s3 + $0xc8] sm:$0xf] %v1870
  %2383 = vst [vmem:[%s3 + $0xcc] sm:$0xf] %v1871
  %2384 = vst [vmem:[%s3 + $0xd0] sm:$0xf] %v1872
  %2385 = vst [vmem:[%s3 + $0xd4] sm:$0xf] %v1873
  %2386 = vst [vmem:[%s3 + $0xd8] sm:$0xf] %v1874
  %2387 = vst [vmem:[%s3 + $0xdc] sm:$0xf] %v1875
  %2388 = vst [vmem:[%s3 + $0xe0] sm:$0xf] %v1876
  %2389 = vst [vmem:[%s3 + $0xe4] sm:$0xf] %v1877
  %2390 = vst [vmem:[%s3 + $0xe8] sm:$0xf] %v1878
  %2391 = vst [vmem:[%s3 + $0xec] sm:$0xf] %v1879
  %2392 = vst [vmem:[%s3 + $0xf0] sm:$0xf] %v1880
  %2393 = vst [vmem:[%s3 + $0xf4] sm:$0xf] %v1881
  %2394 = vst [vmem:[%s3 + $0xf8] sm:$0xf] %v1882
  %2395 = vst [vmem:[%s3 + $0xfc] sm:$0xf] %v1883
  %2396 = vst [vmem:[%s3 + $0x100] sm:$0xf] %v1884
  %2397 = vst [vmem:[%s3 + $0x104] sm:$0xf] %v1885
  %2398 = vst [vmem:[%s3 + $0x108] sm:$0xf] %v1886
  %2399 = vst [vmem:[%s3 + $0x10c] sm:$0xf] %v1887
  %2400 = vst [vmem:[%s3 + $0x110] sm:$0xf] %v1888
  %2401 = vst [vmem:[%s3 + $0x114] sm:$0xf] %v1889
  %2402 = vst [vmem:[%s3 + $0x118] sm:$0xf] %v1890
  %2403 = vst [vmem:[%s3 + $0x11c] sm:$0xf] %v1891
  %2404 = vst [vmem:[%s3 + $0x120] sm:$0xf] %v1892
  %2405 = vst [vmem:[%s3 + $0x124] sm:$0xf] %v1893
  %2406 = vst [vmem:[%s3 + $0x128] sm:$0xf] %v1894
  %2407 = vst [vmem:[%s3 + $0x12c] sm:$0xf] %v1895
  %2408 = vst [vmem:[%s3 + $0x130] sm:$0xf] %v1896
  %2409 = vst [vmem:[%s3 + $0x134] sm:$0xf] %v1897
  %2410 = vst [vmem:[%s3 + $0x138] sm:$0xf] %v1898
  %2411 = vst [vmem:[%s3 + $0x13c] sm:$0xf] %v1899
  %2412 = vst [vmem:[%s3 + $0x140] sm:$0xf] %v1900
  %2413 = vst [vmem:[%s3 + $0x144] sm:$0xf] %v1901
  %2414 = vst [vmem:[%s3 + $0x148] sm:$0xf] %v1902
  %2415 = vst [vmem:[%s3 + $0x14c] sm:$0xf] %v1903
  %2416 = vst [vmem:[%s3 + $0x150] sm:$0xf] %v1904
  %2417 = vst [vmem:[%s3 + $0x154] sm:$0xf] %v1905
  %2418 = vst [vmem:[%s3 + $0x158] sm:$0xf] %v1906
  %2419 = vst [vmem:[%s3 + $0x15c] sm:$0xf] %v1907
  %2420 = vst [vmem:[%s3 + $0x160] sm:$0xf] %v1908
  %2421 = vst [vmem:[%s3 + $0x164] sm:$0xf] %v1909
  %2422 = vst [vmem:[%s3 + $0x168] sm:$0xf] %v1910
  %2423 = vst [vmem:[%s3 + $0x16c] sm:$0xf] %v1911
  %2424 = vst [vmem:[%s3 + $0x170] sm:$0xf] %v1912
  %2425 = vst [vmem:[%s3 + $0x174] sm:$0xf] %v1913
  %2426 = vst [vmem:[%s3 + $0x178] sm:$0xf] %v1914
  %2427 = vst [vmem:[%s3 + $0x17c] sm:$0xf] %v1915
  %2428 = vst [vmem:[%s3 + $0x180] sm:$0xf] %v1916
  %2429 = vst [vmem:[%s3 + $0x184] sm:$0xf] %v1917
  %2430 = vst [vmem:[%s3 + $0x188] sm:$0xf] %v1918
  %2431 = vst [vmem:[%s3 + $0x18c] sm:$0xf] %v1919
  %2432 = vst [vmem:[%s3 + $0x190] sm:$0xf] %v1920
  %2433 = vst [vmem:[%s3 + $0x194] sm:$0xf] %v1921
  %2434 = vst [vmem:[%s3 + $0x198] sm:$0xf] %v1922
  %2435 = vst [vmem:[%s3 + $0x19c] sm:$0xf] %v1923
  %2436 = vst [vmem:[%s3 + $0x1a0] sm:$0xf] %v1924
  %2437 = vst [vmem:[%s3 + $0x1a4] sm:$0xf] %v1925
  %2438 = vst [vmem:[%s3 + $0x1a8] sm:$0xf] %v1926
  %2439 = vst [vmem:[%s3 + $0x1ac] sm:$0xf] %v1927
  %2440 = vst [vmem:[%s3 + $0x1b0] sm:$0xf] %v1928
  %2441 = vst [vmem:[%s3 + $0x1b4] sm:$0xf] %v1929
  %2442 = vst [vmem:[%s3 + $0x1b8] sm:$0xf] %v1930
  %2443 = vst [vmem:[%s3 + $0x1bc] sm:$0xf] %v1931
  %2444 = vst [vmem:[%s3 + $0x1c0] sm:$0xf] %v1932
  %2445 = vst [vmem:[%s3 + $0x1c4] sm:$0xf] %v1933
  %2446 = vst [vmem:[%s3 + $0x1c8] sm:$0xf] %v1934
  %2447 = vst [vmem:[%s3 + $0x1cc] sm:$0xf] %v1935
  %2448 = vst [vmem:[%s3 + $0x1d0] sm:$0xf] %v1936
  %2449 = vst [vmem:[%s3 + $0x1d4] sm:$0xf] %v1937
  %2450 = vst [vmem:[%s3 + $0x1d8] sm:$0xf] %v1938
  %2451 = vst [vmem:[%s3 + $0x1dc] sm:$0xf] %v1939
  %2452 = vst [vmem:[%s3 + $0x1e0] sm:$0xf] %v1940
  %2453 = vst [vmem:[%s3 + $0x1e4] sm:$0xf] %v1941
  %2454 = vst [vmem:[%s3 + $0x1e8] sm:$0xf] %v1942
  %2455 = vst [vmem:[%s3 + $0x1ec] sm:$0xf] %v1943
  %2456 = vst [vmem:[%s3 + $0x1f0] sm:$0xf] %v1944
  %2457 = vst [vmem:[%s3 + $0x1f4] sm:$0xf] %v1945
  %2458 = vst [vmem:[%s3 + $0x1f8] sm:$0xf] %v1946
  %2459 = vst [vmem:[%s3 + $0x1fc] sm:$0xf] %v1947
  %2460 = vst [vmem:[%s3 + $0x200] sm:$0xf] %v1948
  %2461 = vst [vmem:[%s3 + $0x204] sm:$0xf] %v1949
  %2462 = vst [vmem:[%s3 + $0x208] sm:$0xf] %v1950
  %2463 = vst [vmem:[%s3 + $0x20c] sm:$0xf] %v1951
  %2464 = vst [vmem:[%s3 + $0x210] sm:$0xf] %v1952
  %2465 = vst [vmem:[%s3 + $0x214] sm:$0xf] %v1953
  %2466 = vst [vmem:[%s3 + $0x218] sm:$0xf] %v1954
  %2467 = vst [vmem:[%s3 + $0x21c] sm:$0xf] %v1955
  %2468 = vst [vmem:[%s3 + $0x220] sm:$0xf] %v1956
  %2469 = vst [vmem:[%s3 + $0x224] sm:$0xf] %v1957
  %2470 = vst [vmem:[%s3 + $0x228] sm:$0xf] %v1958
  %2471 = vst [vmem:[%s3 + $0x22c] sm:$0xf] %v1959
  %2472 = vst [vmem:[%s3 + $0x230] sm:$0xf] %v1960
  %2473 = vst [vmem:[%s3 + $0x234] sm:$0xf] %v1961
  %2474 = vst [vmem:[%s3 + $0x238] sm:$0xf] %v1962
  %2475 = vst [vmem:[%s3 + $0x23c] sm:$0xf] %v1963
  %2476 = vst [vmem:[%s3 + $0x240] sm:$0xf] %v1964
  %2477 = vst [vmem:[%s3 + $0x244] sm:$0xf] %v1965
  %2478 = vst [vmem:[%s3 + $0x248] sm:$0xf] %v1966
  %2479 = vst [vmem:[%s3 + $0x24c] sm:$0xf] %v1967
  %2480 = vst [vmem:[%s3 + $0x250] sm:$0xf] %v1968
  %2481 = vst [vmem:[%s3 + $0x254] sm:$0xf] %v1969
  %2482 = vst [vmem:[%s3 + $0x258] sm:$0xf] %v1970
  %2483 = vst [vmem:[%s3 + $0x25c] sm:$0xf] %v1971
  %2484 = vst [vmem:[%s3 + $0x260] sm:$0xf] %v1972
  %2485 = vst [vmem:[%s3 + $0x264] sm:$0xf] %v1973
  %2486 = vst [vmem:[%s3 + $0x268] sm:$0xf] %v1974
  %2487 = vst [vmem:[%s3 + $0x26c] sm:$0xf] %v1975
  %2488 = vst [vmem:[%s3 + $0x270] sm:$0xf] %v1976
  %2489 = vst [vmem:[%s3 + $0x274] sm:$0xf] %v1977
  %2490 = vst [vmem:[%s3 + $0x278] sm:$0xf] %v1978
  %2491 = vst [vmem:[%s3 + $0x27c] sm:$0xf] %v1979
  %2492 = vst [vmem:[%s3 + $0x280] sm:$0xf] %v1980
  %2493 = vst [vmem:[%s3 + $0x284] sm:$0xf] %v1981
  %2494 = vst [vmem:[%s3 + $0x288] sm:$0xf] %v1982
  %2495 = vst [vmem:[%s3 + $0x28c] sm:$0xf] %v1983
  %2496 = vst [vmem:[%s3 + $0x290] sm:$0xf] %v1984
  %2497 = vst [vmem:[%s3 + $0x294] sm:$0xf] %v1985
  %2498 = vst [vmem:[%s3 + $0x298] sm:$0xf] %v1986
  %2499 = vst [vmem:[%s3 + $0x29c] sm:$0xf] %v1987
  %2500 = vst [vmem:[%s3 + $0x2a0] sm:$0xf] %v1988
  %2501 = vst [vmem:[%s3 + $0x2a4] sm:$0xf] %v1989
  %2502 = vst [vmem:[%s3 + $0x2a8] sm:$0xf] %v1990
  %2503 = vst [vmem:[%s3 + $0x2ac] sm:$0xf] %v1991
  %2504 = vst [vmem:[%s3 + $0x2b0] sm:$0xf] %v1992
  %2505 = vst [vmem:[%s3 + $0x2b4] sm:$0xf] %v1993
  %2506 = vst [vmem:[%s3 + $0x2b8] sm:$0xf] %v1994
  %2507 = vst [vmem:[%s3 + $0x2bc] sm:$0xf] %v1995
  %2508 = vst [vmem:[%s3 + $0x2c0] sm:$0xf] %v1996
  %2509 = vst [vmem:[%s3 + $0x2c4] sm:$0xf] %v1997
  %2510 = vst [vmem:[%s3 + $0x2c8] sm:$0xf] %v1998
  %2511 = vst [vmem:[%s3 + $0x2cc] sm:$0xf] %v1999
  %2512 = vst [vmem:[%s3 + $0x2d0] sm:$0xf] %v2000
  %2513 = vst [vmem:[%s3 + $0x2d4] sm:$0xf] %v2001
  %2514 = vst [vmem:[%s3 + $0x2d8] sm:$0xf] %v2002
  %2515 = vst [vmem:[%s3 + $0x2dc] sm:$0xf] %v2003
  %2516 = vst [vmem:[%s3 + $0x2e0] sm:$0xf] %v2004
  %2517 = vst [vmem:[%s3 + $0x2e4] sm:$0xf] %v2005
  %2518 = vst [vmem:[%s3 + $0x2e8] sm:$0xf] %v2006
  %2519 = vst [vmem:[%s3 + $0x2ec] sm:$0xf] %v2007
  %2520 = vst [vmem:[%s3 + $0x2f0] sm:$0xf] %v2008
  %2521 = vst [vmem:[%s3 + $0x2f4] sm:$0xf] %v2009
  %2522 = vst [vmem:[%s3 + $0x2f8] sm:$0xf] %v2010
  %2523 = vst [vmem:[%s3 + $0x2fc] sm:$0xf] %v2011
  %2524 = vst [vmem:[%s3 + $0x300] sm:$0xf] %v2012
  %2525 = vst [vmem:[%s3 + $0x304] sm:$0xf] %v2013
  %2526 = vst [vmem:[%s3 + $0x308] sm:$0xf] %v2014
  %2527 = vst [vmem:[%s3 + $0x30c] sm:$0xf] %v2015
  %2528 = vst [vmem:[%s3 + $0x310] sm:$0xf] %v2016
  %2529 = vst [vmem:[%s3 + $0x314] sm:$0xf] %v2017
  %2530 = vst [vmem:[%s3 + $0x318] sm:$0xf] %v2018
  %2531 = vst [vmem:[%s3 + $0x31c] sm:$0xf] %v2019
  %2532 = vst [vmem:[%s3 + $0x320] sm:$0xf] %v2020
  %2533 = vst [vmem:[%s3 + $0x324] sm:$0xf] %v2021
  %2534 = vst [vmem:[%s3 + $0x328] sm:$0xf] %v2022
  %2535 = vst [vmem:[%s3 + $0x32c] sm:$0xf] %v2023
  %2536 = vst [vmem:[%s3 + $0x330] sm:$0xf] %v2024
  %2537 = vst [vmem:[%s3 + $0x334] sm:$0xf] %v2025
  %2538 = vst [vmem:[%s3 + $0x338] sm:$0xf] %v2026
  %2539 = vst [vmem:[%s3 + $0x33c] sm:$0xf] %v2027
  %2540 = vst [vmem:[%s3 + $0x340] sm:$0xf] %v2028
  %2541 = vst [vmem:[%s3 + $0x344] sm:$0xf] %v2029
  %2542 = vst [vmem:[%s3 + $0x348] sm:$0xf] %v2030
  %2543 = vst [vmem:[%s3 + $0x34c] sm:$0xf] %v2031
  %2544 = vst [vmem:[%s3 + $0x350] sm:$0xf] %v2032
  %2545 = vst [vmem:[%s3 + $0x354] sm:$0xf] %v2033
  %2546 = vst [vmem:[%s3 + $0x358] sm:$0xf] %v2034
  %2547 = vst [vmem:[%s3 + $0x35c] sm:$0xf] %v2035
  %2548 = vst [vmem:[%s3 + $0x360] sm:$0xf] %v2036
  %2549 = vst [vmem:[%s3 + $0x364] sm:$0xf] %v2037
  %2550 = vst [vmem:[%s3 + $0x368] sm:$0xf] %v2038
  %2551 = vst [vmem:[%s3 + $0x36c] sm:$0xf] %v2039
  %2552 = vst [vmem:[%s3 + $0x370] sm:$0xf] %v2040
  %2553 = vst [vmem:[%s3 + $0x374] sm:$0xf] %v2041
  %2554 = vst [vmem:[%s3 + $0x378] sm:$0xf] %v2042
  %2555 = vst [vmem:[%s3 + $0x37c] sm:$0xf] %v2043
  %2556 = vst [vmem:[%s3 + $0x380] sm:$0xf] %v2044
  %2557 = vst [vmem:[%s3 + $0x384] sm:$0xf] %v2045
  %2558 = vst [vmem:[%s3 + $0x388] sm:$0xf] %v2046
  %2559 = vst [vmem:[%s3 + $0x38c] sm:$0xf] %v2047
  %2560 = vst [vmem:[%s3 + $0x390] sm:$0xf] %v2048
  %2561 = vst [vmem:[%s3 + $0x394] sm:$0xf] %v2049
  %2562 = vst [vmem:[%s3 + $0x398] sm:$0xf] %v2050
  %2563 = vst [vmem:[%s3 + $0x39c] sm:$0xf] %v2051
  %2564 = vst [vmem:[%s3 + $0x3a0] sm:$0xf] %v2052
  %2565 = vst [vmem:[%s3 + $0x3a4] sm:$0xf] %v2053
  %2566 = vst [vmem:[%s3 + $0x3a8] sm:$0xf] %v2054
  %2567 = vst [vmem:[%s3 + $0x3ac] sm:$0xf] %v2055
  %2568 = vst [vmem:[%s3 + $0x3b0] sm:$0xf] %v2056
  %2569 = vst [vmem:[%s3 + $0x3b4] sm:$0xf] %v2057
  %2570 = vst [vmem:[%s3 + $0x3b8] sm:$0xf] %v2058
  %2571 = vst [vmem:[%s3 + $0x3bc] sm:$0xf] %v2059
  %2572 = vst [vmem:[%s3 + $0x3c0] sm:$0xf] %v2060
  %2573 = vst [vmem:[%s3 + $0x3c4] sm:$0xf] %v2061
  %2574 = vst [vmem:[%s3 + $0x3c8] sm:$0xf] %v2062
  %2575 = vst [vmem:[%s3 + $0x3cc] sm:$0xf] %v2063
  %2576 = vst [vmem:[%s3 + $0x3d0] sm:$0xf] %v2064
  %2577 = vst [vmem:[%s3 + $0x3d4] sm:$0xf] %v2065
  %2578 = vst [vmem:[%s3 + $0x3d8] sm:$0xf] %v2066
  %2579 = vst [vmem:[%s3 + $0x3dc] sm:$0xf] %v2067
  %2580 = vst [vmem:[%s3 + $0x3e0] sm:$0xf] %v2068
  %2581 = vst [vmem:[%s3 + $0x3e4] sm:$0xf] %v2069
  %2582 = vst [vmem:[%s3 + $0x3e8] sm:$0xf] %v2070
  %2583 = vst [vmem:[%s3 + $0x3ec] sm:$0xf] %v2071
  %2584 = vst [vmem:[%s3 + $0x3f0] sm:$0xf] %v2072
  %2585 = vst [vmem:[%s3 + $0x3f4] sm:$0xf] %v2073
  %2586 = vst [vmem:[%s3 + $0x3f8] sm:$0xf] %v2074
  %2587 = vst [vmem:[%s3 + $0x3fc] sm:$0xf] %v2075
  // Predicated region
  $region14: #{generator_forward.16} parent=0 // pred_check
    _
  $region15: #{generator_forward.16} parent=0 // pred_check_branch
    %2589 = sbr.rel (0) target = $region17
  $region16: #{generator_forward.16} parent=0 // pred_region
    _
  $region17: #{generator_forward.16} parent=0 // pred_fallthru
    _
  // Predicated region
  $region18: #{generator_forward.16} parent=0 // pred_check
    _
  $region19: #{generator_forward.16} parent=0 // pred_check_branch
    %2591 = sbr.rel (0) target = $region21
  $region20: #{generator_forward.16} parent=0 // pred_region
    _
  $region21: #{generator_forward.16} parent=0 // pred_fallthru
    _

// kernel: generator_forward.17
$region0: #{generator_forward.17}
  #allocation0 [shape = 'u32[]', space=smem, size = 0x4, offset = 0x4, fixed_abs, tag = 'smem constant byte address 0x4 - core index']
  #allocation1 [shape = 'u32[144,128]{1,0:T(1,128)}', space=vmem, size = 0x12000, scoped, tag = 'internal scratch']
  %s0 = inlined_call_operand.vmem [shape: bf16[4,2048,128], index: 0, kind: input, shape index: {}]
  %s1 = inlined_call_operand.vmem [shape: bf16[4,128,128], index: 1, kind: input, shape index: {}]
  %s2 = inlined_call_operand.vmem [shape: f32[4,2048,128], index: 2, kind: output, shape index: {}]
  %s3 = sld [smem:[#allocation0]]
  $region41: #{generator_forward.17} parent=0
    _
  %s5 = ssub.s32 1, %s3
  %s6 = scalar_select 0, %s5, %s3
  loop: start=0, step=1, limit=18
  $region2: #{generator_forward.17} parent=0 // loop_pre_header
    _
  $region3: #{generator_forward.17} parent=0 // loop_header
    %s8 = sphi 0, %s12
    %p9 = scmp.ge.s32.totalorder %s8, 18
    %s15 = sphi 0, %s27
    %s16 = sphi 0, %s23
    %s17 = sphi 0, %s15
    %s18 = sphi 0, %s16
    %s19 = sphi 0, %s17
    %s20 = sphi 0, %s18
    %s32 = sphi 0, %s34
    %s35 = sphi 0, %s32
    %s36 = sphi 0, %s35
    %s52 = sphi 0, %s36
    %s58 = sphi 0, %s60
    %s61 = sphi 0, %s58
    %s62 = sphi 0, %s61
    %s78 = sphi 0, %s62
    %s86 = sphi 0, %s88
    %s89 = sphi 0, %s86
    %s90 = sphi 0, %s89
    %s106 = sphi 0, %s90
  $region4: #{generator_forward.17} parent=0 // loop_header_branch
    %11 = sbr.rel (%p9) target = $region8
  $region5: #{generator_forward.17} parent=0 // loop_body
    %s13 = ssub.s32 %s8, 1
    %s14 = ssub.s32 %s8, 2
    %s21 = sadd.s32 1, %s16
    %p22 = scmp.ge.s32.totalorder %s21, 4
    %s23 = scalar_select %p22, 0, %s21
    %s24 = sadd.s32 1, %s15
    %s25 = scalar_select %p22, %s24, %s15
    %p26 = scmp.ge.s32.totalorder %s25, 4
    %s27 = scalar_select %p26, 0, %s25
    %s28 = ssub.s32 %s15, %s27
    %s29 = ssub.s32 %s16, %s23
    %s30 = sor.u32 %s28, %s29
    %p31 = scmp.eq.s32.totalorder %s30, 0
    %s33 = sadd.s32 %s32, 1
    %s34 = scalar_select %p31, %s32, %s33
    %p37 = pneg %p31
    %p38 = scmp.eq.s32.totalorder %s8, 15
    %p39 = por %p37, %p38
    %p40 = scmp.ne.s32.totalorder %s32, %s35
    %p41 = scmp.eq.s32.totalorder %s8, 0
    %p42 = por %p40, %p41
    %p43 = scmp.ne.s32.totalorder %s32, %s35
    %p44 = scmp.eq.s32.totalorder %s13, 15
    %p45 = por %p43, %p44
    %p46 = scmp.ne.s32.totalorder %s35, %s36
    %p47 = scmp.eq.s32.totalorder %s13, 0
    %p48 = por %p46, %p47
    %p49 = scmp.ne.s32.totalorder %s35, %s36
    %p50 = scmp.eq.s32.totalorder %s14, 15
    %p51 = por %p49, %p50
    %p53 = scmp.ne.s32.totalorder %s36, %s52
    %p54 = scmp.eq.s32.totalorder %s14, 0
    %p55 = por %p53, %p54
    %s56 = ssub.s32 %s15, %s27
    %p57 = scmp.eq.s32.totalorder %s56, 0
    %s59 = sadd.s32 %s58, 1
    %s60 = scalar_select %p57, %s58, %s59
    %p63 = pneg %p57
    %p64 = scmp.eq.s32.totalorder %s8, 15
    %p65 = por %p63, %p64
    %p66 = scmp.ne.s32.totalorder %s58, %s61
    %p67 = scmp.eq.s32.totalorder %s8, 0
    %p68 = por %p66, %p67
    %p69 = scmp.ne.s32.totalorder %s58, %s61
    %p70 = scmp.eq.s32.totalorder %s13, 15
    %p71 = por %p69, %p70
    %p72 = scmp.ne.s32.totalorder %s61, %s62
    %p73 = scmp.eq.s32.totalorder %s13, 0
    %p74 = por %p72, %p73
    %p75 = scmp.ne.s32.totalorder %s61, %s62
    %p76 = scmp.eq.s32.totalorder %s14, 15
    %p77 = por %p75, %p76
    %p79 = scmp.ne.s32.totalorder %s62, %s78
    %p80 = scmp.eq.s32.totalorder %s14, 0
    %p81 = por %p79, %p80
    %s82 = ssub.s32 %s15, %s27
    %s83 = ssub.s32 %s16, %s23
    %s84 = sor.u32 %s82, %s83
    %p85 = scmp.eq.s32.totalorder %s84, 0
    %s87 = sadd.s32 %s86, 1
    %s88 = scalar_select %p85, %s86, %s87
    %p91 = pneg %p85
    %p92 = scmp.eq.s32.totalorder %s8, 15
    %p93 = por %p91, %p92
    %p94 = scmp.ne.s32.totalorder %s86, %s89
    %p95 = scmp.eq.s32.totalorder %s8, 0
    %p96 = por %p94, %p95
    %p97 = scmp.ne.s32.totalorder %s86, %s89
    %p98 = scmp.eq.s32.totalorder %s13, 15
    %p99 = por %p97, %p98
    %p100 = scmp.ne.s32.totalorder %s89, %s90
    %p101 = scmp.eq.s32.totalorder %s13, 0
    %p102 = por %p100, %p101
    %p103 = scmp.ne.s32.totalorder %s89, %s90
    %p104 = scmp.eq.s32.totalorder %s14, 15
    %p105 = por %p103, %p104
    %p107 = scmp.ne.s32.totalorder %s90, %s106
    %p108 = scmp.eq.s32.totalorder %s14, 0
    %p109 = por %p107, %p108
    %p110 = scmp.le.s32.totalorder 1, %s8
    %p111 = scmp.lt.s32.totalorder %s8, 17
    %p112 = pnand %p110, %p111
    %p113 = pneg %p112
    // Predicated region
    $region9: #{generator_forward.17} parent=5 // pred_check
      _
    $region10: #{generator_forward.17} parent=5 // pred_check_branch
      %115 = sbr.rel (%p112) target = $region12
    $region11: #{generator_forward.17} parent=5 // pred_region
      %s116 = ssub.s32 %s8, 1
    $region12: #{generator_forward.17} parent=5 // pred_fallthru
      _
    %p117 = scmp.lt.s32.totalorder %s8, 16
    // Predicated region
    $region13: #{generator_forward.17} parent=5 // pred_check
      %p118 = pneg %p117
    $region14: #{generator_forward.17} parent=5 // pred_check_branch
      %120 = sbr.rel (%p118) target = $region16
    $region15: #{generator_forward.17} parent=5 // pred_region
      // Predicated region
      $region17: #{generator_forward.17} parent=15 // pred_check
        %p121 = pneg %p42
      $region18: #{generator_forward.17} parent=15 // pred_check_branch
        %123 = sbr.rel (%p121) target = $region20
      $region19: #{generator_forward.17} parent=15 // pred_region
        %s124 = smul.u32 64, %s16
        %p125 = scmp.lt.s32.totalorder %s15, 3
        %s126 = scalar_select %p125, %s15, 3
        %p127 = scmp.lt.s32.totalorder %s124, 255
        %s128 = scalar_select %p127, %s124, 255
        %s129 = smul.addr %s126, 256
        %s130 = sadd.s32 %s128, %s129
        %s131 = smul.addr %s130, 4
        %s132 = scalar_lea.vmem %s0, %s131
        %s133 = smul.u32 64, %s16
      $region20: #{generator_forward.17} parent=15 // pred_fallthru
        _
      // Predicated region
      $region21: #{generator_forward.17} parent=15 // pred_check
        %p134 = pneg %p68
      $region22: #{generator_forward.17} parent=15 // pred_check_branch
        %136 = sbr.rel (%p134) target = $region24
      $region23: #{generator_forward.17} parent=15 // pred_region
        %p137 = scmp.lt.s32.totalorder %s15, 3
        %s138 = scalar_select %p137, %s15, 3
        %s139 = smul.addr %s138, 16
        %s140 = smul.addr %s139, 4
        %s141 = scalar_lea.vmem %s1, %s140
      $region24: #{generator_forward.17} parent=15 // pred_fallthru
        _
    $region16: #{generator_forward.17} parent=5 // pred_fallthru
      _
    %p142 = scmp.le.s32.totalorder 1, %s8
    %p143 = scmp.lt.s32.totalorder %s8, 17
    %p144 = pnand %p142, %p143
    %p145 = pneg %p144
    // Predicated region
    $region25: #{generator_forward.17} parent=5 // pred_check
      _
    $region26: #{generator_forward.17} parent=5 // pred_check_branch
      %147 = sbr.rel (%p144) target = $region28
    $region27: #{generator_forward.17} parent=5 // pred_region
      %s148 = ssub.s32 %s8, 1
      %s149 = smul.u32 64, %s18
      %p150 = scmp.lt.s32.totalorder %s17, 3
      %s151 = scalar_select %p150, %s17, 3
      %p152 = scmp.lt.s32.totalorder %s149, 255
      %s153 = scalar_select %p152, %s149, 255
      %s154 = smul.addr %s151, 256
      %s155 = sadd.s32 %s153, %s154
      %s156 = smul.addr %s155, 4
      %s157 = scalar_lea.vmem %s0, %s156
      %p158 = pneg %p48
      %p159 = pneg %p45
      %p160 = scmp.lt.s32.totalorder %s17, 3
      %s161 = scalar_select %p160, %s17, 3
      %s162 = smul.addr %s161, 16
      %s163 = smul.addr %s162, 4
      %s164 = scalar_lea.vmem %s1, %s163
      %p165 = pneg %p74
      %p166 = pneg %p71
      %p167 = pneg %p102
      %p168 = pneg %p99
      %s169 = smul.u32 64, %s18
      %p170 = scmp.lt.s32.totalorder %s17, 3
      %s171 = scalar_select %p170, %s17, 3
      %p172 = scmp.lt.s32.totalorder %s169, 255
      %s173 = scalar_select %p172, %s169, 255
      %s174 = smul.addr %s171, 256
      %s175 = sadd.s32 %s173, %s174
      %s176 = smul.addr %s175, 8
      %s177 = scalar_lea.vmem %s2, %s176
      %s178 = smul.u32 64, %s18
      %p179 = scmp.lt.s32.totalorder %s17, 3
      %s180 = scalar_select %p179, %s17, 3
      %p181 = scmp.lt.s32.totalorder %s178, 255
      %s182 = scalar_select %p181, %s178, 255
      %s183 = smul.addr %s180, 256
      %s184 = sadd.s32 %s182, %s183
      %s185 = smul.addr %s184, 4
      %s186 = scalar_lea.vmem %s0, %s185
      %s187 = smul.u32 64, %s18
      %p188 = scmp.lt.s32.totalorder %s17, 3
      %s189 = scalar_select %p188, %s17, 3
      %s190 = smul.addr %s189, 16
      %s191 = smul.addr %s190, 4
      %s192 = scalar_lea.vmem %s1, %s191
      %s193 = smul.u32 64, %s18
      %p194 = scmp.lt.s32.totalorder %s17, 3
      %s195 = scalar_select %p194, %s17, 3
      %p196 = scmp.lt.s32.totalorder %s193, 255
      %s197 = scalar_select %p196, %s193, 255
      %s198 = smul.addr %s195, 256
      %s199 = sadd.s32 %s197, %s198
      %s200 = smul.addr %s199, 8
      %s201 = scalar_lea.vmem %s2, %s200
      %s202 = smul.u32 64, %s18
      %v204 = vld [vmem:[%s186] sm:$0xf]
      %v205 = vld [vmem:[%s186 + $0x4] sm:$0xf]
      %v206 = vld [vmem:[%s186 + $0x8] sm:$0xf]
      %v207 = vld [vmem:[%s186 + $0xc] sm:$0xf]
      %v208 = vld [vmem:[%s186 + $0x10] sm:$0xf]
      %v209 = vld [vmem:[%s186 + $0x14] sm:$0xf]
      %v210 = vld [vmem:[%s186 + $0x18] sm:$0xf]
      %v211 = vld [vmem:[%s186 + $0x1c] sm:$0xf]
      %v212 = vld [vmem:[%s186 + $0x20] sm:$0xf]
      %v213 = vld [vmem:[%s186 + $0x24] sm:$0xf]
      %v214 = vld [vmem:[%s186 + $0x28] sm:$0xf]
      %v215 = vld [vmem:[%s186 + $0x2c] sm:$0xf]
      %v216 = vld [vmem:[%s186 + $0x30] sm:$0xf]
      %v217 = vld [vmem:[%s186 + $0x34] sm:$0xf]
      %v218 = vld [vmem:[%s186 + $0x38] sm:$0xf]
      %v219 = vld [vmem:[%s186 + $0x3c] sm:$0xf]
      %v220 = vld [vmem:[%s186 + $0x40] sm:$0xf]
      %v221 = vld [vmem:[%s186 + $0x44] sm:$0xf]
      %v222 = vld [vmem:[%s186 + $0x48] sm:$0xf]
      %v223 = vld [vmem:[%s186 + $0x4c] sm:$0xf]
      %v224 = vld [vmem:[%s186 + $0x50] sm:$0xf]
      %v225 = vld [vmem:[%s186 + $0x54] sm:$0xf]
      %v226 = vld [vmem:[%s186 + $0x58] sm:$0xf]
      %v227 = vld [vmem:[%s186 + $0x5c] sm:$0xf]
      %v228 = vld [vmem:[%s186 + $0x60] sm:$0xf]
      %v229 = vld [vmem:[%s186 + $0x64] sm:$0xf]
      %v230 = vld [vmem:[%s186 + $0x68] sm:$0xf]
      %v231 = vld [vmem:[%s186 + $0x6c] sm:$0xf]
      %v232 = vld [vmem:[%s186 + $0x70] sm:$0xf]
      %v233 = vld [vmem:[%s186 + $0x74] sm:$0xf]
      %v234 = vld [vmem:[%s186 + $0x78] sm:$0xf]
      %v235 = vld [vmem:[%s186 + $0x7c] sm:$0xf]
      %v236 = vld [vmem:[%s186 + $0x80] sm:$0xf]
      %v237 = vld [vmem:[%s186 + $0x84] sm:$0xf]
      %v238 = vld [vmem:[%s186 + $0x88] sm:$0xf]
      %v239 = vld [vmem:[%s186 + $0x8c] sm:$0xf]
      %v240 = vld [vmem:[%s186 + $0x90] sm:$0xf]
      %v241 = vld [vmem:[%s186 + $0x94] sm:$0xf]
      %v242 = vld [vmem:[%s186 + $0x98] sm:$0xf]
      %v243 = vld [vmem:[%s186 + $0x9c] sm:$0xf]
      %v244 = vld [vmem:[%s186 + $0xa0] sm:$0xf]
      %v245 = vld [vmem:[%s186 + $0xa4] sm:$0xf]
      %v246 = vld [vmem:[%s186 + $0xa8] sm:$0xf]
      %v247 = vld [vmem:[%s186 + $0xac] sm:$0xf]
      %v248 = vld [vmem:[%s186 + $0xb0] sm:$0xf]
      %v249 = vld [vmem:[%s186 + $0xb4] sm:$0xf]
      %v250 = vld [vmem:[%s186 + $0xb8] sm:$0xf]
      %v251 = vld [vmem:[%s186 + $0xbc] sm:$0xf]
      %v252 = vld [vmem:[%s186 + $0xc0] sm:$0xf]
      %v253 = vld [vmem:[%s186 + $0xc4] sm:$0xf]
      %v254 = vld [vmem:[%s186 + $0xc8] sm:$0xf]
      %v255 = vld [vmem:[%s186 + $0xcc] sm:$0xf]
      %v256 = vld [vmem:[%s186 + $0xd0] sm:$0xf]
      %v257 = vld [vmem:[%s186 + $0xd4] sm:$0xf]
      %v258 = vld [vmem:[%s186 + $0xd8] sm:$0xf]
      %v259 = vld [vmem:[%s186 + $0xdc] sm:$0xf]
      %v260 = vld [vmem:[%s186 + $0xe0] sm:$0xf]
      %v261 = vld [vmem:[%s186 + $0xe4] sm:$0xf]
      %v262 = vld [vmem:[%s186 + $0xe8] sm:$0xf]
      %v263 = vld [vmem:[%s186 + $0xec] sm:$0xf]
      %v264 = vld [vmem:[%s186 + $0xf0] sm:$0xf]
      %v265 = vld [vmem:[%s186 + $0xf4] sm:$0xf]
      %v266 = vld [vmem:[%s186 + $0xf8] sm:$0xf]
      %v267 = vld [vmem:[%s186 + $0xfc] sm:$0xf]
      %v268 = vld [vmem:[%s192] sm:$0xf]
      %v269 = vld [vmem:[%s192 + $0x4] sm:$0xf]
      %v270 = vld [vmem:[%s192 + $0x8] sm:$0xf]
      %v271 = vld [vmem:[%s192 + $0xc] sm:$0xf]
      %v272 = vld [vmem:[%s192 + $0x10] sm:$0xf]
      %v273 = vld [vmem:[%s192 + $0x14] sm:$0xf]
      %v274 = vld [vmem:[%s192 + $0x18] sm:$0xf]
      %v275 = vld [vmem:[%s192 + $0x1c] sm:$0xf]
      %v276 = vld [vmem:[%s192 + $0x20] sm:$0xf]
      %v277 = vld [vmem:[%s192 + $0x24] sm:$0xf]
      %v278 = vld [vmem:[%s192 + $0x28] sm:$0xf]
      %v279 = vld [vmem:[%s192 + $0x2c] sm:$0xf]
      %v280 = vld [vmem:[%s192 + $0x30] sm:$0xf]
      %v281 = vld [vmem:[%s192 + $0x34] sm:$0xf]
      %v282 = vld [vmem:[%s192 + $0x38] sm:$0xf]
      %v283 = vld [vmem:[%s192 + $0x3c] sm:$0xf]
      %v348 = vunpack.c.l.b16 %v204
      %v349 = vunpack.c.l.b16 %v205
      %v350 = vunpack.c.l.b16 %v206
      %v351 = vunpack.c.l.b16 %v207
      %v352 = vunpack.c.l.b16 %v208
      %v353 = vunpack.c.l.b16 %v209
      %v354 = vunpack.c.l.b16 %v210
      %v355 = vunpack.c.l.b16 %v211
      %v356 = vunpack.c.l.b16 %v212
      %v357 = vunpack.c.l.b16 %v213
      %v358 = vunpack.c.l.b16 %v214
      %v359 = vunpack.c.l.b16 %v215
      %v360 = vunpack.c.l.b16 %v216
      %v361 = vunpack.c.l.b16 %v217
      %v362 = vunpack.c.l.b16 %v218
      %v363 = vunpack.c.l.b16 %v219
      %v364 = vunpack.c.l.b16 %v220
      %v365 = vunpack.c.l.b16 %v221
      %v366 = vunpack.c.l.b16 %v222
      %v367 = vunpack.c.l.b16 %v223
      %v368 = vunpack.c.l.b16 %v224
      %v369 = vunpack.c.l.b16 %v225
      %v370 = vunpack.c.l.b16 %v226
      %v371 = vunpack.c.l.b16 %v227
      %v372 = vunpack.c.l.b16 %v228
      %v373 = vunpack.c.l.b16 %v229
      %v374 = vunpack.c.l.b16 %v230
      %v375 = vunpack.c.l.b16 %v231
      %v376 = vunpack.c.l.b16 %v232
      %v377 = vunpack.c.l.b16 %v233
      %v378 = vunpack.c.l.b16 %v234
      %v379 = vunpack.c.l.b16 %v235
      %v380 = vunpack.c.l.b16 %v236
      %v381 = vunpack.c.l.b16 %v237
      %v382 = vunpack.c.l.b16 %v238
      %v383 = vunpack.c.l.b16 %v239
      %v384 = vunpack.c.l.b16 %v240
      %v385 = vunpack.c.l.b16 %v241
      %v386 = vunpack.c.l.b16 %v242
      %v387 = vunpack.c.l.b16 %v243
      %v388 = vunpack.c.l.b16 %v244
      %v389 = vunpack.c.l.b16 %v245
      %v390 = vunpack.c.l.b16 %v246
      %v391 = vunpack.c.l.b16 %v247
      %v392 = vunpack.c.l.b16 %v248
      %v393 = vunpack.c.l.b16 %v249
      %v394 = vunpack.c.l.b16 %v250
      %v395 = vunpack.c.l.b16 %v251
      %v396 = vunpack.c.l.b16 %v252
      %v397 = vunpack.c.l.b16 %v253
      %v398 = vunpack.c.l.b16 %v254
      %v399 = vunpack.c.l.b16 %v255
      %v400 = vunpack.c.l.b16 %v256
      %v401 = vunpack.c.l.b16 %v257
      %v402 = vunpack.c.l.b16 %v258
      %v403 = vunpack.c.l.b16 %v259
      %v404 = vunpack.c.l.b16 %v260
      %v405 = vunpack.c.l.b16 %v261
      %v406 = vunpack.c.l.b16 %v262
      %v407 = vunpack.c.l.b16 %v263
      %v408 = vunpack.c.l.b16 %v264
      %v409 = vunpack.c.l.b16 %v265
      %v410 = vunpack.c.l.b16 %v266
      %v411 = vunpack.c.l.b16 %v267
      %v412 = vpack.c.b16 %v349, %v348
      %v413 = vpack.c.b16 %v351, %v350
      %v414 = vpack.c.b16 %v353, %v352
      %v415 = vpack.c.b16 %v355, %v354
      %v416 = vpack.c.b16 %v357, %v356
      %v417 = vpack.c.b16 %v359, %v358
      %v418 = vpack.c.b16 %v361, %v360
      %v419 = vpack.c.b16 %v363, %v362
      %v420 = vpack.c.b16 %v365, %v364
      %v421 = vpack.c.b16 %v367, %v366
      %v422 = vpack.c.b16 %v369, %v368
      %v423 = vpack.c.b16 %v371, %v370
      %v424 = vpack.c.b16 %v373, %v372
      %v425 = vpack.c.b16 %v375, %v374
      %v426 = vpack.c.b16 %v377, %v376
      %v427 = vpack.c.b16 %v379, %v378
      %v428 = vpack.c.b16 %v381, %v380
      %v429 = vpack.c.b16 %v383, %v382
      %v430 = vpack.c.b16 %v385, %v384
      %v431 = vpack.c.b16 %v387, %v386
      %v432 = vpack.c.b16 %v389, %v388
      %v433 = vpack.c.b16 %v391, %v390
      %v434 = vpack.c.b16 %v393, %v392
      %v435 = vpack.c.b16 %v395, %v394
      %v436 = vpack.c.b16 %v397, %v396
      %v437 = vpack.c.b16 %v399, %v398
      %v438 = vpack.c.b16 %v401, %v400
      %v439 = vpack.c.b16 %v403, %v402
      %v440 = vpack.c.b16 %v405, %v404
      %v441 = vpack.c.b16 %v407, %v406
      %v442 = vpack.c.b16 %v409, %v408
      %v443 = vpack.c.b16 %v411, %v410
      %v492 = vunpack.c.l.b16 %v268
      %v493 = vunpack.c.l.b16 %v269
      %v494 = vunpack.c.l.b16 %v270
      %v495 = vunpack.c.l.b16 %v271
      %v496 = vunpack.c.l.b16 %v272
      %v497 = vunpack.c.l.b16 %v273
      %v498 = vunpack.c.l.b16 %v274
      %v499 = vunpack.c.l.b16 %v275
      %v500 = vunpack.c.l.b16 %v276
      %v501 = vunpack.c.l.b16 %v277
      %v502 = vunpack.c.l.b16 %v278
      %v503 = vunpack.c.l.b16 %v279
      %v504 = vunpack.c.l.b16 %v280
      %v505 = vunpack.c.l.b16 %v281
      %v506 = vunpack.c.l.b16 %v282
      %v507 = vunpack.c.l.b16 %v283
      %v508 = vpack.c.b16 %v493, %v492
      %v509 = vpack.c.b16 %v495, %v494
      %v510 = vpack.c.b16 %v497, %v496
      %v511 = vpack.c.b16 %v499, %v498
      %v512 = vpack.c.b16 %v501, %v500
      %v513 = vpack.c.b16 %v503, %v502
      %v514 = vpack.c.b16 %v505, %v504
      %v515 = vpack.c.b16 %v507, %v506
      %524 = vmatprep.subr.bf16.mxu0 0
      %525 = vmatpush1.bf16.msra.mxu0 %v515
      %526 = vmatprep.subr.bf16.mxu0 0
      %527 = vmatpush1.bf16.msra.mxu0 %v514
      %528 = vmatprep.subr.bf16.mxu0 0
      %529 = vmatpush1.bf16.msra.mxu0 %v513
      %530 = vmatprep.subr.bf16.mxu0 0
      %531 = vmatpush1.bf16.msra.mxu0 %v512
      %532 = vmatprep.subr.bf16.mxu0 0
      %533 = vmatpush1.bf16.msra.mxu0 %v511
      %534 = vmatprep.subr.bf16.mxu0 0
      %535 = vmatpush1.bf16.msra.mxu0 %v510
      %536 = vmatprep.subr.bf16.mxu0 0
      %537 = vmatpush1.bf16.msra.mxu0 %v509
      %538 = vmatprep.subr.bf16.mxu0 0
      %539 = vmatpush1.bf16.msra.mxu0 %v508
      %540 = vmatprep.subr.bf16.mxu0 0
      %541 = vmatpush2.bf16.msra.mxu0 0
      %542 = vmatprep.subr.bf16.mxu0 0
      %543 = vmatpush2.bf16.msra.mxu0 0
      %544 = vmatprep.subr.bf16.mxu0 0
      %545 = vmatpush2.bf16.msra.mxu0 0
      %546 = vmatprep.subr.bf16.mxu0 0
      %547 = vmatpush2.bf16.msra.mxu0 0
      %548 = vmatprep.subr.bf16.mxu0 0
      %549 = vmatpush2.bf16.msra.mxu0 0
      %550 = vmatprep.subr.bf16.mxu0 0
      %551 = vmatpush2.bf16.msra.mxu0 0
      %552 = vmatprep.subr.bf16.mxu0 0
      %553 = vmatpush2.bf16.msra.mxu0 0
      %554 = vmatprep.subr.bf16.mxu0 0
      %555 = vmatpush2.bf16.msra.mxu0 0
      %556 = vmatprep.mubr.bf16.mxu0 0
      %557 = vmatmul.mubr.bf16.gmra.mxu0 %v412
      %v558 = vpop.f32.mrf.mxu0
      %v559 = vadd.f32 0.0, %v558
      %v560 = vpop.f32.mrf.mxu0
      %v561 = vpop.f32.mrf.mxu0
      %v562 = vadd.f32 0.0, %v561
      %v563 = vpop.f32.mrf.mxu0
      %564 = vmatprep.mubr.bf16.mxu0 0
      %565 = vmatmul.mubr.bf16.gmra.mxu0 %v413
      %v566 = vpop.f32.mrf.mxu0
      %v567 = vadd.f32 0.0, %v566
      %v568 = vpop.f32.mrf.mxu0
      %v569 = vpop.f32.mrf.mxu0
      %v570 = vadd.f32 0.0, %v569
      %v571 = vpop.f32.mrf.mxu0
      %572 = vmatprep.mubr.bf16.mxu0 0
      %573 = vmatmul.mubr.bf16.gmra.mxu0 %v414
      %v574 = vpop.f32.mrf.mxu0
      %v575 = vadd.f32 0.0, %v574
      %v576 = vpop.f32.mrf.mxu0
      %v577 = vpop.f32.mrf.mxu0
      %v578 = vadd.f32 0.0, %v577
      %v579 = vpop.f32.mrf.mxu0
      %580 = vmatprep.mubr.bf16.mxu0 0
      %581 = vmatmul.mubr.bf16.gmra.mxu0 %v415
      %v582 = vpop.f32.mrf.mxu0
      %v583 = vadd.f32 0.0, %v582
      %v584 = vpop.f32.mrf.mxu0
      %v585 = vpop.f32.mrf.mxu0
      %v586 = vadd.f32 0.0, %v585
      %v587 = vpop.f32.mrf.mxu0
      %588 = vmatprep.mubr.bf16.mxu0 0
      %589 = vmatmul.mubr.bf16.gmra.mxu0 %v416
      %v590 = vpop.f32.mrf.mxu0
      %v591 = vadd.f32 0.0, %v590
      %v592 = vpop.f32.mrf.mxu0
      %v593 = vpop.f32.mrf.mxu0
      %v594 = vadd.f32 0.0, %v593
      %v595 = vpop.f32.mrf.mxu0
      %596 = vmatprep.mubr.bf16.mxu0 0
      %597 = vmatmul.mubr.bf16.gmra.mxu0 %v417
      %v598 = vpop.f32.mrf.mxu0
      %v599 = vadd.f32 0.0, %v598
      %v600 = vpop.f32.mrf.mxu0
      %v601 = vpop.f32.mrf.mxu0
      %v602 = vadd.f32 0.0, %v601
      %v603 = vpop.f32.mrf.mxu0
      %604 = vmatprep.mubr.bf16.mxu0 0
      %605 = vmatmul.mubr.bf16.gmra.mxu0 %v418
      %v606 = vpop.f32.mrf.mxu0
      %v607 = vadd.f32 0.0, %v606
      %v608 = vpop.f32.mrf.mxu0
      %v609 = vpop.f32.mrf.mxu0
      %v610 = vadd.f32 0.0, %v609
      %v611 = vpop.f32.mrf.mxu0
      %612 = vmatprep.mubr.bf16.mxu0 0
      %613 = vmatmul.mubr.bf16.gmra.mxu0 %v419
      %v614 = vpop.f32.mrf.mxu0
      %v615 = vadd.f32 0.0, %v614
      %v616 = vpop.f32.mrf.mxu0
      %v617 = vpop.f32.mrf.mxu0
      %v618 = vadd.f32 0.0, %v617
      %v619 = vpop.f32.mrf.mxu0
      %620 = vmatprep.mubr.bf16.mxu0 0
      %621 = vmatmul.mubr.bf16.gmra.mxu0 %v420
      %v622 = vpop.f32.mrf.mxu0
      %v623 = vadd.f32 0.0, %v622
      %v624 = vpop.f32.mrf.mxu0
      %v625 = vpop.f32.mrf.mxu0
      %v626 = vadd.f32 0.0, %v625
      %v627 = vpop.f32.mrf.mxu0
      %628 = vmatprep.mubr.bf16.mxu0 0
      %629 = vmatmul.mubr.bf16.gmra.mxu0 %v421
      %v630 = vpop.f32.mrf.mxu0
      %v631 = vadd.f32 0.0, %v630
      %v632 = vpop.f32.mrf.mxu0
      %v633 = vpop.f32.mrf.mxu0
      %v634 = vadd.f32 0.0, %v633
      %v635 = vpop.f32.mrf.mxu0
      %636 = vmatprep.mubr.bf16.mxu0 0
      %637 = vmatmul.mubr.bf16.gmra.mxu0 %v422
      %v638 = vpop.f32.mrf.mxu0
      %v639 = vadd.f32 0.0, %v638
      %v640 = vpop.f32.mrf.mxu0
      %v641 = vpop.f32.mrf.mxu0
      %v642 = vadd.f32 0.0, %v641
      %v643 = vpop.f32.mrf.mxu0
      %644 = vmatprep.mubr.bf16.mxu0 0
      %645 = vmatmul.mubr.bf16.gmra.mxu0 %v423
      %v646 = vpop.f32.mrf.mxu0
      %v647 = vadd.f32 0.0, %v646
      %v648 = vpop.f32.mrf.mxu0
      %v649 = vpop.f32.mrf.mxu0
      %v650 = vadd.f32 0.0, %v649
      %v651 = vpop.f32.mrf.mxu0
      %652 = vmatprep.mubr.bf16.mxu0 0
      %653 = vmatmul.mubr.bf16.gmra.mxu0 %v424
      %v654 = vpop.f32.mrf.mxu0
      %v655 = vadd.f32 0.0, %v654
      %v656 = vpop.f32.mrf.mxu0
      %v657 = vpop.f32.mrf.mxu0
      %v658 = vadd.f32 0.0, %v657
      %v659 = vpop.f32.mrf.mxu0
      %660 = vmatprep.mubr.bf16.mxu0 0
      %661 = vmatmul.mubr.bf16.gmra.mxu0 %v425
      %v662 = vpop.f32.mrf.mxu0
      %v663 = vadd.f32 0.0, %v662
      %v664 = vpop.f32.mrf.mxu0
      %v665 = vpop.f32.mrf.mxu0
      %v666 = vadd.f32 0.0, %v665
      %v667 = vpop.f32.mrf.mxu0
      %668 = vmatprep.mubr.bf16.mxu0 0
      %669 = vmatmul.mubr.bf16.gmra.mxu0 %v426
      %v670 = vpop.f32.mrf.mxu0
      %v671 = vadd.f32 0.0, %v670
      %v672 = vpop.f32.mrf.mxu0
      %v673 = vpop.f32.mrf.mxu0
      %v674 = vadd.f32 0.0, %v673
      %v675 = vpop.f32.mrf.mxu0
      %676 = vmatprep.mubr.bf16.mxu0 0
      %677 = vmatmul.mubr.bf16.gmra.mxu0 %v427
      %v678 = vpop.f32.mrf.mxu0
      %v679 = vadd.f32 0.0, %v678
      %v680 = vpop.f32.mrf.mxu0
      %v681 = vpop.f32.mrf.mxu0
      %v682 = vadd.f32 0.0, %v681
      %v683 = vpop.f32.mrf.mxu0
      %684 = vmatprep.mubr.bf16.mxu0 0
      %685 = vmatmul.mubr.bf16.gmra.mxu0 %v428
      %v686 = vpop.f32.mrf.mxu0
      %v687 = vadd.f32 0.0, %v686
      %v688 = vpop.f32.mrf.mxu0
      %v689 = vpop.f32.mrf.mxu0
      %v690 = vadd.f32 0.0, %v689
      %v691 = vpop.f32.mrf.mxu0
      %692 = vmatprep.mubr.bf16.mxu0 0
      %693 = vmatmul.mubr.bf16.gmra.mxu0 %v429
      %v694 = vpop.f32.mrf.mxu0
      %v695 = vadd.f32 0.0, %v694
      %v696 = vpop.f32.mrf.mxu0
      %v697 = vpop.f32.mrf.mxu0
      %v698 = vadd.f32 0.0, %v697
      %v699 = vpop.f32.mrf.mxu0
      %700 = vmatprep.mubr.bf16.mxu0 0
      %701 = vmatmul.mubr.bf16.gmra.mxu0 %v430
      %v702 = vpop.f32.mrf.mxu0
      %v703 = vadd.f32 0.0, %v702
      %v704 = vpop.f32.mrf.mxu0
      %v705 = vpop.f32.mrf.mxu0
      %v706 = vadd.f32 0.0, %v705
      %v707 = vpop.f32.mrf.mxu0
      %708 = vmatprep.mubr.bf16.mxu0 0
      %709 = vmatmul.mubr.bf16.gmra.mxu0 %v431
      %v710 = vpop.f32.mrf.mxu0
      %v711 = vadd.f32 0.0, %v710
      %v712 = vpop.f32.mrf.mxu0
      %v713 = vpop.f32.mrf.mxu0
      %v714 = vadd.f32 0.0, %v713
      %v715 = vpop.f32.mrf.mxu0
      %716 = vmatprep.mubr.bf16.mxu0 0
      %717 = vmatmul.mubr.bf16.gmra.mxu0 %v432
      %v718 = vpop.f32.mrf.mxu0
      %v719 = vadd.f32 0.0, %v718
      %v720 = vpop.f32.mrf.mxu0
      %v721 = vpop.f32.mrf.mxu0
      %v722 = vadd.f32 0.0, %v721
      %v723 = vpop.f32.mrf.mxu0
      %724 = vmatprep.mubr.bf16.mxu0 0
      %725 = vmatmul.mubr.bf16.gmra.mxu0 %v433
      %v726 = vpop.f32.mrf.mxu0
      %v727 = vadd.f32 0.0, %v726
      %v728 = vpop.f32.mrf.mxu0
      %v729 = vpop.f32.mrf.mxu0
      %v730 = vadd.f32 0.0, %v729
      %v731 = vpop.f32.mrf.mxu0
      %732 = vmatprep.mubr.bf16.mxu0 0
      %733 = vmatmul.mubr.bf16.gmra.mxu0 %v434
      %v734 = vpop.f32.mrf.mxu0
      %v735 = vadd.f32 0.0, %v734
      %v736 = vpop.f32.mrf.mxu0
      %v737 = vpop.f32.mrf.mxu0
      %v738 = vadd.f32 0.0, %v737
      %v739 = vpop.f32.mrf.mxu0
      %740 = vmatprep.mubr.bf16.mxu0 0
      %741 = vmatmul.mubr.bf16.gmra.mxu0 %v435
      %v742 = vpop.f32.mrf.mxu0
      %v743 = vadd.f32 0.0, %v742
      %v744 = vpop.f32.mrf.mxu0
      %v745 = vpop.f32.mrf.mxu0
      %v746 = vadd.f32 0.0, %v745
      %v747 = vpop.f32.mrf.mxu0
      %748 = vmatprep.mubr.bf16.mxu0 0
      %749 = vmatmul.mubr.bf16.gmra.mxu0 %v436
      %v750 = vpop.f32.mrf.mxu0
      %v751 = vadd.f32 0.0, %v750
      %v752 = vpop.f32.mrf.mxu0
      %v753 = vpop.f32.mrf.mxu0
      %v754 = vadd.f32 0.0, %v753
      %v755 = vpop.f32.mrf.mxu0
      %756 = vmatprep.mubr.bf16.mxu0 0
      %757 = vmatmul.mubr.bf16.gmra.mxu0 %v437
      %v758 = vpop.f32.mrf.mxu0
      %v759 = vadd.f32 0.0, %v758
      %v760 = vpop.f32.mrf.mxu0
      %v761 = vpop.f32.mrf.mxu0
      %v762 = vadd.f32 0.0, %v761
      %v763 = vpop.f32.mrf.mxu0
      %764 = vmatprep.mubr.bf16.mxu0 0
      %765 = vmatmul.mubr.bf16.gmra.mxu0 %v438
      %v766 = vpop.f32.mrf.mxu0
      %v767 = vadd.f32 0.0, %v766
      %v768 = vpop.f32.mrf.mxu0
      %v769 = vpop.f32.mrf.mxu0
      %v770 = vadd.f32 0.0, %v769
      %v771 = vpop.f32.mrf.mxu0
      %772 = vmatprep.mubr.bf16.mxu0 0
      %773 = vmatmul.mubr.bf16.gmra.mxu0 %v439
      %v774 = vpop.f32.mrf.mxu0
      %v775 = vadd.f32 0.0, %v774
      %v776 = vpop.f32.mrf.mxu0
      %v777 = vpop.f32.mrf.mxu0
      %v778 = vadd.f32 0.0, %v777
      %v779 = vpop.f32.mrf.mxu0
      %780 = vmatprep.mubr.bf16.mxu0 0
      %781 = vmatmul.mubr.bf16.gmra.mxu0 %v440
      %v782 = vpop.f32.mrf.mxu0
      %v783 = vadd.f32 0.0, %v782
      %v784 = vpop.f32.mrf.mxu0
      %v785 = vpop.f32.mrf.mxu0
      %v786 = vadd.f32 0.0, %v785
      %v787 = vpop.f32.mrf.mxu0
      %788 = vmatprep.mubr.bf16.mxu0 0
      %789 = vmatmul.mubr.bf16.gmra.mxu0 %v441
      %v790 = vpop.f32.mrf.mxu0
      %v791 = vadd.f32 0.0, %v790
      %v792 = vpop.f32.mrf.mxu0
      %v793 = vpop.f32.mrf.mxu0
      %v794 = vadd.f32 0.0, %v793
      %v795 = vpop.f32.mrf.mxu0
      %796 = vmatprep.mubr.bf16.mxu0 0
      %797 = vmatmul.mubr.bf16.gmra.mxu0 %v442
      %v798 = vpop.f32.mrf.mxu0
      %v799 = vadd.f32 0.0, %v798
      %v800 = vpop.f32.mrf.mxu0
      %v801 = vpop.f32.mrf.mxu0
      %v802 = vadd.f32 0.0, %v801
      %v803 = vpop.f32.mrf.mxu0
      %804 = vmatprep.mubr.bf16.mxu0 0
      %805 = vmatmul.mubr.bf16.gmra.mxu0 %v443
      %v806 = vpop.f32.mrf.mxu0
      %v807 = vadd.f32 0.0, %v806
      %v808 = vpop.f32.mrf.mxu0
      %v809 = vpop.f32.mrf.mxu0
      %v810 = vadd.f32 0.0, %v809
      %v811 = vpop.f32.mrf.mxu0
      %812 = vdwg.mxu0
      %v813 = vtanh.pop %v559
      %v814 = vtanh.pop %v562
      %v815 = vtanh.pop %v567
      %v816 = vtanh.pop %v570
      %v817 = vtanh.pop %v575
      %v818 = vtanh.pop %v578
      %v819 = vtanh.pop %v583
      %v820 = vtanh.pop %v586
      %v821 = vtanh.pop %v591
      %v822 = vtanh.pop %v594
      %v823 = vtanh.pop %v599
      %v824 = vtanh.pop %v602
      %v825 = vtanh.pop %v607
      %v826 = vtanh.pop %v610
      %v827 = vtanh.pop %v615
      %v828 = vtanh.pop %v618
      %v829 = vtanh.pop %v623
      %v830 = vtanh.pop %v626
      %v831 = vtanh.pop %v631
      %v832 = vtanh.pop %v634
      %v833 = vtanh.pop %v639
      %v834 = vtanh.pop %v642
      %v835 = vtanh.pop %v647
      %v836 = vtanh.pop %v650
      %v837 = vtanh.pop %v655
      %v838 = vtanh.pop %v658
      %v839 = vtanh.pop %v663
      %v840 = vtanh.pop %v666
      %v841 = vtanh.pop %v671
      %v842 = vtanh.pop %v674
      %v843 = vtanh.pop %v679
      %v844 = vtanh.pop %v682
      %v845 = vtanh.pop %v687
      %v846 = vtanh.pop %v690
      %v847 = vtanh.pop %v695
      %v848 = vtanh.pop %v698
      %v849 = vtanh.pop %v703
      %v850 = vtanh.pop %v706
      %v851 = vtanh.pop %v711
      %v852 = vtanh.pop %v714
      %v853 = vtanh.pop %v719
      %v854 = vtanh.pop %v722
      %v855 = vtanh.pop %v727
      %v856 = vtanh.pop %v730
      %v857 = vtanh.pop %v735
      %v858 = vtanh.pop %v738
      %v859 = vtanh.pop %v743
      %v860 = vtanh.pop %v746
      %v861 = vtanh.pop %v751
      %v862 = vtanh.pop %v754
      %v863 = vtanh.pop %v759
      %v864 = vtanh.pop %v762
      %v865 = vtanh.pop %v767
      %v866 = vtanh.pop %v770
      %v867 = vtanh.pop %v775
      %v868 = vtanh.pop %v778
      %v869 = vtanh.pop %v783
      %v870 = vtanh.pop %v786
      %v871 = vtanh.pop %v791
      %v872 = vtanh.pop %v794
      %v873 = vtanh.pop %v799
      %v874 = vtanh.pop %v802
      %v875 = vtanh.pop %v807
      %v876 = vtanh.pop %v810
      %877 = vst [vmem:[%s201] sm:$0xff] %v813
      %878 = vst [vmem:[%s201 + $0x8] sm:$0xff] %v814
      %879 = vst [vmem:[%s201 + $0x10] sm:$0xff] %v815
      %880 = vst [vmem:[%s201 + $0x18] sm:$0xff] %v816
      %881 = vst [vmem:[%s201 + $0x20] sm:$0xff] %v817
      %882 = vst [vmem:[%s201 + $0x28] sm:$0xff] %v818
      %883 = vst [vmem:[%s201 + $0x30] sm:$0xff] %v819
      %884 = vst [vmem:[%s201 + $0x38] sm:$0xff] %v820
      %885 = vst [vmem:[%s201 + $0x40] sm:$0xff] %v821
      %886 = vst [vmem:[%s201 + $0x48] sm:$0xff] %v822
      %887 = vst [vmem:[%s201 + $0x50] sm:$0xff] %v823
      %888 = vst [vmem:[%s201 + $0x58] sm:$0xff] %v824
      %889 = vst [vmem:[%s201 + $0x60] sm:$0xff] %v825
      %890 = vst [vmem:[%s201 + $0x68] sm:$0xff] %v826
      %891 = vst [vmem:[%s201 + $0x70] sm:$0xff] %v827
      %892 = vst [vmem:[%s201 + $0x78] sm:$0xff] %v828
      %893 = vst [vmem:[%s201 + $0x80] sm:$0xff] %v829
      %894 = vst [vmem:[%s201 + $0x88] sm:$0xff] %v830
      %895 = vst [vmem:[%s201 + $0x90] sm:$0xff] %v831
      %896 = vst [vmem:[%s201 + $0x98] sm:$0xff] %v832
      %897 = vst [vmem:[%s201 + $0xa0] sm:$0xff] %v833
      %898 = vst [vmem:[%s201 + $0xa8] sm:$0xff] %v834
      %899 = vst [vmem:[%s201 + $0xb0] sm:$0xff] %v835
      %900 = vst [vmem:[%s201 + $0xb8] sm:$0xff] %v836
      %901 = vst [vmem:[%s201 + $0xc0] sm:$0xff] %v837
      %902 = vst [vmem:[%s201 + $0xc8] sm:$0xff] %v838
      %903 = vst [vmem:[%s201 + $0xd0] sm:$0xff] %v839
      %904 = vst [vmem:[%s201 + $0xd8] sm:$0xff] %v840
      %905 = vst [vmem:[%s201 + $0xe0] sm:$0xff] %v841
      %906 = vst [vmem:[%s201 + $0xe8] sm:$0xff] %v842
      %907 = vst [vmem:[%s201 + $0xf0] sm:$0xff] %v843
      %908 = vst [vmem:[%s201 + $0xf8] sm:$0xff] %v844
      %909 = vst [vmem:[%s201 + $0x100] sm:$0xff] %v845
      %910 = vst [vmem:[%s201 + $0x108] sm:$0xff] %v846
      %911 = vst [vmem:[%s201 + $0x110] sm:$0xff] %v847
      %912 = vst [vmem:[%s201 + $0x118] sm:$0xff] %v848
      %913 = vst [vmem:[%s201 + $0x120] sm:$0xff] %v849
      %914 = vst [vmem:[%s201 + $0x128] sm:$0xff] %v850
      %915 = vst [vmem:[%s201 + $0x130] sm:$0xff] %v851
      %916 = vst [vmem:[%s201 + $0x138] sm:$0xff] %v852
      %917 = vst [vmem:[%s201 + $0x140] sm:$0xff] %v853
      %918 = vst [vmem:[%s201 + $0x148] sm:$0xff] %v854
      %919 = vst [vmem:[%s201 + $0x150] sm:$0xff] %v855
      %920 = vst [vmem:[%s201 + $0x158] sm:$0xff] %v856
      %921 = vst [vmem:[%s201 + $0x160] sm:$0xff] %v857
      %922 = vst [vmem:[%s201 + $0x168] sm:$0xff] %v858
      %923 = vst [vmem:[%s201 + $0x170] sm:$0xff] %v859
      %924 = vst [vmem:[%s201 + $0x178] sm:$0xff] %v860
      %925 = vst [vmem:[%s201 + $0x180] sm:$0xff] %v861
      %926 = vst [vmem:[%s201 + $0x188] sm:$0xff] %v862
      %927 = vst [vmem:[%s201 + $0x190] sm:$0xff] %v863
      %928 = vst [vmem:[%s201 + $0x198] sm:$0xff] %v864
      %929 = vst [vmem:[%s201 + $0x1a0] sm:$0xff] %v865
      %930 = vst [vmem:[%s201 + $0x1a8] sm:$0xff] %v866
      %931 = vst [vmem:[%s201 + $0x1b0] sm:$0xff] %v867
      %932 = vst [vmem:[%s201 + $0x1b8] sm:$0xff] %v868
      %933 = vst [vmem:[%s201 + $0x1c0] sm:$0xff] %v869
      %934 = vst [vmem:[%s201 + $0x1c8] sm:$0xff] %v870
      %935 = vst [vmem:[%s201 + $0x1d0] sm:$0xff] %v871
      %936 = vst [vmem:[%s201 + $0x1d8] sm:$0xff] %v872
      %937 = vst [vmem:[%s201 + $0x1e0] sm:$0xff] %v873
      %938 = vst [vmem:[%s201 + $0x1e8] sm:$0xff] %v874
      %939 = vst [vmem:[%s201 + $0x1f0] sm:$0xff] %v875
      %940 = vst [vmem:[%s201 + $0x1f8] sm:$0xff] %v876
      %s941 = smul.u32 64, %s18
      %p942 = scmp.lt.s32.totalorder %s17, 3
      %s943 = scalar_select %p942, %s17, 3
      %p944 = scmp.lt.s32.totalorder %s941, 255
      %s945 = scalar_select %p944, %s941, 255
      %s946 = smul.addr %s943, 256
      %s947 = sadd.s32 %s945, %s946
      %s948 = smul.addr %s947, 8
      %s949 = scalar_lea.vmem %s2, %s948
      // Predicated region
      $region29: #{generator_forward.17} parent=27 // pred_check
        %p950 = pneg %p99
      $region30: #{generator_forward.17} parent=27 // pred_check_branch
        %952 = sbr.rel (%p950) target = $region32
      $region31: #{generator_forward.17} parent=27 // pred_region
        %s953 = smul.u32 64, %s18
      $region32: #{generator_forward.17} parent=27 // pred_fallthru
        _
    $region28: #{generator_forward.17} parent=5 // pred_fallthru
      _
    %p954 = scmp.le.s32.totalorder 2, %s8
    // Predicated region
    $region33: #{generator_forward.17} parent=5 // pred_check
      %p955 = pneg %p954
    $region34: #{generator_forward.17} parent=5 // pred_check_branch
      %957 = sbr.rel (%p955) target = $region36
    $region35: #{generator_forward.17} parent=5 // pred_region
      %s958 = ssub.s32 %s8, 2
      // Predicated region
      $region37: #{generator_forward.17} parent=35 // pred_check
        %p959 = pneg %p105
      $region38: #{generator_forward.17} parent=35 // pred_check_branch
        %961 = sbr.rel (%p959) target = $region40
      $region39: #{generator_forward.17} parent=35 // pred_region
        %s962 = smul.u32 64, %s20
        %p963 = scmp.lt.s32.totalorder %s19, 3
        %s964 = scalar_select %p963, %s19, 3
        %p965 = scmp.lt.s32.totalorder %s962, 255
        %s966 = scalar_select %p965, %s962, 255
        %s967 = smul.addr %s964, 256
        %s968 = sadd.s32 %s966, %s967
        %s969 = smul.addr %s968, 8
        %s970 = scalar_lea.vmem %s2, %s969
      $region40: #{generator_forward.17} parent=35 // pred_fallthru
        _
    $region36: #{generator_forward.17} parent=5 // pred_fallthru
      _
  $region6: #{generator_forward.17} parent=0 // loop_footer
    %s12 = sadd.s32 1, %s8
  $region7: #{generator_forward.17} parent=0 // loop_footer_branch
    %7 = sbr.rel target = $region3
  $region8: #{generator_forward.17} parent=0 // loop_exit
    _

</llo_original>
